<compile_context>
chip_gen: v6e
topology: v6e:2x2x1
jax: 0.10.0
libtpu: 0.0.40
codegen_flags: <defaults>
</compile_context>

<pallas_src>
import functools

import jax
import jax.numpy as jnp
from jax.experimental import pallas as pl
from jax.experimental.pallas import tpu as pltpu

BN_EPS = 1e-5
HIDDEN = 64


# ---------------------------------------------------------------------------
# Fused forward kernel.
#   p1:   [32*2*B, 24]  conv1 patches, rows ordered (w, h, b), cols (kh, kw)
#   w1t:  [24, 8]        w2r: [17*8, 16]   w3r: [9*16, 32]
#   g*/be*: [1, C]       BatchNorm affine params (training-mode batch stats)
#   wih:  [512, 256]     rows ordered (w, h, c), gate cols ordered (i, f, o, g)
#   whh:  [64, 256]      bl: [1, 256]      (gate cols reordered the same way)
#   wf1:  [64, 32]  bf1: [1, 32]  wf2: [32, 3]  bf2: [1, 3]
#   out:  [B, 3]
# ---------------------------------------------------------------------------
def _classifier_kernel(p1_ref, w1_ref, g1_ref, be1_ref,
                       w2_ref, g2_ref, be2_ref,
                       w3_ref, g3_ref, be3_ref,
                       wih_ref, whh_ref, bl_ref,
                       wf1_ref, bf1_ref, wf2_ref, bf2_ref,
                       o_ref, *, B):
    BH = 2 * B                      # rows per w position: (h, b)
    HD = HIDDEN

    def bn_relu(z, g, be):
        # One-pass batch stats (biased var), gamma*rsqrt folded into one scale.
        inv_n = 1.0 / z.shape[0]
        mu = jnp.sum(z, axis=0, keepdims=True) * inv_n
        ez2 = jnp.sum(z * z, axis=0, keepdims=True) * inv_n
        var = jnp.maximum(ez2 - mu * mu, 0.0)
        scale = g * jax.lax.rsqrt(var + BN_EPS)
        shift = be - mu * scale
        return jnp.maximum(z * scale + shift, 0.0)

    # ---- conv1 (12x2, stride 12x2) as one patch matmul (bias cancels in BN)
    a1 = bn_relu(
        jnp.dot(p1_ref[...], w1_ref[...], preferred_element_type=jnp.float32),
        g1_ref[...], be1_ref[...])                       # [32*BH, 8], rows (w,h,b)

    # ---- conv2 (1x17) as 17 shifted matmuls, accumulated -------------------
    z2 = jnp.dot(a1[0:16 * BH, :], w2_ref[0:8, :],
                 preferred_element_type=jnp.float32)
    for kw in range(1, 17):
        z2 = z2 + jnp.dot(a1[kw * BH:(kw + 16) * BH, :],
                          w2_ref[kw * 8:(kw + 1) * 8, :],
                          preferred_element_type=jnp.float32)
    a2 = bn_relu(z2, g2_ref[...], be2_ref[...])          # [16*BH, 16], rows (w,h,b)

    # ---- conv3 (1x9) as 9 shifted matmuls, accumulated ---------------------
    z3 = jnp.dot(a2[0:8 * BH, :], w3_ref[0:16, :],
                 preferred_element_type=jnp.float32)
    for kw in range(1, 9):
        z3 = z3 + jnp.dot(a2[kw * BH:(kw + 8) * BH, :],
                          w3_ref[kw * 16:(kw + 1) * 16, :],
                          preferred_element_type=jnp.float32)
    a3 = bn_relu(z3, g3_ref[...], be3_ref[...])          # [8*BH, 32], rows (w,h,b)

    # ---- LSTM input projection, hoisted out of the recurrence --------------
    # gates_x[b,:] = flat[b,:] @ W_ih^T + (b_ih+b_hh), computed as 16 blocked
    # matmuls straight from a3 (wih rows were pre-permuted to (w, h, c) order).
    gates_x = jnp.dot(a3[0:B, :], wih_ref[0:32, :],
                      preferred_element_type=jnp.float32)
    for j in range(1, 16):                               # j = w*2 + h
        gates_x = gates_x + jnp.dot(a3[j * B:(j + 1) * B, :],
                                    wih_ref[j * 32:(j + 1) * 32, :],
                                    preferred_element_type=jnp.float32)
    gates_x = gates_x + bl_ref[...]                      # [B, 256]

    # ---- LSTM recurrence (PyTorch LSTM on 2-D input: batch axis == time) ---
    whh = whh_ref[...]
    h = jnp.zeros((1, HD), jnp.float32)
    c = jnp.zeros((1, HD), jnp.float32)
    hs = []
    for t in range(B):
        g = gates_x[t:t + 1, :] + jnp.dot(h, whh,
                                          preferred_element_type=jnp.float32)
        sig = jax.nn.sigmoid(g[:, 0:3 * HD])             # (i, f, o) in one slab
        gg = jnp.tanh(g[:, 3 * HD:4 * HD])               # g gate
        c = sig[:, HD:2 * HD] * c + sig[:, 0:HD] * gg
        h = sig[:, 2 * HD:3 * HD] * jnp.tanh(c)
        hs.append(h)
    hseq = jnp.concatenate(hs, axis=0)                   # [B, 64]

    # ---- fc1 + ReLU, fc2, softmax ------------------------------------------
    z = jnp.maximum(
        jnp.dot(hseq, wf1_ref[...], preferred_element_type=jnp.float32)
        + bf1_ref[...], 0.0)
    z = jnp.dot(z, wf2_ref[...], preferred_element_type=jnp.float32) + bf2_ref[...]
    z = z - jnp.max(z, axis=-1, keepdims=True)
    e = jnp.exp(z)
    o_ref[...] = e / jnp.sum(e, axis=-1, keepdims=True)


# ---------------------------------------------------------------------------
# Wrapper: only the conv1 im2col of the raw input happens outside the kernel.
# ---------------------------------------------------------------------------
def classifier_forward(x, kp):
    x = x.reshape(-1, 1, 30, 64).astype(jnp.float32)
    B = x.shape[0]
    # conv1 patches, rows ordered (w, h, b) so the in-kernel 1xK conv windows
    # are contiguous row slices; rows 24..29 of H are unused (stride 12).
    p1 = (x[:, 0, :24, :]
          .reshape(B, 2, 12, 32, 2)      # (b, h, kh, w, kw)
          .transpose(3, 1, 0, 2, 4)      # (w, h, b, kh, kw)
          .reshape(32 * 2 * B, 24))

    vmem = pl.BlockSpec(memory_space=pltpu.MemorySpace.VMEM)
    return pl.pallas_call(
        functools.partial(_classifier_kernel, B=B),
        out_shape=jax.ShapeDtypeStruct((B, 3), jnp.float32),
        in_specs=[vmem] * 17,
        out_specs=vmem,
    )(p1, kp['w1t'], kp['g1'], kp['be1'],
      kp['w2r'], kp['g2'], kp['be2'],
      kp['w3r'], kp['g3'], kp['be3'],
      kp['wih'], kp['whh'], kp['bl'],
      kp['wf1'], kp['bf1'], kp['wf2'], kp['bf2'])


# ---------------------------------------------------------------------------
# Deterministic synthetic parameters in PyTorch layout + kernel-layout prep.
# ---------------------------------------------------------------------------
def init_params(key):
    ks = jax.random.split(key, 14)

    def u(k, shape, scale=0.1):
        return jax.random.uniform(k, shape, jnp.float32, -1.0, 1.0) * scale

    return {
        'conv1_w': u(ks[0], (8, 1, 12, 2)),   'conv1_b': u(ks[1], (8,)),
        'bn1_g': jnp.ones((8,), jnp.float32), 'bn1_b': jnp.zeros((8,), jnp.float32),
        'conv2_w': u(ks[2], (16, 8, 1, 17)),  'conv2_b': u(ks[3], (16,)),
        'bn2_g': jnp.ones((16,), jnp.float32), 'bn2_b': jnp.zeros((16,), jnp.float32),
        'conv3_w': u(ks[4], (32, 16, 1, 9)),  'conv3_b': u(ks[5], (32,)),
        'bn3_g': jnp.ones((32,), jnp.float32), 'bn3_b': jnp.zeros((32,), jnp.float32),
        'w_ih': u(ks[6], (4 * HIDDEN, 512)),  'w_hh': u(ks[7], (4 * HIDDEN, HIDDEN)),
        'b_ih': u(ks[8], (4 * HIDDEN,)),      'b_hh': u(ks[9], (4 * HIDDEN,)),
        'fc1_w': u(ks[10], (32, 64)),         'fc1_b': u(ks[11], (32,)),
        'fc2_w': u(ks[12], (3, 32)),          'fc2_b': u(ks[13], (3,)),
    }


def prepare_params(raw):
    HD = HIDDEN
    # LSTM gate reorder (i, f, g, o) -> (i, f, o, g): sigmoid gates contiguous.
    gate_perm = jnp.concatenate([jnp.arange(0, 2 * HD),
                                 jnp.arange(3 * HD, 4 * HD),
                                 jnp.arange(2 * HD, 3 * HD)])
    # W_ih^T rows reordered from PyTorch flatten (c, h, w) to kernel (w, h, c).
    wih_t = raw['w_ih'].T                                  # [512, 256]
    wih_perm = (wih_t.reshape(32, 2, 8, 4 * HD)            # (c, h, w, gate)
                .transpose(2, 1, 0, 3)                     # (w, h, c, gate)
                .reshape(512, 4 * HD))[:, gate_perm]
    # Conv biases are dropped: per-channel bias before training-mode BatchNorm
    # cancels exactly in the mean subtraction.
    return {
        'w1t': raw['conv1_w'].reshape(8, 24).T,                                 # [24, 8]
        'g1': raw['bn1_g'].reshape(1, 8),  'be1': raw['bn1_b'].reshape(1, 8),
        'w2r': raw['conv2_w'][:, :, 0, :].transpose(2, 1, 0).reshape(136, 16),  # [17*8, 16]
        'g2': raw['bn2_g'].reshape(1, 16), 'be2': raw['bn2_b'].reshape(1, 16),
        'w3r': raw['conv3_w'][:, :, 0, :].transpose(2, 1, 0).reshape(144, 32),  # [9*16, 32]
        'g3': raw['bn3_g'].reshape(1, 32), 'be3': raw['bn3_b'].reshape(1, 32),
        'wih': wih_perm,                                                        # [512, 256]
        'whh': raw['w_hh'].T[:, gate_perm],                                     # [64, 256]
        'bl': (raw['b_ih'] + raw['b_hh'])[gate_perm].reshape(1, 4 * HD),
        'wf1': raw['fc1_w'].T, 'bf1': raw['fc1_b'].reshape(1, 32),
        'wf2': raw['fc2_w'].T, 'bf2': raw['fc2_b'].reshape(1, 3),
    }


# ---------------------------------------------------------------------------
# Plain-JAX reference (PyTorch semantics, training-mode BatchNorm).
# ---------------------------------------------------------------------------
def classifier_reference(x, raw):
    x = x.reshape(-1, 1, 30, 64).astype(jnp.float32)
    B = x.shape[0]

    def conv(inp, w, b, stride):
        y = jax.lax.conv_general_dilated(
            inp, w, window_strides=stride, padding='VALID',
            dimension_numbers=('NCHW', 'OIHW', 'NCHW'))
        return y + b.reshape(1, -1, 1, 1)

    def bn_relu(z, g, be):
        mu = jnp.mean(z, axis=(0, 2, 3), keepdims=True)
        var = jnp.mean((z - mu) ** 2, axis=(0, 2, 3), keepdims=True)
        y = (g.reshape(1, -1, 1, 1) * (z - mu) * jax.lax.rsqrt(var + BN_EPS)
             + be.reshape(1, -1, 1, 1))
        return jnp.maximum(y, 0.0)

    a = bn_relu(conv(x, raw['conv1_w'], raw['conv1_b'], (12, 2)),
                raw['bn1_g'], raw['bn1_b'])
    a = bn_relu(conv(a, raw['conv2_w'], raw['conv2_b'], (1, 1)),
                raw['bn2_g'], raw['bn2_b'])
    a = bn_relu(conv(a, raw['conv3_w'], raw['conv3_b'], (1, 1)),
                raw['bn3_g'], raw['bn3_b'])
    flat = a.reshape(B, -1)

    HD = HIDDEN
    bias = raw['b_ih'] + raw['b_hh']
    h = jnp.zeros((HD,), jnp.float32)
    c = jnp.zeros((HD,), jnp.float32)
    hs = []
    for t in range(B):           # batch axis acts as the time axis (2-D input)
        g = flat[t] @ raw['w_ih'].T + h @ raw['w_hh'].T + bias
        i_g = jax.nn.sigmoid(g[0:HD])
        f_g = jax.nn.sigmoid(g[HD:2 * HD])
        g_g = jnp.tanh(g[2 * HD:3 * HD])
        o_g = jax.nn.sigmoid(g[3 * HD:4 * HD])
        c = f_g * c + i_g * g_g
        h = o_g * jnp.tanh(c)
        hs.append(h)
    hseq = jnp.stack(hs, axis=0)
    z = jnp.maximum(hseq @ raw['fc1_w'].T + raw['fc1_b'], 0.0)
    z = z @ raw['fc2_w'].T + raw['fc2_b']
    return jax.nn.softmax(z, axis=-1)


if __name__ == "__main__":
    B = 4
    x = jax.random.normal(jax.random.PRNGKey(0), (B, 1, 30, 64), jnp.float32)
    raw = init_params(jax.random.PRNGKey(42))
    kp = prepare_params(raw)

    out = jax.jit(classifier_forward)(x, kp)
    out = jax.block_until_ready(out)

    assert out.shape == (B, 3)
    assert bool(jnp.all(jnp.isfinite(out)))
    assert bool(jnp.allclose(jnp.sum(out, axis=-1), 1.0, atol=1e-5))

    ref = jax.block_until_ready(jax.jit(classifier_reference)(x, raw))
    assert bool(jnp.allclose(out, ref, atol=1e-2)), \
        f"max |diff| = {float(jnp.max(jnp.abs(out - ref)))}"

    print("KERNEL_OK")
</pallas_src>

<mosaic_0001>
module attributes {stable_mosaic.version = 11 : i64} {
  func.func @_classifier_kernel(%arg0: memref<256x24xf32, #tpu.memory_space<vmem>>, %arg1: memref<24x8xf32, #tpu.memory_space<vmem>>, %arg2: memref<1x8xf32, #tpu.memory_space<vmem>>, %arg3: memref<1x8xf32, #tpu.memory_space<vmem>>, %arg4: memref<136x16xf32, #tpu.memory_space<vmem>>, %arg5: memref<1x16xf32, #tpu.memory_space<vmem>>, %arg6: memref<1x16xf32, #tpu.memory_space<vmem>>, %arg7: memref<144x32xf32, #tpu.memory_space<vmem>>, %arg8: memref<1x32xf32, #tpu.memory_space<vmem>>, %arg9: memref<1x32xf32, #tpu.memory_space<vmem>>, %arg10: memref<512x256xf32, #tpu.memory_space<vmem>>, %arg11: memref<64x256xf32, #tpu.memory_space<vmem>>, %arg12: memref<1x256xf32, #tpu.memory_space<vmem>>, %arg13: memref<64x32xf32, #tpu.memory_space<vmem>>, %arg14: memref<1x32xf32, #tpu.memory_space<vmem>>, %arg15: memref<32x3xf32, #tpu.memory_space<vmem>>, %arg16: memref<1x3xf32, #tpu.memory_space<vmem>>, %arg17: memref<4x3xf32, #tpu.memory_space<vmem>>) attributes {dimension_semantics = [], scalar_prefetch = 0 : i64, scratch_operands = 0 : i64, tpu.core_type = #tpu.core_type<tc>} {
    %c0 = arith.constant 0 : index
    %c0_0 = arith.constant 0 : index
    %0 = vector.load %arg0[%c0, %c0_0] : memref<256x24xf32, #tpu.memory_space<vmem>>, vector<256x24xf32>
    %c0_1 = arith.constant 0 : index
    %c0_2 = arith.constant 0 : index
    %1 = vector.load %arg1[%c0_1, %c0_2] : memref<24x8xf32, #tpu.memory_space<vmem>>, vector<24x8xf32>
    %cst = arith.constant dense<0.000000e+00> : vector<256x8xf32>
    %2 = tpu.matmul %0, %1, %cst {dimension_numbers = #tpu.dot_dimension_numbers<[1], [0], [0], [1], [0, 0, 1, 1], [], []>} : vector<256x24xf32>, vector<24x8xf32>, vector<256x8xf32> -> vector<256x8xf32>
    %c0_3 = arith.constant 0 : index
    %c0_4 = arith.constant 0 : index
    %3 = vector.load %arg2[%c0_3, %c0_4] : memref<1x8xf32, #tpu.memory_space<vmem>>, vector<1x8xf32>
    %c0_5 = arith.constant 0 : index
    %c0_6 = arith.constant 0 : index
    %4 = vector.load %arg3[%c0_5, %c0_6] : memref<1x8xf32, #tpu.memory_space<vmem>>, vector<1x8xf32>
    %cst_7 = arith.constant dense<0.000000e+00> : vector<8xf32>
    %5 = vector.multi_reduction <add>, %2, %cst_7 [0] : vector<256x8xf32> to vector<8xf32>
    %6 = vector.shape_cast %5 : vector<8xf32> to vector<1x8xf32>
    %cst_8 = arith.constant 3.906250e-03 : f32
    %7 = vector.broadcast %cst_8 : f32 to vector<1x8xf32>
    %8 = arith.mulf %6, %7 : vector<1x8xf32>
    %9 = arith.mulf %2, %2 : vector<256x8xf32>
    %cst_9 = arith.constant dense<0.000000e+00> : vector<8xf32>
    %10 = vector.multi_reduction <add>, %9, %cst_9 [0] : vector<256x8xf32> to vector<8xf32>
    %11 = vector.shape_cast %10 : vector<8xf32> to vector<1x8xf32>
    %cst_10 = arith.constant 3.906250e-03 : f32
    %12 = vector.broadcast %cst_10 : f32 to vector<1x8xf32>
    %13 = arith.mulf %11, %12 : vector<1x8xf32>
    %14 = arith.mulf %8, %8 : vector<1x8xf32>
    %15 = arith.subf %13, %14 : vector<1x8xf32>
    %cst_11 = arith.constant 0.000000e+00 : f32
    %16 = vector.broadcast %cst_11 : f32 to vector<1x8xf32>
    %17 = arith.maximumf %15, %16 : vector<1x8xf32>
    %cst_12 = arith.constant 9.99999974E-6 : f32
    %18 = vector.broadcast %cst_12 : f32 to vector<1x8xf32>
    %19 = arith.addf %17, %18 : vector<1x8xf32>
    %20 = math.rsqrt %19 : vector<1x8xf32>
    %21 = arith.mulf %3, %20 : vector<1x8xf32>
    %22 = arith.mulf %8, %21 : vector<1x8xf32>
    %23 = arith.subf %4, %22 : vector<1x8xf32>
    %24 = vector.broadcast %21 : vector<1x8xf32> to vector<256x8xf32>
    %25 = arith.mulf %2, %24 : vector<256x8xf32>
    %26 = vector.broadcast %23 : vector<1x8xf32> to vector<256x8xf32>
    %27 = arith.addf %25, %26 : vector<256x8xf32>
    %cst_13 = arith.constant 0.000000e+00 : f32
    %28 = vector.broadcast %cst_13 : f32 to vector<256x8xf32>
    %29 = arith.maximumf %27, %28 : vector<256x8xf32>
    %30 = vector.extract_strided_slice %29 {offsets = [0, 0], sizes = [128, 8], strides = [1, 1]} : vector<256x8xf32> to vector<128x8xf32>
    %c0_14 = arith.constant 0 : index
    %c0_15 = arith.constant 0 : index
    %31 = vector.load %arg4[%c0_14, %c0_15] : memref<136x16xf32, #tpu.memory_space<vmem>>, vector<8x16xf32>
    %cst_16 = arith.constant dense<0.000000e+00> : vector<128x16xf32>
    %32 = tpu.matmul %30, %31, %cst_16 {dimension_numbers = #tpu.dot_dimension_numbers<[1], [0], [0], [1], [0, 0, 1, 1], [], []>} : vector<128x8xf32>, vector<8x16xf32>, vector<128x16xf32> -> vector<128x16xf32>
    %33 = vector.extract_strided_slice %29 {offsets = [8, 0], sizes = [128, 8], strides = [1, 1]} : vector<256x8xf32> to vector<128x8xf32>
    %c8 = arith.constant 8 : index
    %c0_17 = arith.constant 0 : index
    %34 = vector.load %arg4[%c8, %c0_17] : memref<136x16xf32, #tpu.memory_space<vmem>>, vector<8x16xf32>
    %cst_18 = arith.constant dense<0.000000e+00> : vector<128x16xf32>
    %35 = tpu.matmul %33, %34, %cst_18 {dimension_numbers = #tpu.dot_dimension_numbers<[1], [0], [0], [1], [0, 0, 1, 1], [], []>} : vector<128x8xf32>, vector<8x16xf32>, vector<128x16xf32> -> vector<128x16xf32>
    %36 = arith.addf %32, %35 : vector<128x16xf32>
    %37 = vector.extract_strided_slice %29 {offsets = [16, 0], sizes = [128, 8], strides = [1, 1]} : vector<256x8xf32> to vector<128x8xf32>
    %c16 = arith.constant 16 : index
    %c0_19 = arith.constant 0 : index
    %38 = vector.load %arg4[%c16, %c0_19] : memref<136x16xf32, #tpu.memory_space<vmem>>, vector<8x16xf32>
    %cst_20 = arith.constant dense<0.000000e+00> : vector<128x16xf32>
    %39 = tpu.matmul %37, %38, %cst_20 {dimension_numbers = #tpu.dot_dimension_numbers<[1], [0], [0], [1], [0, 0, 1, 1], [], []>} : vector<128x8xf32>, vector<8x16xf32>, vector<128x16xf32> -> vector<128x16xf32>
    %40 = arith.addf %36, %39 : vector<128x16xf32>
    %41 = vector.extract_strided_slice %29 {offsets = [24, 0], sizes = [128, 8], strides = [1, 1]} : vector<256x8xf32> to vector<128x8xf32>
    %c24 = arith.constant 24 : index
    %c0_21 = arith.constant 0 : index
    %42 = vector.load %arg4[%c24, %c0_21] : memref<136x16xf32, #tpu.memory_space<vmem>>, vector<8x16xf32>
    %cst_22 = arith.constant dense<0.000000e+00> : vector<128x16xf32>
    %43 = tpu.matmul %41, %42, %cst_22 {dimension_numbers = #tpu.dot_dimension_numbers<[1], [0], [0], [1], [0, 0, 1, 1], [], []>} : vector<128x8xf32>, vector<8x16xf32>, vector<128x16xf32> -> vector<128x16xf32>
    %44 = arith.addf %40, %43 : vector<128x16xf32>
    %45 = vector.extract_strided_slice %29 {offsets = [32, 0], sizes = [128, 8], strides = [1, 1]} : vector<256x8xf32> to vector<128x8xf32>
    %c32 = arith.constant 32 : index
    %c0_23 = arith.constant 0 : index
    %46 = vector.load %arg4[%c32, %c0_23] : memref<136x16xf32, #tpu.memory_space<vmem>>, vector<8x16xf32>
    %cst_24 = arith.constant dense<0.000000e+00> : vector<128x16xf32>
    %47 = tpu.matmul %45, %46, %cst_24 {dimension_numbers = #tpu.dot_dimension_numbers<[1], [0], [0], [1], [0, 0, 1, 1], [], []>} : vector<128x8xf32>, vector<8x16xf32>, vector<128x16xf32> -> vector<128x16xf32>
    %48 = arith.addf %44, %47 : vector<128x16xf32>
    %49 = vector.extract_strided_slice %29 {offsets = [40, 0], sizes = [128, 8], strides = [1, 1]} : vector<256x8xf32> to vector<128x8xf32>
    %c40 = arith.constant 40 : index
    %c0_25 = arith.constant 0 : index
    %50 = vector.load %arg4[%c40, %c0_25] : memref<136x16xf32, #tpu.memory_space<vmem>>, vector<8x16xf32>
    %cst_26 = arith.constant dense<0.000000e+00> : vector<128x16xf32>
    %51 = tpu.matmul %49, %50, %cst_26 {dimension_numbers = #tpu.dot_dimension_numbers<[1], [0], [0], [1], [0, 0, 1, 1], [], []>} : vector<128x8xf32>, vector<8x16xf32>, vector<128x16xf32> -> vector<128x16xf32>
    %52 = arith.addf %48, %51 : vector<128x16xf32>
    %53 = vector.extract_strided_slice %29 {offsets = [48, 0], sizes = [128, 8], strides = [1, 1]} : vector<256x8xf32> to vector<128x8xf32>
    %c48 = arith.constant 48 : index
    %c0_27 = arith.constant 0 : index
    %54 = vector.load %arg4[%c48, %c0_27] : memref<136x16xf32, #tpu.memory_space<vmem>>, vector<8x16xf32>
    %cst_28 = arith.constant dense<0.000000e+00> : vector<128x16xf32>
    %55 = tpu.matmul %53, %54, %cst_28 {dimension_numbers = #tpu.dot_dimension_numbers<[1], [0], [0], [1], [0, 0, 1, 1], [], []>} : vector<128x8xf32>, vector<8x16xf32>, vector<128x16xf32> -> vector<128x16xf32>
    %56 = arith.addf %52, %55 : vector<128x16xf32>
    %57 = vector.extract_strided_slice %29 {offsets = [56, 0], sizes = [128, 8], strides = [1, 1]} : vector<256x8xf32> to vector<128x8xf32>
    %c56 = arith.constant 56 : index
    %c0_29 = arith.constant 0 : index
    %58 = vector.load %arg4[%c56, %c0_29] : memref<136x16xf32, #tpu.memory_space<vmem>>, vector<8x16xf32>
    %cst_30 = arith.constant dense<0.000000e+00> : vector<128x16xf32>
    %59 = tpu.matmul %57, %58, %cst_30 {dimension_numbers = #tpu.dot_dimension_numbers<[1], [0], [0], [1], [0, 0, 1, 1], [], []>} : vector<128x8xf32>, vector<8x16xf32>, vector<128x16xf32> -> vector<128x16xf32>
    %60 = arith.addf %56, %59 : vector<128x16xf32>
    %61 = vector.extract_strided_slice %29 {offsets = [64, 0], sizes = [128, 8], strides = [1, 1]} : vector<256x8xf32> to vector<128x8xf32>
    %c64 = arith.constant 64 : index
    %c0_31 = arith.constant 0 : index
    %62 = vector.load %arg4[%c64, %c0_31] : memref<136x16xf32, #tpu.memory_space<vmem>>, vector<8x16xf32>
    %cst_32 = arith.constant dense<0.000000e+00> : vector<128x16xf32>
    %63 = tpu.matmul %61, %62, %cst_32 {dimension_numbers = #tpu.dot_dimension_numbers<[1], [0], [0], [1], [0, 0, 1, 1], [], []>} : vector<128x8xf32>, vector<8x16xf32>, vector<128x16xf32> -> vector<128x16xf32>
    %64 = arith.addf %60, %63 : vector<128x16xf32>
    %65 = vector.extract_strided_slice %29 {offsets = [72, 0], sizes = [128, 8], strides = [1, 1]} : vector<256x8xf32> to vector<128x8xf32>
    %c72 = arith.constant 72 : index
    %c0_33 = arith.constant 0 : index
    %66 = vector.load %arg4[%c72, %c0_33] : memref<136x16xf32, #tpu.memory_space<vmem>>, vector<8x16xf32>
    %cst_34 = arith.constant dense<0.000000e+00> : vector<128x16xf32>
    %67 = tpu.matmul %65, %66, %cst_34 {dimension_numbers = #tpu.dot_dimension_numbers<[1], [0], [0], [1], [0, 0, 1, 1], [], []>} : vector<128x8xf32>, vector<8x16xf32>, vector<128x16xf32> -> vector<128x16xf32>
    %68 = arith.addf %64, %67 : vector<128x16xf32>
    %69 = vector.extract_strided_slice %29 {offsets = [80, 0], sizes = [128, 8], strides = [1, 1]} : vector<256x8xf32> to vector<128x8xf32>
    %c80 = arith.constant 80 : index
    %c0_35 = arith.constant 0 : index
    %70 = vector.load %arg4[%c80, %c0_35] : memref<136x16xf32, #tpu.memory_space<vmem>>, vector<8x16xf32>
    %cst_36 = arith.constant dense<0.000000e+00> : vector<128x16xf32>
    %71 = tpu.matmul %69, %70, %cst_36 {dimension_numbers = #tpu.dot_dimension_numbers<[1], [0], [0], [1], [0, 0, 1, 1], [], []>} : vector<128x8xf32>, vector<8x16xf32>, vector<128x16xf32> -> vector<128x16xf32>
    %72 = arith.addf %68, %71 : vector<128x16xf32>
    %73 = vector.extract_strided_slice %29 {offsets = [88, 0], sizes = [128, 8], strides = [1, 1]} : vector<256x8xf32> to vector<128x8xf32>
    %c88 = arith.constant 88 : index
    %c0_37 = arith.constant 0 : index
    %74 = vector.load %arg4[%c88, %c0_37] : memref<136x16xf32, #tpu.memory_space<vmem>>, vector<8x16xf32>
    %cst_38 = arith.constant dense<0.000000e+00> : vector<128x16xf32>
    %75 = tpu.matmul %73, %74, %cst_38 {dimension_numbers = #tpu.dot_dimension_numbers<[1], [0], [0], [1], [0, 0, 1, 1], [], []>} : vector<128x8xf32>, vector<8x16xf32>, vector<128x16xf32> -> vector<128x16xf32>
    %76 = arith.addf %72, %75 : vector<128x16xf32>
    %77 = vector.extract_strided_slice %29 {offsets = [96, 0], sizes = [128, 8], strides = [1, 1]} : vector<256x8xf32> to vector<128x8xf32>
    %c96 = arith.constant 96 : index
    %c0_39 = arith.constant 0 : index
    %78 = vector.load %arg4[%c96, %c0_39] : memref<136x16xf32, #tpu.memory_space<vmem>>, vector<8x16xf32>
    %cst_40 = arith.constant dense<0.000000e+00> : vector<128x16xf32>
    %79 = tpu.matmul %77, %78, %cst_40 {dimension_numbers = #tpu.dot_dimension_numbers<[1], [0], [0], [1], [0, 0, 1, 1], [], []>} : vector<128x8xf32>, vector<8x16xf32>, vector<128x16xf32> -> vector<128x16xf32>
    %80 = arith.addf %76, %79 : vector<128x16xf32>
    %81 = vector.extract_strided_slice %29 {offsets = [104, 0], sizes = [128, 8], strides = [1, 1]} : vector<256x8xf32> to vector<128x8xf32>
    %c104 = arith.constant 104 : index
    %c0_41 = arith.constant 0 : index
    %82 = vector.load %arg4[%c104, %c0_41] : memref<136x16xf32, #tpu.memory_space<vmem>>, vector<8x16xf32>
    %cst_42 = arith.constant dense<0.000000e+00> : vector<128x16xf32>
    %83 = tpu.matmul %81, %82, %cst_42 {dimension_numbers = #tpu.dot_dimension_numbers<[1], [0], [0], [1], [0, 0, 1, 1], [], []>} : vector<128x8xf32>, vector<8x16xf32>, vector<128x16xf32> -> vector<128x16xf32>
    %84 = arith.addf %80, %83 : vector<128x16xf32>
    %85 = vector.extract_strided_slice %29 {offsets = [112, 0], sizes = [128, 8], strides = [1, 1]} : vector<256x8xf32> to vector<128x8xf32>
    %c112 = arith.constant 112 : index
    %c0_43 = arith.constant 0 : index
    %86 = vector.load %arg4[%c112, %c0_43] : memref<136x16xf32, #tpu.memory_space<vmem>>, vector<8x16xf32>
    %cst_44 = arith.constant dense<0.000000e+00> : vector<128x16xf32>
    %87 = tpu.matmul %85, %86, %cst_44 {dimension_numbers = #tpu.dot_dimension_numbers<[1], [0], [0], [1], [0, 0, 1, 1], [], []>} : vector<128x8xf32>, vector<8x16xf32>, vector<128x16xf32> -> vector<128x16xf32>
    %88 = arith.addf %84, %87 : vector<128x16xf32>
    %89 = vector.extract_strided_slice %29 {offsets = [120, 0], sizes = [128, 8], strides = [1, 1]} : vector<256x8xf32> to vector<128x8xf32>
    %c120 = arith.constant 120 : index
    %c0_45 = arith.constant 0 : index
    %90 = vector.load %arg4[%c120, %c0_45] : memref<136x16xf32, #tpu.memory_space<vmem>>, vector<8x16xf32>
    %cst_46 = arith.constant dense<0.000000e+00> : vector<128x16xf32>
    %91 = tpu.matmul %89, %90, %cst_46 {dimension_numbers = #tpu.dot_dimension_numbers<[1], [0], [0], [1], [0, 0, 1, 1], [], []>} : vector<128x8xf32>, vector<8x16xf32>, vector<128x16xf32> -> vector<128x16xf32>
    %92 = arith.addf %88, %91 : vector<128x16xf32>
    %93 = vector.extract_strided_slice %29 {offsets = [128, 0], sizes = [128, 8], strides = [1, 1]} : vector<256x8xf32> to vector<128x8xf32>
    %c128 = arith.constant 128 : index
    %c0_47 = arith.constant 0 : index
    %94 = vector.load %arg4[%c128, %c0_47] : memref<136x16xf32, #tpu.memory_space<vmem>>, vector<8x16xf32>
    %cst_48 = arith.constant dense<0.000000e+00> : vector<128x16xf32>
    %95 = tpu.matmul %93, %94, %cst_48 {dimension_numbers = #tpu.dot_dimension_numbers<[1], [0], [0], [1], [0, 0, 1, 1], [], []>} : vector<128x8xf32>, vector<8x16xf32>, vector<128x16xf32> -> vector<128x16xf32>
    %96 = arith.addf %92, %95 : vector<128x16xf32>
    %c0_49 = arith.constant 0 : index
    %c0_50 = arith.constant 0 : index
    %97 = vector.load %arg5[%c0_49, %c0_50] : memref<1x16xf32, #tpu.memory_space<vmem>>, vector<1x16xf32>
    %c0_51 = arith.constant 0 : index
    %c0_52 = arith.constant 0 : index
    %98 = vector.load %arg6[%c0_51, %c0_52] : memref<1x16xf32, #tpu.memory_space<vmem>>, vector<1x16xf32>
    %cst_53 = arith.constant dense<0.000000e+00> : vector<16xf32>
    %99 = vector.multi_reduction <add>, %96, %cst_53 [0] : vector<128x16xf32> to vector<16xf32>
    %100 = vector.shape_cast %99 : vector<16xf32> to vector<1x16xf32>
    %cst_54 = arith.constant 7.812500e-03 : f32
    %101 = vector.broadcast %cst_54 : f32 to vector<1x16xf32>
    %102 = arith.mulf %100, %101 : vector<1x16xf32>
    %103 = arith.mulf %96, %96 : vector<128x16xf32>
    %cst_55 = arith.constant dense<0.000000e+00> : vector<16xf32>
    %104 = vector.multi_reduction <add>, %103, %cst_55 [0] : vector<128x16xf32> to vector<16xf32>
    %105 = vector.shape_cast %104 : vector<16xf32> to vector<1x16xf32>
    %cst_56 = arith.constant 7.812500e-03 : f32
    %106 = vector.broadcast %cst_56 : f32 to vector<1x16xf32>
    %107 = arith.mulf %105, %106 : vector<1x16xf32>
    %108 = arith.mulf %102, %102 : vector<1x16xf32>
    %109 = arith.subf %107, %108 : vector<1x16xf32>
    %cst_57 = arith.constant 0.000000e+00 : f32
    %110 = vector.broadcast %cst_57 : f32 to vector<1x16xf32>
    %111 = arith.maximumf %109, %110 : vector<1x16xf32>
    %cst_58 = arith.constant 9.99999974E-6 : f32
    %112 = vector.broadcast %cst_58 : f32 to vector<1x16xf32>
    %113 = arith.addf %111, %112 : vector<1x16xf32>
    %114 = math.rsqrt %113 : vector<1x16xf32>
    %115 = arith.mulf %97, %114 : vector<1x16xf32>
    %116 = arith.mulf %102, %115 : vector<1x16xf32>
    %117 = arith.subf %98, %116 : vector<1x16xf32>
    %118 = vector.broadcast %115 : vector<1x16xf32> to vector<128x16xf32>
    %119 = arith.mulf %96, %118 : vector<128x16xf32>
    %120 = vector.broadcast %117 : vector<1x16xf32> to vector<128x16xf32>
    %121 = arith.addf %119, %120 : vector<128x16xf32>
    %cst_59 = arith.constant 0.000000e+00 : f32
    %122 = vector.broadcast %cst_59 : f32 to vector<128x16xf32>
    %123 = arith.maximumf %121, %122 : vector<128x16xf32>
    %124 = vector.extract_strided_slice %123 {offsets = [0, 0], sizes = [64, 16], strides = [1, 1]} : vector<128x16xf32> to vector<64x16xf32>
    %c0_60 = arith.constant 0 : index
    %c0_61 = arith.constant 0 : index
    %125 = vector.load %arg7[%c0_60, %c0_61] : memref<144x32xf32, #tpu.memory_space<vmem>>, vector<16x32xf32>
    %cst_62 = arith.constant dense<0.000000e+00> : vector<64x32xf32>
    %126 = tpu.matmul %124, %125, %cst_62 {dimension_numbers = #tpu.dot_dimension_numbers<[1], [0], [0], [1], [0, 0, 1, 1], [], []>} : vector<64x16xf32>, vector<16x32xf32>, vector<64x32xf32> -> vector<64x32xf32>
    %127 = vector.extract_strided_slice %123 {offsets = [8, 0], sizes = [64, 16], strides = [1, 1]} : vector<128x16xf32> to vector<64x16xf32>
    %c16_63 = arith.constant 16 : index
    %c0_64 = arith.constant 0 : index
    %128 = vector.load %arg7[%c16_63, %c0_64] : memref<144x32xf32, #tpu.memory_space<vmem>>, vector<16x32xf32>
    %cst_65 = arith.constant dense<0.000000e+00> : vector<64x32xf32>
    %129 = tpu.matmul %127, %128, %cst_65 {dimension_numbers = #tpu.dot_dimension_numbers<[1], [0], [0], [1], [0, 0, 1, 1], [], []>} : vector<64x16xf32>, vector<16x32xf32>, vector<64x32xf32> -> vector<64x32xf32>
    %130 = arith.addf %126, %129 : vector<64x32xf32>
    %131 = vector.extract_strided_slice %123 {offsets = [16, 0], sizes = [64, 16], strides = [1, 1]} : vector<128x16xf32> to vector<64x16xf32>
    %c32_66 = arith.constant 32 : index
    %c0_67 = arith.constant 0 : index
    %132 = vector.load %arg7[%c32_66, %c0_67] : memref<144x32xf32, #tpu.memory_space<vmem>>, vector<16x32xf32>
    %cst_68 = arith.constant dense<0.000000e+00> : vector<64x32xf32>
    %133 = tpu.matmul %131, %132, %cst_68 {dimension_numbers = #tpu.dot_dimension_numbers<[1], [0], [0], [1], [0, 0, 1, 1], [], []>} : vector<64x16xf32>, vector<16x32xf32>, vector<64x32xf32> -> vector<64x32xf32>
    %134 = arith.addf %130, %133 : vector<64x32xf32>
    %135 = vector.extract_strided_slice %123 {offsets = [24, 0], sizes = [64, 16], strides = [1, 1]} : vector<128x16xf32> to vector<64x16xf32>
    %c48_69 = arith.constant 48 : index
    %c0_70 = arith.constant 0 : index
    %136 = vector.load %arg7[%c48_69, %c0_70] : memref<144x32xf32, #tpu.memory_space<vmem>>, vector<16x32xf32>
    %cst_71 = arith.constant dense<0.000000e+00> : vector<64x32xf32>
    %137 = tpu.matmul %135, %136, %cst_71 {dimension_numbers = #tpu.dot_dimension_numbers<[1], [0], [0], [1], [0, 0, 1, 1], [], []>} : vector<64x16xf32>, vector<16x32xf32>, vector<64x32xf32> -> vector<64x32xf32>
    %138 = arith.addf %134, %137 : vector<64x32xf32>
    %139 = vector.extract_strided_slice %123 {offsets = [32, 0], sizes = [64, 16], strides = [1, 1]} : vector<128x16xf32> to vector<64x16xf32>
    %c64_72 = arith.constant 64 : index
    %c0_73 = arith.constant 0 : index
    %140 = vector.load %arg7[%c64_72, %c0_73] : memref<144x32xf32, #tpu.memory_space<vmem>>, vector<16x32xf32>
    %cst_74 = arith.constant dense<0.000000e+00> : vector<64x32xf32>
    %141 = tpu.matmul %139, %140, %cst_74 {dimension_numbers = #tpu.dot_dimension_numbers<[1], [0], [0], [1], [0, 0, 1, 1], [], []>} : vector<64x16xf32>, vector<16x32xf32>, vector<64x32xf32> -> vector<64x32xf32>
    %142 = arith.addf %138, %141 : vector<64x32xf32>
    %143 = vector.extract_strided_slice %123 {offsets = [40, 0], sizes = [64, 16], strides = [1, 1]} : vector<128x16xf32> to vector<64x16xf32>
    %c80_75 = arith.constant 80 : index
    %c0_76 = arith.constant 0 : index
    %144 = vector.load %arg7[%c80_75, %c0_76] : memref<144x32xf32, #tpu.memory_space<vmem>>, vector<16x32xf32>
    %cst_77 = arith.constant dense<0.000000e+00> : vector<64x32xf32>
    %145 = tpu.matmul %143, %144, %cst_77 {dimension_numbers = #tpu.dot_dimension_numbers<[1], [0], [0], [1], [0, 0, 1, 1], [], []>} : vector<64x16xf32>, vector<16x32xf32>, vector<64x32xf32> -> vector<64x32xf32>
    %146 = arith.addf %142, %145 : vector<64x32xf32>
    %147 = vector.extract_strided_slice %123 {offsets = [48, 0], sizes = [64, 16], strides = [1, 1]} : vector<128x16xf32> to vector<64x16xf32>
    %c96_78 = arith.constant 96 : index
    %c0_79 = arith.constant 0 : index
    %148 = vector.load %arg7[%c96_78, %c0_79] : memref<144x32xf32, #tpu.memory_space<vmem>>, vector<16x32xf32>
    %cst_80 = arith.constant dense<0.000000e+00> : vector<64x32xf32>
    %149 = tpu.matmul %147, %148, %cst_80 {dimension_numbers = #tpu.dot_dimension_numbers<[1], [0], [0], [1], [0, 0, 1, 1], [], []>} : vector<64x16xf32>, vector<16x32xf32>, vector<64x32xf32> -> vector<64x32xf32>
    %150 = arith.addf %146, %149 : vector<64x32xf32>
    %151 = vector.extract_strided_slice %123 {offsets = [56, 0], sizes = [64, 16], strides = [1, 1]} : vector<128x16xf32> to vector<64x16xf32>
    %c112_81 = arith.constant 112 : index
    %c0_82 = arith.constant 0 : index
    %152 = vector.load %arg7[%c112_81, %c0_82] : memref<144x32xf32, #tpu.memory_space<vmem>>, vector<16x32xf32>
    %cst_83 = arith.constant dense<0.000000e+00> : vector<64x32xf32>
    %153 = tpu.matmul %151, %152, %cst_83 {dimension_numbers = #tpu.dot_dimension_numbers<[1], [0], [0], [1], [0, 0, 1, 1], [], []>} : vector<64x16xf32>, vector<16x32xf32>, vector<64x32xf32> -> vector<64x32xf32>
    %154 = arith.addf %150, %153 : vector<64x32xf32>
    %155 = vector.extract_strided_slice %123 {offsets = [64, 0], sizes = [64, 16], strides = [1, 1]} : vector<128x16xf32> to vector<64x16xf32>
    %c128_84 = arith.constant 128 : index
    %c0_85 = arith.constant 0 : index
    %156 = vector.load %arg7[%c128_84, %c0_85] : memref<144x32xf32, #tpu.memory_space<vmem>>, vector<16x32xf32>
    %cst_86 = arith.constant dense<0.000000e+00> : vector<64x32xf32>
    %157 = tpu.matmul %155, %156, %cst_86 {dimension_numbers = #tpu.dot_dimension_numbers<[1], [0], [0], [1], [0, 0, 1, 1], [], []>} : vector<64x16xf32>, vector<16x32xf32>, vector<64x32xf32> -> vector<64x32xf32>
    %158 = arith.addf %154, %157 : vector<64x32xf32>
    %c0_87 = arith.constant 0 : index
    %c0_88 = arith.constant 0 : index
    %159 = vector.load %arg8[%c0_87, %c0_88] : memref<1x32xf32, #tpu.memory_space<vmem>>, vector<1x32xf32>
    %c0_89 = arith.constant 0 : index
    %c0_90 = arith.constant 0 : index
    %160 = vector.load %arg9[%c0_89, %c0_90] : memref<1x32xf32, #tpu.memory_space<vmem>>, vector<1x32xf32>
    %cst_91 = arith.constant dense<0.000000e+00> : vector<32xf32>
    %161 = vector.multi_reduction <add>, %158, %cst_91 [0] : vector<64x32xf32> to vector<32xf32>
    %162 = vector.shape_cast %161 : vector<32xf32> to vector<1x32xf32>
    %cst_92 = arith.constant 1.562500e-02 : f32
    %163 = vector.broadcast %cst_92 : f32 to vector<1x32xf32>
    %164 = arith.mulf %162, %163 : vector<1x32xf32>
    %165 = arith.mulf %158, %158 : vector<64x32xf32>
    %cst_93 = arith.constant dense<0.000000e+00> : vector<32xf32>
    %166 = vector.multi_reduction <add>, %165, %cst_93 [0] : vector<64x32xf32> to vector<32xf32>
    %167 = vector.shape_cast %166 : vector<32xf32> to vector<1x32xf32>
    %cst_94 = arith.constant 1.562500e-02 : f32
    %168 = vector.broadcast %cst_94 : f32 to vector<1x32xf32>
    %169 = arith.mulf %167, %168 : vector<1x32xf32>
    %170 = arith.mulf %164, %164 : vector<1x32xf32>
    %171 = arith.subf %169, %170 : vector<1x32xf32>
    %cst_95 = arith.constant 0.000000e+00 : f32
    %172 = vector.broadcast %cst_95 : f32 to vector<1x32xf32>
    %173 = arith.maximumf %171, %172 : vector<1x32xf32>
    %cst_96 = arith.constant 9.99999974E-6 : f32
    %174 = vector.broadcast %cst_96 : f32 to vector<1x32xf32>
    %175 = arith.addf %173, %174 : vector<1x32xf32>
    %176 = math.rsqrt %175 : vector<1x32xf32>
    %177 = arith.mulf %159, %176 : vector<1x32xf32>
    %178 = arith.mulf %164, %177 : vector<1x32xf32>
    %179 = arith.subf %160, %178 : vector<1x32xf32>
    %180 = vector.broadcast %177 : vector<1x32xf32> to vector<64x32xf32>
    %181 = arith.mulf %158, %180 : vector<64x32xf32>
    %182 = vector.broadcast %179 : vector<1x32xf32> to vector<64x32xf32>
    %183 = arith.addf %181, %182 : vector<64x32xf32>
    %cst_97 = arith.constant 0.000000e+00 : f32
    %184 = vector.broadcast %cst_97 : f32 to vector<64x32xf32>
    %185 = arith.maximumf %183, %184 : vector<64x32xf32>
    %186 = vector.extract_strided_slice %185 {offsets = [0, 0], sizes = [4, 32], strides = [1, 1]} : vector<64x32xf32> to vector<4x32xf32>
    %c0_98 = arith.constant 0 : index
    %c0_99 = arith.constant 0 : index
    %187 = vector.load %arg10[%c0_98, %c0_99] : memref<512x256xf32, #tpu.memory_space<vmem>>, vector<32x256xf32>
    %cst_100 = arith.constant dense<0.000000e+00> : vector<4x256xf32>
    %188 = tpu.matmul %186, %187, %cst_100 {dimension_numbers = #tpu.dot_dimension_numbers<[1], [0], [0], [1], [0, 0, 1, 1], [], []>} : vector<4x32xf32>, vector<32x256xf32>, vector<4x256xf32> -> vector<4x256xf32>
    %189 = vector.extract_strided_slice %185 {offsets = [4, 0], sizes = [4, 32], strides = [1, 1]} : vector<64x32xf32> to vector<4x32xf32>
    %c32_101 = arith.constant 32 : index
    %c0_102 = arith.constant 0 : index
    %190 = vector.load %arg10[%c32_101, %c0_102] : memref<512x256xf32, #tpu.memory_space<vmem>>, vector<32x256xf32>
    %cst_103 = arith.constant dense<0.000000e+00> : vector<4x256xf32>
    %191 = tpu.matmul %189, %190, %cst_103 {dimension_numbers = #tpu.dot_dimension_numbers<[1], [0], [0], [1], [0, 0, 1, 1], [], []>} : vector<4x32xf32>, vector<32x256xf32>, vector<4x256xf32> -> vector<4x256xf32>
    %192 = arith.addf %188, %191 : vector<4x256xf32>
    %193 = vector.extract_strided_slice %185 {offsets = [8, 0], sizes = [4, 32], strides = [1, 1]} : vector<64x32xf32> to vector<4x32xf32>
    %c64_104 = arith.constant 64 : index
    %c0_105 = arith.constant 0 : index
    %194 = vector.load %arg10[%c64_104, %c0_105] : memref<512x256xf32, #tpu.memory_space<vmem>>, vector<32x256xf32>
    %cst_106 = arith.constant dense<0.000000e+00> : vector<4x256xf32>
    %195 = tpu.matmul %193, %194, %cst_106 {dimension_numbers = #tpu.dot_dimension_numbers<[1], [0], [0], [1], [0, 0, 1, 1], [], []>} : vector<4x32xf32>, vector<32x256xf32>, vector<4x256xf32> -> vector<4x256xf32>
    %196 = arith.addf %192, %195 : vector<4x256xf32>
    %197 = vector.extract_strided_slice %185 {offsets = [12, 0], sizes = [4, 32], strides = [1, 1]} : vector<64x32xf32> to vector<4x32xf32>
    %c96_107 = arith.constant 96 : index
    %c0_108 = arith.constant 0 : index
    %198 = vector.load %arg10[%c96_107, %c0_108] : memref<512x256xf32, #tpu.memory_space<vmem>>, vector<32x256xf32>
    %cst_109 = arith.constant dense<0.000000e+00> : vector<4x256xf32>
    %199 = tpu.matmul %197, %198, %cst_109 {dimension_numbers = #tpu.dot_dimension_numbers<[1], [0], [0], [1], [0, 0, 1, 1], [], []>} : vector<4x32xf32>, vector<32x256xf32>, vector<4x256xf32> -> vector<4x256xf32>
    %200 = arith.addf %196, %199 : vector<4x256xf32>
    %201 = vector.extract_strided_slice %185 {offsets = [16, 0], sizes = [4, 32], strides = [1, 1]} : vector<64x32xf32> to vector<4x32xf32>
    %c128_110 = arith.constant 128 : index
    %c0_111 = arith.constant 0 : index
    %202 = vector.load %arg10[%c128_110, %c0_111] : memref<512x256xf32, #tpu.memory_space<vmem>>, vector<32x256xf32>
    %cst_112 = arith.constant dense<0.000000e+00> : vector<4x256xf32>
    %203 = tpu.matmul %201, %202, %cst_112 {dimension_numbers = #tpu.dot_dimension_numbers<[1], [0], [0], [1], [0, 0, 1, 1], [], []>} : vector<4x32xf32>, vector<32x256xf32>, vector<4x256xf32> -> vector<4x256xf32>
    %204 = arith.addf %200, %203 : vector<4x256xf32>
    %205 = vector.extract_strided_slice %185 {offsets = [20, 0], sizes = [4, 32], strides = [1, 1]} : vector<64x32xf32> to vector<4x32xf32>
    %c160 = arith.constant 160 : index
    %c0_113 = arith.constant 0 : index
    %206 = vector.load %arg10[%c160, %c0_113] : memref<512x256xf32, #tpu.memory_space<vmem>>, vector<32x256xf32>
    %cst_114 = arith.constant dense<0.000000e+00> : vector<4x256xf32>
    %207 = tpu.matmul %205, %206, %cst_114 {dimension_numbers = #tpu.dot_dimension_numbers<[1], [0], [0], [1], [0, 0, 1, 1], [], []>} : vector<4x32xf32>, vector<32x256xf32>, vector<4x256xf32> -> vector<4x256xf32>
    %208 = arith.addf %204, %207 : vector<4x256xf32>
    %209 = vector.extract_strided_slice %185 {offsets = [24, 0], sizes = [4, 32], strides = [1, 1]} : vector<64x32xf32> to vector<4x32xf32>
    %c192 = arith.constant 192 : index
    %c0_115 = arith.constant 0 : index
    %210 = vector.load %arg10[%c192, %c0_115] : memref<512x256xf32, #tpu.memory_space<vmem>>, vector<32x256xf32>
    %cst_116 = arith.constant dense<0.000000e+00> : vector<4x256xf32>
    %211 = tpu.matmul %209, %210, %cst_116 {dimension_numbers = #tpu.dot_dimension_numbers<[1], [0], [0], [1], [0, 0, 1, 1], [], []>} : vector<4x32xf32>, vector<32x256xf32>, vector<4x256xf32> -> vector<4x256xf32>
    %212 = arith.addf %208, %211 : vector<4x256xf32>
    %213 = vector.extract_strided_slice %185 {offsets = [28, 0], sizes = [4, 32], strides = [1, 1]} : vector<64x32xf32> to vector<4x32xf32>
    %c224 = arith.constant 224 : index
    %c0_117 = arith.constant 0 : index
    %214 = vector.load %arg10[%c224, %c0_117] : memref<512x256xf32, #tpu.memory_space<vmem>>, vector<32x256xf32>
    %cst_118 = arith.constant dense<0.000000e+00> : vector<4x256xf32>
    %215 = tpu.matmul %213, %214, %cst_118 {dimension_numbers = #tpu.dot_dimension_numbers<[1], [0], [0], [1], [0, 0, 1, 1], [], []>} : vector<4x32xf32>, vector<32x256xf32>, vector<4x256xf32> -> vector<4x256xf32>
    %216 = arith.addf %212, %215 : vector<4x256xf32>
    %217 = vector.extract_strided_slice %185 {offsets = [32, 0], sizes = [4, 32], strides = [1, 1]} : vector<64x32xf32> to vector<4x32xf32>
    %c256 = arith.constant 256 : index
    %c0_119 = arith.constant 0 : index
    %218 = vector.load %arg10[%c256, %c0_119] : memref<512x256xf32, #tpu.memory_space<vmem>>, vector<32x256xf32>
    %cst_120 = arith.constant dense<0.000000e+00> : vector<4x256xf32>
    %219 = tpu.matmul %217, %218, %cst_120 {dimension_numbers = #tpu.dot_dimension_numbers<[1], [0], [0], [1], [0, 0, 1, 1], [], []>} : vector<4x32xf32>, vector<32x256xf32>, vector<4x256xf32> -> vector<4x256xf32>
    %220 = arith.addf %216, %219 : vector<4x256xf32>
    %221 = vector.extract_strided_slice %185 {offsets = [36, 0], sizes = [4, 32], strides = [1, 1]} : vector<64x32xf32> to vector<4x32xf32>
    %c288 = arith.constant 288 : index
    %c0_121 = arith.constant 0 : index
    %222 = vector.load %arg10[%c288, %c0_121] : memref<512x256xf32, #tpu.memory_space<vmem>>, vector<32x256xf32>
    %cst_122 = arith.constant dense<0.000000e+00> : vector<4x256xf32>
    %223 = tpu.matmul %221, %222, %cst_122 {dimension_numbers = #tpu.dot_dimension_numbers<[1], [0], [0], [1], [0, 0, 1, 1], [], []>} : vector<4x32xf32>, vector<32x256xf32>, vector<4x256xf32> -> vector<4x256xf32>
    %224 = arith.addf %220, %223 : vector<4x256xf32>
    %225 = vector.extract_strided_slice %185 {offsets = [40, 0], sizes = [4, 32], strides = [1, 1]} : vector<64x32xf32> to vector<4x32xf32>
    %c320 = arith.constant 320 : index
    %c0_123 = arith.constant 0 : index
    %226 = vector.load %arg10[%c320, %c0_123] : memref<512x256xf32, #tpu.memory_space<vmem>>, vector<32x256xf32>
    %cst_124 = arith.constant dense<0.000000e+00> : vector<4x256xf32>
    %227 = tpu.matmul %225, %226, %cst_124 {dimension_numbers = #tpu.dot_dimension_numbers<[1], [0], [0], [1], [0, 0, 1, 1], [], []>} : vector<4x32xf32>, vector<32x256xf32>, vector<4x256xf32> -> vector<4x256xf32>
    %228 = arith.addf %224, %227 : vector<4x256xf32>
    %229 = vector.extract_strided_slice %185 {offsets = [44, 0], sizes = [4, 32], strides = [1, 1]} : vector<64x32xf32> to vector<4x32xf32>
    %c352 = arith.constant 352 : index
    %c0_125 = arith.constant 0 : index
    %230 = vector.load %arg10[%c352, %c0_125] : memref<512x256xf32, #tpu.memory_space<vmem>>, vector<32x256xf32>
    %cst_126 = arith.constant dense<0.000000e+00> : vector<4x256xf32>
    %231 = tpu.matmul %229, %230, %cst_126 {dimension_numbers = #tpu.dot_dimension_numbers<[1], [0], [0], [1], [0, 0, 1, 1], [], []>} : vector<4x32xf32>, vector<32x256xf32>, vector<4x256xf32> -> vector<4x256xf32>
    %232 = arith.addf %228, %231 : vector<4x256xf32>
    %233 = vector.extract_strided_slice %185 {offsets = [48, 0], sizes = [4, 32], strides = [1, 1]} : vector<64x32xf32> to vector<4x32xf32>
    %c384 = arith.constant 384 : index
    %c0_127 = arith.constant 0 : index
    %234 = vector.load %arg10[%c384, %c0_127] : memref<512x256xf32, #tpu.memory_space<vmem>>, vector<32x256xf32>
    %cst_128 = arith.constant dense<0.000000e+00> : vector<4x256xf32>
    %235 = tpu.matmul %233, %234, %cst_128 {dimension_numbers = #tpu.dot_dimension_numbers<[1], [0], [0], [1], [0, 0, 1, 1], [], []>} : vector<4x32xf32>, vector<32x256xf32>, vector<4x256xf32> -> vector<4x256xf32>
    %236 = arith.addf %232, %235 : vector<4x256xf32>
    %237 = vector.extract_strided_slice %185 {offsets = [52, 0], sizes = [4, 32], strides = [1, 1]} : vector<64x32xf32> to vector<4x32xf32>
    %c416 = arith.constant 416 : index
    %c0_129 = arith.constant 0 : index
    %238 = vector.load %arg10[%c416, %c0_129] : memref<512x256xf32, #tpu.memory_space<vmem>>, vector<32x256xf32>
    %cst_130 = arith.constant dense<0.000000e+00> : vector<4x256xf32>
    %239 = tpu.matmul %237, %238, %cst_130 {dimension_numbers = #tpu.dot_dimension_numbers<[1], [0], [0], [1], [0, 0, 1, 1], [], []>} : vector<4x32xf32>, vector<32x256xf32>, vector<4x256xf32> -> vector<4x256xf32>
    %240 = arith.addf %236, %239 : vector<4x256xf32>
    %241 = vector.extract_strided_slice %185 {offsets = [56, 0], sizes = [4, 32], strides = [1, 1]} : vector<64x32xf32> to vector<4x32xf32>
    %c448 = arith.constant 448 : index
    %c0_131 = arith.constant 0 : index
    %242 = vector.load %arg10[%c448, %c0_131] : memref<512x256xf32, #tpu.memory_space<vmem>>, vector<32x256xf32>
    %cst_132 = arith.constant dense<0.000000e+00> : vector<4x256xf32>
    %243 = tpu.matmul %241, %242, %cst_132 {dimension_numbers = #tpu.dot_dimension_numbers<[1], [0], [0], [1], [0, 0, 1, 1], [], []>} : vector<4x32xf32>, vector<32x256xf32>, vector<4x256xf32> -> vector<4x256xf32>
    %244 = arith.addf %240, %243 : vector<4x256xf32>
    %245 = vector.extract_strided_slice %185 {offsets = [60, 0], sizes = [4, 32], strides = [1, 1]} : vector<64x32xf32> to vector<4x32xf32>
    %c480 = arith.constant 480 : index
    %c0_133 = arith.constant 0 : index
    %246 = vector.load %arg10[%c480, %c0_133] : memref<512x256xf32, #tpu.memory_space<vmem>>, vector<32x256xf32>
    %cst_134 = arith.constant dense<0.000000e+00> : vector<4x256xf32>
    %247 = tpu.matmul %245, %246, %cst_134 {dimension_numbers = #tpu.dot_dimension_numbers<[1], [0], [0], [1], [0, 0, 1, 1], [], []>} : vector<4x32xf32>, vector<32x256xf32>, vector<4x256xf32> -> vector<4x256xf32>
    %248 = arith.addf %244, %247 : vector<4x256xf32>
    %c0_135 = arith.constant 0 : index
    %c0_136 = arith.constant 0 : index
    %249 = vector.load %arg12[%c0_135, %c0_136] : memref<1x256xf32, #tpu.memory_space<vmem>>, vector<1x256xf32>
    %250 = vector.broadcast %249 : vector<1x256xf32> to vector<4x256xf32>
    %251 = arith.addf %248, %250 : vector<4x256xf32>
    %c0_137 = arith.constant 0 : index
    %c0_138 = arith.constant 0 : index
    %252 = vector.load %arg11[%c0_137, %c0_138] : memref<64x256xf32, #tpu.memory_space<vmem>>, vector<64x256xf32>
    %cst_139 = arith.constant 0.000000e+00 : f32
    %253 = vector.broadcast %cst_139 : f32 to vector<1x64xf32>
    %cst_140 = arith.constant 0.000000e+00 : f32
    %254 = vector.broadcast %cst_140 : f32 to vector<1x64xf32>
    %255 = vector.extract_strided_slice %251 {offsets = [0, 0], sizes = [1, 256], strides = [1, 1]} : vector<4x256xf32> to vector<1x256xf32>
    %cst_141 = arith.constant dense<0.000000e+00> : vector<1x256xf32>
    %256 = tpu.matmul %253, %252, %cst_141 {dimension_numbers = #tpu.dot_dimension_numbers<[1], [0], [0], [1], [0, 0, 1, 1], [], []>} : vector<1x64xf32>, vector<64x256xf32>, vector<1x256xf32> -> vector<1x256xf32>
    %257 = arith.addf %255, %256 : vector<1x256xf32>
    %258 = vector.extract_strided_slice %257 {offsets = [0, 0], sizes = [1, 192], strides = [1, 1]} : vector<1x256xf32> to vector<1x192xf32>
    %259 = arith.negf %258 : vector<1x192xf32>
    %260 = math.exp %259 : vector<1x192xf32>
    %cst_142 = arith.constant 1.000000e+00 : f32
    %261 = vector.broadcast %cst_142 : f32 to vector<1x192xf32>
    %262 = arith.addf %261, %260 : vector<1x192xf32>
    %263 = arith.divf %261, %262 : vector<1x192xf32>
    %264 = vector.extract_strided_slice %257 {offsets = [0, 192], sizes = [1, 64], strides = [1, 1]} : vector<1x256xf32> to vector<1x64xf32>
    %265 = math.tanh %264 : vector<1x64xf32>
    %266 = vector.extract_strided_slice %263 {offsets = [0, 64], sizes = [1, 64], strides = [1, 1]} : vector<1x192xf32> to vector<1x64xf32>
    %267 = arith.mulf %266, %254 : vector<1x64xf32>
    %268 = vector.extract_strided_slice %263 {offsets = [0, 0], sizes = [1, 64], strides = [1, 1]} : vector<1x192xf32> to vector<1x64xf32>
    %269 = arith.mulf %268, %265 : vector<1x64xf32>
    %270 = arith.addf %267, %269 : vector<1x64xf32>
    %271 = vector.extract_strided_slice %263 {offsets = [0, 128], sizes = [1, 64], strides = [1, 1]} : vector<1x192xf32> to vector<1x64xf32>
    %272 = math.tanh %270 : vector<1x64xf32>
    %273 = arith.mulf %271, %272 : vector<1x64xf32>
    %274 = vector.extract_strided_slice %251 {offsets = [1, 0], sizes = [1, 256], strides = [1, 1]} : vector<4x256xf32> to vector<1x256xf32>
    %cst_143 = arith.constant dense<0.000000e+00> : vector<1x256xf32>
    %275 = tpu.matmul %273, %252, %cst_143 {dimension_numbers = #tpu.dot_dimension_numbers<[1], [0], [0], [1], [0, 0, 1, 1], [], []>} : vector<1x64xf32>, vector<64x256xf32>, vector<1x256xf32> -> vector<1x256xf32>
    %276 = arith.addf %274, %275 : vector<1x256xf32>
    %277 = vector.extract_strided_slice %276 {offsets = [0, 0], sizes = [1, 192], strides = [1, 1]} : vector<1x256xf32> to vector<1x192xf32>
    %278 = arith.negf %277 : vector<1x192xf32>
    %279 = math.exp %278 : vector<1x192xf32>
    %cst_144 = arith.constant 1.000000e+00 : f32
    %280 = vector.broadcast %cst_144 : f32 to vector<1x192xf32>
    %281 = arith.addf %280, %279 : vector<1x192xf32>
    %282 = arith.divf %280, %281 : vector<1x192xf32>
    %283 = vector.extract_strided_slice %276 {offsets = [0, 192], sizes = [1, 64], strides = [1, 1]} : vector<1x256xf32> to vector<1x64xf32>
    %284 = math.tanh %283 : vector<1x64xf32>
    %285 = vector.extract_strided_slice %282 {offsets = [0, 64], sizes = [1, 64], strides = [1, 1]} : vector<1x192xf32> to vector<1x64xf32>
    %286 = arith.mulf %285, %270 : vector<1x64xf32>
    %287 = vector.extract_strided_slice %282 {offsets = [0, 0], sizes = [1, 64], strides = [1, 1]} : vector<1x192xf32> to vector<1x64xf32>
    %288 = arith.mulf %287, %284 : vector<1x64xf32>
    %289 = arith.addf %286, %288 : vector<1x64xf32>
    %290 = vector.extract_strided_slice %282 {offsets = [0, 128], sizes = [1, 64], strides = [1, 1]} : vector<1x192xf32> to vector<1x64xf32>
    %291 = math.tanh %289 : vector<1x64xf32>
    %292 = arith.mulf %290, %291 : vector<1x64xf32>
    %293 = vector.extract_strided_slice %251 {offsets = [2, 0], sizes = [1, 256], strides = [1, 1]} : vector<4x256xf32> to vector<1x256xf32>
    %cst_145 = arith.constant dense<0.000000e+00> : vector<1x256xf32>
    %294 = tpu.matmul %292, %252, %cst_145 {dimension_numbers = #tpu.dot_dimension_numbers<[1], [0], [0], [1], [0, 0, 1, 1], [], []>} : vector<1x64xf32>, vector<64x256xf32>, vector<1x256xf32> -> vector<1x256xf32>
    %295 = arith.addf %293, %294 : vector<1x256xf32>
    %296 = vector.extract_strided_slice %295 {offsets = [0, 0], sizes = [1, 192], strides = [1, 1]} : vector<1x256xf32> to vector<1x192xf32>
    %297 = arith.negf %296 : vector<1x192xf32>
    %298 = math.exp %297 : vector<1x192xf32>
    %cst_146 = arith.constant 1.000000e+00 : f32
    %299 = vector.broadcast %cst_146 : f32 to vector<1x192xf32>
    %300 = arith.addf %299, %298 : vector<1x192xf32>
    %301 = arith.divf %299, %300 : vector<1x192xf32>
    %302 = vector.extract_strided_slice %295 {offsets = [0, 192], sizes = [1, 64], strides = [1, 1]} : vector<1x256xf32> to vector<1x64xf32>
    %303 = math.tanh %302 : vector<1x64xf32>
    %304 = vector.extract_strided_slice %301 {offsets = [0, 64], sizes = [1, 64], strides = [1, 1]} : vector<1x192xf32> to vector<1x64xf32>
    %305 = arith.mulf %304, %289 : vector<1x64xf32>
    %306 = vector.extract_strided_slice %301 {offsets = [0, 0], sizes = [1, 64], strides = [1, 1]} : vector<1x192xf32> to vector<1x64xf32>
    %307 = arith.mulf %306, %303 : vector<1x64xf32>
    %308 = arith.addf %305, %307 : vector<1x64xf32>
    %309 = vector.extract_strided_slice %301 {offsets = [0, 128], sizes = [1, 64], strides = [1, 1]} : vector<1x192xf32> to vector<1x64xf32>
    %310 = math.tanh %308 : vector<1x64xf32>
    %311 = arith.mulf %309, %310 : vector<1x64xf32>
    %312 = vector.extract_strided_slice %251 {offsets = [3, 0], sizes = [1, 256], strides = [1, 1]} : vector<4x256xf32> to vector<1x256xf32>
    %cst_147 = arith.constant dense<0.000000e+00> : vector<1x256xf32>
    %313 = tpu.matmul %311, %252, %cst_147 {dimension_numbers = #tpu.dot_dimension_numbers<[1], [0], [0], [1], [0, 0, 1, 1], [], []>} : vector<1x64xf32>, vector<64x256xf32>, vector<1x256xf32> -> vector<1x256xf32>
    %314 = arith.addf %312, %313 : vector<1x256xf32>
    %315 = vector.extract_strided_slice %314 {offsets = [0, 0], sizes = [1, 192], strides = [1, 1]} : vector<1x256xf32> to vector<1x192xf32>
    %316 = arith.negf %315 : vector<1x192xf32>
    %317 = math.exp %316 : vector<1x192xf32>
    %cst_148 = arith.constant 1.000000e+00 : f32
    %318 = vector.broadcast %cst_148 : f32 to vector<1x192xf32>
    %319 = arith.addf %318, %317 : vector<1x192xf32>
    %320 = arith.divf %318, %319 : vector<1x192xf32>
    %321 = vector.extract_strided_slice %314 {offsets = [0, 192], sizes = [1, 64], strides = [1, 1]} : vector<1x256xf32> to vector<1x64xf32>
    %322 = math.tanh %321 : vector<1x64xf32>
    %323 = vector.extract_strided_slice %320 {offsets = [0, 64], sizes = [1, 64], strides = [1, 1]} : vector<1x192xf32> to vector<1x64xf32>
    %324 = arith.mulf %323, %308 : vector<1x64xf32>
    %325 = vector.extract_strided_slice %320 {offsets = [0, 0], sizes = [1, 64], strides = [1, 1]} : vector<1x192xf32> to vector<1x64xf32>
    %326 = arith.mulf %325, %322 : vector<1x64xf32>
    %327 = arith.addf %324, %326 : vector<1x64xf32>
    %328 = vector.extract_strided_slice %320 {offsets = [0, 128], sizes = [1, 64], strides = [1, 1]} : vector<1x192xf32> to vector<1x64xf32>
    %329 = math.tanh %327 : vector<1x64xf32>
    %330 = arith.mulf %328, %329 : vector<1x64xf32>
    %331 = tpu.concatenate %273, %292, %311, %330 in 0 : vector<1x64xf32>, vector<1x64xf32>, vector<1x64xf32>, vector<1x64xf32> -> vector<4x64xf32>
    %c0_149 = arith.constant 0 : index
    %c0_150 = arith.constant 0 : index
    %332 = vector.load %arg13[%c0_149, %c0_150] : memref<64x32xf32, #tpu.memory_space<vmem>>, vector<64x32xf32>
    %cst_151 = arith.constant dense<0.000000e+00> : vector<4x32xf32>
    %333 = tpu.matmul %331, %332, %cst_151 {dimension_numbers = #tpu.dot_dimension_numbers<[1], [0], [0], [1], [0, 0, 1, 1], [], []>} : vector<4x64xf32>, vector<64x32xf32>, vector<4x32xf32> -> vector<4x32xf32>
    %c0_152 = arith.constant 0 : index
    %c0_153 = arith.constant 0 : index
    %334 = vector.load %arg14[%c0_152, %c0_153] : memref<1x32xf32, #tpu.memory_space<vmem>>, vector<1x32xf32>
    %335 = vector.broadcast %334 : vector<1x32xf32> to vector<4x32xf32>
    %336 = arith.addf %333, %335 : vector<4x32xf32>
    %cst_154 = arith.constant 0.000000e+00 : f32
    %337 = vector.broadcast %cst_154 : f32 to vector<4x32xf32>
    %338 = arith.maximumf %336, %337 : vector<4x32xf32>
    %c0_155 = arith.constant 0 : index
    %c0_156 = arith.constant 0 : index
    %339 = vector.load %arg15[%c0_155, %c0_156] : memref<32x3xf32, #tpu.memory_space<vmem>>, vector<32x3xf32>
    %cst_157 = arith.constant dense<0.000000e+00> : vector<4x3xf32>
    %340 = tpu.matmul %338, %339, %cst_157 {dimension_numbers = #tpu.dot_dimension_numbers<[1], [0], [0], [1], [0, 0, 1, 1], [], []>} : vector<4x32xf32>, vector<32x3xf32>, vector<4x3xf32> -> vector<4x3xf32>
    %c0_158 = arith.constant 0 : index
    %c0_159 = arith.constant 0 : index
    %341 = vector.load %arg16[%c0_158, %c0_159] : memref<1x3xf32, #tpu.memory_space<vmem>>, vector<1x3xf32>
    %342 = vector.broadcast %341 : vector<1x3xf32> to vector<4x3xf32>
    %343 = arith.addf %340, %342 : vector<4x3xf32>
    %cst_160 = arith.constant dense<0xFF800000> : vector<4xf32>
    %344 = vector.multi_reduction <maximumf>, %343, %cst_160 [1] : vector<4x3xf32> to vector<4xf32>
    %345 = vector.shape_cast %344 : vector<4xf32> to vector<4x1xf32>
    %346 = vector.broadcast %345 : vector<4x1xf32> to vector<4x3xf32>
    %347 = arith.subf %343, %346 : vector<4x3xf32>
    %348 = math.exp %347 : vector<4x3xf32>
    %cst_161 = arith.constant dense<0.000000e+00> : vector<4xf32>
    %349 = vector.multi_reduction <add>, %348, %cst_161 [1] : vector<4x3xf32> to vector<4xf32>
    %350 = vector.shape_cast %349 : vector<4xf32> to vector<4x1xf32>
    %351 = vector.broadcast %350 : vector<4x1xf32> to vector<4x3xf32>
    %352 = arith.divf %348, %351 : vector<4x3xf32>
    %c0_162 = arith.constant 0 : index
    %c0_163 = arith.constant 0 : index
    %353 = vector.load %arg17[%c0_162, %c0_163] : memref<4x3xf32, #tpu.memory_space<vmem>>, vector<4x3xf32>
    tpu.vector_store %arg17[%c0_162, %c0_163], %352 {strides = array<i32>} : memref<4x3xf32, #tpu.memory_space<vmem>>, vector<4x3xf32>,
    return
  }
}

</mosaic_0001>

<llo_original>
// kernel: squeeze.1
$region0: #{squeeze.1}
  %s0 = inlined_call_operand.vmem [shape: f32[4,1,24,64], index: 0, kind: input, shape index: {}]
  %s1 = inlined_call_operand.vmem [shape: f32[4,2,12,32,2], index: 1, kind: output, shape index: {}]
  $region1: #{squeeze.1} parent=0
    #allocation0 [shape = 'u8[1048576]{0}', space=vmem, size = 0x100000, scoped, tag = 'scoped mem for output reshape']
    %v2 = vld [vmem:[%s0] sm:$0xff]
    %vm3 = vcmask 97280
    %4 = vst.msk [vmem:[#allocation0] ss:$8 sm:$0xf] %vm3, %v2
    %5 = vst.msk [vmem:[#allocation0] ss:$8 sm:$0xf0] %vm3, %v2
    %s6 = scalar_lea.vmem %s0, 8
    %v7 = vld [vmem:[%s6] sm:$0xff]
    %vm8 = vcmask 97280
    %s9 = scalar_lea.vmem [#allocation0], 64
    %10 = vst.msk [vmem:[%s9] ss:$8 sm:$0xf] %vm8, %v7
    %s11 = scalar_lea.vmem [#allocation0], 64
    %12 = vst.msk [vmem:[%s11] ss:$8 sm:$0xf0] %vm8, %v7
    %s13 = scalar_lea.vmem %s0, 16
    %v14 = vld [vmem:[%s13] sm:$0xff]
    %vm15 = vcmask 97280
    %s16 = scalar_lea.vmem [#allocation0], 128
    %17 = vst.msk [vmem:[%s16] ss:$8 sm:$0xf] %vm15, %v14
    %s18 = scalar_lea.vmem [#allocation0], 128
    %19 = vst.msk [vmem:[%s18] ss:$8 sm:$0xf0] %vm15, %v14
    %s20 = scalar_lea.vmem %s0, 24
    %v21 = vld [vmem:[%s20] sm:$0xff]
    %vm22 = vcmask 97280
    %s23 = scalar_lea.vmem [#allocation0], 192
    %24 = vst.msk [vmem:[%s23] ss:$8 sm:$0xf] %vm22, %v21
    %s25 = scalar_lea.vmem [#allocation0], 192
    %26 = vst.msk [vmem:[%s25] ss:$8 sm:$0xf0] %vm22, %v21
    %s27 = scalar_lea.vmem %s0, 32
    %v28 = vld [vmem:[%s27] sm:$0xff]
    %vm29 = vcmask 97280
    %s30 = scalar_lea.vmem [#allocation0], 256
    %31 = vst.msk [vmem:[%s30] ss:$8 sm:$0xf] %vm29, %v28
    %s32 = scalar_lea.vmem [#allocation0], 256
    %33 = vst.msk [vmem:[%s32] ss:$8 sm:$0xf0] %vm29, %v28
    %s34 = scalar_lea.vmem %s0, 40
    %v35 = vld [vmem:[%s34] sm:$0xff]
    %vm36 = vcmask 97280
    %s37 = scalar_lea.vmem [#allocation0], 320
    %38 = vst.msk [vmem:[%s37] ss:$8 sm:$0xf] %vm36, %v35
    %s39 = scalar_lea.vmem [#allocation0], 320
    %40 = vst.msk [vmem:[%s39] ss:$8 sm:$0xf0] %vm36, %v35
    %s41 = scalar_lea.vmem %s0, 48
    %v42 = vld [vmem:[%s41] sm:$0xff]
    %vm43 = vcmask 97280
    %s44 = scalar_lea.vmem [#allocation0], 384
    %45 = vst.msk [vmem:[%s44] ss:$8 sm:$0xf] %vm43, %v42
    %s46 = scalar_lea.vmem [#allocation0], 384
    %47 = vst.msk [vmem:[%s46] ss:$8 sm:$0xf0] %vm43, %v42
    %s48 = scalar_lea.vmem %s0, 56
    %v49 = vld [vmem:[%s48] sm:$0xff]
    %vm50 = vcmask 97280
    %s51 = scalar_lea.vmem [#allocation0], 448
    %52 = vst.msk [vmem:[%s51] ss:$8 sm:$0xf] %vm50, %v49
    %s53 = scalar_lea.vmem [#allocation0], 448
    %54 = vst.msk [vmem:[%s53] ss:$8 sm:$0xf0] %vm50, %v49
    %s55 = scalar_lea.vmem %s0, 64
    %v56 = vld [vmem:[%s55] sm:$0xff]
    %vm57 = vcmask 97280
    %s58 = scalar_lea.vmem [#allocation0], 512
    %59 = vst.msk [vmem:[%s58] ss:$8 sm:$0xf] %vm57, %v56
    %s60 = scalar_lea.vmem [#allocation0], 512
    %61 = vst.msk [vmem:[%s60] ss:$8 sm:$0xf0] %vm57, %v56
    %s62 = scalar_lea.vmem %s0, 72
    %v63 = vld [vmem:[%s62] sm:$0xff]
    %vm64 = vcmask 97280
    %s65 = scalar_lea.vmem [#allocation0], 576
    %66 = vst.msk [vmem:[%s65] ss:$8 sm:$0xf] %vm64, %v63
    %s67 = scalar_lea.vmem [#allocation0], 576
    %68 = vst.msk [vmem:[%s67] ss:$8 sm:$0xf0] %vm64, %v63
    %s69 = scalar_lea.vmem %s0, 80
    %v70 = vld [vmem:[%s69] sm:$0xff]
    %vm71 = vcmask 97280
    %s72 = scalar_lea.vmem [#allocation0], 640
    %73 = vst.msk [vmem:[%s72] ss:$8 sm:$0xf] %vm71, %v70
    %s74 = scalar_lea.vmem [#allocation0], 640
    %75 = vst.msk [vmem:[%s74] ss:$8 sm:$0xf0] %vm71, %v70
    %s76 = scalar_lea.vmem %s0, 88
    %v77 = vld [vmem:[%s76] sm:$0xff]
    %vm78 = vcmask 97280
    %s79 = scalar_lea.vmem [#allocation0], 704
    %80 = vst.msk [vmem:[%s79] ss:$8 sm:$0xf] %vm78, %v77
    %s81 = scalar_lea.vmem [#allocation0], 704
    %82 = vst.msk [vmem:[%s81] ss:$8 sm:$0xf0] %vm78, %v77
    %s83 = scalar_lea.vmem %s0, 96
    %v84 = vld [vmem:[%s83] sm:$0xff]
    %vm85 = vcmask 97280
    %s86 = scalar_lea.vmem [#allocation0], 768
    %87 = vst.msk [vmem:[%s86] ss:$8 sm:$0xf] %vm85, %v84
    %s88 = scalar_lea.vmem [#allocation0], 768
    %89 = vst.msk [vmem:[%s88] ss:$8 sm:$0xf0] %vm85, %v84
    %s90 = scalar_lea.vmem %s0, 104
    %v91 = vld [vmem:[%s90] sm:$0xff]
    %vm92 = vcmask 97280
    %s93 = scalar_lea.vmem [#allocation0], 832
    %94 = vst.msk [vmem:[%s93] ss:$8 sm:$0xf] %vm92, %v91
    %s95 = scalar_lea.vmem [#allocation0], 832
    %96 = vst.msk [vmem:[%s95] ss:$8 sm:$0xf0] %vm92, %v91
    %s97 = scalar_lea.vmem %s0, 112
    %v98 = vld [vmem:[%s97] sm:$0xff]
    %vm99 = vcmask 97280
    %s100 = scalar_lea.vmem [#allocation0], 896
    %101 = vst.msk [vmem:[%s100] ss:$8 sm:$0xf] %vm99, %v98
    %s102 = scalar_lea.vmem [#allocation0], 896
    %103 = vst.msk [vmem:[%s102] ss:$8 sm:$0xf0] %vm99, %v98
    %s104 = scalar_lea.vmem %s0, 120
    %v105 = vld [vmem:[%s104] sm:$0xff]
    %vm106 = vcmask 97280
    %s107 = scalar_lea.vmem [#allocation0], 960
    %108 = vst.msk [vmem:[%s107] ss:$8 sm:$0xf] %vm106, %v105
    %s109 = scalar_lea.vmem [#allocation0], 960
    %110 = vst.msk [vmem:[%s109] ss:$8 sm:$0xf0] %vm106, %v105
    %s111 = scalar_lea.vmem %s0, 128
    %v112 = vld [vmem:[%s111] sm:$0xff]
    %vm113 = vcmask 97280
    %s114 = scalar_lea.vmem [#allocation0], 1024
    %115 = vst.msk [vmem:[%s114] ss:$8 sm:$0xf] %vm113, %v112
    %s116 = scalar_lea.vmem [#allocation0], 1024
    %117 = vst.msk [vmem:[%s116] ss:$8 sm:$0xf0] %vm113, %v112
    %s118 = scalar_lea.vmem %s0, 136
    %v119 = vld [vmem:[%s118] sm:$0xff]
    %vm120 = vcmask 97280
    %s121 = scalar_lea.vmem [#allocation0], 1088
    %122 = vst.msk [vmem:[%s121] ss:$8 sm:$0xf] %vm120, %v119
    %s123 = scalar_lea.vmem [#allocation0], 1088
    %124 = vst.msk [vmem:[%s123] ss:$8 sm:$0xf0] %vm120, %v119
    %s125 = scalar_lea.vmem %s0, 144
    %v126 = vld [vmem:[%s125] sm:$0xff]
    %vm127 = vcmask 97280
    %s128 = scalar_lea.vmem [#allocation0], 1152
    %129 = vst.msk [vmem:[%s128] ss:$8 sm:$0xf] %vm127, %v126
    %s130 = scalar_lea.vmem [#allocation0], 1152
    %131 = vst.msk [vmem:[%s130] ss:$8 sm:$0xf0] %vm127, %v126
    %s132 = scalar_lea.vmem %s0, 152
    %v133 = vld [vmem:[%s132] sm:$0xff]
    %vm134 = vcmask 97280
    %s135 = scalar_lea.vmem [#allocation0], 1216
    %136 = vst.msk [vmem:[%s135] ss:$8 sm:$0xf] %vm134, %v133
    %s137 = scalar_lea.vmem [#allocation0], 1216
    %138 = vst.msk [vmem:[%s137] ss:$8 sm:$0xf0] %vm134, %v133
    %s139 = scalar_lea.vmem %s0, 160
    %v140 = vld [vmem:[%s139] sm:$0xff]
    %vm141 = vcmask 97280
    %s142 = scalar_lea.vmem [#allocation0], 1280
    %143 = vst.msk [vmem:[%s142] ss:$8 sm:$0xf] %vm141, %v140
    %s144 = scalar_lea.vmem [#allocation0], 1280
    %145 = vst.msk [vmem:[%s144] ss:$8 sm:$0xf0] %vm141, %v140
    %s146 = scalar_lea.vmem %s0, 168
    %v147 = vld [vmem:[%s146] sm:$0xff]
    %vm148 = vcmask 97280
    %s149 = scalar_lea.vmem [#allocation0], 1344
    %150 = vst.msk [vmem:[%s149] ss:$8 sm:$0xf] %vm148, %v147
    %s151 = scalar_lea.vmem [#allocation0], 1344
    %152 = vst.msk [vmem:[%s151] ss:$8 sm:$0xf0] %vm148, %v147
    %s153 = scalar_lea.vmem %s0, 176
    %v154 = vld [vmem:[%s153] sm:$0xff]
    %vm155 = vcmask 97280
    %s156 = scalar_lea.vmem [#allocation0], 1408
    %157 = vst.msk [vmem:[%s156] ss:$8 sm:$0xf] %vm155, %v154
    %s158 = scalar_lea.vmem [#allocation0], 1408
    %159 = vst.msk [vmem:[%s158] ss:$8 sm:$0xf0] %vm155, %v154
    %s160 = scalar_lea.vmem %s0, 184
    %v161 = vld [vmem:[%s160] sm:$0xff]
    %vm162 = vcmask 97280
    %s163 = scalar_lea.vmem [#allocation0], 1472
    %164 = vst.msk [vmem:[%s163] ss:$8 sm:$0xf] %vm162, %v161
    %s165 = scalar_lea.vmem [#allocation0], 1472
    %166 = vst.msk [vmem:[%s165] ss:$8 sm:$0xf0] %vm162, %v161
    %s167 = scalar_lea.vmem %s0, 192
    %v168 = vld [vmem:[%s167] sm:$0xff]
    %vm169 = vcmask 97280
    %s170 = scalar_lea.vmem [#allocation0], 1536
    %171 = vst.msk [vmem:[%s170] ss:$8 sm:$0xf] %vm169, %v168
    %s172 = scalar_lea.vmem [#allocation0], 1536
    %173 = vst.msk [vmem:[%s172] ss:$8 sm:$0xf0] %vm169, %v168
    %s174 = scalar_lea.vmem %s0, 200
    %v175 = vld [vmem:[%s174] sm:$0xff]
    %vm176 = vcmask 97280
    %s177 = scalar_lea.vmem [#allocation0], 1600
    %178 = vst.msk [vmem:[%s177] ss:$8 sm:$0xf] %vm176, %v175
    %s179 = scalar_lea.vmem [#allocation0], 1600
    %180 = vst.msk [vmem:[%s179] ss:$8 sm:$0xf0] %vm176, %v175
    %s181 = scalar_lea.vmem %s0, 208
    %v182 = vld [vmem:[%s181] sm:$0xff]
    %vm183 = vcmask 97280
    %s184 = scalar_lea.vmem [#allocation0], 1664
    %185 = vst.msk [vmem:[%s184] ss:$8 sm:$0xf] %vm183, %v182
    %s186 = scalar_lea.vmem [#allocation0], 1664
    %187 = vst.msk [vmem:[%s186] ss:$8 sm:$0xf0] %vm183, %v182
    %s188 = scalar_lea.vmem %s0, 216
    %v189 = vld [vmem:[%s188] sm:$0xff]
    %vm190 = vcmask 97280
    %s191 = scalar_lea.vmem [#allocation0], 1728
    %192 = vst.msk [vmem:[%s191] ss:$8 sm:$0xf] %vm190, %v189
    %s193 = scalar_lea.vmem [#allocation0], 1728
    %194 = vst.msk [vmem:[%s193] ss:$8 sm:$0xf0] %vm190, %v189
    %s195 = scalar_lea.vmem %s0, 224
    %v196 = vld [vmem:[%s195] sm:$0xff]
    %vm197 = vcmask 97280
    %s198 = scalar_lea.vmem [#allocation0], 1792
    %199 = vst.msk [vmem:[%s198] ss:$8 sm:$0xf] %vm197, %v196
    %s200 = scalar_lea.vmem [#allocation0], 1792
    %201 = vst.msk [vmem:[%s200] ss:$8 sm:$0xf0] %vm197, %v196
    %s202 = scalar_lea.vmem %s0, 232
    %v203 = vld [vmem:[%s202] sm:$0xff]
    %vm204 = vcmask 97280
    %s205 = scalar_lea.vmem [#allocation0], 1856
    %206 = vst.msk [vmem:[%s205] ss:$8 sm:$0xf] %vm204, %v203
    %s207 = scalar_lea.vmem [#allocation0], 1856
    %208 = vst.msk [vmem:[%s207] ss:$8 sm:$0xf0] %vm204, %v203
    %s209 = scalar_lea.vmem %s0, 240
    %v210 = vld [vmem:[%s209] sm:$0xff]
    %vm211 = vcmask 97280
    %s212 = scalar_lea.vmem [#allocation0], 1920
    %213 = vst.msk [vmem:[%s212] ss:$8 sm:$0xf] %vm211, %v210
    %s214 = scalar_lea.vmem [#allocation0], 1920
    %215 = vst.msk [vmem:[%s214] ss:$8 sm:$0xf0] %vm211, %v210
    %s216 = scalar_lea.vmem %s0, 248
    %v217 = vld [vmem:[%s216] sm:$0xff]
    %vm218 = vcmask 97280
    %s219 = scalar_lea.vmem [#allocation0], 1984
    %220 = vst.msk [vmem:[%s219] ss:$8 sm:$0xf] %vm218, %v217
    %s221 = scalar_lea.vmem [#allocation0], 1984
    %222 = vst.msk [vmem:[%s221] ss:$8 sm:$0xf0] %vm218, %v217
    %v223 = vld [vmem:[%s0] sm:$0xff]
    %224 = vrot.lane.b32.xlu0 %v223, 116
    %v225 = vpop.permute.xlu0 %224
    %vm226 = vcmask 97280
    %s227 = scalar_lea.vmem [#allocation0], 1
    %228 = vst.msk [vmem:[%s227] ss:$8 sm:$0xf] %vm226, %v225
    %s229 = scalar_lea.vmem [#allocation0], 1
    %230 = vst.msk [vmem:[%s229] ss:$8 sm:$0xf0] %vm226, %v225
    %s231 = scalar_lea.vmem %s0, 8
    %v232 = vld [vmem:[%s231] sm:$0xff]
    %233 = vrot.lane.b32.xlu0 %v232, 116
    %v234 = vpop.permute.xlu0 %233
    %vm235 = vcmask 97280
    %s236 = scalar_lea.vmem [#allocation0], 65
    %237 = vst.msk [vmem:[%s236] ss:$8 sm:$0xf] %vm235, %v234
    %s238 = scalar_lea.vmem [#allocation0], 65
    %239 = vst.msk [vmem:[%s238] ss:$8 sm:$0xf0] %vm235, %v234
    %s240 = scalar_lea.vmem %s0, 16
    %v241 = vld [vmem:[%s240] sm:$0xff]
    %242 = vrot.lane.b32.xlu0 %v241, 116
    %v243 = vpop.permute.xlu0 %242
    %vm244 = vcmask 97280
    %s245 = scalar_lea.vmem [#allocation0], 129
    %246 = vst.msk [vmem:[%s245] ss:$8 sm:$0xf] %vm244, %v243
    %s247 = scalar_lea.vmem [#allocation0], 129
    %248 = vst.msk [vmem:[%s247] ss:$8 sm:$0xf0] %vm244, %v243
    %s249 = scalar_lea.vmem %s0, 24
    %v250 = vld [vmem:[%s249] sm:$0xff]
    %251 = vrot.lane.b32.xlu0 %v250, 116
    %v252 = vpop.permute.xlu0 %251
    %vm253 = vcmask 97280
    %s254 = scalar_lea.vmem [#allocation0], 193
    %255 = vst.msk [vmem:[%s254] ss:$8 sm:$0xf] %vm253, %v252
    %s256 = scalar_lea.vmem [#allocation0], 193
    %257 = vst.msk [vmem:[%s256] ss:$8 sm:$0xf0] %vm253, %v252
    %s258 = scalar_lea.vmem %s0, 32
    %v259 = vld [vmem:[%s258] sm:$0xff]
    %260 = vrot.lane.b32.xlu0 %v259, 116
    %v261 = vpop.permute.xlu0 %260
    %vm262 = vcmask 97280
    %s263 = scalar_lea.vmem [#allocation0], 257
    %264 = vst.msk [vmem:[%s263] ss:$8 sm:$0xf] %vm262, %v261
    %s265 = scalar_lea.vmem [#allocation0], 257
    %266 = vst.msk [vmem:[%s265] ss:$8 sm:$0xf0] %vm262, %v261
    %s267 = scalar_lea.vmem %s0, 40
    %v268 = vld [vmem:[%s267] sm:$0xff]
    %269 = vrot.lane.b32.xlu0 %v268, 116
    %v270 = vpop.permute.xlu0 %269
    %vm271 = vcmask 97280
    %s272 = scalar_lea.vmem [#allocation0], 321
    %273 = vst.msk [vmem:[%s272] ss:$8 sm:$0xf] %vm271, %v270
    %s274 = scalar_lea.vmem [#allocation0], 321
    %275 = vst.msk [vmem:[%s274] ss:$8 sm:$0xf0] %vm271, %v270
    %s276 = scalar_lea.vmem %s0, 48
    %v277 = vld [vmem:[%s276] sm:$0xff]
    %278 = vrot.lane.b32.xlu0 %v277, 116
    %v279 = vpop.permute.xlu0 %278
    %vm280 = vcmask 97280
    %s281 = scalar_lea.vmem [#allocation0], 385
    %282 = vst.msk [vmem:[%s281] ss:$8 sm:$0xf] %vm280, %v279
    %s283 = scalar_lea.vmem [#allocation0], 385
    %284 = vst.msk [vmem:[%s283] ss:$8 sm:$0xf0] %vm280, %v279
    %s285 = scalar_lea.vmem %s0, 56
    %v286 = vld [vmem:[%s285] sm:$0xff]
    %287 = vrot.lane.b32.xlu0 %v286, 116
    %v288 = vpop.permute.xlu0 %287
    %vm289 = vcmask 97280
    %s290 = scalar_lea.vmem [#allocation0], 449
    %291 = vst.msk [vmem:[%s290] ss:$8 sm:$0xf] %vm289, %v288
    %s292 = scalar_lea.vmem [#allocation0], 449
    %293 = vst.msk [vmem:[%s292] ss:$8 sm:$0xf0] %vm289, %v288
    %s294 = scalar_lea.vmem %s0, 64
    %v295 = vld [vmem:[%s294] sm:$0xff]
    %296 = vrot.lane.b32.xlu0 %v295, 116
    %v297 = vpop.permute.xlu0 %296
    %vm298 = vcmask 97280
    %s299 = scalar_lea.vmem [#allocation0], 513
    %300 = vst.msk [vmem:[%s299] ss:$8 sm:$0xf] %vm298, %v297
    %s301 = scalar_lea.vmem [#allocation0], 513
    %302 = vst.msk [vmem:[%s301] ss:$8 sm:$0xf0] %vm298, %v297
    %s303 = scalar_lea.vmem %s0, 72
    %v304 = vld [vmem:[%s303] sm:$0xff]
    %305 = vrot.lane.b32.xlu0 %v304, 116
    %v306 = vpop.permute.xlu0 %305
    %vm307 = vcmask 97280
    %s308 = scalar_lea.vmem [#allocation0], 577
    %309 = vst.msk [vmem:[%s308] ss:$8 sm:$0xf] %vm307, %v306
    %s310 = scalar_lea.vmem [#allocation0], 577
    %311 = vst.msk [vmem:[%s310] ss:$8 sm:$0xf0] %vm307, %v306
    %s312 = scalar_lea.vmem %s0, 80
    %v313 = vld [vmem:[%s312] sm:$0xff]
    %314 = vrot.lane.b32.xlu0 %v313, 116
    %v315 = vpop.permute.xlu0 %314
    %vm316 = vcmask 97280
    %s317 = scalar_lea.vmem [#allocation0], 641
    %318 = vst.msk [vmem:[%s317] ss:$8 sm:$0xf] %vm316, %v315
    %s319 = scalar_lea.vmem [#allocation0], 641
    %320 = vst.msk [vmem:[%s319] ss:$8 sm:$0xf0] %vm316, %v315
    %s321 = scalar_lea.vmem %s0, 88
    %v322 = vld [vmem:[%s321] sm:$0xff]
    %323 = vrot.lane.b32.xlu0 %v322, 116
    %v324 = vpop.permute.xlu0 %323
    %vm325 = vcmask 97280
    %s326 = scalar_lea.vmem [#allocation0], 705
    %327 = vst.msk [vmem:[%s326] ss:$8 sm:$0xf] %vm325, %v324
    %s328 = scalar_lea.vmem [#allocation0], 705
    %329 = vst.msk [vmem:[%s328] ss:$8 sm:$0xf0] %vm325, %v324
    %s330 = scalar_lea.vmem %s0, 96
    %v331 = vld [vmem:[%s330] sm:$0xff]
    %332 = vrot.lane.b32.xlu0 %v331, 116
    %v333 = vpop.permute.xlu0 %332
    %vm334 = vcmask 97280
    %s335 = scalar_lea.vmem [#allocation0], 769
    %336 = vst.msk [vmem:[%s335] ss:$8 sm:$0xf] %vm334, %v333
    %s337 = scalar_lea.vmem [#allocation0], 769
    %338 = vst.msk [vmem:[%s337] ss:$8 sm:$0xf0] %vm334, %v333
    %s339 = scalar_lea.vmem %s0, 104
    %v340 = vld [vmem:[%s339] sm:$0xff]
    %341 = vrot.lane.b32.xlu0 %v340, 116
    %v342 = vpop.permute.xlu0 %341
    %vm343 = vcmask 97280
    %s344 = scalar_lea.vmem [#allocation0], 833
    %345 = vst.msk [vmem:[%s344] ss:$8 sm:$0xf] %vm343, %v342
    %s346 = scalar_lea.vmem [#allocation0], 833
    %347 = vst.msk [vmem:[%s346] ss:$8 sm:$0xf0] %vm343, %v342
    %s348 = scalar_lea.vmem %s0, 112
    %v349 = vld [vmem:[%s348] sm:$0xff]
    %350 = vrot.lane.b32.xlu0 %v349, 116
    %v351 = vpop.permute.xlu0 %350
    %vm352 = vcmask 97280
    %s353 = scalar_lea.vmem [#allocation0], 897
    %354 = vst.msk [vmem:[%s353] ss:$8 sm:$0xf] %vm352, %v351
    %s355 = scalar_lea.vmem [#allocation0], 897
    %356 = vst.msk [vmem:[%s355] ss:$8 sm:$0xf0] %vm352, %v351
    %s357 = scalar_lea.vmem %s0, 120
    %v358 = vld [vmem:[%s357] sm:$0xff]
    %359 = vrot.lane.b32.xlu0 %v358, 116
    %v360 = vpop.permute.xlu0 %359
    %vm361 = vcmask 97280
    %s362 = scalar_lea.vmem [#allocation0], 961
    %363 = vst.msk [vmem:[%s362] ss:$8 sm:$0xf] %vm361, %v360
    %s364 = scalar_lea.vmem [#allocation0], 961
    %365 = vst.msk [vmem:[%s364] ss:$8 sm:$0xf0] %vm361, %v360
    %s366 = scalar_lea.vmem %s0, 128
    %v367 = vld [vmem:[%s366] sm:$0xff]
    %368 = vrot.lane.b32.xlu0 %v367, 116
    %v369 = vpop.permute.xlu0 %368
    %vm370 = vcmask 97280
    %s371 = scalar_lea.vmem [#allocation0], 1025
    %372 = vst.msk [vmem:[%s371] ss:$8 sm:$0xf] %vm370, %v369
    %s373 = scalar_lea.vmem [#allocation0], 1025
    %374 = vst.msk [vmem:[%s373] ss:$8 sm:$0xf0] %vm370, %v369
    %s375 = scalar_lea.vmem %s0, 136
    %v376 = vld [vmem:[%s375] sm:$0xff]
    %377 = vrot.lane.b32.xlu0 %v376, 116
    %v378 = vpop.permute.xlu0 %377
    %vm379 = vcmask 97280
    %s380 = scalar_lea.vmem [#allocation0], 1089
    %381 = vst.msk [vmem:[%s380] ss:$8 sm:$0xf] %vm379, %v378
    %s382 = scalar_lea.vmem [#allocation0], 1089
    %383 = vst.msk [vmem:[%s382] ss:$8 sm:$0xf0] %vm379, %v378
    %s384 = scalar_lea.vmem %s0, 144
    %v385 = vld [vmem:[%s384] sm:$0xff]
    %386 = vrot.lane.b32.xlu0 %v385, 116
    %v387 = vpop.permute.xlu0 %386
    %vm388 = vcmask 97280
    %s389 = scalar_lea.vmem [#allocation0], 1153
    %390 = vst.msk [vmem:[%s389] ss:$8 sm:$0xf] %vm388, %v387
    %s391 = scalar_lea.vmem [#allocation0], 1153
    %392 = vst.msk [vmem:[%s391] ss:$8 sm:$0xf0] %vm388, %v387
    %s393 = scalar_lea.vmem %s0, 152
    %v394 = vld [vmem:[%s393] sm:$0xff]
    %395 = vrot.lane.b32.xlu0 %v394, 116
    %v396 = vpop.permute.xlu0 %395
    %vm397 = vcmask 97280
    %s398 = scalar_lea.vmem [#allocation0], 1217
    %399 = vst.msk [vmem:[%s398] ss:$8 sm:$0xf] %vm397, %v396
    %s400 = scalar_lea.vmem [#allocation0], 1217
    %401 = vst.msk [vmem:[%s400] ss:$8 sm:$0xf0] %vm397, %v396
    %s402 = scalar_lea.vmem %s0, 160
    %v403 = vld [vmem:[%s402] sm:$0xff]
    %404 = vrot.lane.b32.xlu0 %v403, 116
    %v405 = vpop.permute.xlu0 %404
    %vm406 = vcmask 97280
    %s407 = scalar_lea.vmem [#allocation0], 1281
    %408 = vst.msk [vmem:[%s407] ss:$8 sm:$0xf] %vm406, %v405
    %s409 = scalar_lea.vmem [#allocation0], 1281
    %410 = vst.msk [vmem:[%s409] ss:$8 sm:$0xf0] %vm406, %v405
    %s411 = scalar_lea.vmem %s0, 168
    %v412 = vld [vmem:[%s411] sm:$0xff]
    %413 = vrot.lane.b32.xlu0 %v412, 116
    %v414 = vpop.permute.xlu0 %413
    %vm415 = vcmask 97280
    %s416 = scalar_lea.vmem [#allocation0], 1345
    %417 = vst.msk [vmem:[%s416] ss:$8 sm:$0xf] %vm415, %v414
    %s418 = scalar_lea.vmem [#allocation0], 1345
    %419 = vst.msk [vmem:[%s418] ss:$8 sm:$0xf0] %vm415, %v414
    %s420 = scalar_lea.vmem %s0, 176
    %v421 = vld [vmem:[%s420] sm:$0xff]
    %422 = vrot.lane.b32.xlu0 %v421, 116
    %v423 = vpop.permute.xlu0 %422
    %vm424 = vcmask 97280
    %s425 = scalar_lea.vmem [#allocation0], 1409
    %426 = vst.msk [vmem:[%s425] ss:$8 sm:$0xf] %vm424, %v423
    %s427 = scalar_lea.vmem [#allocation0], 1409
    %428 = vst.msk [vmem:[%s427] ss:$8 sm:$0xf0] %vm424, %v423
    %s429 = scalar_lea.vmem %s0, 184
    %v430 = vld [vmem:[%s429] sm:$0xff]
    %431 = vrot.lane.b32.xlu0 %v430, 116
    %v432 = vpop.permute.xlu0 %431
    %vm433 = vcmask 97280
    %s434 = scalar_lea.vmem [#allocation0], 1473
    %435 = vst.msk [vmem:[%s434] ss:$8 sm:$0xf] %vm433, %v432
    %s436 = scalar_lea.vmem [#allocation0], 1473
    %437 = vst.msk [vmem:[%s436] ss:$8 sm:$0xf0] %vm433, %v432
    %s438 = scalar_lea.vmem %s0, 192
    %v439 = vld [vmem:[%s438] sm:$0xff]
    %440 = vrot.lane.b32.xlu0 %v439, 116
    %v441 = vpop.permute.xlu0 %440
    %vm442 = vcmask 97280
    %s443 = scalar_lea.vmem [#allocation0], 1537
    %444 = vst.msk [vmem:[%s443] ss:$8 sm:$0xf] %vm442, %v441
    %s445 = scalar_lea.vmem [#allocation0], 1537
    %446 = vst.msk [vmem:[%s445] ss:$8 sm:$0xf0] %vm442, %v441
    %s447 = scalar_lea.vmem %s0, 200
    %v448 = vld [vmem:[%s447] sm:$0xff]
    %449 = vrot.lane.b32.xlu0 %v448, 116
    %v450 = vpop.permute.xlu0 %449
    %vm451 = vcmask 97280
    %s452 = scalar_lea.vmem [#allocation0], 1601
    %453 = vst.msk [vmem:[%s452] ss:$8 sm:$0xf] %vm451, %v450
    %s454 = scalar_lea.vmem [#allocation0], 1601
    %455 = vst.msk [vmem:[%s454] ss:$8 sm:$0xf0] %vm451, %v450
    %s456 = scalar_lea.vmem %s0, 208
    %v457 = vld [vmem:[%s456] sm:$0xff]
    %458 = vrot.lane.b32.xlu0 %v457, 116
    %v459 = vpop.permute.xlu0 %458
    %vm460 = vcmask 97280
    %s461 = scalar_lea.vmem [#allocation0], 1665
    %462 = vst.msk [vmem:[%s461] ss:$8 sm:$0xf] %vm460, %v459
    %s463 = scalar_lea.vmem [#allocation0], 1665
    %464 = vst.msk [vmem:[%s463] ss:$8 sm:$0xf0] %vm460, %v459
    %s465 = scalar_lea.vmem %s0, 216
    %v466 = vld [vmem:[%s465] sm:$0xff]
    %467 = vrot.lane.b32.xlu0 %v466, 116
    %v468 = vpop.permute.xlu0 %467
    %vm469 = vcmask 97280
    %s470 = scalar_lea.vmem [#allocation0], 1729
    %471 = vst.msk [vmem:[%s470] ss:$8 sm:$0xf] %vm469, %v468
    %s472 = scalar_lea.vmem [#allocation0], 1729
    %473 = vst.msk [vmem:[%s472] ss:$8 sm:$0xf0] %vm469, %v468
    %s474 = scalar_lea.vmem %s0, 224
    %v475 = vld [vmem:[%s474] sm:$0xff]
    %476 = vrot.lane.b32.xlu0 %v475, 116
    %v477 = vpop.permute.xlu0 %476
    %vm478 = vcmask 97280
    %s479 = scalar_lea.vmem [#allocation0], 1793
    %480 = vst.msk [vmem:[%s479] ss:$8 sm:$0xf] %vm478, %v477
    %s481 = scalar_lea.vmem [#allocation0], 1793
    %482 = vst.msk [vmem:[%s481] ss:$8 sm:$0xf0] %vm478, %v477
    %s483 = scalar_lea.vmem %s0, 232
    %v484 = vld [vmem:[%s483] sm:$0xff]
    %485 = vrot.lane.b32.xlu0 %v484, 116
    %v486 = vpop.permute.xlu0 %485
    %vm487 = vcmask 97280
    %s488 = scalar_lea.vmem [#allocation0], 1857
    %489 = vst.msk [vmem:[%s488] ss:$8 sm:$0xf] %vm487, %v486
    %s490 = scalar_lea.vmem [#allocation0], 1857
    %491 = vst.msk [vmem:[%s490] ss:$8 sm:$0xf0] %vm487, %v486
    %s492 = scalar_lea.vmem %s0, 240
    %v493 = vld [vmem:[%s492] sm:$0xff]
    %494 = vrot.lane.b32.xlu0 %v493, 116
    %v495 = vpop.permute.xlu0 %494
    %vm496 = vcmask 97280
    %s497 = scalar_lea.vmem [#allocation0], 1921
    %498 = vst.msk [vmem:[%s497] ss:$8 sm:$0xf] %vm496, %v495
    %s499 = scalar_lea.vmem [#allocation0], 1921
    %500 = vst.msk [vmem:[%s499] ss:$8 sm:$0xf0] %vm496, %v495
    %s501 = scalar_lea.vmem %s0, 248
    %v502 = vld [vmem:[%s501] sm:$0xff]
    %503 = vrot.lane.b32.xlu0 %v502, 116
    %v504 = vpop.permute.xlu0 %503
    %vm505 = vcmask 97280
    %s506 = scalar_lea.vmem [#allocation0], 1985
    %507 = vst.msk [vmem:[%s506] ss:$8 sm:$0xf] %vm505, %v504
    %s508 = scalar_lea.vmem [#allocation0], 1985
    %509 = vst.msk [vmem:[%s508] ss:$8 sm:$0xf0] %vm505, %v504
    %s511 = sshll.u32 1, 2
    %s512 = ssub.s32 %s511, 1
    %v514 = vld [vmem:[#allocation0] sm:%s512]
    %s515 = sshll.u32 1, 2
    %s516 = ssub.s32 %s515, 1
    %517 = vst [vmem:[%s1] sm:%s516] %v514
    %s518 = scalar_lea.vmem [#allocation0], 8
    %v519 = vld [vmem:[%s518] sm:%s512]
    %s520 = sshll.u32 1, 2
    %s521 = ssub.s32 %s520, 1
    %s522 = scalar_lea.vmem %s1, 2
    %523 = vst [vmem:[%s522] sm:%s521] %v519
    %s524 = scalar_lea.vmem [#allocation0], 16
    %v525 = vld [vmem:[%s524] sm:%s512]
    %s526 = sshll.u32 1, 2
    %s527 = ssub.s32 %s526, 1
    %s528 = smul.addr 2, 2
    %s529 = scalar_lea.vmem %s1, %s528
    %530 = vst [vmem:[%s529] sm:%s527] %v525
    %s531 = scalar_lea.vmem [#allocation0], 24
    %v532 = vld [vmem:[%s531] sm:%s512]
    %s533 = sshll.u32 1, 2
    %s534 = ssub.s32 %s533, 1
    %s535 = smul.addr 2, 3
    %s536 = scalar_lea.vmem %s1, %s535
    %537 = vst [vmem:[%s536] sm:%s534] %v532
    %s538 = scalar_lea.vmem [#allocation0], 32
    %v539 = vld [vmem:[%s538] sm:%s512]
    %s540 = sshll.u32 1, 2
    %s541 = ssub.s32 %s540, 1
    %s542 = smul.addr 2, 4
    %s543 = scalar_lea.vmem %s1, %s542
    %544 = vst [vmem:[%s543] sm:%s541] %v539
    %s545 = scalar_lea.vmem [#allocation0], 40
    %v546 = vld [vmem:[%s545] sm:%s512]
    %s547 = sshll.u32 1, 2
    %s548 = ssub.s32 %s547, 1
    %s549 = smul.addr 2, 5
    %s550 = scalar_lea.vmem %s1, %s549
    %551 = vst [vmem:[%s550] sm:%s548] %v546
    %s552 = scalar_lea.vmem [#allocation0], 48
    %v553 = vld [vmem:[%s552] sm:%s512]
    %s554 = sshll.u32 1, 2
    %s555 = ssub.s32 %s554, 1
    %s556 = smul.addr 2, 6
    %s557 = scalar_lea.vmem %s1, %s556
    %558 = vst [vmem:[%s557] sm:%s555] %v553
    %s559 = scalar_lea.vmem [#allocation0], 56
    %v560 = vld [vmem:[%s559] sm:%s512]
    %s561 = sshll.u32 1, 2
    %s562 = ssub.s32 %s561, 1
    %s563 = smul.addr 2, 7
    %s564 = scalar_lea.vmem %s1, %s563
    %565 = vst [vmem:[%s564] sm:%s562] %v560
    %s566 = scalar_lea.vmem [#allocation0], 64
    %v567 = vld [vmem:[%s566] sm:%s512]
    %s568 = sshll.u32 1, 2
    %s569 = ssub.s32 %s568, 1
    %s570 = smul.addr 2, 8
    %s571 = scalar_lea.vmem %s1, %s570
    %572 = vst [vmem:[%s571] sm:%s569] %v567
    %s573 = scalar_lea.vmem [#allocation0], 72
    %v574 = vld [vmem:[%s573] sm:%s512]
    %s575 = sshll.u32 1, 2
    %s576 = ssub.s32 %s575, 1
    %s577 = smul.addr 2, 9
    %s578 = scalar_lea.vmem %s1, %s577
    %579 = vst [vmem:[%s578] sm:%s576] %v574
    %s580 = scalar_lea.vmem [#allocation0], 80
    %v581 = vld [vmem:[%s580] sm:%s512]
    %s582 = sshll.u32 1, 2
    %s583 = ssub.s32 %s582, 1
    %s584 = smul.addr 2, 10
    %s585 = scalar_lea.vmem %s1, %s584
    %586 = vst [vmem:[%s585] sm:%s583] %v581
    %s587 = scalar_lea.vmem [#allocation0], 88
    %v588 = vld [vmem:[%s587] sm:%s512]
    %s589 = sshll.u32 1, 2
    %s590 = ssub.s32 %s589, 1
    %s591 = smul.addr 2, 11
    %s592 = scalar_lea.vmem %s1, %s591
    %593 = vst [vmem:[%s592] sm:%s590] %v588
    %s594 = scalar_lea.vmem [#allocation0], 96
    %v595 = vld [vmem:[%s594] sm:%s512]
    %s596 = sshll.u32 1, 2
    %s597 = ssub.s32 %s596, 1
    %s598 = smul.addr 2, 12
    %s599 = scalar_lea.vmem %s1, %s598
    %600 = vst [vmem:[%s599] sm:%s597] %v595
    %s601 = scalar_lea.vmem [#allocation0], 104
    %v602 = vld [vmem:[%s601] sm:%s512]
    %s603 = sshll.u32 1, 2
    %s604 = ssub.s32 %s603, 1
    %s605 = smul.addr 2, 13
    %s606 = scalar_lea.vmem %s1, %s605
    %607 = vst [vmem:[%s606] sm:%s604] %v602
    %s608 = scalar_lea.vmem [#allocation0], 112
    %v609 = vld [vmem:[%s608] sm:%s512]
    %s610 = sshll.u32 1, 2
    %s611 = ssub.s32 %s610, 1
    %s612 = smul.addr 2, 14
    %s613 = scalar_lea.vmem %s1, %s612
    %614 = vst [vmem:[%s613] sm:%s611] %v609
    %s615 = scalar_lea.vmem [#allocation0], 120
    %v616 = vld [vmem:[%s615] sm:%s512]
    %s617 = sshll.u32 1, 2
    %s618 = ssub.s32 %s617, 1
    %s619 = smul.addr 2, 15
    %s620 = scalar_lea.vmem %s1, %s619
    %621 = vst [vmem:[%s620] sm:%s618] %v616
    %s622 = scalar_lea.vmem [#allocation0], 128
    %v623 = vld [vmem:[%s622] sm:%s512]
    %s624 = sshll.u32 1, 2
    %s625 = ssub.s32 %s624, 1
    %s626 = smul.addr 2, 16
    %s627 = scalar_lea.vmem %s1, %s626
    %628 = vst [vmem:[%s627] sm:%s625] %v623
    %s629 = scalar_lea.vmem [#allocation0], 136
    %v630 = vld [vmem:[%s629] sm:%s512]
    %s631 = sshll.u32 1, 2
    %s632 = ssub.s32 %s631, 1
    %s633 = smul.addr 2, 17
    %s634 = scalar_lea.vmem %s1, %s633
    %635 = vst [vmem:[%s634] sm:%s632] %v630
    %s636 = scalar_lea.vmem [#allocation0], 144
    %v637 = vld [vmem:[%s636] sm:%s512]
    %s638 = sshll.u32 1, 2
    %s639 = ssub.s32 %s638, 1
    %s640 = smul.addr 2, 18
    %s641 = scalar_lea.vmem %s1, %s640
    %642 = vst [vmem:[%s641] sm:%s639] %v637
    %s643 = scalar_lea.vmem [#allocation0], 152
    %v644 = vld [vmem:[%s643] sm:%s512]
    %s645 = sshll.u32 1, 2
    %s646 = ssub.s32 %s645, 1
    %s647 = smul.addr 2, 19
    %s648 = scalar_lea.vmem %s1, %s647
    %649 = vst [vmem:[%s648] sm:%s646] %v644
    %s650 = scalar_lea.vmem [#allocation0], 160
    %v651 = vld [vmem:[%s650] sm:%s512]
    %s652 = sshll.u32 1, 2
    %s653 = ssub.s32 %s652, 1
    %s654 = smul.addr 2, 20
    %s655 = scalar_lea.vmem %s1, %s654
    %656 = vst [vmem:[%s655] sm:%s653] %v651
    %s657 = scalar_lea.vmem [#allocation0], 168
    %v658 = vld [vmem:[%s657] sm:%s512]
    %s659 = sshll.u32 1, 2
    %s660 = ssub.s32 %s659, 1
    %s661 = smul.addr 2, 21
    %s662 = scalar_lea.vmem %s1, %s661
    %663 = vst [vmem:[%s662] sm:%s660] %v658
    %s664 = scalar_lea.vmem [#allocation0], 176
    %v665 = vld [vmem:[%s664] sm:%s512]
    %s666 = sshll.u32 1, 2
    %s667 = ssub.s32 %s666, 1
    %s668 = smul.addr 2, 22
    %s669 = scalar_lea.vmem %s1, %s668
    %670 = vst [vmem:[%s669] sm:%s667] %v665
    %s671 = scalar_lea.vmem [#allocation0], 184
    %v672 = vld [vmem:[%s671] sm:%s512]
    %s673 = sshll.u32 1, 2
    %s674 = ssub.s32 %s673, 1
    %s675 = smul.addr 2, 23
    %s676 = scalar_lea.vmem %s1, %s675
    %677 = vst [vmem:[%s676] sm:%s674] %v672
    %s678 = scalar_lea.vmem [#allocation0], 192
    %v679 = vld [vmem:[%s678] sm:%s512]
    %s680 = sshll.u32 1, 2
    %s681 = ssub.s32 %s680, 1
    %s682 = smul.addr 2, 24
    %s683 = scalar_lea.vmem %s1, %s682
    %684 = vst [vmem:[%s683] sm:%s681] %v679
    %s685 = scalar_lea.vmem [#allocation0], 200
    %v686 = vld [vmem:[%s685] sm:%s512]
    %s687 = sshll.u32 1, 2
    %s688 = ssub.s32 %s687, 1
    %s689 = smul.addr 2, 25
    %s690 = scalar_lea.vmem %s1, %s689
    %691 = vst [vmem:[%s690] sm:%s688] %v686
    %s692 = scalar_lea.vmem [#allocation0], 208
    %v693 = vld [vmem:[%s692] sm:%s512]
    %s694 = sshll.u32 1, 2
    %s695 = ssub.s32 %s694, 1
    %s696 = smul.addr 2, 26
    %s697 = scalar_lea.vmem %s1, %s696
    %698 = vst [vmem:[%s697] sm:%s695] %v693
    %s699 = scalar_lea.vmem [#allocation0], 216
    %v700 = vld [vmem:[%s699] sm:%s512]
    %s701 = sshll.u32 1, 2
    %s702 = ssub.s32 %s701, 1
    %s703 = smul.addr 2, 27
    %s704 = scalar_lea.vmem %s1, %s703
    %705 = vst [vmem:[%s704] sm:%s702] %v700
    %s706 = scalar_lea.vmem [#allocation0], 224
    %v707 = vld [vmem:[%s706] sm:%s512]
    %s708 = sshll.u32 1, 2
    %s709 = ssub.s32 %s708, 1
    %s710 = smul.addr 2, 28
    %s711 = scalar_lea.vmem %s1, %s710
    %712 = vst [vmem:[%s711] sm:%s709] %v707
    %s713 = scalar_lea.vmem [#allocation0], 232
    %v714 = vld [vmem:[%s713] sm:%s512]
    %s715 = sshll.u32 1, 2
    %s716 = ssub.s32 %s715, 1
    %s717 = smul.addr 2, 29
    %s718 = scalar_lea.vmem %s1, %s717
    %719 = vst [vmem:[%s718] sm:%s716] %v714
    %s720 = scalar_lea.vmem [#allocation0], 240
    %v721 = vld [vmem:[%s720] sm:%s512]
    %s722 = sshll.u32 1, 2
    %s723 = ssub.s32 %s722, 1
    %s724 = smul.addr 2, 30
    %s725 = scalar_lea.vmem %s1, %s724
    %726 = vst [vmem:[%s725] sm:%s723] %v721
    %s727 = scalar_lea.vmem [#allocation0], 248
    %v728 = vld [vmem:[%s727] sm:%s512]
    %s729 = sshll.u32 1, 2
    %s730 = ssub.s32 %s729, 1
    %s731 = smul.addr 2, 31
    %s732 = scalar_lea.vmem %s1, %s731
    %733 = vst [vmem:[%s732] sm:%s730] %v728
    %s734 = scalar_lea.vmem [#allocation0], 256
    %v735 = vld [vmem:[%s734] sm:%s512]
    %s736 = sshll.u32 1, 2
    %s737 = ssub.s32 %s736, 1
    %s738 = smul.addr 2, 32
    %s739 = scalar_lea.vmem %s1, %s738
    %740 = vst [vmem:[%s739] sm:%s737] %v735
    %s741 = scalar_lea.vmem [#allocation0], 264
    %v742 = vld [vmem:[%s741] sm:%s512]
    %s743 = sshll.u32 1, 2
    %s744 = ssub.s32 %s743, 1
    %s745 = smul.addr 2, 33
    %s746 = scalar_lea.vmem %s1, %s745
    %747 = vst [vmem:[%s746] sm:%s744] %v742
    %s748 = scalar_lea.vmem [#allocation0], 272
    %v749 = vld [vmem:[%s748] sm:%s512]
    %s750 = sshll.u32 1, 2
    %s751 = ssub.s32 %s750, 1
    %s752 = smul.addr 2, 34
    %s753 = scalar_lea.vmem %s1, %s752
    %754 = vst [vmem:[%s753] sm:%s751] %v749
    %s755 = scalar_lea.vmem [#allocation0], 280
    %v756 = vld [vmem:[%s755] sm:%s512]
    %s757 = sshll.u32 1, 2
    %s758 = ssub.s32 %s757, 1
    %s759 = smul.addr 2, 35
    %s760 = scalar_lea.vmem %s1, %s759
    %761 = vst [vmem:[%s760] sm:%s758] %v756
    %s762 = scalar_lea.vmem [#allocation0], 288
    %v763 = vld [vmem:[%s762] sm:%s512]
    %s764 = sshll.u32 1, 2
    %s765 = ssub.s32 %s764, 1
    %s766 = smul.addr 2, 36
    %s767 = scalar_lea.vmem %s1, %s766
    %768 = vst [vmem:[%s767] sm:%s765] %v763
    %s769 = scalar_lea.vmem [#allocation0], 296
    %v770 = vld [vmem:[%s769] sm:%s512]
    %s771 = sshll.u32 1, 2
    %s772 = ssub.s32 %s771, 1
    %s773 = smul.addr 2, 37
    %s774 = scalar_lea.vmem %s1, %s773
    %775 = vst [vmem:[%s774] sm:%s772] %v770
    %s776 = scalar_lea.vmem [#allocation0], 304
    %v777 = vld [vmem:[%s776] sm:%s512]
    %s778 = sshll.u32 1, 2
    %s779 = ssub.s32 %s778, 1
    %s780 = smul.addr 2, 38
    %s781 = scalar_lea.vmem %s1, %s780
    %782 = vst [vmem:[%s781] sm:%s779] %v777
    %s783 = scalar_lea.vmem [#allocation0], 312
    %v784 = vld [vmem:[%s783] sm:%s512]
    %s785 = sshll.u32 1, 2
    %s786 = ssub.s32 %s785, 1
    %s787 = smul.addr 2, 39
    %s788 = scalar_lea.vmem %s1, %s787
    %789 = vst [vmem:[%s788] sm:%s786] %v784
    %s790 = scalar_lea.vmem [#allocation0], 320
    %v791 = vld [vmem:[%s790] sm:%s512]
    %s792 = sshll.u32 1, 2
    %s793 = ssub.s32 %s792, 1
    %s794 = smul.addr 2, 40
    %s795 = scalar_lea.vmem %s1, %s794
    %796 = vst [vmem:[%s795] sm:%s793] %v791
    %s797 = scalar_lea.vmem [#allocation0], 328
    %v798 = vld [vmem:[%s797] sm:%s512]
    %s799 = sshll.u32 1, 2
    %s800 = ssub.s32 %s799, 1
    %s801 = smul.addr 2, 41
    %s802 = scalar_lea.vmem %s1, %s801
    %803 = vst [vmem:[%s802] sm:%s800] %v798
    %s804 = scalar_lea.vmem [#allocation0], 336
    %v805 = vld [vmem:[%s804] sm:%s512]
    %s806 = sshll.u32 1, 2
    %s807 = ssub.s32 %s806, 1
    %s808 = smul.addr 2, 42
    %s809 = scalar_lea.vmem %s1, %s808
    %810 = vst [vmem:[%s809] sm:%s807] %v805
    %s811 = scalar_lea.vmem [#allocation0], 344
    %v812 = vld [vmem:[%s811] sm:%s512]
    %s813 = sshll.u32 1, 2
    %s814 = ssub.s32 %s813, 1
    %s815 = smul.addr 2, 43
    %s816 = scalar_lea.vmem %s1, %s815
    %817 = vst [vmem:[%s816] sm:%s814] %v812
    %s818 = scalar_lea.vmem [#allocation0], 352
    %v819 = vld [vmem:[%s818] sm:%s512]
    %s820 = sshll.u32 1, 2
    %s821 = ssub.s32 %s820, 1
    %s822 = smul.addr 2, 44
    %s823 = scalar_lea.vmem %s1, %s822
    %824 = vst [vmem:[%s823] sm:%s821] %v819
    %s825 = scalar_lea.vmem [#allocation0], 360
    %v826 = vld [vmem:[%s825] sm:%s512]
    %s827 = sshll.u32 1, 2
    %s828 = ssub.s32 %s827, 1
    %s829 = smul.addr 2, 45
    %s830 = scalar_lea.vmem %s1, %s829
    %831 = vst [vmem:[%s830] sm:%s828] %v826
    %s832 = scalar_lea.vmem [#allocation0], 368
    %v833 = vld [vmem:[%s832] sm:%s512]
    %s834 = sshll.u32 1, 2
    %s835 = ssub.s32 %s834, 1
    %s836 = smul.addr 2, 46
    %s837 = scalar_lea.vmem %s1, %s836
    %838 = vst [vmem:[%s837] sm:%s835] %v833
    %s839 = scalar_lea.vmem [#allocation0], 376
    %v840 = vld [vmem:[%s839] sm:%s512]
    %s841 = sshll.u32 1, 2
    %s842 = ssub.s32 %s841, 1
    %s843 = smul.addr 2, 47
    %s844 = scalar_lea.vmem %s1, %s843
    %845 = vst [vmem:[%s844] sm:%s842] %v840
    %s846 = scalar_lea.vmem [#allocation0], 384
    %v847 = vld [vmem:[%s846] sm:%s512]
    %s848 = sshll.u32 1, 2
    %s849 = ssub.s32 %s848, 1
    %s850 = smul.addr 2, 48
    %s851 = scalar_lea.vmem %s1, %s850
    %852 = vst [vmem:[%s851] sm:%s849] %v847
    %s853 = scalar_lea.vmem [#allocation0], 392
    %v854 = vld [vmem:[%s853] sm:%s512]
    %s855 = sshll.u32 1, 2
    %s856 = ssub.s32 %s855, 1
    %s857 = smul.addr 2, 49
    %s858 = scalar_lea.vmem %s1, %s857
    %859 = vst [vmem:[%s858] sm:%s856] %v854
    %s860 = scalar_lea.vmem [#allocation0], 400
    %v861 = vld [vmem:[%s860] sm:%s512]
    %s862 = sshll.u32 1, 2
    %s863 = ssub.s32 %s862, 1
    %s864 = smul.addr 2, 50
    %s865 = scalar_lea.vmem %s1, %s864
    %866 = vst [vmem:[%s865] sm:%s863] %v861
    %s867 = scalar_lea.vmem [#allocation0], 408
    %v868 = vld [vmem:[%s867] sm:%s512]
    %s869 = sshll.u32 1, 2
    %s870 = ssub.s32 %s869, 1
    %s871 = smul.addr 2, 51
    %s872 = scalar_lea.vmem %s1, %s871
    %873 = vst [vmem:[%s872] sm:%s870] %v868
    %s874 = scalar_lea.vmem [#allocation0], 416
    %v875 = vld [vmem:[%s874] sm:%s512]
    %s876 = sshll.u32 1, 2
    %s877 = ssub.s32 %s876, 1
    %s878 = smul.addr 2, 52
    %s879 = scalar_lea.vmem %s1, %s878
    %880 = vst [vmem:[%s879] sm:%s877] %v875
    %s881 = scalar_lea.vmem [#allocation0], 424
    %v882 = vld [vmem:[%s881] sm:%s512]
    %s883 = sshll.u32 1, 2
    %s884 = ssub.s32 %s883, 1
    %s885 = smul.addr 2, 53
    %s886 = scalar_lea.vmem %s1, %s885
    %887 = vst [vmem:[%s886] sm:%s884] %v882
    %s888 = scalar_lea.vmem [#allocation0], 432
    %v889 = vld [vmem:[%s888] sm:%s512]
    %s890 = sshll.u32 1, 2
    %s891 = ssub.s32 %s890, 1
    %s892 = smul.addr 2, 54
    %s893 = scalar_lea.vmem %s1, %s892
    %894 = vst [vmem:[%s893] sm:%s891] %v889
    %s895 = scalar_lea.vmem [#allocation0], 440
    %v896 = vld [vmem:[%s895] sm:%s512]
    %s897 = sshll.u32 1, 2
    %s898 = ssub.s32 %s897, 1
    %s899 = smul.addr 2, 55
    %s900 = scalar_lea.vmem %s1, %s899
    %901 = vst [vmem:[%s900] sm:%s898] %v896
    %s902 = scalar_lea.vmem [#allocation0], 448
    %v903 = vld [vmem:[%s902] sm:%s512]
    %s904 = sshll.u32 1, 2
    %s905 = ssub.s32 %s904, 1
    %s906 = smul.addr 2, 56
    %s907 = scalar_lea.vmem %s1, %s906
    %908 = vst [vmem:[%s907] sm:%s905] %v903
    %s909 = scalar_lea.vmem [#allocation0], 456
    %v910 = vld [vmem:[%s909] sm:%s512]
    %s911 = sshll.u32 1, 2
    %s912 = ssub.s32 %s911, 1
    %s913 = smul.addr 2, 57
    %s914 = scalar_lea.vmem %s1, %s913
    %915 = vst [vmem:[%s914] sm:%s912] %v910
    %s916 = scalar_lea.vmem [#allocation0], 464
    %v917 = vld [vmem:[%s916] sm:%s512]
    %s918 = sshll.u32 1, 2
    %s919 = ssub.s32 %s918, 1
    %s920 = smul.addr 2, 58
    %s921 = scalar_lea.vmem %s1, %s920
    %922 = vst [vmem:[%s921] sm:%s919] %v917
    %s923 = scalar_lea.vmem [#allocation0], 472
    %v924 = vld [vmem:[%s923] sm:%s512]
    %s925 = sshll.u32 1, 2
    %s926 = ssub.s32 %s925, 1
    %s927 = smul.addr 2, 59
    %s928 = scalar_lea.vmem %s1, %s927
    %929 = vst [vmem:[%s928] sm:%s926] %v924
    %s930 = scalar_lea.vmem [#allocation0], 480
    %v931 = vld [vmem:[%s930] sm:%s512]
    %s932 = sshll.u32 1, 2
    %s933 = ssub.s32 %s932, 1
    %s934 = smul.addr 2, 60
    %s935 = scalar_lea.vmem %s1, %s934
    %936 = vst [vmem:[%s935] sm:%s933] %v931
    %s937 = scalar_lea.vmem [#allocation0], 488
    %v938 = vld [vmem:[%s937] sm:%s512]
    %s939 = sshll.u32 1, 2
    %s940 = ssub.s32 %s939, 1
    %s941 = smul.addr 2, 61
    %s942 = scalar_lea.vmem %s1, %s941
    %943 = vst [vmem:[%s942] sm:%s940] %v938
    %s944 = scalar_lea.vmem [#allocation0], 496
    %v945 = vld [vmem:[%s944] sm:%s512]
    %s946 = sshll.u32 1, 2
    %s947 = ssub.s32 %s946, 1
    %s948 = smul.addr 2, 62
    %s949 = scalar_lea.vmem %s1, %s948
    %950 = vst [vmem:[%s949] sm:%s947] %v945
    %s951 = scalar_lea.vmem [#allocation0], 504
    %v952 = vld [vmem:[%s951] sm:%s512]
    %s953 = sshll.u32 1, 2
    %s954 = ssub.s32 %s953, 1
    %s955 = smul.addr 2, 63
    %s956 = scalar_lea.vmem %s1, %s955
    %957 = vst [vmem:[%s956] sm:%s954] %v952
    %s958 = scalar_lea.vmem [#allocation0], 512
    %v959 = vld [vmem:[%s958] sm:%s512]
    %s960 = sshll.u32 1, 2
    %s961 = ssub.s32 %s960, 1
    %s962 = smul.addr 2, 64
    %s963 = scalar_lea.vmem %s1, %s962
    %964 = vst [vmem:[%s963] sm:%s961] %v959
    %s965 = scalar_lea.vmem [#allocation0], 520
    %v966 = vld [vmem:[%s965] sm:%s512]
    %s967 = sshll.u32 1, 2
    %s968 = ssub.s32 %s967, 1
    %s969 = smul.addr 2, 65
    %s970 = scalar_lea.vmem %s1, %s969
    %971 = vst [vmem:[%s970] sm:%s968] %v966
    %s972 = scalar_lea.vmem [#allocation0], 528
    %v973 = vld [vmem:[%s972] sm:%s512]
    %s974 = sshll.u32 1, 2
    %s975 = ssub.s32 %s974, 1
    %s976 = smul.addr 2, 66
    %s977 = scalar_lea.vmem %s1, %s976
    %978 = vst [vmem:[%s977] sm:%s975] %v973
    %s979 = scalar_lea.vmem [#allocation0], 536
    %v980 = vld [vmem:[%s979] sm:%s512]
    %s981 = sshll.u32 1, 2
    %s982 = ssub.s32 %s981, 1
    %s983 = smul.addr 2, 67
    %s984 = scalar_lea.vmem %s1, %s983
    %985 = vst [vmem:[%s984] sm:%s982] %v980
    %s986 = scalar_lea.vmem [#allocation0], 544
    %v987 = vld [vmem:[%s986] sm:%s512]
    %s988 = sshll.u32 1, 2
    %s989 = ssub.s32 %s988, 1
    %s990 = smul.addr 2, 68
    %s991 = scalar_lea.vmem %s1, %s990
    %992 = vst [vmem:[%s991] sm:%s989] %v987
    %s993 = scalar_lea.vmem [#allocation0], 552
    %v994 = vld [vmem:[%s993] sm:%s512]
    %s995 = sshll.u32 1, 2
    %s996 = ssub.s32 %s995, 1
    %s997 = smul.addr 2, 69
    %s998 = scalar_lea.vmem %s1, %s997
    %999 = vst [vmem:[%s998] sm:%s996] %v994
    %s1000 = scalar_lea.vmem [#allocation0], 560
    %v1001 = vld [vmem:[%s1000] sm:%s512]
    %s1002 = sshll.u32 1, 2
    %s1003 = ssub.s32 %s1002, 1
    %s1004 = smul.addr 2, 70
    %s1005 = scalar_lea.vmem %s1, %s1004
    %1006 = vst [vmem:[%s1005] sm:%s1003] %v1001
    %s1007 = scalar_lea.vmem [#allocation0], 568
    %v1008 = vld [vmem:[%s1007] sm:%s512]
    %s1009 = sshll.u32 1, 2
    %s1010 = ssub.s32 %s1009, 1
    %s1011 = smul.addr 2, 71
    %s1012 = scalar_lea.vmem %s1, %s1011
    %1013 = vst [vmem:[%s1012] sm:%s1010] %v1008
    %s1014 = scalar_lea.vmem [#allocation0], 576
    %v1015 = vld [vmem:[%s1014] sm:%s512]
    %s1016 = sshll.u32 1, 2
    %s1017 = ssub.s32 %s1016, 1
    %s1018 = smul.addr 2, 72
    %s1019 = scalar_lea.vmem %s1, %s1018
    %1020 = vst [vmem:[%s1019] sm:%s1017] %v1015
    %s1021 = scalar_lea.vmem [#allocation0], 584
    %v1022 = vld [vmem:[%s1021] sm:%s512]
    %s1023 = sshll.u32 1, 2
    %s1024 = ssub.s32 %s1023, 1
    %s1025 = smul.addr 2, 73
    %s1026 = scalar_lea.vmem %s1, %s1025
    %1027 = vst [vmem:[%s1026] sm:%s1024] %v1022
    %s1028 = scalar_lea.vmem [#allocation0], 592
    %v1029 = vld [vmem:[%s1028] sm:%s512]
    %s1030 = sshll.u32 1, 2
    %s1031 = ssub.s32 %s1030, 1
    %s1032 = smul.addr 2, 74
    %s1033 = scalar_lea.vmem %s1, %s1032
    %1034 = vst [vmem:[%s1033] sm:%s1031] %v1029
    %s1035 = scalar_lea.vmem [#allocation0], 600
    %v1036 = vld [vmem:[%s1035] sm:%s512]
    %s1037 = sshll.u32 1, 2
    %s1038 = ssub.s32 %s1037, 1
    %s1039 = smul.addr 2, 75
    %s1040 = scalar_lea.vmem %s1, %s1039
    %1041 = vst [vmem:[%s1040] sm:%s1038] %v1036
    %s1042 = scalar_lea.vmem [#allocation0], 608
    %v1043 = vld [vmem:[%s1042] sm:%s512]
    %s1044 = sshll.u32 1, 2
    %s1045 = ssub.s32 %s1044, 1
    %s1046 = smul.addr 2, 76
    %s1047 = scalar_lea.vmem %s1, %s1046
    %1048 = vst [vmem:[%s1047] sm:%s1045] %v1043
    %s1049 = scalar_lea.vmem [#allocation0], 616
    %v1050 = vld [vmem:[%s1049] sm:%s512]
    %s1051 = sshll.u32 1, 2
    %s1052 = ssub.s32 %s1051, 1
    %s1053 = smul.addr 2, 77
    %s1054 = scalar_lea.vmem %s1, %s1053
    %1055 = vst [vmem:[%s1054] sm:%s1052] %v1050
    %s1056 = scalar_lea.vmem [#allocation0], 624
    %v1057 = vld [vmem:[%s1056] sm:%s512]
    %s1058 = sshll.u32 1, 2
    %s1059 = ssub.s32 %s1058, 1
    %s1060 = smul.addr 2, 78
    %s1061 = scalar_lea.vmem %s1, %s1060
    %1062 = vst [vmem:[%s1061] sm:%s1059] %v1057
    %s1063 = scalar_lea.vmem [#allocation0], 632
    %v1064 = vld [vmem:[%s1063] sm:%s512]
    %s1065 = sshll.u32 1, 2
    %s1066 = ssub.s32 %s1065, 1
    %s1067 = smul.addr 2, 79
    %s1068 = scalar_lea.vmem %s1, %s1067
    %1069 = vst [vmem:[%s1068] sm:%s1066] %v1064
    %s1070 = scalar_lea.vmem [#allocation0], 640
    %v1071 = vld [vmem:[%s1070] sm:%s512]
    %s1072 = sshll.u32 1, 2
    %s1073 = ssub.s32 %s1072, 1
    %s1074 = smul.addr 2, 80
    %s1075 = scalar_lea.vmem %s1, %s1074
    %1076 = vst [vmem:[%s1075] sm:%s1073] %v1071
    %s1077 = scalar_lea.vmem [#allocation0], 648
    %v1078 = vld [vmem:[%s1077] sm:%s512]
    %s1079 = sshll.u32 1, 2
    %s1080 = ssub.s32 %s1079, 1
    %s1081 = smul.addr 2, 81
    %s1082 = scalar_lea.vmem %s1, %s1081
    %1083 = vst [vmem:[%s1082] sm:%s1080] %v1078
    %s1084 = scalar_lea.vmem [#allocation0], 656
    %v1085 = vld [vmem:[%s1084] sm:%s512]
    %s1086 = sshll.u32 1, 2
    %s1087 = ssub.s32 %s1086, 1
    %s1088 = smul.addr 2, 82
    %s1089 = scalar_lea.vmem %s1, %s1088
    %1090 = vst [vmem:[%s1089] sm:%s1087] %v1085
    %s1091 = scalar_lea.vmem [#allocation0], 664
    %v1092 = vld [vmem:[%s1091] sm:%s512]
    %s1093 = sshll.u32 1, 2
    %s1094 = ssub.s32 %s1093, 1
    %s1095 = smul.addr 2, 83
    %s1096 = scalar_lea.vmem %s1, %s1095
    %1097 = vst [vmem:[%s1096] sm:%s1094] %v1092
    %s1098 = scalar_lea.vmem [#allocation0], 672
    %v1099 = vld [vmem:[%s1098] sm:%s512]
    %s1100 = sshll.u32 1, 2
    %s1101 = ssub.s32 %s1100, 1
    %s1102 = smul.addr 2, 84
    %s1103 = scalar_lea.vmem %s1, %s1102
    %1104 = vst [vmem:[%s1103] sm:%s1101] %v1099
    %s1105 = scalar_lea.vmem [#allocation0], 680
    %v1106 = vld [vmem:[%s1105] sm:%s512]
    %s1107 = sshll.u32 1, 2
    %s1108 = ssub.s32 %s1107, 1
    %s1109 = smul.addr 2, 85
    %s1110 = scalar_lea.vmem %s1, %s1109
    %1111 = vst [vmem:[%s1110] sm:%s1108] %v1106
    %s1112 = scalar_lea.vmem [#allocation0], 688
    %v1113 = vld [vmem:[%s1112] sm:%s512]
    %s1114 = sshll.u32 1, 2
    %s1115 = ssub.s32 %s1114, 1
    %s1116 = smul.addr 2, 86
    %s1117 = scalar_lea.vmem %s1, %s1116
    %1118 = vst [vmem:[%s1117] sm:%s1115] %v1113
    %s1119 = scalar_lea.vmem [#allocation0], 696
    %v1120 = vld [vmem:[%s1119] sm:%s512]
    %s1121 = sshll.u32 1, 2
    %s1122 = ssub.s32 %s1121, 1
    %s1123 = smul.addr 2, 87
    %s1124 = scalar_lea.vmem %s1, %s1123
    %1125 = vst [vmem:[%s1124] sm:%s1122] %v1120
    %s1126 = scalar_lea.vmem [#allocation0], 704
    %v1127 = vld [vmem:[%s1126] sm:%s512]
    %s1128 = sshll.u32 1, 2
    %s1129 = ssub.s32 %s1128, 1
    %s1130 = smul.addr 2, 88
    %s1131 = scalar_lea.vmem %s1, %s1130
    %1132 = vst [vmem:[%s1131] sm:%s1129] %v1127
    %s1133 = scalar_lea.vmem [#allocation0], 712
    %v1134 = vld [vmem:[%s1133] sm:%s512]
    %s1135 = sshll.u32 1, 2
    %s1136 = ssub.s32 %s1135, 1
    %s1137 = smul.addr 2, 89
    %s1138 = scalar_lea.vmem %s1, %s1137
    %1139 = vst [vmem:[%s1138] sm:%s1136] %v1134
    %s1140 = scalar_lea.vmem [#allocation0], 720
    %v1141 = vld [vmem:[%s1140] sm:%s512]
    %s1142 = sshll.u32 1, 2
    %s1143 = ssub.s32 %s1142, 1
    %s1144 = smul.addr 2, 90
    %s1145 = scalar_lea.vmem %s1, %s1144
    %1146 = vst [vmem:[%s1145] sm:%s1143] %v1141
    %s1147 = scalar_lea.vmem [#allocation0], 728
    %v1148 = vld [vmem:[%s1147] sm:%s512]
    %s1149 = sshll.u32 1, 2
    %s1150 = ssub.s32 %s1149, 1
    %s1151 = smul.addr 2, 91
    %s1152 = scalar_lea.vmem %s1, %s1151
    %1153 = vst [vmem:[%s1152] sm:%s1150] %v1148
    %s1154 = scalar_lea.vmem [#allocation0], 736
    %v1155 = vld [vmem:[%s1154] sm:%s512]
    %s1156 = sshll.u32 1, 2
    %s1157 = ssub.s32 %s1156, 1
    %s1158 = smul.addr 2, 92
    %s1159 = scalar_lea.vmem %s1, %s1158
    %1160 = vst [vmem:[%s1159] sm:%s1157] %v1155
    %s1161 = scalar_lea.vmem [#allocation0], 744
    %v1162 = vld [vmem:[%s1161] sm:%s512]
    %s1163 = sshll.u32 1, 2
    %s1164 = ssub.s32 %s1163, 1
    %s1165 = smul.addr 2, 93
    %s1166 = scalar_lea.vmem %s1, %s1165
    %1167 = vst [vmem:[%s1166] sm:%s1164] %v1162
    %s1168 = scalar_lea.vmem [#allocation0], 752
    %v1169 = vld [vmem:[%s1168] sm:%s512]
    %s1170 = sshll.u32 1, 2
    %s1171 = ssub.s32 %s1170, 1
    %s1172 = smul.addr 2, 94
    %s1173 = scalar_lea.vmem %s1, %s1172
    %1174 = vst [vmem:[%s1173] sm:%s1171] %v1169
    %s1175 = scalar_lea.vmem [#allocation0], 760
    %v1176 = vld [vmem:[%s1175] sm:%s512]
    %s1177 = sshll.u32 1, 2
    %s1178 = ssub.s32 %s1177, 1
    %s1179 = smul.addr 2, 95
    %s1180 = scalar_lea.vmem %s1, %s1179
    %1181 = vst [vmem:[%s1180] sm:%s1178] %v1176
    %s1182 = scalar_lea.vmem [#allocation0], 768
    %v1183 = vld [vmem:[%s1182] sm:%s512]
    %s1184 = sshll.u32 1, 2
    %s1185 = ssub.s32 %s1184, 1
    %s1186 = smul.addr 2, 96
    %s1187 = scalar_lea.vmem %s1, %s1186
    %1188 = vst [vmem:[%s1187] sm:%s1185] %v1183
    %s1189 = scalar_lea.vmem [#allocation0], 776
    %v1190 = vld [vmem:[%s1189] sm:%s512]
    %s1191 = sshll.u32 1, 2
    %s1192 = ssub.s32 %s1191, 1
    %s1193 = smul.addr 2, 97
    %s1194 = scalar_lea.vmem %s1, %s1193
    %1195 = vst [vmem:[%s1194] sm:%s1192] %v1190
    %s1196 = scalar_lea.vmem [#allocation0], 784
    %v1197 = vld [vmem:[%s1196] sm:%s512]
    %s1198 = sshll.u32 1, 2
    %s1199 = ssub.s32 %s1198, 1
    %s1200 = smul.addr 2, 98
    %s1201 = scalar_lea.vmem %s1, %s1200
    %1202 = vst [vmem:[%s1201] sm:%s1199] %v1197
    %s1203 = scalar_lea.vmem [#allocation0], 792
    %v1204 = vld [vmem:[%s1203] sm:%s512]
    %s1205 = sshll.u32 1, 2
    %s1206 = ssub.s32 %s1205, 1
    %s1207 = smul.addr 2, 99
    %s1208 = scalar_lea.vmem %s1, %s1207
    %1209 = vst [vmem:[%s1208] sm:%s1206] %v1204
    %s1210 = scalar_lea.vmem [#allocation0], 800
    %v1211 = vld [vmem:[%s1210] sm:%s512]
    %s1212 = sshll.u32 1, 2
    %s1213 = ssub.s32 %s1212, 1
    %s1214 = smul.addr 2, 100
    %s1215 = scalar_lea.vmem %s1, %s1214
    %1216 = vst [vmem:[%s1215] sm:%s1213] %v1211
    %s1217 = scalar_lea.vmem [#allocation0], 808
    %v1218 = vld [vmem:[%s1217] sm:%s512]
    %s1219 = sshll.u32 1, 2
    %s1220 = ssub.s32 %s1219, 1
    %s1221 = smul.addr 2, 101
    %s1222 = scalar_lea.vmem %s1, %s1221
    %1223 = vst [vmem:[%s1222] sm:%s1220] %v1218
    %s1224 = scalar_lea.vmem [#allocation0], 816
    %v1225 = vld [vmem:[%s1224] sm:%s512]
    %s1226 = sshll.u32 1, 2
    %s1227 = ssub.s32 %s1226, 1
    %s1228 = smul.addr 2, 102
    %s1229 = scalar_lea.vmem %s1, %s1228
    %1230 = vst [vmem:[%s1229] sm:%s1227] %v1225
    %s1231 = scalar_lea.vmem [#allocation0], 824
    %v1232 = vld [vmem:[%s1231] sm:%s512]
    %s1233 = sshll.u32 1, 2
    %s1234 = ssub.s32 %s1233, 1
    %s1235 = smul.addr 2, 103
    %s1236 = scalar_lea.vmem %s1, %s1235
    %1237 = vst [vmem:[%s1236] sm:%s1234] %v1232
    %s1238 = scalar_lea.vmem [#allocation0], 832
    %v1239 = vld [vmem:[%s1238] sm:%s512]
    %s1240 = sshll.u32 1, 2
    %s1241 = ssub.s32 %s1240, 1
    %s1242 = smul.addr 2, 104
    %s1243 = scalar_lea.vmem %s1, %s1242
    %1244 = vst [vmem:[%s1243] sm:%s1241] %v1239
    %s1245 = scalar_lea.vmem [#allocation0], 840
    %v1246 = vld [vmem:[%s1245] sm:%s512]
    %s1247 = sshll.u32 1, 2
    %s1248 = ssub.s32 %s1247, 1
    %s1249 = smul.addr 2, 105
    %s1250 = scalar_lea.vmem %s1, %s1249
    %1251 = vst [vmem:[%s1250] sm:%s1248] %v1246
    %s1252 = scalar_lea.vmem [#allocation0], 848
    %v1253 = vld [vmem:[%s1252] sm:%s512]
    %s1254 = sshll.u32 1, 2
    %s1255 = ssub.s32 %s1254, 1
    %s1256 = smul.addr 2, 106
    %s1257 = scalar_lea.vmem %s1, %s1256
    %1258 = vst [vmem:[%s1257] sm:%s1255] %v1253
    %s1259 = scalar_lea.vmem [#allocation0], 856
    %v1260 = vld [vmem:[%s1259] sm:%s512]
    %s1261 = sshll.u32 1, 2
    %s1262 = ssub.s32 %s1261, 1
    %s1263 = smul.addr 2, 107
    %s1264 = scalar_lea.vmem %s1, %s1263
    %1265 = vst [vmem:[%s1264] sm:%s1262] %v1260
    %s1266 = scalar_lea.vmem [#allocation0], 864
    %v1267 = vld [vmem:[%s1266] sm:%s512]
    %s1268 = sshll.u32 1, 2
    %s1269 = ssub.s32 %s1268, 1
    %s1270 = smul.addr 2, 108
    %s1271 = scalar_lea.vmem %s1, %s1270
    %1272 = vst [vmem:[%s1271] sm:%s1269] %v1267
    %s1273 = scalar_lea.vmem [#allocation0], 872
    %v1274 = vld [vmem:[%s1273] sm:%s512]
    %s1275 = sshll.u32 1, 2
    %s1276 = ssub.s32 %s1275, 1
    %s1277 = smul.addr 2, 109
    %s1278 = scalar_lea.vmem %s1, %s1277
    %1279 = vst [vmem:[%s1278] sm:%s1276] %v1274
    %s1280 = scalar_lea.vmem [#allocation0], 880
    %v1281 = vld [vmem:[%s1280] sm:%s512]
    %s1282 = sshll.u32 1, 2
    %s1283 = ssub.s32 %s1282, 1
    %s1284 = smul.addr 2, 110
    %s1285 = scalar_lea.vmem %s1, %s1284
    %1286 = vst [vmem:[%s1285] sm:%s1283] %v1281
    %s1287 = scalar_lea.vmem [#allocation0], 888
    %v1288 = vld [vmem:[%s1287] sm:%s512]
    %s1289 = sshll.u32 1, 2
    %s1290 = ssub.s32 %s1289, 1
    %s1291 = smul.addr 2, 111
    %s1292 = scalar_lea.vmem %s1, %s1291
    %1293 = vst [vmem:[%s1292] sm:%s1290] %v1288
    %s1294 = scalar_lea.vmem [#allocation0], 896
    %v1295 = vld [vmem:[%s1294] sm:%s512]
    %s1296 = sshll.u32 1, 2
    %s1297 = ssub.s32 %s1296, 1
    %s1298 = smul.addr 2, 112
    %s1299 = scalar_lea.vmem %s1, %s1298
    %1300 = vst [vmem:[%s1299] sm:%s1297] %v1295
    %s1301 = scalar_lea.vmem [#allocation0], 904
    %v1302 = vld [vmem:[%s1301] sm:%s512]
    %s1303 = sshll.u32 1, 2
    %s1304 = ssub.s32 %s1303, 1
    %s1305 = smul.addr 2, 113
    %s1306 = scalar_lea.vmem %s1, %s1305
    %1307 = vst [vmem:[%s1306] sm:%s1304] %v1302
    %s1308 = scalar_lea.vmem [#allocation0], 912
    %v1309 = vld [vmem:[%s1308] sm:%s512]
    %s1310 = sshll.u32 1, 2
    %s1311 = ssub.s32 %s1310, 1
    %s1312 = smul.addr 2, 114
    %s1313 = scalar_lea.vmem %s1, %s1312
    %1314 = vst [vmem:[%s1313] sm:%s1311] %v1309
    %s1315 = scalar_lea.vmem [#allocation0], 920
    %v1316 = vld [vmem:[%s1315] sm:%s512]
    %s1317 = sshll.u32 1, 2
    %s1318 = ssub.s32 %s1317, 1
    %s1319 = smul.addr 2, 115
    %s1320 = scalar_lea.vmem %s1, %s1319
    %1321 = vst [vmem:[%s1320] sm:%s1318] %v1316
    %s1322 = scalar_lea.vmem [#allocation0], 928
    %v1323 = vld [vmem:[%s1322] sm:%s512]
    %s1324 = sshll.u32 1, 2
    %s1325 = ssub.s32 %s1324, 1
    %s1326 = smul.addr 2, 116
    %s1327 = scalar_lea.vmem %s1, %s1326
    %1328 = vst [vmem:[%s1327] sm:%s1325] %v1323
    %s1329 = scalar_lea.vmem [#allocation0], 936
    %v1330 = vld [vmem:[%s1329] sm:%s512]
    %s1331 = sshll.u32 1, 2
    %s1332 = ssub.s32 %s1331, 1
    %s1333 = smul.addr 2, 117
    %s1334 = scalar_lea.vmem %s1, %s1333
    %1335 = vst [vmem:[%s1334] sm:%s1332] %v1330
    %s1336 = scalar_lea.vmem [#allocation0], 944
    %v1337 = vld [vmem:[%s1336] sm:%s512]
    %s1338 = sshll.u32 1, 2
    %s1339 = ssub.s32 %s1338, 1
    %s1340 = smul.addr 2, 118
    %s1341 = scalar_lea.vmem %s1, %s1340
    %1342 = vst [vmem:[%s1341] sm:%s1339] %v1337
    %s1343 = scalar_lea.vmem [#allocation0], 952
    %v1344 = vld [vmem:[%s1343] sm:%s512]
    %s1345 = sshll.u32 1, 2
    %s1346 = ssub.s32 %s1345, 1
    %s1347 = smul.addr 2, 119
    %s1348 = scalar_lea.vmem %s1, %s1347
    %1349 = vst [vmem:[%s1348] sm:%s1346] %v1344
    %s1350 = scalar_lea.vmem [#allocation0], 960
    %v1351 = vld [vmem:[%s1350] sm:%s512]
    %s1352 = sshll.u32 1, 2
    %s1353 = ssub.s32 %s1352, 1
    %s1354 = smul.addr 2, 120
    %s1355 = scalar_lea.vmem %s1, %s1354
    %1356 = vst [vmem:[%s1355] sm:%s1353] %v1351
    %s1357 = scalar_lea.vmem [#allocation0], 968
    %v1358 = vld [vmem:[%s1357] sm:%s512]
    %s1359 = sshll.u32 1, 2
    %s1360 = ssub.s32 %s1359, 1
    %s1361 = smul.addr 2, 121
    %s1362 = scalar_lea.vmem %s1, %s1361
    %1363 = vst [vmem:[%s1362] sm:%s1360] %v1358
    %s1364 = scalar_lea.vmem [#allocation0], 976
    %v1365 = vld [vmem:[%s1364] sm:%s512]
    %s1366 = sshll.u32 1, 2
    %s1367 = ssub.s32 %s1366, 1
    %s1368 = smul.addr 2, 122
    %s1369 = scalar_lea.vmem %s1, %s1368
    %1370 = vst [vmem:[%s1369] sm:%s1367] %v1365
    %s1371 = scalar_lea.vmem [#allocation0], 984
    %v1372 = vld [vmem:[%s1371] sm:%s512]
    %s1373 = sshll.u32 1, 2
    %s1374 = ssub.s32 %s1373, 1
    %s1375 = smul.addr 2, 123
    %s1376 = scalar_lea.vmem %s1, %s1375
    %1377 = vst [vmem:[%s1376] sm:%s1374] %v1372
    %s1378 = scalar_lea.vmem [#allocation0], 992
    %v1379 = vld [vmem:[%s1378] sm:%s512]
    %s1380 = sshll.u32 1, 2
    %s1381 = ssub.s32 %s1380, 1
    %s1382 = smul.addr 2, 124
    %s1383 = scalar_lea.vmem %s1, %s1382
    %1384 = vst [vmem:[%s1383] sm:%s1381] %v1379
    %s1385 = scalar_lea.vmem [#allocation0], 1000
    %v1386 = vld [vmem:[%s1385] sm:%s512]
    %s1387 = sshll.u32 1, 2
    %s1388 = ssub.s32 %s1387, 1
    %s1389 = smul.addr 2, 125
    %s1390 = scalar_lea.vmem %s1, %s1389
    %1391 = vst [vmem:[%s1390] sm:%s1388] %v1386
    %s1392 = scalar_lea.vmem [#allocation0], 1008
    %v1393 = vld [vmem:[%s1392] sm:%s512]
    %s1394 = sshll.u32 1, 2
    %s1395 = ssub.s32 %s1394, 1
    %s1396 = smul.addr 2, 126
    %s1397 = scalar_lea.vmem %s1, %s1396
    %1398 = vst [vmem:[%s1397] sm:%s1395] %v1393
    %s1399 = scalar_lea.vmem [#allocation0], 1016
    %v1400 = vld [vmem:[%s1399] sm:%s512]
    %s1401 = sshll.u32 1, 2
    %s1402 = ssub.s32 %s1401, 1
    %s1403 = smul.addr 2, 127
    %s1404 = scalar_lea.vmem %s1, %s1403
    %1405 = vst [vmem:[%s1404] sm:%s1402] %v1400
    %s1406 = scalar_lea.vmem [#allocation0], 1024
    %v1407 = vld [vmem:[%s1406] sm:%s512]
    %s1408 = sshll.u32 1, 2
    %s1409 = ssub.s32 %s1408, 1
    %s1410 = smul.addr 2, 128
    %s1411 = scalar_lea.vmem %s1, %s1410
    %1412 = vst [vmem:[%s1411] sm:%s1409] %v1407
    %s1413 = scalar_lea.vmem [#allocation0], 1032
    %v1414 = vld [vmem:[%s1413] sm:%s512]
    %s1415 = sshll.u32 1, 2
    %s1416 = ssub.s32 %s1415, 1
    %s1417 = smul.addr 2, 129
    %s1418 = scalar_lea.vmem %s1, %s1417
    %1419 = vst [vmem:[%s1418] sm:%s1416] %v1414
    %s1420 = scalar_lea.vmem [#allocation0], 1040
    %v1421 = vld [vmem:[%s1420] sm:%s512]
    %s1422 = sshll.u32 1, 2
    %s1423 = ssub.s32 %s1422, 1
    %s1424 = smul.addr 2, 130
    %s1425 = scalar_lea.vmem %s1, %s1424
    %1426 = vst [vmem:[%s1425] sm:%s1423] %v1421
    %s1427 = scalar_lea.vmem [#allocation0], 1048
    %v1428 = vld [vmem:[%s1427] sm:%s512]
    %s1429 = sshll.u32 1, 2
    %s1430 = ssub.s32 %s1429, 1
    %s1431 = smul.addr 2, 131
    %s1432 = scalar_lea.vmem %s1, %s1431
    %1433 = vst [vmem:[%s1432] sm:%s1430] %v1428
    %s1434 = scalar_lea.vmem [#allocation0], 1056
    %v1435 = vld [vmem:[%s1434] sm:%s512]
    %s1436 = sshll.u32 1, 2
    %s1437 = ssub.s32 %s1436, 1
    %s1438 = smul.addr 2, 132
    %s1439 = scalar_lea.vmem %s1, %s1438
    %1440 = vst [vmem:[%s1439] sm:%s1437] %v1435
    %s1441 = scalar_lea.vmem [#allocation0], 1064
    %v1442 = vld [vmem:[%s1441] sm:%s512]
    %s1443 = sshll.u32 1, 2
    %s1444 = ssub.s32 %s1443, 1
    %s1445 = smul.addr 2, 133
    %s1446 = scalar_lea.vmem %s1, %s1445
    %1447 = vst [vmem:[%s1446] sm:%s1444] %v1442
    %s1448 = scalar_lea.vmem [#allocation0], 1072
    %v1449 = vld [vmem:[%s1448] sm:%s512]
    %s1450 = sshll.u32 1, 2
    %s1451 = ssub.s32 %s1450, 1
    %s1452 = smul.addr 2, 134
    %s1453 = scalar_lea.vmem %s1, %s1452
    %1454 = vst [vmem:[%s1453] sm:%s1451] %v1449
    %s1455 = scalar_lea.vmem [#allocation0], 1080
    %v1456 = vld [vmem:[%s1455] sm:%s512]
    %s1457 = sshll.u32 1, 2
    %s1458 = ssub.s32 %s1457, 1
    %s1459 = smul.addr 2, 135
    %s1460 = scalar_lea.vmem %s1, %s1459
    %1461 = vst [vmem:[%s1460] sm:%s1458] %v1456
    %s1462 = scalar_lea.vmem [#allocation0], 1088
    %v1463 = vld [vmem:[%s1462] sm:%s512]
    %s1464 = sshll.u32 1, 2
    %s1465 = ssub.s32 %s1464, 1
    %s1466 = smul.addr 2, 136
    %s1467 = scalar_lea.vmem %s1, %s1466
    %1468 = vst [vmem:[%s1467] sm:%s1465] %v1463
    %s1469 = scalar_lea.vmem [#allocation0], 1096
    %v1470 = vld [vmem:[%s1469] sm:%s512]
    %s1471 = sshll.u32 1, 2
    %s1472 = ssub.s32 %s1471, 1
    %s1473 = smul.addr 2, 137
    %s1474 = scalar_lea.vmem %s1, %s1473
    %1475 = vst [vmem:[%s1474] sm:%s1472] %v1470
    %s1476 = scalar_lea.vmem [#allocation0], 1104
    %v1477 = vld [vmem:[%s1476] sm:%s512]
    %s1478 = sshll.u32 1, 2
    %s1479 = ssub.s32 %s1478, 1
    %s1480 = smul.addr 2, 138
    %s1481 = scalar_lea.vmem %s1, %s1480
    %1482 = vst [vmem:[%s1481] sm:%s1479] %v1477
    %s1483 = scalar_lea.vmem [#allocation0], 1112
    %v1484 = vld [vmem:[%s1483] sm:%s512]
    %s1485 = sshll.u32 1, 2
    %s1486 = ssub.s32 %s1485, 1
    %s1487 = smul.addr 2, 139
    %s1488 = scalar_lea.vmem %s1, %s1487
    %1489 = vst [vmem:[%s1488] sm:%s1486] %v1484
    %s1490 = scalar_lea.vmem [#allocation0], 1120
    %v1491 = vld [vmem:[%s1490] sm:%s512]
    %s1492 = sshll.u32 1, 2
    %s1493 = ssub.s32 %s1492, 1
    %s1494 = smul.addr 2, 140
    %s1495 = scalar_lea.vmem %s1, %s1494
    %1496 = vst [vmem:[%s1495] sm:%s1493] %v1491
    %s1497 = scalar_lea.vmem [#allocation0], 1128
    %v1498 = vld [vmem:[%s1497] sm:%s512]
    %s1499 = sshll.u32 1, 2
    %s1500 = ssub.s32 %s1499, 1
    %s1501 = smul.addr 2, 141
    %s1502 = scalar_lea.vmem %s1, %s1501
    %1503 = vst [vmem:[%s1502] sm:%s1500] %v1498
    %s1504 = scalar_lea.vmem [#allocation0], 1136
    %v1505 = vld [vmem:[%s1504] sm:%s512]
    %s1506 = sshll.u32 1, 2
    %s1507 = ssub.s32 %s1506, 1
    %s1508 = smul.addr 2, 142
    %s1509 = scalar_lea.vmem %s1, %s1508
    %1510 = vst [vmem:[%s1509] sm:%s1507] %v1505
    %s1511 = scalar_lea.vmem [#allocation0], 1144
    %v1512 = vld [vmem:[%s1511] sm:%s512]
    %s1513 = sshll.u32 1, 2
    %s1514 = ssub.s32 %s1513, 1
    %s1515 = smul.addr 2, 143
    %s1516 = scalar_lea.vmem %s1, %s1515
    %1517 = vst [vmem:[%s1516] sm:%s1514] %v1512
    %s1518 = scalar_lea.vmem [#allocation0], 1152
    %v1519 = vld [vmem:[%s1518] sm:%s512]
    %s1520 = sshll.u32 1, 2
    %s1521 = ssub.s32 %s1520, 1
    %s1522 = smul.addr 2, 144
    %s1523 = scalar_lea.vmem %s1, %s1522
    %1524 = vst [vmem:[%s1523] sm:%s1521] %v1519
    %s1525 = scalar_lea.vmem [#allocation0], 1160
    %v1526 = vld [vmem:[%s1525] sm:%s512]
    %s1527 = sshll.u32 1, 2
    %s1528 = ssub.s32 %s1527, 1
    %s1529 = smul.addr 2, 145
    %s1530 = scalar_lea.vmem %s1, %s1529
    %1531 = vst [vmem:[%s1530] sm:%s1528] %v1526
    %s1532 = scalar_lea.vmem [#allocation0], 1168
    %v1533 = vld [vmem:[%s1532] sm:%s512]
    %s1534 = sshll.u32 1, 2
    %s1535 = ssub.s32 %s1534, 1
    %s1536 = smul.addr 2, 146
    %s1537 = scalar_lea.vmem %s1, %s1536
    %1538 = vst [vmem:[%s1537] sm:%s1535] %v1533
    %s1539 = scalar_lea.vmem [#allocation0], 1176
    %v1540 = vld [vmem:[%s1539] sm:%s512]
    %s1541 = sshll.u32 1, 2
    %s1542 = ssub.s32 %s1541, 1
    %s1543 = smul.addr 2, 147
    %s1544 = scalar_lea.vmem %s1, %s1543
    %1545 = vst [vmem:[%s1544] sm:%s1542] %v1540
    %s1546 = scalar_lea.vmem [#allocation0], 1184
    %v1547 = vld [vmem:[%s1546] sm:%s512]
    %s1548 = sshll.u32 1, 2
    %s1549 = ssub.s32 %s1548, 1
    %s1550 = smul.addr 2, 148
    %s1551 = scalar_lea.vmem %s1, %s1550
    %1552 = vst [vmem:[%s1551] sm:%s1549] %v1547
    %s1553 = scalar_lea.vmem [#allocation0], 1192
    %v1554 = vld [vmem:[%s1553] sm:%s512]
    %s1555 = sshll.u32 1, 2
    %s1556 = ssub.s32 %s1555, 1
    %s1557 = smul.addr 2, 149
    %s1558 = scalar_lea.vmem %s1, %s1557
    %1559 = vst [vmem:[%s1558] sm:%s1556] %v1554
    %s1560 = scalar_lea.vmem [#allocation0], 1200
    %v1561 = vld [vmem:[%s1560] sm:%s512]
    %s1562 = sshll.u32 1, 2
    %s1563 = ssub.s32 %s1562, 1
    %s1564 = smul.addr 2, 150
    %s1565 = scalar_lea.vmem %s1, %s1564
    %1566 = vst [vmem:[%s1565] sm:%s1563] %v1561
    %s1567 = scalar_lea.vmem [#allocation0], 1208
    %v1568 = vld [vmem:[%s1567] sm:%s512]
    %s1569 = sshll.u32 1, 2
    %s1570 = ssub.s32 %s1569, 1
    %s1571 = smul.addr 2, 151
    %s1572 = scalar_lea.vmem %s1, %s1571
    %1573 = vst [vmem:[%s1572] sm:%s1570] %v1568
    %s1574 = scalar_lea.vmem [#allocation0], 1216
    %v1575 = vld [vmem:[%s1574] sm:%s512]
    %s1576 = sshll.u32 1, 2
    %s1577 = ssub.s32 %s1576, 1
    %s1578 = smul.addr 2, 152
    %s1579 = scalar_lea.vmem %s1, %s1578
    %1580 = vst [vmem:[%s1579] sm:%s1577] %v1575
    %s1581 = scalar_lea.vmem [#allocation0], 1224
    %v1582 = vld [vmem:[%s1581] sm:%s512]
    %s1583 = sshll.u32 1, 2
    %s1584 = ssub.s32 %s1583, 1
    %s1585 = smul.addr 2, 153
    %s1586 = scalar_lea.vmem %s1, %s1585
    %1587 = vst [vmem:[%s1586] sm:%s1584] %v1582
    %s1588 = scalar_lea.vmem [#allocation0], 1232
    %v1589 = vld [vmem:[%s1588] sm:%s512]
    %s1590 = sshll.u32 1, 2
    %s1591 = ssub.s32 %s1590, 1
    %s1592 = smul.addr 2, 154
    %s1593 = scalar_lea.vmem %s1, %s1592
    %1594 = vst [vmem:[%s1593] sm:%s1591] %v1589
    %s1595 = scalar_lea.vmem [#allocation0], 1240
    %v1596 = vld [vmem:[%s1595] sm:%s512]
    %s1597 = sshll.u32 1, 2
    %s1598 = ssub.s32 %s1597, 1
    %s1599 = smul.addr 2, 155
    %s1600 = scalar_lea.vmem %s1, %s1599
    %1601 = vst [vmem:[%s1600] sm:%s1598] %v1596
    %s1602 = scalar_lea.vmem [#allocation0], 1248
    %v1603 = vld [vmem:[%s1602] sm:%s512]
    %s1604 = sshll.u32 1, 2
    %s1605 = ssub.s32 %s1604, 1
    %s1606 = smul.addr 2, 156
    %s1607 = scalar_lea.vmem %s1, %s1606
    %1608 = vst [vmem:[%s1607] sm:%s1605] %v1603
    %s1609 = scalar_lea.vmem [#allocation0], 1256
    %v1610 = vld [vmem:[%s1609] sm:%s512]
    %s1611 = sshll.u32 1, 2
    %s1612 = ssub.s32 %s1611, 1
    %s1613 = smul.addr 2, 157
    %s1614 = scalar_lea.vmem %s1, %s1613
    %1615 = vst [vmem:[%s1614] sm:%s1612] %v1610
    %s1616 = scalar_lea.vmem [#allocation0], 1264
    %v1617 = vld [vmem:[%s1616] sm:%s512]
    %s1618 = sshll.u32 1, 2
    %s1619 = ssub.s32 %s1618, 1
    %s1620 = smul.addr 2, 158
    %s1621 = scalar_lea.vmem %s1, %s1620
    %1622 = vst [vmem:[%s1621] sm:%s1619] %v1617
    %s1623 = scalar_lea.vmem [#allocation0], 1272
    %v1624 = vld [vmem:[%s1623] sm:%s512]
    %s1625 = sshll.u32 1, 2
    %s1626 = ssub.s32 %s1625, 1
    %s1627 = smul.addr 2, 159
    %s1628 = scalar_lea.vmem %s1, %s1627
    %1629 = vst [vmem:[%s1628] sm:%s1626] %v1624
    %s1630 = scalar_lea.vmem [#allocation0], 1280
    %v1631 = vld [vmem:[%s1630] sm:%s512]
    %s1632 = sshll.u32 1, 2
    %s1633 = ssub.s32 %s1632, 1
    %s1634 = smul.addr 2, 160
    %s1635 = scalar_lea.vmem %s1, %s1634
    %1636 = vst [vmem:[%s1635] sm:%s1633] %v1631
    %s1637 = scalar_lea.vmem [#allocation0], 1288
    %v1638 = vld [vmem:[%s1637] sm:%s512]
    %s1639 = sshll.u32 1, 2
    %s1640 = ssub.s32 %s1639, 1
    %s1641 = smul.addr 2, 161
    %s1642 = scalar_lea.vmem %s1, %s1641
    %1643 = vst [vmem:[%s1642] sm:%s1640] %v1638
    %s1644 = scalar_lea.vmem [#allocation0], 1296
    %v1645 = vld [vmem:[%s1644] sm:%s512]
    %s1646 = sshll.u32 1, 2
    %s1647 = ssub.s32 %s1646, 1
    %s1648 = smul.addr 2, 162
    %s1649 = scalar_lea.vmem %s1, %s1648
    %1650 = vst [vmem:[%s1649] sm:%s1647] %v1645
    %s1651 = scalar_lea.vmem [#allocation0], 1304
    %v1652 = vld [vmem:[%s1651] sm:%s512]
    %s1653 = sshll.u32 1, 2
    %s1654 = ssub.s32 %s1653, 1
    %s1655 = smul.addr 2, 163
    %s1656 = scalar_lea.vmem %s1, %s1655
    %1657 = vst [vmem:[%s1656] sm:%s1654] %v1652
    %s1658 = scalar_lea.vmem [#allocation0], 1312
    %v1659 = vld [vmem:[%s1658] sm:%s512]
    %s1660 = sshll.u32 1, 2
    %s1661 = ssub.s32 %s1660, 1
    %s1662 = smul.addr 2, 164
    %s1663 = scalar_lea.vmem %s1, %s1662
    %1664 = vst [vmem:[%s1663] sm:%s1661] %v1659
    %s1665 = scalar_lea.vmem [#allocation0], 1320
    %v1666 = vld [vmem:[%s1665] sm:%s512]
    %s1667 = sshll.u32 1, 2
    %s1668 = ssub.s32 %s1667, 1
    %s1669 = smul.addr 2, 165
    %s1670 = scalar_lea.vmem %s1, %s1669
    %1671 = vst [vmem:[%s1670] sm:%s1668] %v1666
    %s1672 = scalar_lea.vmem [#allocation0], 1328
    %v1673 = vld [vmem:[%s1672] sm:%s512]
    %s1674 = sshll.u32 1, 2
    %s1675 = ssub.s32 %s1674, 1
    %s1676 = smul.addr 2, 166
    %s1677 = scalar_lea.vmem %s1, %s1676
    %1678 = vst [vmem:[%s1677] sm:%s1675] %v1673
    %s1679 = scalar_lea.vmem [#allocation0], 1336
    %v1680 = vld [vmem:[%s1679] sm:%s512]
    %s1681 = sshll.u32 1, 2
    %s1682 = ssub.s32 %s1681, 1
    %s1683 = smul.addr 2, 167
    %s1684 = scalar_lea.vmem %s1, %s1683
    %1685 = vst [vmem:[%s1684] sm:%s1682] %v1680
    %s1686 = scalar_lea.vmem [#allocation0], 1344
    %v1687 = vld [vmem:[%s1686] sm:%s512]
    %s1688 = sshll.u32 1, 2
    %s1689 = ssub.s32 %s1688, 1
    %s1690 = smul.addr 2, 168
    %s1691 = scalar_lea.vmem %s1, %s1690
    %1692 = vst [vmem:[%s1691] sm:%s1689] %v1687
    %s1693 = scalar_lea.vmem [#allocation0], 1352
    %v1694 = vld [vmem:[%s1693] sm:%s512]
    %s1695 = sshll.u32 1, 2
    %s1696 = ssub.s32 %s1695, 1
    %s1697 = smul.addr 2, 169
    %s1698 = scalar_lea.vmem %s1, %s1697
    %1699 = vst [vmem:[%s1698] sm:%s1696] %v1694
    %s1700 = scalar_lea.vmem [#allocation0], 1360
    %v1701 = vld [vmem:[%s1700] sm:%s512]
    %s1702 = sshll.u32 1, 2
    %s1703 = ssub.s32 %s1702, 1
    %s1704 = smul.addr 2, 170
    %s1705 = scalar_lea.vmem %s1, %s1704
    %1706 = vst [vmem:[%s1705] sm:%s1703] %v1701
    %s1707 = scalar_lea.vmem [#allocation0], 1368
    %v1708 = vld [vmem:[%s1707] sm:%s512]
    %s1709 = sshll.u32 1, 2
    %s1710 = ssub.s32 %s1709, 1
    %s1711 = smul.addr 2, 171
    %s1712 = scalar_lea.vmem %s1, %s1711
    %1713 = vst [vmem:[%s1712] sm:%s1710] %v1708
    %s1714 = scalar_lea.vmem [#allocation0], 1376
    %v1715 = vld [vmem:[%s1714] sm:%s512]
    %s1716 = sshll.u32 1, 2
    %s1717 = ssub.s32 %s1716, 1
    %s1718 = smul.addr 2, 172
    %s1719 = scalar_lea.vmem %s1, %s1718
    %1720 = vst [vmem:[%s1719] sm:%s1717] %v1715
    %s1721 = scalar_lea.vmem [#allocation0], 1384
    %v1722 = vld [vmem:[%s1721] sm:%s512]
    %s1723 = sshll.u32 1, 2
    %s1724 = ssub.s32 %s1723, 1
    %s1725 = smul.addr 2, 173
    %s1726 = scalar_lea.vmem %s1, %s1725
    %1727 = vst [vmem:[%s1726] sm:%s1724] %v1722
    %s1728 = scalar_lea.vmem [#allocation0], 1392
    %v1729 = vld [vmem:[%s1728] sm:%s512]
    %s1730 = sshll.u32 1, 2
    %s1731 = ssub.s32 %s1730, 1
    %s1732 = smul.addr 2, 174
    %s1733 = scalar_lea.vmem %s1, %s1732
    %1734 = vst [vmem:[%s1733] sm:%s1731] %v1729
    %s1735 = scalar_lea.vmem [#allocation0], 1400
    %v1736 = vld [vmem:[%s1735] sm:%s512]
    %s1737 = sshll.u32 1, 2
    %s1738 = ssub.s32 %s1737, 1
    %s1739 = smul.addr 2, 175
    %s1740 = scalar_lea.vmem %s1, %s1739
    %1741 = vst [vmem:[%s1740] sm:%s1738] %v1736
    %s1742 = scalar_lea.vmem [#allocation0], 1408
    %v1743 = vld [vmem:[%s1742] sm:%s512]
    %s1744 = sshll.u32 1, 2
    %s1745 = ssub.s32 %s1744, 1
    %s1746 = smul.addr 2, 176
    %s1747 = scalar_lea.vmem %s1, %s1746
    %1748 = vst [vmem:[%s1747] sm:%s1745] %v1743
    %s1749 = scalar_lea.vmem [#allocation0], 1416
    %v1750 = vld [vmem:[%s1749] sm:%s512]
    %s1751 = sshll.u32 1, 2
    %s1752 = ssub.s32 %s1751, 1
    %s1753 = smul.addr 2, 177
    %s1754 = scalar_lea.vmem %s1, %s1753
    %1755 = vst [vmem:[%s1754] sm:%s1752] %v1750
    %s1756 = scalar_lea.vmem [#allocation0], 1424
    %v1757 = vld [vmem:[%s1756] sm:%s512]
    %s1758 = sshll.u32 1, 2
    %s1759 = ssub.s32 %s1758, 1
    %s1760 = smul.addr 2, 178
    %s1761 = scalar_lea.vmem %s1, %s1760
    %1762 = vst [vmem:[%s1761] sm:%s1759] %v1757
    %s1763 = scalar_lea.vmem [#allocation0], 1432
    %v1764 = vld [vmem:[%s1763] sm:%s512]
    %s1765 = sshll.u32 1, 2
    %s1766 = ssub.s32 %s1765, 1
    %s1767 = smul.addr 2, 179
    %s1768 = scalar_lea.vmem %s1, %s1767
    %1769 = vst [vmem:[%s1768] sm:%s1766] %v1764
    %s1770 = scalar_lea.vmem [#allocation0], 1440
    %v1771 = vld [vmem:[%s1770] sm:%s512]
    %s1772 = sshll.u32 1, 2
    %s1773 = ssub.s32 %s1772, 1
    %s1774 = smul.addr 2, 180
    %s1775 = scalar_lea.vmem %s1, %s1774
    %1776 = vst [vmem:[%s1775] sm:%s1773] %v1771
    %s1777 = scalar_lea.vmem [#allocation0], 1448
    %v1778 = vld [vmem:[%s1777] sm:%s512]
    %s1779 = sshll.u32 1, 2
    %s1780 = ssub.s32 %s1779, 1
    %s1781 = smul.addr 2, 181
    %s1782 = scalar_lea.vmem %s1, %s1781
    %1783 = vst [vmem:[%s1782] sm:%s1780] %v1778
    %s1784 = scalar_lea.vmem [#allocation0], 1456
    %v1785 = vld [vmem:[%s1784] sm:%s512]
    %s1786 = sshll.u32 1, 2
    %s1787 = ssub.s32 %s1786, 1
    %s1788 = smul.addr 2, 182
    %s1789 = scalar_lea.vmem %s1, %s1788
    %1790 = vst [vmem:[%s1789] sm:%s1787] %v1785
    %s1791 = scalar_lea.vmem [#allocation0], 1464
    %v1792 = vld [vmem:[%s1791] sm:%s512]
    %s1793 = sshll.u32 1, 2
    %s1794 = ssub.s32 %s1793, 1
    %s1795 = smul.addr 2, 183
    %s1796 = scalar_lea.vmem %s1, %s1795
    %1797 = vst [vmem:[%s1796] sm:%s1794] %v1792
    %s1798 = scalar_lea.vmem [#allocation0], 1472
    %v1799 = vld [vmem:[%s1798] sm:%s512]
    %s1800 = sshll.u32 1, 2
    %s1801 = ssub.s32 %s1800, 1
    %s1802 = smul.addr 2, 184
    %s1803 = scalar_lea.vmem %s1, %s1802
    %1804 = vst [vmem:[%s1803] sm:%s1801] %v1799
    %s1805 = scalar_lea.vmem [#allocation0], 1480
    %v1806 = vld [vmem:[%s1805] sm:%s512]
    %s1807 = sshll.u32 1, 2
    %s1808 = ssub.s32 %s1807, 1
    %s1809 = smul.addr 2, 185
    %s1810 = scalar_lea.vmem %s1, %s1809
    %1811 = vst [vmem:[%s1810] sm:%s1808] %v1806
    %s1812 = scalar_lea.vmem [#allocation0], 1488
    %v1813 = vld [vmem:[%s1812] sm:%s512]
    %s1814 = sshll.u32 1, 2
    %s1815 = ssub.s32 %s1814, 1
    %s1816 = smul.addr 2, 186
    %s1817 = scalar_lea.vmem %s1, %s1816
    %1818 = vst [vmem:[%s1817] sm:%s1815] %v1813
    %s1819 = scalar_lea.vmem [#allocation0], 1496
    %v1820 = vld [vmem:[%s1819] sm:%s512]
    %s1821 = sshll.u32 1, 2
    %s1822 = ssub.s32 %s1821, 1
    %s1823 = smul.addr 2, 187
    %s1824 = scalar_lea.vmem %s1, %s1823
    %1825 = vst [vmem:[%s1824] sm:%s1822] %v1820
    %s1826 = scalar_lea.vmem [#allocation0], 1504
    %v1827 = vld [vmem:[%s1826] sm:%s512]
    %s1828 = sshll.u32 1, 2
    %s1829 = ssub.s32 %s1828, 1
    %s1830 = smul.addr 2, 188
    %s1831 = scalar_lea.vmem %s1, %s1830
    %1832 = vst [vmem:[%s1831] sm:%s1829] %v1827
    %s1833 = scalar_lea.vmem [#allocation0], 1512
    %v1834 = vld [vmem:[%s1833] sm:%s512]
    %s1835 = sshll.u32 1, 2
    %s1836 = ssub.s32 %s1835, 1
    %s1837 = smul.addr 2, 189
    %s1838 = scalar_lea.vmem %s1, %s1837
    %1839 = vst [vmem:[%s1838] sm:%s1836] %v1834
    %s1840 = scalar_lea.vmem [#allocation0], 1520
    %v1841 = vld [vmem:[%s1840] sm:%s512]
    %s1842 = sshll.u32 1, 2
    %s1843 = ssub.s32 %s1842, 1
    %s1844 = smul.addr 2, 190
    %s1845 = scalar_lea.vmem %s1, %s1844
    %1846 = vst [vmem:[%s1845] sm:%s1843] %v1841
    %s1847 = scalar_lea.vmem [#allocation0], 1528
    %v1848 = vld [vmem:[%s1847] sm:%s512]
    %s1849 = sshll.u32 1, 2
    %s1850 = ssub.s32 %s1849, 1
    %s1851 = smul.addr 2, 191
    %s1852 = scalar_lea.vmem %s1, %s1851
    %1853 = vst [vmem:[%s1852] sm:%s1850] %v1848
    %s1854 = scalar_lea.vmem [#allocation0], 1536
    %v1855 = vld [vmem:[%s1854] sm:%s512]
    %s1856 = sshll.u32 1, 2
    %s1857 = ssub.s32 %s1856, 1
    %s1858 = smul.addr 2, 192
    %s1859 = scalar_lea.vmem %s1, %s1858
    %1860 = vst [vmem:[%s1859] sm:%s1857] %v1855
    %s1861 = scalar_lea.vmem [#allocation0], 1544
    %v1862 = vld [vmem:[%s1861] sm:%s512]
    %s1863 = sshll.u32 1, 2
    %s1864 = ssub.s32 %s1863, 1
    %s1865 = smul.addr 2, 193
    %s1866 = scalar_lea.vmem %s1, %s1865
    %1867 = vst [vmem:[%s1866] sm:%s1864] %v1862
    %s1868 = scalar_lea.vmem [#allocation0], 1552
    %v1869 = vld [vmem:[%s1868] sm:%s512]
    %s1870 = sshll.u32 1, 2
    %s1871 = ssub.s32 %s1870, 1
    %s1872 = smul.addr 2, 194
    %s1873 = scalar_lea.vmem %s1, %s1872
    %1874 = vst [vmem:[%s1873] sm:%s1871] %v1869
    %s1875 = scalar_lea.vmem [#allocation0], 1560
    %v1876 = vld [vmem:[%s1875] sm:%s512]
    %s1877 = sshll.u32 1, 2
    %s1878 = ssub.s32 %s1877, 1
    %s1879 = smul.addr 2, 195
    %s1880 = scalar_lea.vmem %s1, %s1879
    %1881 = vst [vmem:[%s1880] sm:%s1878] %v1876
    %s1882 = scalar_lea.vmem [#allocation0], 1568
    %v1883 = vld [vmem:[%s1882] sm:%s512]
    %s1884 = sshll.u32 1, 2
    %s1885 = ssub.s32 %s1884, 1
    %s1886 = smul.addr 2, 196
    %s1887 = scalar_lea.vmem %s1, %s1886
    %1888 = vst [vmem:[%s1887] sm:%s1885] %v1883
    %s1889 = scalar_lea.vmem [#allocation0], 1576
    %v1890 = vld [vmem:[%s1889] sm:%s512]
    %s1891 = sshll.u32 1, 2
    %s1892 = ssub.s32 %s1891, 1
    %s1893 = smul.addr 2, 197
    %s1894 = scalar_lea.vmem %s1, %s1893
    %1895 = vst [vmem:[%s1894] sm:%s1892] %v1890
    %s1896 = scalar_lea.vmem [#allocation0], 1584
    %v1897 = vld [vmem:[%s1896] sm:%s512]
    %s1898 = sshll.u32 1, 2
    %s1899 = ssub.s32 %s1898, 1
    %s1900 = smul.addr 2, 198
    %s1901 = scalar_lea.vmem %s1, %s1900
    %1902 = vst [vmem:[%s1901] sm:%s1899] %v1897
    %s1903 = scalar_lea.vmem [#allocation0], 1592
    %v1904 = vld [vmem:[%s1903] sm:%s512]
    %s1905 = sshll.u32 1, 2
    %s1906 = ssub.s32 %s1905, 1
    %s1907 = smul.addr 2, 199
    %s1908 = scalar_lea.vmem %s1, %s1907
    %1909 = vst [vmem:[%s1908] sm:%s1906] %v1904
    %s1910 = scalar_lea.vmem [#allocation0], 1600
    %v1911 = vld [vmem:[%s1910] sm:%s512]
    %s1912 = sshll.u32 1, 2
    %s1913 = ssub.s32 %s1912, 1
    %s1914 = smul.addr 2, 200
    %s1915 = scalar_lea.vmem %s1, %s1914
    %1916 = vst [vmem:[%s1915] sm:%s1913] %v1911
    %s1917 = scalar_lea.vmem [#allocation0], 1608
    %v1918 = vld [vmem:[%s1917] sm:%s512]
    %s1919 = sshll.u32 1, 2
    %s1920 = ssub.s32 %s1919, 1
    %s1921 = smul.addr 2, 201
    %s1922 = scalar_lea.vmem %s1, %s1921
    %1923 = vst [vmem:[%s1922] sm:%s1920] %v1918
    %s1924 = scalar_lea.vmem [#allocation0], 1616
    %v1925 = vld [vmem:[%s1924] sm:%s512]
    %s1926 = sshll.u32 1, 2
    %s1927 = ssub.s32 %s1926, 1
    %s1928 = smul.addr 2, 202
    %s1929 = scalar_lea.vmem %s1, %s1928
    %1930 = vst [vmem:[%s1929] sm:%s1927] %v1925
    %s1931 = scalar_lea.vmem [#allocation0], 1624
    %v1932 = vld [vmem:[%s1931] sm:%s512]
    %s1933 = sshll.u32 1, 2
    %s1934 = ssub.s32 %s1933, 1
    %s1935 = smul.addr 2, 203
    %s1936 = scalar_lea.vmem %s1, %s1935
    %1937 = vst [vmem:[%s1936] sm:%s1934] %v1932
    %s1938 = scalar_lea.vmem [#allocation0], 1632
    %v1939 = vld [vmem:[%s1938] sm:%s512]
    %s1940 = sshll.u32 1, 2
    %s1941 = ssub.s32 %s1940, 1
    %s1942 = smul.addr 2, 204
    %s1943 = scalar_lea.vmem %s1, %s1942
    %1944 = vst [vmem:[%s1943] sm:%s1941] %v1939
    %s1945 = scalar_lea.vmem [#allocation0], 1640
    %v1946 = vld [vmem:[%s1945] sm:%s512]
    %s1947 = sshll.u32 1, 2
    %s1948 = ssub.s32 %s1947, 1
    %s1949 = smul.addr 2, 205
    %s1950 = scalar_lea.vmem %s1, %s1949
    %1951 = vst [vmem:[%s1950] sm:%s1948] %v1946
    %s1952 = scalar_lea.vmem [#allocation0], 1648
    %v1953 = vld [vmem:[%s1952] sm:%s512]
    %s1954 = sshll.u32 1, 2
    %s1955 = ssub.s32 %s1954, 1
    %s1956 = smul.addr 2, 206
    %s1957 = scalar_lea.vmem %s1, %s1956
    %1958 = vst [vmem:[%s1957] sm:%s1955] %v1953
    %s1959 = scalar_lea.vmem [#allocation0], 1656
    %v1960 = vld [vmem:[%s1959] sm:%s512]
    %s1961 = sshll.u32 1, 2
    %s1962 = ssub.s32 %s1961, 1
    %s1963 = smul.addr 2, 207
    %s1964 = scalar_lea.vmem %s1, %s1963
    %1965 = vst [vmem:[%s1964] sm:%s1962] %v1960
    %s1966 = scalar_lea.vmem [#allocation0], 1664
    %v1967 = vld [vmem:[%s1966] sm:%s512]
    %s1968 = sshll.u32 1, 2
    %s1969 = ssub.s32 %s1968, 1
    %s1970 = smul.addr 2, 208
    %s1971 = scalar_lea.vmem %s1, %s1970
    %1972 = vst [vmem:[%s1971] sm:%s1969] %v1967
    %s1973 = scalar_lea.vmem [#allocation0], 1672
    %v1974 = vld [vmem:[%s1973] sm:%s512]
    %s1975 = sshll.u32 1, 2
    %s1976 = ssub.s32 %s1975, 1
    %s1977 = smul.addr 2, 209
    %s1978 = scalar_lea.vmem %s1, %s1977
    %1979 = vst [vmem:[%s1978] sm:%s1976] %v1974
    %s1980 = scalar_lea.vmem [#allocation0], 1680
    %v1981 = vld [vmem:[%s1980] sm:%s512]
    %s1982 = sshll.u32 1, 2
    %s1983 = ssub.s32 %s1982, 1
    %s1984 = smul.addr 2, 210
    %s1985 = scalar_lea.vmem %s1, %s1984
    %1986 = vst [vmem:[%s1985] sm:%s1983] %v1981
    %s1987 = scalar_lea.vmem [#allocation0], 1688
    %v1988 = vld [vmem:[%s1987] sm:%s512]
    %s1989 = sshll.u32 1, 2
    %s1990 = ssub.s32 %s1989, 1
    %s1991 = smul.addr 2, 211
    %s1992 = scalar_lea.vmem %s1, %s1991
    %1993 = vst [vmem:[%s1992] sm:%s1990] %v1988
    %s1994 = scalar_lea.vmem [#allocation0], 1696
    %v1995 = vld [vmem:[%s1994] sm:%s512]
    %s1996 = sshll.u32 1, 2
    %s1997 = ssub.s32 %s1996, 1
    %s1998 = smul.addr 2, 212
    %s1999 = scalar_lea.vmem %s1, %s1998
    %2000 = vst [vmem:[%s1999] sm:%s1997] %v1995
    %s2001 = scalar_lea.vmem [#allocation0], 1704
    %v2002 = vld [vmem:[%s2001] sm:%s512]
    %s2003 = sshll.u32 1, 2
    %s2004 = ssub.s32 %s2003, 1
    %s2005 = smul.addr 2, 213
    %s2006 = scalar_lea.vmem %s1, %s2005
    %2007 = vst [vmem:[%s2006] sm:%s2004] %v2002
    %s2008 = scalar_lea.vmem [#allocation0], 1712
    %v2009 = vld [vmem:[%s2008] sm:%s512]
    %s2010 = sshll.u32 1, 2
    %s2011 = ssub.s32 %s2010, 1
    %s2012 = smul.addr 2, 214
    %s2013 = scalar_lea.vmem %s1, %s2012
    %2014 = vst [vmem:[%s2013] sm:%s2011] %v2009
    %s2015 = scalar_lea.vmem [#allocation0], 1720
    %v2016 = vld [vmem:[%s2015] sm:%s512]
    %s2017 = sshll.u32 1, 2
    %s2018 = ssub.s32 %s2017, 1
    %s2019 = smul.addr 2, 215
    %s2020 = scalar_lea.vmem %s1, %s2019
    %2021 = vst [vmem:[%s2020] sm:%s2018] %v2016
    %s2022 = scalar_lea.vmem [#allocation0], 1728
    %v2023 = vld [vmem:[%s2022] sm:%s512]
    %s2024 = sshll.u32 1, 2
    %s2025 = ssub.s32 %s2024, 1
    %s2026 = smul.addr 2, 216
    %s2027 = scalar_lea.vmem %s1, %s2026
    %2028 = vst [vmem:[%s2027] sm:%s2025] %v2023
    %s2029 = scalar_lea.vmem [#allocation0], 1736
    %v2030 = vld [vmem:[%s2029] sm:%s512]
    %s2031 = sshll.u32 1, 2
    %s2032 = ssub.s32 %s2031, 1
    %s2033 = smul.addr 2, 217
    %s2034 = scalar_lea.vmem %s1, %s2033
    %2035 = vst [vmem:[%s2034] sm:%s2032] %v2030
    %s2036 = scalar_lea.vmem [#allocation0], 1744
    %v2037 = vld [vmem:[%s2036] sm:%s512]
    %s2038 = sshll.u32 1, 2
    %s2039 = ssub.s32 %s2038, 1
    %s2040 = smul.addr 2, 218
    %s2041 = scalar_lea.vmem %s1, %s2040
    %2042 = vst [vmem:[%s2041] sm:%s2039] %v2037
    %s2043 = scalar_lea.vmem [#allocation0], 1752
    %v2044 = vld [vmem:[%s2043] sm:%s512]
    %s2045 = sshll.u32 1, 2
    %s2046 = ssub.s32 %s2045, 1
    %s2047 = smul.addr 2, 219
    %s2048 = scalar_lea.vmem %s1, %s2047
    %2049 = vst [vmem:[%s2048] sm:%s2046] %v2044
    %s2050 = scalar_lea.vmem [#allocation0], 1760
    %v2051 = vld [vmem:[%s2050] sm:%s512]
    %s2052 = sshll.u32 1, 2
    %s2053 = ssub.s32 %s2052, 1
    %s2054 = smul.addr 2, 220
    %s2055 = scalar_lea.vmem %s1, %s2054
    %2056 = vst [vmem:[%s2055] sm:%s2053] %v2051
    %s2057 = scalar_lea.vmem [#allocation0], 1768
    %v2058 = vld [vmem:[%s2057] sm:%s512]
    %s2059 = sshll.u32 1, 2
    %s2060 = ssub.s32 %s2059, 1
    %s2061 = smul.addr 2, 221
    %s2062 = scalar_lea.vmem %s1, %s2061
    %2063 = vst [vmem:[%s2062] sm:%s2060] %v2058
    %s2064 = scalar_lea.vmem [#allocation0], 1776
    %v2065 = vld [vmem:[%s2064] sm:%s512]
    %s2066 = sshll.u32 1, 2
    %s2067 = ssub.s32 %s2066, 1
    %s2068 = smul.addr 2, 222
    %s2069 = scalar_lea.vmem %s1, %s2068
    %2070 = vst [vmem:[%s2069] sm:%s2067] %v2065
    %s2071 = scalar_lea.vmem [#allocation0], 1784
    %v2072 = vld [vmem:[%s2071] sm:%s512]
    %s2073 = sshll.u32 1, 2
    %s2074 = ssub.s32 %s2073, 1
    %s2075 = smul.addr 2, 223
    %s2076 = scalar_lea.vmem %s1, %s2075
    %2077 = vst [vmem:[%s2076] sm:%s2074] %v2072
    %s2078 = scalar_lea.vmem [#allocation0], 1792
    %v2079 = vld [vmem:[%s2078] sm:%s512]
    %s2080 = sshll.u32 1, 2
    %s2081 = ssub.s32 %s2080, 1
    %s2082 = smul.addr 2, 224
    %s2083 = scalar_lea.vmem %s1, %s2082
    %2084 = vst [vmem:[%s2083] sm:%s2081] %v2079
    %s2085 = scalar_lea.vmem [#allocation0], 1800
    %v2086 = vld [vmem:[%s2085] sm:%s512]
    %s2087 = sshll.u32 1, 2
    %s2088 = ssub.s32 %s2087, 1
    %s2089 = smul.addr 2, 225
    %s2090 = scalar_lea.vmem %s1, %s2089
    %2091 = vst [vmem:[%s2090] sm:%s2088] %v2086
    %s2092 = scalar_lea.vmem [#allocation0], 1808
    %v2093 = vld [vmem:[%s2092] sm:%s512]
    %s2094 = sshll.u32 1, 2
    %s2095 = ssub.s32 %s2094, 1
    %s2096 = smul.addr 2, 226
    %s2097 = scalar_lea.vmem %s1, %s2096
    %2098 = vst [vmem:[%s2097] sm:%s2095] %v2093
    %s2099 = scalar_lea.vmem [#allocation0], 1816
    %v2100 = vld [vmem:[%s2099] sm:%s512]
    %s2101 = sshll.u32 1, 2
    %s2102 = ssub.s32 %s2101, 1
    %s2103 = smul.addr 2, 227
    %s2104 = scalar_lea.vmem %s1, %s2103
    %2105 = vst [vmem:[%s2104] sm:%s2102] %v2100
    %s2106 = scalar_lea.vmem [#allocation0], 1824
    %v2107 = vld [vmem:[%s2106] sm:%s512]
    %s2108 = sshll.u32 1, 2
    %s2109 = ssub.s32 %s2108, 1
    %s2110 = smul.addr 2, 228
    %s2111 = scalar_lea.vmem %s1, %s2110
    %2112 = vst [vmem:[%s2111] sm:%s2109] %v2107
    %s2113 = scalar_lea.vmem [#allocation0], 1832
    %v2114 = vld [vmem:[%s2113] sm:%s512]
    %s2115 = sshll.u32 1, 2
    %s2116 = ssub.s32 %s2115, 1
    %s2117 = smul.addr 2, 229
    %s2118 = scalar_lea.vmem %s1, %s2117
    %2119 = vst [vmem:[%s2118] sm:%s2116] %v2114
    %s2120 = scalar_lea.vmem [#allocation0], 1840
    %v2121 = vld [vmem:[%s2120] sm:%s512]
    %s2122 = sshll.u32 1, 2
    %s2123 = ssub.s32 %s2122, 1
    %s2124 = smul.addr 2, 230
    %s2125 = scalar_lea.vmem %s1, %s2124
    %2126 = vst [vmem:[%s2125] sm:%s2123] %v2121
    %s2127 = scalar_lea.vmem [#allocation0], 1848
    %v2128 = vld [vmem:[%s2127] sm:%s512]
    %s2129 = sshll.u32 1, 2
    %s2130 = ssub.s32 %s2129, 1
    %s2131 = smul.addr 2, 231
    %s2132 = scalar_lea.vmem %s1, %s2131
    %2133 = vst [vmem:[%s2132] sm:%s2130] %v2128
    %s2134 = scalar_lea.vmem [#allocation0], 1856
    %v2135 = vld [vmem:[%s2134] sm:%s512]
    %s2136 = sshll.u32 1, 2
    %s2137 = ssub.s32 %s2136, 1
    %s2138 = smul.addr 2, 232
    %s2139 = scalar_lea.vmem %s1, %s2138
    %2140 = vst [vmem:[%s2139] sm:%s2137] %v2135
    %s2141 = scalar_lea.vmem [#allocation0], 1864
    %v2142 = vld [vmem:[%s2141] sm:%s512]
    %s2143 = sshll.u32 1, 2
    %s2144 = ssub.s32 %s2143, 1
    %s2145 = smul.addr 2, 233
    %s2146 = scalar_lea.vmem %s1, %s2145
    %2147 = vst [vmem:[%s2146] sm:%s2144] %v2142
    %s2148 = scalar_lea.vmem [#allocation0], 1872
    %v2149 = vld [vmem:[%s2148] sm:%s512]
    %s2150 = sshll.u32 1, 2
    %s2151 = ssub.s32 %s2150, 1
    %s2152 = smul.addr 2, 234
    %s2153 = scalar_lea.vmem %s1, %s2152
    %2154 = vst [vmem:[%s2153] sm:%s2151] %v2149
    %s2155 = scalar_lea.vmem [#allocation0], 1880
    %v2156 = vld [vmem:[%s2155] sm:%s512]
    %s2157 = sshll.u32 1, 2
    %s2158 = ssub.s32 %s2157, 1
    %s2159 = smul.addr 2, 235
    %s2160 = scalar_lea.vmem %s1, %s2159
    %2161 = vst [vmem:[%s2160] sm:%s2158] %v2156
    %s2162 = scalar_lea.vmem [#allocation0], 1888
    %v2163 = vld [vmem:[%s2162] sm:%s512]
    %s2164 = sshll.u32 1, 2
    %s2165 = ssub.s32 %s2164, 1
    %s2166 = smul.addr 2, 236
    %s2167 = scalar_lea.vmem %s1, %s2166
    %2168 = vst [vmem:[%s2167] sm:%s2165] %v2163
    %s2169 = scalar_lea.vmem [#allocation0], 1896
    %v2170 = vld [vmem:[%s2169] sm:%s512]
    %s2171 = sshll.u32 1, 2
    %s2172 = ssub.s32 %s2171, 1
    %s2173 = smul.addr 2, 237
    %s2174 = scalar_lea.vmem %s1, %s2173
    %2175 = vst [vmem:[%s2174] sm:%s2172] %v2170
    %s2176 = scalar_lea.vmem [#allocation0], 1904
    %v2177 = vld [vmem:[%s2176] sm:%s512]
    %s2178 = sshll.u32 1, 2
    %s2179 = ssub.s32 %s2178, 1
    %s2180 = smul.addr 2, 238
    %s2181 = scalar_lea.vmem %s1, %s2180
    %2182 = vst [vmem:[%s2181] sm:%s2179] %v2177
    %s2183 = scalar_lea.vmem [#allocation0], 1912
    %v2184 = vld [vmem:[%s2183] sm:%s512]
    %s2185 = sshll.u32 1, 2
    %s2186 = ssub.s32 %s2185, 1
    %s2187 = smul.addr 2, 239
    %s2188 = scalar_lea.vmem %s1, %s2187
    %2189 = vst [vmem:[%s2188] sm:%s2186] %v2184
    %s2190 = scalar_lea.vmem [#allocation0], 1920
    %v2191 = vld [vmem:[%s2190] sm:%s512]
    %s2192 = sshll.u32 1, 2
    %s2193 = ssub.s32 %s2192, 1
    %s2194 = smul.addr 2, 240
    %s2195 = scalar_lea.vmem %s1, %s2194
    %2196 = vst [vmem:[%s2195] sm:%s2193] %v2191
    %s2197 = scalar_lea.vmem [#allocation0], 1928
    %v2198 = vld [vmem:[%s2197] sm:%s512]
    %s2199 = sshll.u32 1, 2
    %s2200 = ssub.s32 %s2199, 1
    %s2201 = smul.addr 2, 241
    %s2202 = scalar_lea.vmem %s1, %s2201
    %2203 = vst [vmem:[%s2202] sm:%s2200] %v2198
    %s2204 = scalar_lea.vmem [#allocation0], 1936
    %v2205 = vld [vmem:[%s2204] sm:%s512]
    %s2206 = sshll.u32 1, 2
    %s2207 = ssub.s32 %s2206, 1
    %s2208 = smul.addr 2, 242
    %s2209 = scalar_lea.vmem %s1, %s2208
    %2210 = vst [vmem:[%s2209] sm:%s2207] %v2205
    %s2211 = scalar_lea.vmem [#allocation0], 1944
    %v2212 = vld [vmem:[%s2211] sm:%s512]
    %s2213 = sshll.u32 1, 2
    %s2214 = ssub.s32 %s2213, 1
    %s2215 = smul.addr 2, 243
    %s2216 = scalar_lea.vmem %s1, %s2215
    %2217 = vst [vmem:[%s2216] sm:%s2214] %v2212
    %s2218 = scalar_lea.vmem [#allocation0], 1952
    %v2219 = vld [vmem:[%s2218] sm:%s512]
    %s2220 = sshll.u32 1, 2
    %s2221 = ssub.s32 %s2220, 1
    %s2222 = smul.addr 2, 244
    %s2223 = scalar_lea.vmem %s1, %s2222
    %2224 = vst [vmem:[%s2223] sm:%s2221] %v2219
    %s2225 = scalar_lea.vmem [#allocation0], 1960
    %v2226 = vld [vmem:[%s2225] sm:%s512]
    %s2227 = sshll.u32 1, 2
    %s2228 = ssub.s32 %s2227, 1
    %s2229 = smul.addr 2, 245
    %s2230 = scalar_lea.vmem %s1, %s2229
    %2231 = vst [vmem:[%s2230] sm:%s2228] %v2226
    %s2232 = scalar_lea.vmem [#allocation0], 1968
    %v2233 = vld [vmem:[%s2232] sm:%s512]
    %s2234 = sshll.u32 1, 2
    %s2235 = ssub.s32 %s2234, 1
    %s2236 = smul.addr 2, 246
    %s2237 = scalar_lea.vmem %s1, %s2236
    %2238 = vst [vmem:[%s2237] sm:%s2235] %v2233
    %s2239 = scalar_lea.vmem [#allocation0], 1976
    %v2240 = vld [vmem:[%s2239] sm:%s512]
    %s2241 = sshll.u32 1, 2
    %s2242 = ssub.s32 %s2241, 1
    %s2243 = smul.addr 2, 247
    %s2244 = scalar_lea.vmem %s1, %s2243
    %2245 = vst [vmem:[%s2244] sm:%s2242] %v2240
    %s2246 = scalar_lea.vmem [#allocation0], 1984
    %v2247 = vld [vmem:[%s2246] sm:%s512]
    %s2248 = sshll.u32 1, 2
    %s2249 = ssub.s32 %s2248, 1
    %s2250 = smul.addr 2, 248
    %s2251 = scalar_lea.vmem %s1, %s2250
    %2252 = vst [vmem:[%s2251] sm:%s2249] %v2247
    %s2253 = scalar_lea.vmem [#allocation0], 1992
    %v2254 = vld [vmem:[%s2253] sm:%s512]
    %s2255 = sshll.u32 1, 2
    %s2256 = ssub.s32 %s2255, 1
    %s2257 = smul.addr 2, 249
    %s2258 = scalar_lea.vmem %s1, %s2257
    %2259 = vst [vmem:[%s2258] sm:%s2256] %v2254
    %s2260 = scalar_lea.vmem [#allocation0], 2000
    %v2261 = vld [vmem:[%s2260] sm:%s512]
    %s2262 = sshll.u32 1, 2
    %s2263 = ssub.s32 %s2262, 1
    %s2264 = smul.addr 2, 250
    %s2265 = scalar_lea.vmem %s1, %s2264
    %2266 = vst [vmem:[%s2265] sm:%s2263] %v2261
    %s2267 = scalar_lea.vmem [#allocation0], 2008
    %v2268 = vld [vmem:[%s2267] sm:%s512]
    %s2269 = sshll.u32 1, 2
    %s2270 = ssub.s32 %s2269, 1
    %s2271 = smul.addr 2, 251
    %s2272 = scalar_lea.vmem %s1, %s2271
    %2273 = vst [vmem:[%s2272] sm:%s2270] %v2268
    %s2274 = scalar_lea.vmem [#allocation0], 2016
    %v2275 = vld [vmem:[%s2274] sm:%s512]
    %s2276 = sshll.u32 1, 2
    %s2277 = ssub.s32 %s2276, 1
    %s2278 = smul.addr 2, 252
    %s2279 = scalar_lea.vmem %s1, %s2278
    %2280 = vst [vmem:[%s2279] sm:%s2277] %v2275
    %s2281 = scalar_lea.vmem [#allocation0], 2024
    %v2282 = vld [vmem:[%s2281] sm:%s512]
    %s2283 = sshll.u32 1, 2
    %s2284 = ssub.s32 %s2283, 1
    %s2285 = smul.addr 2, 253
    %s2286 = scalar_lea.vmem %s1, %s2285
    %2287 = vst [vmem:[%s2286] sm:%s2284] %v2282
    %s2288 = scalar_lea.vmem [#allocation0], 2032
    %v2289 = vld [vmem:[%s2288] sm:%s512]
    %s2290 = sshll.u32 1, 2
    %s2291 = ssub.s32 %s2290, 1
    %s2292 = smul.addr 2, 254
    %s2293 = scalar_lea.vmem %s1, %s2292
    %2294 = vst [vmem:[%s2293] sm:%s2291] %v2289
    %s2295 = scalar_lea.vmem [#allocation0], 2040
    %v2296 = vld [vmem:[%s2295] sm:%s512]
    %s2297 = sshll.u32 1, 2
    %s2298 = ssub.s32 %s2297, 1
    %s2299 = smul.addr 2, 255
    %s2300 = scalar_lea.vmem %s1, %s2299
    %2301 = vst [vmem:[%s2300] sm:%s2298] %v2296

// kernel: classifier_forward.1
$region0: #{classifier_forward.1}
  #allocation0 [shape = 'u32[]', space=smem, size = 0x4, offset = 0x4, fixed_abs, tag = 'smem constant byte address 0x4 - core index']
  #allocation1 [shape = 'u32[144,128]{1,0:T(1,128)}', space=vmem, size = 0x12000, scoped, tag = 'internal scratch']
  %s0 = inlined_call_operand.vmem [shape: f32[256,24], index: 0, kind: input, shape index: {}]
  %s1 = inlined_call_operand.vmem [shape: f32[24,8], index: 1, kind: input, shape index: {}]
  %s2 = inlined_call_operand.vmem [shape: f32[1,8], index: 2, kind: input, shape index: {}]
  %s3 = inlined_call_operand.vmem [shape: f32[1,8], index: 3, kind: input, shape index: {}]
  %s4 = inlined_call_operand.vmem [shape: f32[136,16], index: 4, kind: input, shape index: {}]
  %s5 = inlined_call_operand.vmem [shape: f32[1,16], index: 5, kind: input, shape index: {}]
  %s6 = inlined_call_operand.vmem [shape: f32[1,16], index: 6, kind: input, shape index: {}]
  %s7 = inlined_call_operand.vmem [shape: f32[144,32], index: 7, kind: input, shape index: {}]
  %s8 = inlined_call_operand.vmem [shape: f32[1,32], index: 8, kind: input, shape index: {}]
  %s9 = inlined_call_operand.vmem [shape: f32[1,32], index: 9, kind: input, shape index: {}]
  %s10 = inlined_call_operand.vmem [shape: f32[512,256], index: 10, kind: input, shape index: {}]
  %s11 = inlined_call_operand.vmem [shape: f32[64,256], index: 11, kind: input, shape index: {}]
  %s12 = inlined_call_operand.vmem [shape: f32[1,256], index: 12, kind: input, shape index: {}]
  %s13 = inlined_call_operand.vmem [shape: f32[64,32], index: 13, kind: input, shape index: {}]
  %s14 = inlined_call_operand.vmem [shape: f32[1,32], index: 14, kind: input, shape index: {}]
  %s15 = inlined_call_operand.vmem [shape: f32[32,3], index: 15, kind: input, shape index: {}]
  %s16 = inlined_call_operand.vmem [shape: f32[1,3], index: 16, kind: input, shape index: {}]
  %s17 = inlined_call_operand.hbm [shape: f32[4,3], index: 17, kind: output, shape index: {}]
  %s18 = sld [smem:[#allocation0]]
  $region78: #{classifier_forward.1} parent=0
    _
  %s20 = ssub.s32 1, %s18
  %s21 = scalar_select 0, %s20, %s18
  $region1: #{classifier_forward.1} parent=0
    #allocation2 [shape = 'u8[2048]{0}', space=vmem, size = 0x800, scoped, tag = 'output window, operand 0, single buffered']
    #allocation3 [shape = 's32[1]{0}', space=sflag, size = 0x4, scoped, tag = 'scoped memory for classifier_forward.1']
    %22 = vsyncpa [#allocation3], 0
    // Predicated region
    $region2: #{classifier_forward.1} parent=1 // pred_check
      _
    $region3: #{classifier_forward.1} parent=1 // pred_check_branch
      %24 = sbr.rel (0) target = $region5
    $region4: #{classifier_forward.1} parent=1 // pred_region
      _
    $region5: #{classifier_forward.1} parent=1 // pred_fallthru
      _
    // Predicated region
    $region6: #{classifier_forward.1} parent=1 // pred_check
      _
    $region7: #{classifier_forward.1} parent=1 // pred_check_branch
      %26 = sbr.rel (0) target = $region9
    $region8: #{classifier_forward.1} parent=1 // pred_region
      _
    $region9: #{classifier_forward.1} parent=1 // pred_fallthru
      _
    // Predicated region
    $region10: #{classifier_forward.1} parent=1 // pred_check
      _
    $region11: #{classifier_forward.1} parent=1 // pred_check_branch
      %28 = sbr.rel (0) target = $region13
    $region12: #{classifier_forward.1} parent=1 // pred_region
      _
    $region13: #{classifier_forward.1} parent=1 // pred_fallthru
      _
    // Predicated region
    $region14: #{classifier_forward.1} parent=1 // pred_check
      _
    $region15: #{classifier_forward.1} parent=1 // pred_check_branch
      %30 = sbr.rel (0) target = $region17
    $region16: #{classifier_forward.1} parent=1 // pred_region
      _
    $region17: #{classifier_forward.1} parent=1 // pred_fallthru
      _
    // Predicated region
    $region18: #{classifier_forward.1} parent=1 // pred_check
      _
    $region19: #{classifier_forward.1} parent=1 // pred_check_branch
      %32 = sbr.rel (0) target = $region21
    $region20: #{classifier_forward.1} parent=1 // pred_region
      _
    $region21: #{classifier_forward.1} parent=1 // pred_fallthru
      _
    // Predicated region
    $region22: #{classifier_forward.1} parent=1 // pred_check
      _
    $region23: #{classifier_forward.1} parent=1 // pred_check_branch
      %34 = sbr.rel (0) target = $region25
    $region24: #{classifier_forward.1} parent=1 // pred_region
      _
    $region25: #{classifier_forward.1} parent=1 // pred_fallthru
      _
    // Predicated region
    $region26: #{classifier_forward.1} parent=1 // pred_check
      _
    $region27: #{classifier_forward.1} parent=1 // pred_check_branch
      %36 = sbr.rel (0) target = $region29
    $region28: #{classifier_forward.1} parent=1 // pred_region
      _
    $region29: #{classifier_forward.1} parent=1 // pred_fallthru
      _
    // Predicated region
    $region30: #{classifier_forward.1} parent=1 // pred_check
      _
    $region31: #{classifier_forward.1} parent=1 // pred_check_branch
      %38 = sbr.rel (0) target = $region33
    $region32: #{classifier_forward.1} parent=1 // pred_region
      _
    $region33: #{classifier_forward.1} parent=1 // pred_fallthru
      _
    // Predicated region
    $region34: #{classifier_forward.1} parent=1 // pred_check
      _
    $region35: #{classifier_forward.1} parent=1 // pred_check_branch
      %40 = sbr.rel (0) target = $region37
    $region36: #{classifier_forward.1} parent=1 // pred_region
      _
    $region37: #{classifier_forward.1} parent=1 // pred_fallthru
      _
    // Predicated region
    $region38: #{classifier_forward.1} parent=1 // pred_check
      _
    $region39: #{classifier_forward.1} parent=1 // pred_check_branch
      %42 = sbr.rel (0) target = $region41
    $region40: #{classifier_forward.1} parent=1 // pred_region
      _
    $region41: #{classifier_forward.1} parent=1 // pred_fallthru
      _
    // Predicated region
    $region42: #{classifier_forward.1} parent=1 // pred_check
      _
    $region43: #{classifier_forward.1} parent=1 // pred_check_branch
      %44 = sbr.rel (0) target = $region45
    $region44: #{classifier_forward.1} parent=1 // pred_region
      _
    $region45: #{classifier_forward.1} parent=1 // pred_fallthru
      _
    // Predicated region
    $region46: #{classifier_forward.1} parent=1 // pred_check
      _
    $region47: #{classifier_forward.1} parent=1 // pred_check_branch
      %46 = sbr.rel (0) target = $region49
    $region48: #{classifier_forward.1} parent=1 // pred_region
      _
    $region49: #{classifier_forward.1} parent=1 // pred_fallthru
      _
    // Predicated region
    $region50: #{classifier_forward.1} parent=1 // pred_check
      _
    $region51: #{classifier_forward.1} parent=1 // pred_check_branch
      %48 = sbr.rel (0) target = $region53
    $region52: #{classifier_forward.1} parent=1 // pred_region
      _
    $region53: #{classifier_forward.1} parent=1 // pred_fallthru
      _
    // Predicated region
    $region54: #{classifier_forward.1} parent=1 // pred_check
      _
    $region55: #{classifier_forward.1} parent=1 // pred_check_branch
      %50 = sbr.rel (0) target = $region57
    $region56: #{classifier_forward.1} parent=1 // pred_region
      _
    $region57: #{classifier_forward.1} parent=1 // pred_fallthru
      _
    // Predicated region
    $region58: #{classifier_forward.1} parent=1 // pred_check
      _
    $region59: #{classifier_forward.1} parent=1 // pred_check_branch
      %52 = sbr.rel (0) target = $region61
    $region60: #{classifier_forward.1} parent=1 // pred_region
      _
    $region61: #{classifier_forward.1} parent=1 // pred_fallthru
      _
    // Predicated region
    $region62: #{classifier_forward.1} parent=1 // pred_check
      _
    $region63: #{classifier_forward.1} parent=1 // pred_check_branch
      %54 = sbr.rel (0) target = $region65
    $region64: #{classifier_forward.1} parent=1 // pred_region
      _
    $region65: #{classifier_forward.1} parent=1 // pred_fallthru
      _
    // Predicated region
    $region66: #{classifier_forward.1} parent=1 // pred_check
      _
    $region67: #{classifier_forward.1} parent=1 // pred_check_branch
      %56 = sbr.rel (0) target = $region69
    $region68: #{classifier_forward.1} parent=1 // pred_region
      _
    $region69: #{classifier_forward.1} parent=1 // pred_fallthru
      _
    %v57 = vld [vmem:[%s0] sm:$0xff]
    %v58 = vld [vmem:[%s0 + $0x8] sm:$0xff]
    %v59 = vld [vmem:[%s0 + $0x10] sm:$0xff]
    %v60 = vld [vmem:[%s0 + $0x18] sm:$0xff]
    %v61 = vld [vmem:[%s0 + $0x20] sm:$0xff]
    %v62 = vld [vmem:[%s0 + $0x28] sm:$0xff]
    %v63 = vld [vmem:[%s0 + $0x30] sm:$0xff]
    %v64 = vld [vmem:[%s0 + $0x38] sm:$0xff]
    %v65 = vld [vmem:[%s0 + $0x40] sm:$0xff]
    %v66 = vld [vmem:[%s0 + $0x48] sm:$0xff]
    %v67 = vld [vmem:[%s0 + $0x50] sm:$0xff]
    %v68 = vld [vmem:[%s0 + $0x58] sm:$0xff]
    %v69 = vld [vmem:[%s0 + $0x60] sm:$0xff]
    %v70 = vld [vmem:[%s0 + $0x68] sm:$0xff]
    %v71 = vld [vmem:[%s0 + $0x70] sm:$0xff]
    %v72 = vld [vmem:[%s0 + $0x78] sm:$0xff]
    %v73 = vld [vmem:[%s0 + $0x80] sm:$0xff]
    %v74 = vld [vmem:[%s0 + $0x88] sm:$0xff]
    %v75 = vld [vmem:[%s0 + $0x90] sm:$0xff]
    %v76 = vld [vmem:[%s0 + $0x98] sm:$0xff]
    %v77 = vld [vmem:[%s0 + $0xa0] sm:$0xff]
    %v78 = vld [vmem:[%s0 + $0xa8] sm:$0xff]
    %v79 = vld [vmem:[%s0 + $0xb0] sm:$0xff]
    %v80 = vld [vmem:[%s0 + $0xb8] sm:$0xff]
    %v81 = vld [vmem:[%s0 + $0xc0] sm:$0xff]
    %v82 = vld [vmem:[%s0 + $0xc8] sm:$0xff]
    %v83 = vld [vmem:[%s0 + $0xd0] sm:$0xff]
    %v84 = vld [vmem:[%s0 + $0xd8] sm:$0xff]
    %v85 = vld [vmem:[%s0 + $0xe0] sm:$0xff]
    %v86 = vld [vmem:[%s0 + $0xe8] sm:$0xff]
    %v87 = vld [vmem:[%s0 + $0xf0] sm:$0xff]
    %v88 = vld [vmem:[%s0 + $0xf8] sm:$0xff]
    %v89 = vld [vmem:[%s1] sm:$0xff]
    %v90 = vld [vmem:[%s1 + $0x8] sm:$0xff]
    %v91 = vld [vmem:[%s1 + $0x10] sm:$0xff]
    %vm92 = vcmask 195584
    %v94 = vsel %vm92, %v57, 0
    %v97 = vsel %vm92, %v58, 0
    %v100 = vsel %vm92, %v59, 0
    %v103 = vsel %vm92, %v60, 0
    %v106 = vsel %vm92, %v61, 0
    %v109 = vsel %vm92, %v62, 0
    %v112 = vsel %vm92, %v63, 0
    %v115 = vsel %vm92, %v64, 0
    %v118 = vsel %vm92, %v65, 0
    %v121 = vsel %vm92, %v66, 0
    %v124 = vsel %vm92, %v67, 0
    %v127 = vsel %vm92, %v68, 0
    %v130 = vsel %vm92, %v69, 0
    %v133 = vsel %vm92, %v70, 0
    %v136 = vsel %vm92, %v71, 0
    %v139 = vsel %vm92, %v72, 0
    %v142 = vsel %vm92, %v73, 0
    %v145 = vsel %vm92, %v74, 0
    %v148 = vsel %vm92, %v75, 0
    %v151 = vsel %vm92, %v76, 0
    %v154 = vsel %vm92, %v77, 0
    %v157 = vsel %vm92, %v78, 0
    %v160 = vsel %vm92, %v79, 0
    %v163 = vsel %vm92, %v80, 0
    %v166 = vsel %vm92, %v81, 0
    %v169 = vsel %vm92, %v82, 0
    %v172 = vsel %vm92, %v83, 0
    %v175 = vsel %vm92, %v84, 0
    %v178 = vsel %vm92, %v85, 0
    %v181 = vsel %vm92, %v86, 0
    %v184 = vsel %vm92, %v87, 0
    %v187 = vsel %vm92, %v88, 0
    %189 = vmatprep.subr.mxu0 0.0
    %190 = vmatpush1.msra.mxu0 0.0
    %191 = vmatprep.subr.mxu0 0.0
    %192 = vmatpush1.msra.mxu0 0.0
    %193 = vmatprep.subr.mxu0 0.0
    %194 = vmatpush1.msra.mxu0 0.0
    %195 = vmatprep.subr.mxu0 0.0
    %196 = vmatpush1.msra.mxu0 0.0
    %197 = vmatprep.subr.mxu0 0.0
    %198 = vmatpush1.msra.mxu0 0.0
    %199 = vmatprep.subr.mxu0 0.0
    %200 = vmatpush1.msra.mxu0 0.0
    %201 = vmatprep.subr.mxu0 0.0
    %202 = vmatpush1.msra.mxu0 0.0
    %203 = vmatprep.subr.mxu0 0.0
    %204 = vmatpush1.msra.mxu0 0.0
    %205 = vmatprep.subr.mxu0 0.0
    %206 = vmatpush1.msra.mxu0 0.0
    %207 = vmatprep.subr.mxu0 0.0
    %208 = vmatpush1.msra.mxu0 0.0
    %209 = vmatprep.subr.mxu0 0.0
    %210 = vmatpush1.msra.mxu0 0.0
    %211 = vmatprep.subr.mxu0 0.0
    %212 = vmatpush1.msra.mxu0 0.0
    %213 = vmatprep.subr.mxu0 0.0
    %214 = vmatpush1.msra.mxu0 0.0
    %215 = vmatprep.subr.mxu0 0.0
    %216 = vmatpush1.msra.mxu0 %v91
    %217 = vmatprep.subr.mxu0 0.0
    %218 = vmatpush1.msra.mxu0 %v90
    %219 = vmatprep.subr.mxu0 0.0
    %220 = vmatpush1.msra.mxu0 %v89
    %221 = vmatprep.subr.mxu0 0.0
    %222 = vmatpush2.msra.mxu0 0.0
    %223 = vmatprep.subr.mxu0 0.0
    %224 = vmatpush2.msra.mxu0 0.0
    %225 = vmatprep.subr.mxu0 0.0
    %226 = vmatpush2.msra.mxu0 0.0
    %227 = vmatprep.subr.mxu0 0.0
    %228 = vmatpush2.msra.mxu0 0.0
    %229 = vmatprep.subr.mxu0 0.0
    %230 = vmatpush2.msra.mxu0 0.0
    %231 = vmatprep.subr.mxu0 0.0
    %232 = vmatpush2.msra.mxu0 0.0
    %233 = vmatprep.subr.mxu0 0.0
    %234 = vmatpush2.msra.mxu0 0.0
    %235 = vmatprep.subr.mxu0 0.0
    %236 = vmatpush2.msra.mxu0 0.0
    %237 = vmatprep.subr.mxu0 0.0
    %238 = vmatpush2.msra.mxu0 0.0
    %239 = vmatprep.subr.mxu0 0.0
    %240 = vmatpush2.msra.mxu0 0.0
    %241 = vmatprep.subr.mxu0 0.0
    %242 = vmatpush2.msra.mxu0 0.0
    %243 = vmatprep.subr.mxu0 0.0
    %244 = vmatpush2.msra.mxu0 0.0
    %245 = vmatprep.subr.mxu0 0.0
    %246 = vmatpush2.msra.mxu0 0.0
    %247 = vmatprep.subr.mxu0 0.0
    %248 = vmatpush2.msra.mxu0 0.0
    %249 = vmatprep.subr.mxu0 0.0
    %250 = vmatpush2.msra.mxu0 0.0
    %251 = vmatprep.subr.mxu0 0.0
    %252 = vmatpush2.msra.mxu0 0.0
    %253 = vmatprep.mubr.f32.mxu0 0.0
    %254 = vmatmul.mubr.f32.gmra.mxu0 %v94
    %v255 = vpop.f32.mrf.mxu0
    %v256 = vadd.f32 0.0, %v255
    %v257 = vpop.f32.mrf.mxu0
    %258 = vmatprep.mubr.f32.mxu0 0.0
    %259 = vmatmul.mubr.f32.gmra.mxu0 %v97
    %v260 = vpop.f32.mrf.mxu0
    %v261 = vadd.f32 0.0, %v260
    %v262 = vpop.f32.mrf.mxu0
    %263 = vmatprep.mubr.f32.mxu0 0.0
    %264 = vmatmul.mubr.f32.gmra.mxu0 %v100
    %v265 = vpop.f32.mrf.mxu0
    %v266 = vadd.f32 0.0, %v265
    %v267 = vpop.f32.mrf.mxu0
    %268 = vmatprep.mubr.f32.mxu0 0.0
    %269 = vmatmul.mubr.f32.gmra.mxu0 %v103
    %v270 = vpop.f32.mrf.mxu0
    %v271 = vadd.f32 0.0, %v270
    %v272 = vpop.f32.mrf.mxu0
    %273 = vmatprep.mubr.f32.mxu0 0.0
    %274 = vmatmul.mubr.f32.gmra.mxu0 %v106
    %v275 = vpop.f32.mrf.mxu0
    %v276 = vadd.f32 0.0, %v275
    %v277 = vpop.f32.mrf.mxu0
    %278 = vmatprep.mubr.f32.mxu0 0.0
    %279 = vmatmul.mubr.f32.gmra.mxu0 %v109
    %v280 = vpop.f32.mrf.mxu0
    %v281 = vadd.f32 0.0, %v280
    %v282 = vpop.f32.mrf.mxu0
    %283 = vmatprep.mubr.f32.mxu0 0.0
    %284 = vmatmul.mubr.f32.gmra.mxu0 %v112
    %v285 = vpop.f32.mrf.mxu0
    %v286 = vadd.f32 0.0, %v285
    %v287 = vpop.f32.mrf.mxu0
    %288 = vmatprep.mubr.f32.mxu0 0.0
    %289 = vmatmul.mubr.f32.gmra.mxu0 %v115
    %v290 = vpop.f32.mrf.mxu0
    %v291 = vadd.f32 0.0, %v290
    %v292 = vpop.f32.mrf.mxu0
    %293 = vmatprep.mubr.f32.mxu0 0.0
    %294 = vmatmul.mubr.f32.gmra.mxu0 %v118
    %v295 = vpop.f32.mrf.mxu0
    %v296 = vadd.f32 0.0, %v295
    %v297 = vpop.f32.mrf.mxu0
    %298 = vmatprep.mubr.f32.mxu0 0.0
    %299 = vmatmul.mubr.f32.gmra.mxu0 %v121
    %v300 = vpop.f32.mrf.mxu0
    %v301 = vadd.f32 0.0, %v300
    %v302 = vpop.f32.mrf.mxu0
    %303 = vmatprep.mubr.f32.mxu0 0.0
    %304 = vmatmul.mubr.f32.gmra.mxu0 %v124
    %v305 = vpop.f32.mrf.mxu0
    %v306 = vadd.f32 0.0, %v305
    %v307 = vpop.f32.mrf.mxu0
    %308 = vmatprep.mubr.f32.mxu0 0.0
    %309 = vmatmul.mubr.f32.gmra.mxu0 %v127
    %v310 = vpop.f32.mrf.mxu0
    %v311 = vadd.f32 0.0, %v310
    %v312 = vpop.f32.mrf.mxu0
    %313 = vmatprep.mubr.f32.mxu0 0.0
    %314 = vmatmul.mubr.f32.gmra.mxu0 %v130
    %v315 = vpop.f32.mrf.mxu0
    %v316 = vadd.f32 0.0, %v315
    %v317 = vpop.f32.mrf.mxu0
    %318 = vmatprep.mubr.f32.mxu0 0.0
    %319 = vmatmul.mubr.f32.gmra.mxu0 %v133
    %v320 = vpop.f32.mrf.mxu0
    %v321 = vadd.f32 0.0, %v320
    %v322 = vpop.f32.mrf.mxu0
    %323 = vmatprep.mubr.f32.mxu0 0.0
    %324 = vmatmul.mubr.f32.gmra.mxu0 %v136
    %v325 = vpop.f32.mrf.mxu0
    %v326 = vadd.f32 0.0, %v325
    %v327 = vpop.f32.mrf.mxu0
    %328 = vmatprep.mubr.f32.mxu0 0.0
    %329 = vmatmul.mubr.f32.gmra.mxu0 %v139
    %v330 = vpop.f32.mrf.mxu0
    %v331 = vadd.f32 0.0, %v330
    %v332 = vpop.f32.mrf.mxu0
    %333 = vmatprep.mubr.f32.mxu0 0.0
    %334 = vmatmul.mubr.f32.gmra.mxu0 %v142
    %v335 = vpop.f32.mrf.mxu0
    %v336 = vadd.f32 0.0, %v335
    %v337 = vpop.f32.mrf.mxu0
    %338 = vmatprep.mubr.f32.mxu0 0.0
    %339 = vmatmul.mubr.f32.gmra.mxu0 %v145
    %v340 = vpop.f32.mrf.mxu0
    %v341 = vadd.f32 0.0, %v340
    %v342 = vpop.f32.mrf.mxu0
    %343 = vmatprep.mubr.f32.mxu0 0.0
    %344 = vmatmul.mubr.f32.gmra.mxu0 %v148
    %v345 = vpop.f32.mrf.mxu0
    %v346 = vadd.f32 0.0, %v345
    %v347 = vpop.f32.mrf.mxu0
    %348 = vmatprep.mubr.f32.mxu0 0.0
    %349 = vmatmul.mubr.f32.gmra.mxu0 %v151
    %v350 = vpop.f32.mrf.mxu0
    %v351 = vadd.f32 0.0, %v350
    %v352 = vpop.f32.mrf.mxu0
    %353 = vmatprep.mubr.f32.mxu0 0.0
    %354 = vmatmul.mubr.f32.gmra.mxu0 %v154
    %v355 = vpop.f32.mrf.mxu0
    %v356 = vadd.f32 0.0, %v355
    %v357 = vpop.f32.mrf.mxu0
    %358 = vmatprep.mubr.f32.mxu0 0.0
    %359 = vmatmul.mubr.f32.gmra.mxu0 %v157
    %v360 = vpop.f32.mrf.mxu0
    %v361 = vadd.f32 0.0, %v360
    %v362 = vpop.f32.mrf.mxu0
    %363 = vmatprep.mubr.f32.mxu0 0.0
    %364 = vmatmul.mubr.f32.gmra.mxu0 %v160
    %v365 = vpop.f32.mrf.mxu0
    %v366 = vadd.f32 0.0, %v365
    %v367 = vpop.f32.mrf.mxu0
    %368 = vmatprep.mubr.f32.mxu0 0.0
    %369 = vmatmul.mubr.f32.gmra.mxu0 %v163
    %v370 = vpop.f32.mrf.mxu0
    %v371 = vadd.f32 0.0, %v370
    %v372 = vpop.f32.mrf.mxu0
    %373 = vmatprep.mubr.f32.mxu0 0.0
    %374 = vmatmul.mubr.f32.gmra.mxu0 %v166
    %v375 = vpop.f32.mrf.mxu0
    %v376 = vadd.f32 0.0, %v375
    %v377 = vpop.f32.mrf.mxu0
    %378 = vmatprep.mubr.f32.mxu0 0.0
    %379 = vmatmul.mubr.f32.gmra.mxu0 %v169
    %v380 = vpop.f32.mrf.mxu0
    %v381 = vadd.f32 0.0, %v380
    %v382 = vpop.f32.mrf.mxu0
    %383 = vmatprep.mubr.f32.mxu0 0.0
    %384 = vmatmul.mubr.f32.gmra.mxu0 %v172
    %v385 = vpop.f32.mrf.mxu0
    %v386 = vadd.f32 0.0, %v385
    %v387 = vpop.f32.mrf.mxu0
    %388 = vmatprep.mubr.f32.mxu0 0.0
    %389 = vmatmul.mubr.f32.gmra.mxu0 %v175
    %v390 = vpop.f32.mrf.mxu0
    %v391 = vadd.f32 0.0, %v390
    %v392 = vpop.f32.mrf.mxu0
    %393 = vmatprep.mubr.f32.mxu0 0.0
    %394 = vmatmul.mubr.f32.gmra.mxu0 %v178
    %v395 = vpop.f32.mrf.mxu0
    %v396 = vadd.f32 0.0, %v395
    %v397 = vpop.f32.mrf.mxu0
    %398 = vmatprep.mubr.f32.mxu0 0.0
    %399 = vmatmul.mubr.f32.gmra.mxu0 %v181
    %v400 = vpop.f32.mrf.mxu0
    %v401 = vadd.f32 0.0, %v400
    %v402 = vpop.f32.mrf.mxu0
    %403 = vmatprep.mubr.f32.mxu0 0.0
    %404 = vmatmul.mubr.f32.gmra.mxu0 %v184
    %v405 = vpop.f32.mrf.mxu0
    %v406 = vadd.f32 0.0, %v405
    %v407 = vpop.f32.mrf.mxu0
    %408 = vmatprep.mubr.f32.mxu0 0.0
    %409 = vmatmul.mubr.f32.gmra.mxu0 %v187
    %v410 = vpop.f32.mrf.mxu0
    %v411 = vadd.f32 0.0, %v410
    %v412 = vpop.f32.mrf.mxu0
    %413 = vdwg.mxu0
    %v414 = vld [vmem:[%s2] sm:$0x1]
    %v415 = vld [vmem:[%s3] sm:$0x1]
    %vm416 = vcmask 64512
    %v417 = vsel %vm416, %v256, 0.0
    %v418 = vsel %vm416, %v261, 0.0
    %v419 = vadd.f32 %v417, %v418
    %v420 = vsel %vm416, %v266, 0.0
    %v421 = vadd.f32 %v419, %v420
    %v422 = vsel %vm416, %v271, 0.0
    %v423 = vadd.f32 %v421, %v422
    %v424 = vsel %vm416, %v276, 0.0
    %v425 = vadd.f32 %v423, %v424
    %v426 = vsel %vm416, %v281, 0.0
    %v427 = vadd.f32 %v425, %v426
    %v428 = vsel %vm416, %v286, 0.0
    %v429 = vadd.f32 %v427, %v428
    %v430 = vsel %vm416, %v291, 0.0
    %v431 = vadd.f32 %v429, %v430
    %v432 = vsel %vm416, %v296, 0.0
    %v433 = vadd.f32 %v431, %v432
    %v434 = vsel %vm416, %v301, 0.0
    %v435 = vadd.f32 %v433, %v434
    %v436 = vsel %vm416, %v306, 0.0
    %v437 = vadd.f32 %v435, %v436
    %v438 = vsel %vm416, %v311, 0.0
    %v439 = vadd.f32 %v437, %v438
    %v440 = vsel %vm416, %v316, 0.0
    %v441 = vadd.f32 %v439, %v440
    %v442 = vsel %vm416, %v321, 0.0
    %v443 = vadd.f32 %v441, %v442
    %v444 = vsel %vm416, %v326, 0.0
    %v445 = vadd.f32 %v443, %v444
    %v446 = vsel %vm416, %v331, 0.0
    %v447 = vadd.f32 %v445, %v446
    %v448 = vsel %vm416, %v336, 0.0
    %v449 = vadd.f32 %v447, %v448
    %v450 = vsel %vm416, %v341, 0.0
    %v451 = vadd.f32 %v449, %v450
    %v452 = vsel %vm416, %v346, 0.0
    %v453 = vadd.f32 %v451, %v452
    %v454 = vsel %vm416, %v351, 0.0
    %v455 = vadd.f32 %v453, %v454
    %v456 = vsel %vm416, %v356, 0.0
    %v457 = vadd.f32 %v455, %v456
    %v458 = vsel %vm416, %v361, 0.0
    %v459 = vadd.f32 %v457, %v458
    %v460 = vsel %vm416, %v366, 0.0
    %v461 = vadd.f32 %v459, %v460
    %v462 = vsel %vm416, %v371, 0.0
    %v463 = vadd.f32 %v461, %v462
    %v464 = vsel %vm416, %v376, 0.0
    %v465 = vadd.f32 %v463, %v464
    %v466 = vsel %vm416, %v381, 0.0
    %v467 = vadd.f32 %v465, %v466
    %v468 = vsel %vm416, %v386, 0.0
    %v469 = vadd.f32 %v467, %v468
    %v470 = vsel %vm416, %v391, 0.0
    %v471 = vadd.f32 %v469, %v470
    %v472 = vsel %vm416, %v396, 0.0
    %v473 = vadd.f32 %v471, %v472
    %v474 = vsel %vm416, %v401, 0.0
    %v475 = vadd.f32 %v473, %v474
    %v476 = vsel %vm416, %v406, 0.0
    %v477 = vadd.f32 %v475, %v476
    %v478 = vsel %vm416, %v411, 0.0
    %v479 = vadd.f32 %v477, %v478
    %v480 = vrot.slane %v479, 4
    %v481 = vadd.f32 %v479, %v480
    %v482 = vrot.slane %v481, 2
    %v483 = vadd.f32 %v481, %v482
    %v484 = vrot.slane %v483, 1
    %v485 = vadd.f32 %v483, %v484
    %v486 = vmul.f32 %v485, 0.00390625
    %v487 = vmul.f32 %v256, %v256
    %v488 = vmul.f32 %v261, %v261
    %v489 = vmul.f32 %v266, %v266
    %v490 = vmul.f32 %v271, %v271
    %v491 = vmul.f32 %v276, %v276
    %v492 = vmul.f32 %v281, %v281
    %v493 = vmul.f32 %v286, %v286
    %v494 = vmul.f32 %v291, %v291
    %v495 = vmul.f32 %v296, %v296
    %v496 = vmul.f32 %v301, %v301
    %v497 = vmul.f32 %v306, %v306
    %v498 = vmul.f32 %v311, %v311
    %v499 = vmul.f32 %v316, %v316
    %v500 = vmul.f32 %v321, %v321
    %v501 = vmul.f32 %v326, %v326
    %v502 = vmul.f32 %v331, %v331
    %v503 = vmul.f32 %v336, %v336
    %v504 = vmul.f32 %v341, %v341
    %v505 = vmul.f32 %v346, %v346
    %v506 = vmul.f32 %v351, %v351
    %v507 = vmul.f32 %v356, %v356
    %v508 = vmul.f32 %v361, %v361
    %v509 = vmul.f32 %v366, %v366
    %v510 = vmul.f32 %v371, %v371
    %v511 = vmul.f32 %v376, %v376
    %v512 = vmul.f32 %v381, %v381
    %v513 = vmul.f32 %v386, %v386
    %v514 = vmul.f32 %v391, %v391
    %v515 = vmul.f32 %v396, %v396
    %v516 = vmul.f32 %v401, %v401
    %v517 = vmul.f32 %v406, %v406
    %v518 = vmul.f32 %v411, %v411
    %v519 = vsel %vm416, %v487, 0.0
    %v520 = vsel %vm416, %v488, 0.0
    %v521 = vadd.f32 %v519, %v520
    %v522 = vsel %vm416, %v489, 0.0
    %v523 = vadd.f32 %v521, %v522
    %v524 = vsel %vm416, %v490, 0.0
    %v525 = vadd.f32 %v523, %v524
    %v526 = vsel %vm416, %v491, 0.0
    %v527 = vadd.f32 %v525, %v526
    %v528 = vsel %vm416, %v492, 0.0
    %v529 = vadd.f32 %v527, %v528
    %v530 = vsel %vm416, %v493, 0.0
    %v531 = vadd.f32 %v529, %v530
    %v532 = vsel %vm416, %v494, 0.0
    %v533 = vadd.f32 %v531, %v532
    %v534 = vsel %vm416, %v495, 0.0
    %v535 = vadd.f32 %v533, %v534
    %v536 = vsel %vm416, %v496, 0.0
    %v537 = vadd.f32 %v535, %v536
    %v538 = vsel %vm416, %v497, 0.0
    %v539 = vadd.f32 %v537, %v538
    %v540 = vsel %vm416, %v498, 0.0
    %v541 = vadd.f32 %v539, %v540
    %v542 = vsel %vm416, %v499, 0.0
    %v543 = vadd.f32 %v541, %v542
    %v544 = vsel %vm416, %v500, 0.0
    %v545 = vadd.f32 %v543, %v544
    %v546 = vsel %vm416, %v501, 0.0
    %v547 = vadd.f32 %v545, %v546
    %v548 = vsel %vm416, %v502, 0.0
    %v549 = vadd.f32 %v547, %v548
    %v550 = vsel %vm416, %v503, 0.0
    %v551 = vadd.f32 %v549, %v550
    %v552 = vsel %vm416, %v504, 0.0
    %v553 = vadd.f32 %v551, %v552
    %v554 = vsel %vm416, %v505, 0.0
    %v555 = vadd.f32 %v553, %v554
    %v556 = vsel %vm416, %v506, 0.0
    %v557 = vadd.f32 %v555, %v556
    %v558 = vsel %vm416, %v507, 0.0
    %v559 = vadd.f32 %v557, %v558
    %v560 = vsel %vm416, %v508, 0.0
    %v561 = vadd.f32 %v559, %v560
    %v562 = vsel %vm416, %v509, 0.0
    %v563 = vadd.f32 %v561, %v562
    %v564 = vsel %vm416, %v510, 0.0
    %v565 = vadd.f32 %v563, %v564
    %v566 = vsel %vm416, %v511, 0.0
    %v567 = vadd.f32 %v565, %v566
    %v568 = vsel %vm416, %v512, 0.0
    %v569 = vadd.f32 %v567, %v568
    %v570 = vsel %vm416, %v513, 0.0
    %v571 = vadd.f32 %v569, %v570
    %v572 = vsel %vm416, %v514, 0.0
    %v573 = vadd.f32 %v571, %v572
    %v574 = vsel %vm416, %v515, 0.0
    %v575 = vadd.f32 %v573, %v574
    %v576 = vsel %vm416, %v516, 0.0
    %v577 = vadd.f32 %v575, %v576
    %v578 = vsel %vm416, %v517, 0.0
    %v579 = vadd.f32 %v577, %v578
    %v580 = vsel %vm416, %v518, 0.0
    %v581 = vadd.f32 %v579, %v580
    %v582 = vrot.slane %v581, 4
    %v583 = vadd.f32 %v581, %v582
    %v584 = vrot.slane %v583, 2
    %v585 = vadd.f32 %v583, %v584
    %v586 = vrot.slane %v585, 1
    %v587 = vadd.f32 %v585, %v586
    %v588 = vmul.f32 %v587, 0.00390625
    %v589 = vmul.f32 %v486, %v486
    %v590 = vsub.f32 %v588, %v589
    %v591 = vmax.f32 %v590, 0.0
    %v592 = vadd.f32 %v591, 1e-05
    %v593 = vrsqrt.pop %v592
    %v594 = vmul.f32 %v414, %v593
    %v595 = vmul.f32 %v486, %v594
    %v596 = vsub.f32 %v415, %v595
    %v598 = vlaneseq
    %v599 = vshrl.u32 %v598, 7
    %v600 = vsub.s32 0, %v599
    %v601 = vrot.slane %v594, %v600
    %v603 = vmul.f32 %v256, %v601
    %v604 = vmul.f32 %v261, %v601
    %v605 = vmul.f32 %v266, %v601
    %v606 = vmul.f32 %v271, %v601
    %v607 = vmul.f32 %v276, %v601
    %v608 = vmul.f32 %v281, %v601
    %v609 = vmul.f32 %v286, %v601
    %v610 = vmul.f32 %v291, %v601
    %v611 = vmul.f32 %v296, %v601
    %v612 = vmul.f32 %v301, %v601
    %v613 = vmul.f32 %v306, %v601
    %v614 = vmul.f32 %v311, %v601
    %v615 = vmul.f32 %v316, %v601
    %v616 = vmul.f32 %v321, %v601
    %v617 = vmul.f32 %v326, %v601
    %v618 = vmul.f32 %v331, %v601
    %v619 = vmul.f32 %v336, %v601
    %v620 = vmul.f32 %v341, %v601
    %v621 = vmul.f32 %v346, %v601
    %v622 = vmul.f32 %v351, %v601
    %v623 = vmul.f32 %v356, %v601
    %v624 = vmul.f32 %v361, %v601
    %v625 = vmul.f32 %v366, %v601
    %v626 = vmul.f32 %v371, %v601
    %v627 = vmul.f32 %v376, %v601
    %v628 = vmul.f32 %v381, %v601
    %v629 = vmul.f32 %v386, %v601
    %v630 = vmul.f32 %v391, %v601
    %v631 = vmul.f32 %v396, %v601
    %v632 = vmul.f32 %v401, %v601
    %v633 = vmul.f32 %v406, %v601
    %v634 = vmul.f32 %v411, %v601
    %v636 = vlaneseq
    %v637 = vshrl.u32 %v636, 7
    %v638 = vsub.s32 0, %v637
    %v639 = vrot.slane %v596, %v638
    %v641 = vadd.f32 %v603, %v639
    %v642 = vadd.f32 %v604, %v639
    %v643 = vadd.f32 %v605, %v639
    %v644 = vadd.f32 %v606, %v639
    %v645 = vadd.f32 %v607, %v639
    %v646 = vadd.f32 %v608, %v639
    %v647 = vadd.f32 %v609, %v639
    %v648 = vadd.f32 %v610, %v639
    %v649 = vadd.f32 %v611, %v639
    %v650 = vadd.f32 %v612, %v639
    %v651 = vadd.f32 %v613, %v639
    %v652 = vadd.f32 %v614, %v639
    %v653 = vadd.f32 %v615, %v639
    %v654 = vadd.f32 %v616, %v639
    %v655 = vadd.f32 %v617, %v639
    %v656 = vadd.f32 %v618, %v639
    %v657 = vadd.f32 %v619, %v639
    %v658 = vadd.f32 %v620, %v639
    %v659 = vadd.f32 %v621, %v639
    %v660 = vadd.f32 %v622, %v639
    %v661 = vadd.f32 %v623, %v639
    %v662 = vadd.f32 %v624, %v639
    %v663 = vadd.f32 %v625, %v639
    %v664 = vadd.f32 %v626, %v639
    %v665 = vadd.f32 %v627, %v639
    %v666 = vadd.f32 %v628, %v639
    %v667 = vadd.f32 %v629, %v639
    %v668 = vadd.f32 %v630, %v639
    %v669 = vadd.f32 %v631, %v639
    %v670 = vadd.f32 %v632, %v639
    %v671 = vadd.f32 %v633, %v639
    %v672 = vadd.f32 %v634, %v639
    %v673 = vmax.f32 %v641, 0.0
    %v674 = vmax.f32 %v642, 0.0
    %v675 = vmax.f32 %v643, 0.0
    %v676 = vmax.f32 %v644, 0.0
    %v677 = vmax.f32 %v645, 0.0
    %v678 = vmax.f32 %v646, 0.0
    %v679 = vmax.f32 %v647, 0.0
    %v680 = vmax.f32 %v648, 0.0
    %v681 = vmax.f32 %v649, 0.0
    %v682 = vmax.f32 %v650, 0.0
    %v683 = vmax.f32 %v651, 0.0
    %v684 = vmax.f32 %v652, 0.0
    %v685 = vmax.f32 %v653, 0.0
    %v686 = vmax.f32 %v654, 0.0
    %v687 = vmax.f32 %v655, 0.0
    %v688 = vmax.f32 %v656, 0.0
    %v689 = vmax.f32 %v657, 0.0
    %v690 = vmax.f32 %v658, 0.0
    %v691 = vmax.f32 %v659, 0.0
    %v692 = vmax.f32 %v660, 0.0
    %v693 = vmax.f32 %v661, 0.0
    %v694 = vmax.f32 %v662, 0.0
    %v695 = vmax.f32 %v663, 0.0
    %v696 = vmax.f32 %v664, 0.0
    %v697 = vmax.f32 %v665, 0.0
    %v698 = vmax.f32 %v666, 0.0
    %v699 = vmax.f32 %v667, 0.0
    %v700 = vmax.f32 %v668, 0.0
    %v701 = vmax.f32 %v669, 0.0
    %v702 = vmax.f32 %v670, 0.0
    %v703 = vmax.f32 %v671, 0.0
    %v704 = vmax.f32 %v672, 0.0
    %v705 = vld [vmem:[%s4] sm:$0xff]
    %v706 = vld [vmem:[%s4 + $0x8] sm:$0xff]
    %v708 = vsel %vm416, %v674, 0
    %v711 = vsel %vm416, %v675, 0
    %v714 = vsel %vm416, %v676, 0
    %v717 = vsel %vm416, %v677, 0
    %v720 = vsel %vm416, %v678, 0
    %v723 = vsel %vm416, %v679, 0
    %v726 = vsel %vm416, %v680, 0
    %v729 = vsel %vm416, %v681, 0
    %v732 = vsel %vm416, %v682, 0
    %v735 = vsel %vm416, %v683, 0
    %v738 = vsel %vm416, %v684, 0
    %v741 = vsel %vm416, %v685, 0
    %v744 = vsel %vm416, %v686, 0
    %v747 = vsel %vm416, %v687, 0
    %v750 = vsel %vm416, %v688, 0
    %v753 = vsel %vm416, %v689, 0
    %755 = vmatprep.subr.mxu0 0.0
    %756 = vmatpush1.msra.mxu0 0.0
    %757 = vmatprep.subr.mxu0 0.0
    %758 = vmatpush1.msra.mxu0 0.0
    %759 = vmatprep.subr.mxu0 0.0
    %760 = vmatpush1.msra.mxu0 0.0
    %761 = vmatprep.subr.mxu0 0.0
    %762 = vmatpush1.msra.mxu0 0.0
    %763 = vmatprep.subr.mxu0 0.0
    %764 = vmatpush1.msra.mxu0 0.0
    %765 = vmatprep.subr.mxu0 0.0
    %766 = vmatpush1.msra.mxu0 0.0
    %767 = vmatprep.subr.mxu0 0.0
    %768 = vmatpush1.msra.mxu0 0.0
    %769 = vmatprep.subr.mxu0 0.0
    %770 = vmatpush1.msra.mxu0 0.0
    %771 = vmatprep.subr.mxu0 0.0
    %772 = vmatpush1.msra.mxu0 0.0
    %773 = vmatprep.subr.mxu0 0.0
    %774 = vmatpush1.msra.mxu0 0.0
    %775 = vmatprep.subr.mxu0 0.0
    %776 = vmatpush1.msra.mxu0 0.0
    %777 = vmatprep.subr.mxu0 0.0
    %778 = vmatpush1.msra.mxu0 0.0
    %779 = vmatprep.subr.mxu0 0.0
    %780 = vmatpush1.msra.mxu0 0.0
    %781 = vmatprep.subr.mxu0 0.0
    %782 = vmatpush1.msra.mxu0 0.0
    %783 = vmatprep.subr.mxu0 0.0
    %784 = vmatpush1.msra.mxu0 0.0
    %785 = vmatprep.subr.mxu0 0.0
    %786 = vmatpush1.msra.mxu0 %v706
    %787 = vmatprep.subr.mxu0 0.0
    %788 = vmatpush2.msra.mxu0 0.0
    %789 = vmatprep.subr.mxu0 0.0
    %790 = vmatpush2.msra.mxu0 0.0
    %791 = vmatprep.subr.mxu0 0.0
    %792 = vmatpush2.msra.mxu0 0.0
    %793 = vmatprep.subr.mxu0 0.0
    %794 = vmatpush2.msra.mxu0 0.0
    %795 = vmatprep.subr.mxu0 0.0
    %796 = vmatpush2.msra.mxu0 0.0
    %797 = vmatprep.subr.mxu0 0.0
    %798 = vmatpush2.msra.mxu0 0.0
    %799 = vmatprep.subr.mxu0 0.0
    %800 = vmatpush2.msra.mxu0 0.0
    %801 = vmatprep.subr.mxu0 0.0
    %802 = vmatpush2.msra.mxu0 0.0
    %803 = vmatprep.subr.mxu0 0.0
    %804 = vmatpush2.msra.mxu0 0.0
    %805 = vmatprep.subr.mxu0 0.0
    %806 = vmatpush2.msra.mxu0 0.0
    %807 = vmatprep.subr.mxu0 0.0
    %808 = vmatpush2.msra.mxu0 0.0
    %809 = vmatprep.subr.mxu0 0.0
    %810 = vmatpush2.msra.mxu0 0.0
    %811 = vmatprep.subr.mxu0 0.0
    %812 = vmatpush2.msra.mxu0 0.0
    %813 = vmatprep.subr.mxu0 0.0
    %814 = vmatpush2.msra.mxu0 0.0
    %815 = vmatprep.subr.mxu0 0.0
    %816 = vmatpush2.msra.mxu0 0.0
    %817 = vmatprep.subr.mxu0 0.0
    %818 = vmatpush2.msra.mxu0 0.0
    %819 = vmatprep.mubr.f32.mxu0 0.0
    %820 = vmatmul.mubr.f32.gmra.mxu0 %v708
    %v821 = vpop.f32.mrf.mxu0
    %v822 = vadd.f32 0.0, %v821
    %v823 = vpop.f32.mrf.mxu0
    %824 = vmatprep.mubr.f32.mxu0 0.0
    %825 = vmatmul.mubr.f32.gmra.mxu0 %v711
    %v826 = vpop.f32.mrf.mxu0
    %v827 = vadd.f32 0.0, %v826
    %v828 = vpop.f32.mrf.mxu0
    %829 = vmatprep.mubr.f32.mxu0 0.0
    %830 = vmatmul.mubr.f32.gmra.mxu0 %v714
    %v831 = vpop.f32.mrf.mxu0
    %v832 = vadd.f32 0.0, %v831
    %v833 = vpop.f32.mrf.mxu0
    %834 = vmatprep.mubr.f32.mxu0 0.0
    %835 = vmatmul.mubr.f32.gmra.mxu0 %v717
    %v836 = vpop.f32.mrf.mxu0
    %v837 = vadd.f32 0.0, %v836
    %v838 = vpop.f32.mrf.mxu0
    %839 = vmatprep.mubr.f32.mxu0 0.0
    %840 = vmatmul.mubr.f32.gmra.mxu0 %v720
    %v841 = vpop.f32.mrf.mxu0
    %v842 = vadd.f32 0.0, %v841
    %v843 = vpop.f32.mrf.mxu0
    %844 = vmatprep.mubr.f32.mxu0 0.0
    %845 = vmatmul.mubr.f32.gmra.mxu0 %v723
    %v846 = vpop.f32.mrf.mxu0
    %v847 = vadd.f32 0.0, %v846
    %v848 = vpop.f32.mrf.mxu0
    %849 = vmatprep.mubr.f32.mxu0 0.0
    %850 = vmatmul.mubr.f32.gmra.mxu0 %v726
    %v851 = vpop.f32.mrf.mxu0
    %v852 = vadd.f32 0.0, %v851
    %v853 = vpop.f32.mrf.mxu0
    %854 = vmatprep.mubr.f32.mxu0 0.0
    %855 = vmatmul.mubr.f32.gmra.mxu0 %v729
    %v856 = vpop.f32.mrf.mxu0
    %v857 = vadd.f32 0.0, %v856
    %v858 = vpop.f32.mrf.mxu0
    %859 = vmatprep.mubr.f32.mxu0 0.0
    %860 = vmatmul.mubr.f32.gmra.mxu0 %v732
    %v861 = vpop.f32.mrf.mxu0
    %v862 = vadd.f32 0.0, %v861
    %v863 = vpop.f32.mrf.mxu0
    %864 = vmatprep.mubr.f32.mxu0 0.0
    %865 = vmatmul.mubr.f32.gmra.mxu0 %v735
    %v866 = vpop.f32.mrf.mxu0
    %v867 = vadd.f32 0.0, %v866
    %v868 = vpop.f32.mrf.mxu0
    %869 = vmatprep.mubr.f32.mxu0 0.0
    %870 = vmatmul.mubr.f32.gmra.mxu0 %v738
    %v871 = vpop.f32.mrf.mxu0
    %v872 = vadd.f32 0.0, %v871
    %v873 = vpop.f32.mrf.mxu0
    %874 = vmatprep.mubr.f32.mxu0 0.0
    %875 = vmatmul.mubr.f32.gmra.mxu0 %v741
    %v876 = vpop.f32.mrf.mxu0
    %v877 = vadd.f32 0.0, %v876
    %v878 = vpop.f32.mrf.mxu0
    %879 = vmatprep.mubr.f32.mxu0 0.0
    %880 = vmatmul.mubr.f32.gmra.mxu0 %v744
    %v881 = vpop.f32.mrf.mxu0
    %v882 = vadd.f32 0.0, %v881
    %v883 = vpop.f32.mrf.mxu0
    %884 = vmatprep.mubr.f32.mxu0 0.0
    %885 = vmatmul.mubr.f32.gmra.mxu0 %v747
    %v886 = vpop.f32.mrf.mxu0
    %v887 = vadd.f32 0.0, %v886
    %v888 = vpop.f32.mrf.mxu0
    %889 = vmatprep.mubr.f32.mxu0 0.0
    %890 = vmatmul.mubr.f32.gmra.mxu0 %v750
    %v891 = vpop.f32.mrf.mxu0
    %v892 = vadd.f32 0.0, %v891
    %v893 = vpop.f32.mrf.mxu0
    %894 = vmatprep.mubr.f32.mxu0 0.0
    %895 = vmatmul.mubr.f32.gmra.mxu0 %v753
    %v896 = vpop.f32.mrf.mxu0
    %v897 = vadd.f32 0.0, %v896
    %v898 = vpop.f32.mrf.mxu0
    %899 = vdwg.mxu0
    %v901 = vsel %vm416, %v673, 0
    %903 = vmatprep.subr.mxu0 0.0
    %904 = vmatpush1.msra.mxu0 0.0
    %905 = vmatprep.subr.mxu0 0.0
    %906 = vmatpush1.msra.mxu0 0.0
    %907 = vmatprep.subr.mxu0 0.0
    %908 = vmatpush1.msra.mxu0 0.0
    %909 = vmatprep.subr.mxu0 0.0
    %910 = vmatpush1.msra.mxu0 0.0
    %911 = vmatprep.subr.mxu0 0.0
    %912 = vmatpush1.msra.mxu0 0.0
    %913 = vmatprep.subr.mxu0 0.0
    %914 = vmatpush1.msra.mxu0 0.0
    %915 = vmatprep.subr.mxu0 0.0
    %916 = vmatpush1.msra.mxu0 0.0
    %917 = vmatprep.subr.mxu0 0.0
    %918 = vmatpush1.msra.mxu0 0.0
    %919 = vmatprep.subr.mxu0 0.0
    %920 = vmatpush1.msra.mxu0 0.0
    %921 = vmatprep.subr.mxu0 0.0
    %922 = vmatpush1.msra.mxu0 0.0
    %923 = vmatprep.subr.mxu0 0.0
    %924 = vmatpush1.msra.mxu0 0.0
    %925 = vmatprep.subr.mxu0 0.0
    %926 = vmatpush1.msra.mxu0 0.0
    %927 = vmatprep.subr.mxu0 0.0
    %928 = vmatpush1.msra.mxu0 0.0
    %929 = vmatprep.subr.mxu0 0.0
    %930 = vmatpush1.msra.mxu0 0.0
    %931 = vmatprep.subr.mxu0 0.0
    %932 = vmatpush1.msra.mxu0 0.0
    %933 = vmatprep.subr.mxu0 0.0
    %934 = vmatpush1.msra.mxu0 %v705
    %935 = vmatprep.subr.mxu0 0.0
    %936 = vmatpush2.msra.mxu0 0.0
    %937 = vmatprep.subr.mxu0 0.0
    %938 = vmatpush2.msra.mxu0 0.0
    %939 = vmatprep.subr.mxu0 0.0
    %940 = vmatpush2.msra.mxu0 0.0
    %941 = vmatprep.subr.mxu0 0.0
    %942 = vmatpush2.msra.mxu0 0.0
    %943 = vmatprep.subr.mxu0 0.0
    %944 = vmatpush2.msra.mxu0 0.0
    %945 = vmatprep.subr.mxu0 0.0
    %946 = vmatpush2.msra.mxu0 0.0
    %947 = vmatprep.subr.mxu0 0.0
    %948 = vmatpush2.msra.mxu0 0.0
    %949 = vmatprep.subr.mxu0 0.0
    %950 = vmatpush2.msra.mxu0 0.0
    %951 = vmatprep.subr.mxu0 0.0
    %952 = vmatpush2.msra.mxu0 0.0
    %953 = vmatprep.subr.mxu0 0.0
    %954 = vmatpush2.msra.mxu0 0.0
    %955 = vmatprep.subr.mxu0 0.0
    %956 = vmatpush2.msra.mxu0 0.0
    %957 = vmatprep.subr.mxu0 0.0
    %958 = vmatpush2.msra.mxu0 0.0
    %959 = vmatprep.subr.mxu0 0.0
    %960 = vmatpush2.msra.mxu0 0.0
    %961 = vmatprep.subr.mxu0 0.0
    %962 = vmatpush2.msra.mxu0 0.0
    %963 = vmatprep.subr.mxu0 0.0
    %964 = vmatpush2.msra.mxu0 0.0
    %965 = vmatprep.subr.mxu0 0.0
    %966 = vmatpush2.msra.mxu0 0.0
    %967 = vmatprep.mubr.f32.mxu0 0.0
    %968 = vmatmul.mubr.f32.gmra.mxu0 %v901
    %v969 = vpop.f32.mrf.mxu0
    %v970 = vadd.f32 %v822, %v969
    %v971 = vpop.f32.mrf.mxu0
    %972 = vmatprep.mubr.f32.mxu0 0.0
    %973 = vmatmul.mubr.f32.gmra.mxu0 %v708
    %v974 = vpop.f32.mrf.mxu0
    %v975 = vadd.f32 %v827, %v974
    %v976 = vpop.f32.mrf.mxu0
    %977 = vmatprep.mubr.f32.mxu0 0.0
    %978 = vmatmul.mubr.f32.gmra.mxu0 %v711
    %v979 = vpop.f32.mrf.mxu0
    %v980 = vadd.f32 %v832, %v979
    %v981 = vpop.f32.mrf.mxu0
    %982 = vmatprep.mubr.f32.mxu0 0.0
    %983 = vmatmul.mubr.f32.gmra.mxu0 %v714
    %v984 = vpop.f32.mrf.mxu0
    %v985 = vadd.f32 %v837, %v984
    %v986 = vpop.f32.mrf.mxu0
    %987 = vmatprep.mubr.f32.mxu0 0.0
    %988 = vmatmul.mubr.f32.gmra.mxu0 %v717
    %v989 = vpop.f32.mrf.mxu0
    %v990 = vadd.f32 %v842, %v989
    %v991 = vpop.f32.mrf.mxu0
    %992 = vmatprep.mubr.f32.mxu0 0.0
    %993 = vmatmul.mubr.f32.gmra.mxu0 %v720
    %v994 = vpop.f32.mrf.mxu0
    %v995 = vadd.f32 %v847, %v994
    %v996 = vpop.f32.mrf.mxu0
    %997 = vmatprep.mubr.f32.mxu0 0.0
    %998 = vmatmul.mubr.f32.gmra.mxu0 %v723
    %v999 = vpop.f32.mrf.mxu0
    %v1000 = vadd.f32 %v852, %v999
    %v1001 = vpop.f32.mrf.mxu0
    %1002 = vmatprep.mubr.f32.mxu0 0.0
    %1003 = vmatmul.mubr.f32.gmra.mxu0 %v726
    %v1004 = vpop.f32.mrf.mxu0
    %v1005 = vadd.f32 %v857, %v1004
    %v1006 = vpop.f32.mrf.mxu0
    %1007 = vmatprep.mubr.f32.mxu0 0.0
    %1008 = vmatmul.mubr.f32.gmra.mxu0 %v729
    %v1009 = vpop.f32.mrf.mxu0
    %v1010 = vadd.f32 %v862, %v1009
    %v1011 = vpop.f32.mrf.mxu0
    %1012 = vmatprep.mubr.f32.mxu0 0.0
    %1013 = vmatmul.mubr.f32.gmra.mxu0 %v732
    %v1014 = vpop.f32.mrf.mxu0
    %v1015 = vadd.f32 %v867, %v1014
    %v1016 = vpop.f32.mrf.mxu0
    %1017 = vmatprep.mubr.f32.mxu0 0.0
    %1018 = vmatmul.mubr.f32.gmra.mxu0 %v735
    %v1019 = vpop.f32.mrf.mxu0
    %v1020 = vadd.f32 %v872, %v1019
    %v1021 = vpop.f32.mrf.mxu0
    %1022 = vmatprep.mubr.f32.mxu0 0.0
    %1023 = vmatmul.mubr.f32.gmra.mxu0 %v738
    %v1024 = vpop.f32.mrf.mxu0
    %v1025 = vadd.f32 %v877, %v1024
    %v1026 = vpop.f32.mrf.mxu0
    %1027 = vmatprep.mubr.f32.mxu0 0.0
    %1028 = vmatmul.mubr.f32.gmra.mxu0 %v741
    %v1029 = vpop.f32.mrf.mxu0
    %v1030 = vadd.f32 %v882, %v1029
    %v1031 = vpop.f32.mrf.mxu0
    %1032 = vmatprep.mubr.f32.mxu0 0.0
    %1033 = vmatmul.mubr.f32.gmra.mxu0 %v744
    %v1034 = vpop.f32.mrf.mxu0
    %v1035 = vadd.f32 %v887, %v1034
    %v1036 = vpop.f32.mrf.mxu0
    %1037 = vmatprep.mubr.f32.mxu0 0.0
    %1038 = vmatmul.mubr.f32.gmra.mxu0 %v747
    %v1039 = vpop.f32.mrf.mxu0
    %v1040 = vadd.f32 %v892, %v1039
    %v1041 = vpop.f32.mrf.mxu0
    %1042 = vmatprep.mubr.f32.mxu0 0.0
    %1043 = vmatmul.mubr.f32.gmra.mxu0 %v750
    %v1044 = vpop.f32.mrf.mxu0
    %v1045 = vadd.f32 %v897, %v1044
    %v1046 = vpop.f32.mrf.mxu0
    %1047 = vdwg.mxu0
    %v1048 = vld [vmem:[%s4 + $0x10] sm:$0xff]
    %v1050 = vsel %vm416, %v690, 0
    %1052 = vmatprep.subr.mxu0 0.0
    %1053 = vmatpush1.msra.mxu0 0.0
    %1054 = vmatprep.subr.mxu0 0.0
    %1055 = vmatpush1.msra.mxu0 0.0
    %1056 = vmatprep.subr.mxu0 0.0
    %1057 = vmatpush1.msra.mxu0 0.0
    %1058 = vmatprep.subr.mxu0 0.0
    %1059 = vmatpush1.msra.mxu0 0.0
    %1060 = vmatprep.subr.mxu0 0.0
    %1061 = vmatpush1.msra.mxu0 0.0
    %1062 = vmatprep.subr.mxu0 0.0
    %1063 = vmatpush1.msra.mxu0 0.0
    %1064 = vmatprep.subr.mxu0 0.0
    %1065 = vmatpush1.msra.mxu0 0.0
    %1066 = vmatprep.subr.mxu0 0.0
    %1067 = vmatpush1.msra.mxu0 0.0
    %1068 = vmatprep.subr.mxu0 0.0
    %1069 = vmatpush1.msra.mxu0 0.0
    %1070 = vmatprep.subr.mxu0 0.0
    %1071 = vmatpush1.msra.mxu0 0.0
    %1072 = vmatprep.subr.mxu0 0.0
    %1073 = vmatpush1.msra.mxu0 0.0
    %1074 = vmatprep.subr.mxu0 0.0
    %1075 = vmatpush1.msra.mxu0 0.0
    %1076 = vmatprep.subr.mxu0 0.0
    %1077 = vmatpush1.msra.mxu0 0.0
    %1078 = vmatprep.subr.mxu0 0.0
    %1079 = vmatpush1.msra.mxu0 0.0
    %1080 = vmatprep.subr.mxu0 0.0
    %1081 = vmatpush1.msra.mxu0 0.0
    %1082 = vmatprep.subr.mxu0 0.0
    %1083 = vmatpush1.msra.mxu0 %v1048
    %1084 = vmatprep.subr.mxu0 0.0
    %1085 = vmatpush2.msra.mxu0 0.0
    %1086 = vmatprep.subr.mxu0 0.0
    %1087 = vmatpush2.msra.mxu0 0.0
    %1088 = vmatprep.subr.mxu0 0.0
    %1089 = vmatpush2.msra.mxu0 0.0
    %1090 = vmatprep.subr.mxu0 0.0
    %1091 = vmatpush2.msra.mxu0 0.0
    %1092 = vmatprep.subr.mxu0 0.0
    %1093 = vmatpush2.msra.mxu0 0.0
    %1094 = vmatprep.subr.mxu0 0.0
    %1095 = vmatpush2.msra.mxu0 0.0
    %1096 = vmatprep.subr.mxu0 0.0
    %1097 = vmatpush2.msra.mxu0 0.0
    %1098 = vmatprep.subr.mxu0 0.0
    %1099 = vmatpush2.msra.mxu0 0.0
    %1100 = vmatprep.subr.mxu0 0.0
    %1101 = vmatpush2.msra.mxu0 0.0
    %1102 = vmatprep.subr.mxu0 0.0
    %1103 = vmatpush2.msra.mxu0 0.0
    %1104 = vmatprep.subr.mxu0 0.0
    %1105 = vmatpush2.msra.mxu0 0.0
    %1106 = vmatprep.subr.mxu0 0.0
    %1107 = vmatpush2.msra.mxu0 0.0
    %1108 = vmatprep.subr.mxu0 0.0
    %1109 = vmatpush2.msra.mxu0 0.0
    %1110 = vmatprep.subr.mxu0 0.0
    %1111 = vmatpush2.msra.mxu0 0.0
    %1112 = vmatprep.subr.mxu0 0.0
    %1113 = vmatpush2.msra.mxu0 0.0
    %1114 = vmatprep.subr.mxu0 0.0
    %1115 = vmatpush2.msra.mxu0 0.0
    %1116 = vmatprep.mubr.f32.mxu0 0.0
    %1117 = vmatmul.mubr.f32.gmra.mxu0 %v711
    %v1118 = vpop.f32.mrf.mxu0
    %v1119 = vadd.f32 0.0, %v1118
    %v1120 = vpop.f32.mrf.mxu0
    %1121 = vmatprep.mubr.f32.mxu0 0.0
    %1122 = vmatmul.mubr.f32.gmra.mxu0 %v714
    %v1123 = vpop.f32.mrf.mxu0
    %v1124 = vadd.f32 0.0, %v1123
    %v1125 = vpop.f32.mrf.mxu0
    %1126 = vmatprep.mubr.f32.mxu0 0.0
    %1127 = vmatmul.mubr.f32.gmra.mxu0 %v717
    %v1128 = vpop.f32.mrf.mxu0
    %v1129 = vadd.f32 0.0, %v1128
    %v1130 = vpop.f32.mrf.mxu0
    %1131 = vmatprep.mubr.f32.mxu0 0.0
    %1132 = vmatmul.mubr.f32.gmra.mxu0 %v720
    %v1133 = vpop.f32.mrf.mxu0
    %v1134 = vadd.f32 0.0, %v1133
    %v1135 = vpop.f32.mrf.mxu0
    %1136 = vmatprep.mubr.f32.mxu0 0.0
    %1137 = vmatmul.mubr.f32.gmra.mxu0 %v723
    %v1138 = vpop.f32.mrf.mxu0
    %v1139 = vadd.f32 0.0, %v1138
    %v1140 = vpop.f32.mrf.mxu0
    %1141 = vmatprep.mubr.f32.mxu0 0.0
    %1142 = vmatmul.mubr.f32.gmra.mxu0 %v726
    %v1143 = vpop.f32.mrf.mxu0
    %v1144 = vadd.f32 0.0, %v1143
    %v1145 = vpop.f32.mrf.mxu0
    %1146 = vmatprep.mubr.f32.mxu0 0.0
    %1147 = vmatmul.mubr.f32.gmra.mxu0 %v729
    %v1148 = vpop.f32.mrf.mxu0
    %v1149 = vadd.f32 0.0, %v1148
    %v1150 = vpop.f32.mrf.mxu0
    %1151 = vmatprep.mubr.f32.mxu0 0.0
    %1152 = vmatmul.mubr.f32.gmra.mxu0 %v732
    %v1153 = vpop.f32.mrf.mxu0
    %v1154 = vadd.f32 0.0, %v1153
    %v1155 = vpop.f32.mrf.mxu0
    %1156 = vmatprep.mubr.f32.mxu0 0.0
    %1157 = vmatmul.mubr.f32.gmra.mxu0 %v735
    %v1158 = vpop.f32.mrf.mxu0
    %v1159 = vadd.f32 0.0, %v1158
    %v1160 = vpop.f32.mrf.mxu0
    %1161 = vmatprep.mubr.f32.mxu0 0.0
    %1162 = vmatmul.mubr.f32.gmra.mxu0 %v738
    %v1163 = vpop.f32.mrf.mxu0
    %v1164 = vadd.f32 0.0, %v1163
    %v1165 = vpop.f32.mrf.mxu0
    %1166 = vmatprep.mubr.f32.mxu0 0.0
    %1167 = vmatmul.mubr.f32.gmra.mxu0 %v741
    %v1168 = vpop.f32.mrf.mxu0
    %v1169 = vadd.f32 0.0, %v1168
    %v1170 = vpop.f32.mrf.mxu0
    %1171 = vmatprep.mubr.f32.mxu0 0.0
    %1172 = vmatmul.mubr.f32.gmra.mxu0 %v744
    %v1173 = vpop.f32.mrf.mxu0
    %v1174 = vadd.f32 0.0, %v1173
    %v1175 = vpop.f32.mrf.mxu0
    %1176 = vmatprep.mubr.f32.mxu0 0.0
    %1177 = vmatmul.mubr.f32.gmra.mxu0 %v747
    %v1178 = vpop.f32.mrf.mxu0
    %v1179 = vadd.f32 0.0, %v1178
    %v1180 = vpop.f32.mrf.mxu0
    %1181 = vmatprep.mubr.f32.mxu0 0.0
    %1182 = vmatmul.mubr.f32.gmra.mxu0 %v750
    %v1183 = vpop.f32.mrf.mxu0
    %v1184 = vadd.f32 0.0, %v1183
    %v1185 = vpop.f32.mrf.mxu0
    %1186 = vmatprep.mubr.f32.mxu0 0.0
    %1187 = vmatmul.mubr.f32.gmra.mxu0 %v753
    %v1188 = vpop.f32.mrf.mxu0
    %v1189 = vadd.f32 0.0, %v1188
    %v1190 = vpop.f32.mrf.mxu0
    %1191 = vmatprep.mubr.f32.mxu0 0.0
    %1192 = vmatmul.mubr.f32.gmra.mxu0 %v1050
    %v1193 = vpop.f32.mrf.mxu0
    %v1194 = vadd.f32 0.0, %v1193
    %v1195 = vpop.f32.mrf.mxu0
    %1196 = vdwg.mxu0
    %v1197 = vadd.f32 %v970, %v1119
    %v1198 = vadd.f32 %v975, %v1124
    %v1199 = vadd.f32 %v980, %v1129
    %v1200 = vadd.f32 %v985, %v1134
    %v1201 = vadd.f32 %v990, %v1139
    %v1202 = vadd.f32 %v995, %v1144
    %v1203 = vadd.f32 %v1000, %v1149
    %v1204 = vadd.f32 %v1005, %v1154
    %v1205 = vadd.f32 %v1010, %v1159
    %v1206 = vadd.f32 %v1015, %v1164
    %v1207 = vadd.f32 %v1020, %v1169
    %v1208 = vadd.f32 %v1025, %v1174
    %v1209 = vadd.f32 %v1030, %v1179
    %v1210 = vadd.f32 %v1035, %v1184
    %v1211 = vadd.f32 %v1040, %v1189
    %v1212 = vadd.f32 %v1045, %v1194
    %v1213 = vld [vmem:[%s4 + $0x18] sm:$0xff]
    %v1215 = vsel %vm416, %v691, 0
    %1217 = vmatprep.subr.mxu0 0.0
    %1218 = vmatpush1.msra.mxu0 0.0
    %1219 = vmatprep.subr.mxu0 0.0
    %1220 = vmatpush1.msra.mxu0 0.0
    %1221 = vmatprep.subr.mxu0 0.0
    %1222 = vmatpush1.msra.mxu0 0.0
    %1223 = vmatprep.subr.mxu0 0.0
    %1224 = vmatpush1.msra.mxu0 0.0
    %1225 = vmatprep.subr.mxu0 0.0
    %1226 = vmatpush1.msra.mxu0 0.0
    %1227 = vmatprep.subr.mxu0 0.0
    %1228 = vmatpush1.msra.mxu0 0.0
    %1229 = vmatprep.subr.mxu0 0.0
    %1230 = vmatpush1.msra.mxu0 0.0
    %1231 = vmatprep.subr.mxu0 0.0
    %1232 = vmatpush1.msra.mxu0 0.0
    %1233 = vmatprep.subr.mxu0 0.0
    %1234 = vmatpush1.msra.mxu0 0.0
    %1235 = vmatprep.subr.mxu0 0.0
    %1236 = vmatpush1.msra.mxu0 0.0
    %1237 = vmatprep.subr.mxu0 0.0
    %1238 = vmatpush1.msra.mxu0 0.0
    %1239 = vmatprep.subr.mxu0 0.0
    %1240 = vmatpush1.msra.mxu0 0.0
    %1241 = vmatprep.subr.mxu0 0.0
    %1242 = vmatpush1.msra.mxu0 0.0
    %1243 = vmatprep.subr.mxu0 0.0
    %1244 = vmatpush1.msra.mxu0 0.0
    %1245 = vmatprep.subr.mxu0 0.0
    %1246 = vmatpush1.msra.mxu0 0.0
    %1247 = vmatprep.subr.mxu0 0.0
    %1248 = vmatpush1.msra.mxu0 %v1213
    %1249 = vmatprep.subr.mxu0 0.0
    %1250 = vmatpush2.msra.mxu0 0.0
    %1251 = vmatprep.subr.mxu0 0.0
    %1252 = vmatpush2.msra.mxu0 0.0
    %1253 = vmatprep.subr.mxu0 0.0
    %1254 = vmatpush2.msra.mxu0 0.0
    %1255 = vmatprep.subr.mxu0 0.0
    %1256 = vmatpush2.msra.mxu0 0.0
    %1257 = vmatprep.subr.mxu0 0.0
    %1258 = vmatpush2.msra.mxu0 0.0
    %1259 = vmatprep.subr.mxu0 0.0
    %1260 = vmatpush2.msra.mxu0 0.0
    %1261 = vmatprep.subr.mxu0 0.0
    %1262 = vmatpush2.msra.mxu0 0.0
    %1263 = vmatprep.subr.mxu0 0.0
    %1264 = vmatpush2.msra.mxu0 0.0
    %1265 = vmatprep.subr.mxu0 0.0
    %1266 = vmatpush2.msra.mxu0 0.0
    %1267 = vmatprep.subr.mxu0 0.0
    %1268 = vmatpush2.msra.mxu0 0.0
    %1269 = vmatprep.subr.mxu0 0.0
    %1270 = vmatpush2.msra.mxu0 0.0
    %1271 = vmatprep.subr.mxu0 0.0
    %1272 = vmatpush2.msra.mxu0 0.0
    %1273 = vmatprep.subr.mxu0 0.0
    %1274 = vmatpush2.msra.mxu0 0.0
    %1275 = vmatprep.subr.mxu0 0.0
    %1276 = vmatpush2.msra.mxu0 0.0
    %1277 = vmatprep.subr.mxu0 0.0
    %1278 = vmatpush2.msra.mxu0 0.0
    %1279 = vmatprep.subr.mxu0 0.0
    %1280 = vmatpush2.msra.mxu0 0.0
    %1281 = vmatprep.mubr.f32.mxu0 0.0
    %1282 = vmatmul.mubr.f32.gmra.mxu0 %v714
    %v1283 = vpop.f32.mrf.mxu0
    %v1284 = vadd.f32 0.0, %v1283
    %v1285 = vpop.f32.mrf.mxu0
    %1286 = vmatprep.mubr.f32.mxu0 0.0
    %1287 = vmatmul.mubr.f32.gmra.mxu0 %v717
    %v1288 = vpop.f32.mrf.mxu0
    %v1289 = vadd.f32 0.0, %v1288
    %v1290 = vpop.f32.mrf.mxu0
    %1291 = vmatprep.mubr.f32.mxu0 0.0
    %1292 = vmatmul.mubr.f32.gmra.mxu0 %v720
    %v1293 = vpop.f32.mrf.mxu0
    %v1294 = vadd.f32 0.0, %v1293
    %v1295 = vpop.f32.mrf.mxu0
    %1296 = vmatprep.mubr.f32.mxu0 0.0
    %1297 = vmatmul.mubr.f32.gmra.mxu0 %v723
    %v1298 = vpop.f32.mrf.mxu0
    %v1299 = vadd.f32 0.0, %v1298
    %v1300 = vpop.f32.mrf.mxu0
    %1301 = vmatprep.mubr.f32.mxu0 0.0
    %1302 = vmatmul.mubr.f32.gmra.mxu0 %v726
    %v1303 = vpop.f32.mrf.mxu0
    %v1304 = vadd.f32 0.0, %v1303
    %v1305 = vpop.f32.mrf.mxu0
    %1306 = vmatprep.mubr.f32.mxu0 0.0
    %1307 = vmatmul.mubr.f32.gmra.mxu0 %v729
    %v1308 = vpop.f32.mrf.mxu0
    %v1309 = vadd.f32 0.0, %v1308
    %v1310 = vpop.f32.mrf.mxu0
    %1311 = vmatprep.mubr.f32.mxu0 0.0
    %1312 = vmatmul.mubr.f32.gmra.mxu0 %v732
    %v1313 = vpop.f32.mrf.mxu0
    %v1314 = vadd.f32 0.0, %v1313
    %v1315 = vpop.f32.mrf.mxu0
    %1316 = vmatprep.mubr.f32.mxu0 0.0
    %1317 = vmatmul.mubr.f32.gmra.mxu0 %v735
    %v1318 = vpop.f32.mrf.mxu0
    %v1319 = vadd.f32 0.0, %v1318
    %v1320 = vpop.f32.mrf.mxu0
    %1321 = vmatprep.mubr.f32.mxu0 0.0
    %1322 = vmatmul.mubr.f32.gmra.mxu0 %v738
    %v1323 = vpop.f32.mrf.mxu0
    %v1324 = vadd.f32 0.0, %v1323
    %v1325 = vpop.f32.mrf.mxu0
    %1326 = vmatprep.mubr.f32.mxu0 0.0
    %1327 = vmatmul.mubr.f32.gmra.mxu0 %v741
    %v1328 = vpop.f32.mrf.mxu0
    %v1329 = vadd.f32 0.0, %v1328
    %v1330 = vpop.f32.mrf.mxu0
    %1331 = vmatprep.mubr.f32.mxu0 0.0
    %1332 = vmatmul.mubr.f32.gmra.mxu0 %v744
    %v1333 = vpop.f32.mrf.mxu0
    %v1334 = vadd.f32 0.0, %v1333
    %v1335 = vpop.f32.mrf.mxu0
    %1336 = vmatprep.mubr.f32.mxu0 0.0
    %1337 = vmatmul.mubr.f32.gmra.mxu0 %v747
    %v1338 = vpop.f32.mrf.mxu0
    %v1339 = vadd.f32 0.0, %v1338
    %v1340 = vpop.f32.mrf.mxu0
    %1341 = vmatprep.mubr.f32.mxu0 0.0
    %1342 = vmatmul.mubr.f32.gmra.mxu0 %v750
    %v1343 = vpop.f32.mrf.mxu0
    %v1344 = vadd.f32 0.0, %v1343
    %v1345 = vpop.f32.mrf.mxu0
    %1346 = vmatprep.mubr.f32.mxu0 0.0
    %1347 = vmatmul.mubr.f32.gmra.mxu0 %v753
    %v1348 = vpop.f32.mrf.mxu0
    %v1349 = vadd.f32 0.0, %v1348
    %v1350 = vpop.f32.mrf.mxu0
    %1351 = vmatprep.mubr.f32.mxu0 0.0
    %1352 = vmatmul.mubr.f32.gmra.mxu0 %v1050
    %v1353 = vpop.f32.mrf.mxu0
    %v1354 = vadd.f32 0.0, %v1353
    %v1355 = vpop.f32.mrf.mxu0
    %1356 = vmatprep.mubr.f32.mxu0 0.0
    %1357 = vmatmul.mubr.f32.gmra.mxu0 %v1215
    %v1358 = vpop.f32.mrf.mxu0
    %v1359 = vadd.f32 0.0, %v1358
    %v1360 = vpop.f32.mrf.mxu0
    %1361 = vdwg.mxu0
    %v1362 = vadd.f32 %v1197, %v1284
    %v1363 = vadd.f32 %v1198, %v1289
    %v1364 = vadd.f32 %v1199, %v1294
    %v1365 = vadd.f32 %v1200, %v1299
    %v1366 = vadd.f32 %v1201, %v1304
    %v1367 = vadd.f32 %v1202, %v1309
    %v1368 = vadd.f32 %v1203, %v1314
    %v1369 = vadd.f32 %v1204, %v1319
    %v1370 = vadd.f32 %v1205, %v1324
    %v1371 = vadd.f32 %v1206, %v1329
    %v1372 = vadd.f32 %v1207, %v1334
    %v1373 = vadd.f32 %v1208, %v1339
    %v1374 = vadd.f32 %v1209, %v1344
    %v1375 = vadd.f32 %v1210, %v1349
    %v1376 = vadd.f32 %v1211, %v1354
    %v1377 = vadd.f32 %v1212, %v1359
    %v1378 = vld [vmem:[%s4 + $0x20] sm:$0xff]
    %v1380 = vsel %vm416, %v692, 0
    %1382 = vmatprep.subr.mxu0 0.0
    %1383 = vmatpush1.msra.mxu0 0.0
    %1384 = vmatprep.subr.mxu0 0.0
    %1385 = vmatpush1.msra.mxu0 0.0
    %1386 = vmatprep.subr.mxu0 0.0
    %1387 = vmatpush1.msra.mxu0 0.0
    %1388 = vmatprep.subr.mxu0 0.0
    %1389 = vmatpush1.msra.mxu0 0.0
    %1390 = vmatprep.subr.mxu0 0.0
    %1391 = vmatpush1.msra.mxu0 0.0
    %1392 = vmatprep.subr.mxu0 0.0
    %1393 = vmatpush1.msra.mxu0 0.0
    %1394 = vmatprep.subr.mxu0 0.0
    %1395 = vmatpush1.msra.mxu0 0.0
    %1396 = vmatprep.subr.mxu0 0.0
    %1397 = vmatpush1.msra.mxu0 0.0
    %1398 = vmatprep.subr.mxu0 0.0
    %1399 = vmatpush1.msra.mxu0 0.0
    %1400 = vmatprep.subr.mxu0 0.0
    %1401 = vmatpush1.msra.mxu0 0.0
    %1402 = vmatprep.subr.mxu0 0.0
    %1403 = vmatpush1.msra.mxu0 0.0
    %1404 = vmatprep.subr.mxu0 0.0
    %1405 = vmatpush1.msra.mxu0 0.0
    %1406 = vmatprep.subr.mxu0 0.0
    %1407 = vmatpush1.msra.mxu0 0.0
    %1408 = vmatprep.subr.mxu0 0.0
    %1409 = vmatpush1.msra.mxu0 0.0
    %1410 = vmatprep.subr.mxu0 0.0
    %1411 = vmatpush1.msra.mxu0 0.0
    %1412 = vmatprep.subr.mxu0 0.0
    %1413 = vmatpush1.msra.mxu0 %v1378
    %1414 = vmatprep.subr.mxu0 0.0
    %1415 = vmatpush2.msra.mxu0 0.0
    %1416 = vmatprep.subr.mxu0 0.0
    %1417 = vmatpush2.msra.mxu0 0.0
    %1418 = vmatprep.subr.mxu0 0.0
    %1419 = vmatpush2.msra.mxu0 0.0
    %1420 = vmatprep.subr.mxu0 0.0
    %1421 = vmatpush2.msra.mxu0 0.0
    %1422 = vmatprep.subr.mxu0 0.0
    %1423 = vmatpush2.msra.mxu0 0.0
    %1424 = vmatprep.subr.mxu0 0.0
    %1425 = vmatpush2.msra.mxu0 0.0
    %1426 = vmatprep.subr.mxu0 0.0
    %1427 = vmatpush2.msra.mxu0 0.0
    %1428 = vmatprep.subr.mxu0 0.0
    %1429 = vmatpush2.msra.mxu0 0.0
    %1430 = vmatprep.subr.mxu0 0.0
    %1431 = vmatpush2.msra.mxu0 0.0
    %1432 = vmatprep.subr.mxu0 0.0
    %1433 = vmatpush2.msra.mxu0 0.0
    %1434 = vmatprep.subr.mxu0 0.0
    %1435 = vmatpush2.msra.mxu0 0.0
    %1436 = vmatprep.subr.mxu0 0.0
    %1437 = vmatpush2.msra.mxu0 0.0
    %1438 = vmatprep.subr.mxu0 0.0
    %1439 = vmatpush2.msra.mxu0 0.0
    %1440 = vmatprep.subr.mxu0 0.0
    %1441 = vmatpush2.msra.mxu0 0.0
    %1442 = vmatprep.subr.mxu0 0.0
    %1443 = vmatpush2.msra.mxu0 0.0
    %1444 = vmatprep.subr.mxu0 0.0
    %1445 = vmatpush2.msra.mxu0 0.0
    %1446 = vmatprep.mubr.f32.mxu0 0.0
    %1447 = vmatmul.mubr.f32.gmra.mxu0 %v717
    %v1448 = vpop.f32.mrf.mxu0
    %v1449 = vadd.f32 0.0, %v1448
    %v1450 = vpop.f32.mrf.mxu0
    %1451 = vmatprep.mubr.f32.mxu0 0.0
    %1452 = vmatmul.mubr.f32.gmra.mxu0 %v720
    %v1453 = vpop.f32.mrf.mxu0
    %v1454 = vadd.f32 0.0, %v1453
    %v1455 = vpop.f32.mrf.mxu0
    %1456 = vmatprep.mubr.f32.mxu0 0.0
    %1457 = vmatmul.mubr.f32.gmra.mxu0 %v723
    %v1458 = vpop.f32.mrf.mxu0
    %v1459 = vadd.f32 0.0, %v1458
    %v1460 = vpop.f32.mrf.mxu0
    %1461 = vmatprep.mubr.f32.mxu0 0.0
    %1462 = vmatmul.mubr.f32.gmra.mxu0 %v726
    %v1463 = vpop.f32.mrf.mxu0
    %v1464 = vadd.f32 0.0, %v1463
    %v1465 = vpop.f32.mrf.mxu0
    %1466 = vmatprep.mubr.f32.mxu0 0.0
    %1467 = vmatmul.mubr.f32.gmra.mxu0 %v729
    %v1468 = vpop.f32.mrf.mxu0
    %v1469 = vadd.f32 0.0, %v1468
    %v1470 = vpop.f32.mrf.mxu0
    %1471 = vmatprep.mubr.f32.mxu0 0.0
    %1472 = vmatmul.mubr.f32.gmra.mxu0 %v732
    %v1473 = vpop.f32.mrf.mxu0
    %v1474 = vadd.f32 0.0, %v1473
    %v1475 = vpop.f32.mrf.mxu0
    %1476 = vmatprep.mubr.f32.mxu0 0.0
    %1477 = vmatmul.mubr.f32.gmra.mxu0 %v735
    %v1478 = vpop.f32.mrf.mxu0
    %v1479 = vadd.f32 0.0, %v1478
    %v1480 = vpop.f32.mrf.mxu0
    %1481 = vmatprep.mubr.f32.mxu0 0.0
    %1482 = vmatmul.mubr.f32.gmra.mxu0 %v738
    %v1483 = vpop.f32.mrf.mxu0
    %v1484 = vadd.f32 0.0, %v1483
    %v1485 = vpop.f32.mrf.mxu0
    %1486 = vmatprep.mubr.f32.mxu0 0.0
    %1487 = vmatmul.mubr.f32.gmra.mxu0 %v741
    %v1488 = vpop.f32.mrf.mxu0
    %v1489 = vadd.f32 0.0, %v1488
    %v1490 = vpop.f32.mrf.mxu0
    %1491 = vmatprep.mubr.f32.mxu0 0.0
    %1492 = vmatmul.mubr.f32.gmra.mxu0 %v744
    %v1493 = vpop.f32.mrf.mxu0
    %v1494 = vadd.f32 0.0, %v1493
    %v1495 = vpop.f32.mrf.mxu0
    %1496 = vmatprep.mubr.f32.mxu0 0.0
    %1497 = vmatmul.mubr.f32.gmra.mxu0 %v747
    %v1498 = vpop.f32.mrf.mxu0
    %v1499 = vadd.f32 0.0, %v1498
    %v1500 = vpop.f32.mrf.mxu0
    %1501 = vmatprep.mubr.f32.mxu0 0.0
    %1502 = vmatmul.mubr.f32.gmra.mxu0 %v750
    %v1503 = vpop.f32.mrf.mxu0
    %v1504 = vadd.f32 0.0, %v1503
    %v1505 = vpop.f32.mrf.mxu0
    %1506 = vmatprep.mubr.f32.mxu0 0.0
    %1507 = vmatmul.mubr.f32.gmra.mxu0 %v753
    %v1508 = vpop.f32.mrf.mxu0
    %v1509 = vadd.f32 0.0, %v1508
    %v1510 = vpop.f32.mrf.mxu0
    %1511 = vmatprep.mubr.f32.mxu0 0.0
    %1512 = vmatmul.mubr.f32.gmra.mxu0 %v1050
    %v1513 = vpop.f32.mrf.mxu0
    %v1514 = vadd.f32 0.0, %v1513
    %v1515 = vpop.f32.mrf.mxu0
    %1516 = vmatprep.mubr.f32.mxu0 0.0
    %1517 = vmatmul.mubr.f32.gmra.mxu0 %v1215
    %v1518 = vpop.f32.mrf.mxu0
    %v1519 = vadd.f32 0.0, %v1518
    %v1520 = vpop.f32.mrf.mxu0
    %1521 = vmatprep.mubr.f32.mxu0 0.0
    %1522 = vmatmul.mubr.f32.gmra.mxu0 %v1380
    %v1523 = vpop.f32.mrf.mxu0
    %v1524 = vadd.f32 0.0, %v1523
    %v1525 = vpop.f32.mrf.mxu0
    %1526 = vdwg.mxu0
    %v1527 = vadd.f32 %v1362, %v1449
    %v1528 = vadd.f32 %v1363, %v1454
    %v1529 = vadd.f32 %v1364, %v1459
    %v1530 = vadd.f32 %v1365, %v1464
    %v1531 = vadd.f32 %v1366, %v1469
    %v1532 = vadd.f32 %v1367, %v1474
    %v1533 = vadd.f32 %v1368, %v1479
    %v1534 = vadd.f32 %v1369, %v1484
    %v1535 = vadd.f32 %v1370, %v1489
    %v1536 = vadd.f32 %v1371, %v1494
    %v1537 = vadd.f32 %v1372, %v1499
    %v1538 = vadd.f32 %v1373, %v1504
    %v1539 = vadd.f32 %v1374, %v1509
    %v1540 = vadd.f32 %v1375, %v1514
    %v1541 = vadd.f32 %v1376, %v1519
    %v1542 = vadd.f32 %v1377, %v1524
    %v1543 = vld [vmem:[%s4 + $0x28] sm:$0xff]
    %v1545 = vsel %vm416, %v693, 0
    %1547 = vmatprep.subr.mxu0 0.0
    %1548 = vmatpush1.msra.mxu0 0.0
    %1549 = vmatprep.subr.mxu0 0.0
    %1550 = vmatpush1.msra.mxu0 0.0
    %1551 = vmatprep.subr.mxu0 0.0
    %1552 = vmatpush1.msra.mxu0 0.0
    %1553 = vmatprep.subr.mxu0 0.0
    %1554 = vmatpush1.msra.mxu0 0.0
    %1555 = vmatprep.subr.mxu0 0.0
    %1556 = vmatpush1.msra.mxu0 0.0
    %1557 = vmatprep.subr.mxu0 0.0
    %1558 = vmatpush1.msra.mxu0 0.0
    %1559 = vmatprep.subr.mxu0 0.0
    %1560 = vmatpush1.msra.mxu0 0.0
    %1561 = vmatprep.subr.mxu0 0.0
    %1562 = vmatpush1.msra.mxu0 0.0
    %1563 = vmatprep.subr.mxu0 0.0
    %1564 = vmatpush1.msra.mxu0 0.0
    %1565 = vmatprep.subr.mxu0 0.0
    %1566 = vmatpush1.msra.mxu0 0.0
    %1567 = vmatprep.subr.mxu0 0.0
    %1568 = vmatpush1.msra.mxu0 0.0
    %1569 = vmatprep.subr.mxu0 0.0
    %1570 = vmatpush1.msra.mxu0 0.0
    %1571 = vmatprep.subr.mxu0 0.0
    %1572 = vmatpush1.msra.mxu0 0.0
    %1573 = vmatprep.subr.mxu0 0.0
    %1574 = vmatpush1.msra.mxu0 0.0
    %1575 = vmatprep.subr.mxu0 0.0
    %1576 = vmatpush1.msra.mxu0 0.0
    %1577 = vmatprep.subr.mxu0 0.0
    %1578 = vmatpush1.msra.mxu0 %v1543
    %1579 = vmatprep.subr.mxu0 0.0
    %1580 = vmatpush2.msra.mxu0 0.0
    %1581 = vmatprep.subr.mxu0 0.0
    %1582 = vmatpush2.msra.mxu0 0.0
    %1583 = vmatprep.subr.mxu0 0.0
    %1584 = vmatpush2.msra.mxu0 0.0
    %1585 = vmatprep.subr.mxu0 0.0
    %1586 = vmatpush2.msra.mxu0 0.0
    %1587 = vmatprep.subr.mxu0 0.0
    %1588 = vmatpush2.msra.mxu0 0.0
    %1589 = vmatprep.subr.mxu0 0.0
    %1590 = vmatpush2.msra.mxu0 0.0
    %1591 = vmatprep.subr.mxu0 0.0
    %1592 = vmatpush2.msra.mxu0 0.0
    %1593 = vmatprep.subr.mxu0 0.0
    %1594 = vmatpush2.msra.mxu0 0.0
    %1595 = vmatprep.subr.mxu0 0.0
    %1596 = vmatpush2.msra.mxu0 0.0
    %1597 = vmatprep.subr.mxu0 0.0
    %1598 = vmatpush2.msra.mxu0 0.0
    %1599 = vmatprep.subr.mxu0 0.0
    %1600 = vmatpush2.msra.mxu0 0.0
    %1601 = vmatprep.subr.mxu0 0.0
    %1602 = vmatpush2.msra.mxu0 0.0
    %1603 = vmatprep.subr.mxu0 0.0
    %1604 = vmatpush2.msra.mxu0 0.0
    %1605 = vmatprep.subr.mxu0 0.0
    %1606 = vmatpush2.msra.mxu0 0.0
    %1607 = vmatprep.subr.mxu0 0.0
    %1608 = vmatpush2.msra.mxu0 0.0
    %1609 = vmatprep.subr.mxu0 0.0
    %1610 = vmatpush2.msra.mxu0 0.0
    %1611 = vmatprep.mubr.f32.mxu0 0.0
    %1612 = vmatmul.mubr.f32.gmra.mxu0 %v720
    %v1613 = vpop.f32.mrf.mxu0
    %v1614 = vadd.f32 0.0, %v1613
    %v1615 = vpop.f32.mrf.mxu0
    %1616 = vmatprep.mubr.f32.mxu0 0.0
    %1617 = vmatmul.mubr.f32.gmra.mxu0 %v723
    %v1618 = vpop.f32.mrf.mxu0
    %v1619 = vadd.f32 0.0, %v1618
    %v1620 = vpop.f32.mrf.mxu0
    %1621 = vmatprep.mubr.f32.mxu0 0.0
    %1622 = vmatmul.mubr.f32.gmra.mxu0 %v726
    %v1623 = vpop.f32.mrf.mxu0
    %v1624 = vadd.f32 0.0, %v1623
    %v1625 = vpop.f32.mrf.mxu0
    %1626 = vmatprep.mubr.f32.mxu0 0.0
    %1627 = vmatmul.mubr.f32.gmra.mxu0 %v729
    %v1628 = vpop.f32.mrf.mxu0
    %v1629 = vadd.f32 0.0, %v1628
    %v1630 = vpop.f32.mrf.mxu0
    %1631 = vmatprep.mubr.f32.mxu0 0.0
    %1632 = vmatmul.mubr.f32.gmra.mxu0 %v732
    %v1633 = vpop.f32.mrf.mxu0
    %v1634 = vadd.f32 0.0, %v1633
    %v1635 = vpop.f32.mrf.mxu0
    %1636 = vmatprep.mubr.f32.mxu0 0.0
    %1637 = vmatmul.mubr.f32.gmra.mxu0 %v735
    %v1638 = vpop.f32.mrf.mxu0
    %v1639 = vadd.f32 0.0, %v1638
    %v1640 = vpop.f32.mrf.mxu0
    %1641 = vmatprep.mubr.f32.mxu0 0.0
    %1642 = vmatmul.mubr.f32.gmra.mxu0 %v738
    %v1643 = vpop.f32.mrf.mxu0
    %v1644 = vadd.f32 0.0, %v1643
    %v1645 = vpop.f32.mrf.mxu0
    %1646 = vmatprep.mubr.f32.mxu0 0.0
    %1647 = vmatmul.mubr.f32.gmra.mxu0 %v741
    %v1648 = vpop.f32.mrf.mxu0
    %v1649 = vadd.f32 0.0, %v1648
    %v1650 = vpop.f32.mrf.mxu0
    %1651 = vmatprep.mubr.f32.mxu0 0.0
    %1652 = vmatmul.mubr.f32.gmra.mxu0 %v744
    %v1653 = vpop.f32.mrf.mxu0
    %v1654 = vadd.f32 0.0, %v1653
    %v1655 = vpop.f32.mrf.mxu0
    %1656 = vmatprep.mubr.f32.mxu0 0.0
    %1657 = vmatmul.mubr.f32.gmra.mxu0 %v747
    %v1658 = vpop.f32.mrf.mxu0
    %v1659 = vadd.f32 0.0, %v1658
    %v1660 = vpop.f32.mrf.mxu0
    %1661 = vmatprep.mubr.f32.mxu0 0.0
    %1662 = vmatmul.mubr.f32.gmra.mxu0 %v750
    %v1663 = vpop.f32.mrf.mxu0
    %v1664 = vadd.f32 0.0, %v1663
    %v1665 = vpop.f32.mrf.mxu0
    %1666 = vmatprep.mubr.f32.mxu0 0.0
    %1667 = vmatmul.mubr.f32.gmra.mxu0 %v753
    %v1668 = vpop.f32.mrf.mxu0
    %v1669 = vadd.f32 0.0, %v1668
    %v1670 = vpop.f32.mrf.mxu0
    %1671 = vmatprep.mubr.f32.mxu0 0.0
    %1672 = vmatmul.mubr.f32.gmra.mxu0 %v1050
    %v1673 = vpop.f32.mrf.mxu0
    %v1674 = vadd.f32 0.0, %v1673
    %v1675 = vpop.f32.mrf.mxu0
    %1676 = vmatprep.mubr.f32.mxu0 0.0
    %1677 = vmatmul.mubr.f32.gmra.mxu0 %v1215
    %v1678 = vpop.f32.mrf.mxu0
    %v1679 = vadd.f32 0.0, %v1678
    %v1680 = vpop.f32.mrf.mxu0
    %1681 = vmatprep.mubr.f32.mxu0 0.0
    %1682 = vmatmul.mubr.f32.gmra.mxu0 %v1380
    %v1683 = vpop.f32.mrf.mxu0
    %v1684 = vadd.f32 0.0, %v1683
    %v1685 = vpop.f32.mrf.mxu0
    %1686 = vmatprep.mubr.f32.mxu0 0.0
    %1687 = vmatmul.mubr.f32.gmra.mxu0 %v1545
    %v1688 = vpop.f32.mrf.mxu0
    %v1689 = vadd.f32 0.0, %v1688
    %v1690 = vpop.f32.mrf.mxu0
    %1691 = vdwg.mxu0
    %v1692 = vadd.f32 %v1527, %v1614
    %v1693 = vadd.f32 %v1528, %v1619
    %v1694 = vadd.f32 %v1529, %v1624
    %v1695 = vadd.f32 %v1530, %v1629
    %v1696 = vadd.f32 %v1531, %v1634
    %v1697 = vadd.f32 %v1532, %v1639
    %v1698 = vadd.f32 %v1533, %v1644
    %v1699 = vadd.f32 %v1534, %v1649
    %v1700 = vadd.f32 %v1535, %v1654
    %v1701 = vadd.f32 %v1536, %v1659
    %v1702 = vadd.f32 %v1537, %v1664
    %v1703 = vadd.f32 %v1538, %v1669
    %v1704 = vadd.f32 %v1539, %v1674
    %v1705 = vadd.f32 %v1540, %v1679
    %v1706 = vadd.f32 %v1541, %v1684
    %v1707 = vadd.f32 %v1542, %v1689
    %v1708 = vld [vmem:[%s4 + $0x30] sm:$0xff]
    %v1710 = vsel %vm416, %v694, 0
    %1712 = vmatprep.subr.mxu0 0.0
    %1713 = vmatpush1.msra.mxu0 0.0
    %1714 = vmatprep.subr.mxu0 0.0
    %1715 = vmatpush1.msra.mxu0 0.0
    %1716 = vmatprep.subr.mxu0 0.0
    %1717 = vmatpush1.msra.mxu0 0.0
    %1718 = vmatprep.subr.mxu0 0.0
    %1719 = vmatpush1.msra.mxu0 0.0
    %1720 = vmatprep.subr.mxu0 0.0
    %1721 = vmatpush1.msra.mxu0 0.0
    %1722 = vmatprep.subr.mxu0 0.0
    %1723 = vmatpush1.msra.mxu0 0.0
    %1724 = vmatprep.subr.mxu0 0.0
    %1725 = vmatpush1.msra.mxu0 0.0
    %1726 = vmatprep.subr.mxu0 0.0
    %1727 = vmatpush1.msra.mxu0 0.0
    %1728 = vmatprep.subr.mxu0 0.0
    %1729 = vmatpush1.msra.mxu0 0.0
    %1730 = vmatprep.subr.mxu0 0.0
    %1731 = vmatpush1.msra.mxu0 0.0
    %1732 = vmatprep.subr.mxu0 0.0
    %1733 = vmatpush1.msra.mxu0 0.0
    %1734 = vmatprep.subr.mxu0 0.0
    %1735 = vmatpush1.msra.mxu0 0.0
    %1736 = vmatprep.subr.mxu0 0.0
    %1737 = vmatpush1.msra.mxu0 0.0
    %1738 = vmatprep.subr.mxu0 0.0
    %1739 = vmatpush1.msra.mxu0 0.0
    %1740 = vmatprep.subr.mxu0 0.0
    %1741 = vmatpush1.msra.mxu0 0.0
    %1742 = vmatprep.subr.mxu0 0.0
    %1743 = vmatpush1.msra.mxu0 %v1708
    %1744 = vmatprep.subr.mxu0 0.0
    %1745 = vmatpush2.msra.mxu0 0.0
    %1746 = vmatprep.subr.mxu0 0.0
    %1747 = vmatpush2.msra.mxu0 0.0
    %1748 = vmatprep.subr.mxu0 0.0
    %1749 = vmatpush2.msra.mxu0 0.0
    %1750 = vmatprep.subr.mxu0 0.0
    %1751 = vmatpush2.msra.mxu0 0.0
    %1752 = vmatprep.subr.mxu0 0.0
    %1753 = vmatpush2.msra.mxu0 0.0
    %1754 = vmatprep.subr.mxu0 0.0
    %1755 = vmatpush2.msra.mxu0 0.0
    %1756 = vmatprep.subr.mxu0 0.0
    %1757 = vmatpush2.msra.mxu0 0.0
    %1758 = vmatprep.subr.mxu0 0.0
    %1759 = vmatpush2.msra.mxu0 0.0
    %1760 = vmatprep.subr.mxu0 0.0
    %1761 = vmatpush2.msra.mxu0 0.0
    %1762 = vmatprep.subr.mxu0 0.0
    %1763 = vmatpush2.msra.mxu0 0.0
    %1764 = vmatprep.subr.mxu0 0.0
    %1765 = vmatpush2.msra.mxu0 0.0
    %1766 = vmatprep.subr.mxu0 0.0
    %1767 = vmatpush2.msra.mxu0 0.0
    %1768 = vmatprep.subr.mxu0 0.0
    %1769 = vmatpush2.msra.mxu0 0.0
    %1770 = vmatprep.subr.mxu0 0.0
    %1771 = vmatpush2.msra.mxu0 0.0
    %1772 = vmatprep.subr.mxu0 0.0
    %1773 = vmatpush2.msra.mxu0 0.0
    %1774 = vmatprep.subr.mxu0 0.0
    %1775 = vmatpush2.msra.mxu0 0.0
    %1776 = vmatprep.mubr.f32.mxu0 0.0
    %1777 = vmatmul.mubr.f32.gmra.mxu0 %v723
    %v1778 = vpop.f32.mrf.mxu0
    %v1779 = vadd.f32 0.0, %v1778
    %v1780 = vpop.f32.mrf.mxu0
    %1781 = vmatprep.mubr.f32.mxu0 0.0
    %1782 = vmatmul.mubr.f32.gmra.mxu0 %v726
    %v1783 = vpop.f32.mrf.mxu0
    %v1784 = vadd.f32 0.0, %v1783
    %v1785 = vpop.f32.mrf.mxu0
    %1786 = vmatprep.mubr.f32.mxu0 0.0
    %1787 = vmatmul.mubr.f32.gmra.mxu0 %v729
    %v1788 = vpop.f32.mrf.mxu0
    %v1789 = vadd.f32 0.0, %v1788
    %v1790 = vpop.f32.mrf.mxu0
    %1791 = vmatprep.mubr.f32.mxu0 0.0
    %1792 = vmatmul.mubr.f32.gmra.mxu0 %v732
    %v1793 = vpop.f32.mrf.mxu0
    %v1794 = vadd.f32 0.0, %v1793
    %v1795 = vpop.f32.mrf.mxu0
    %1796 = vmatprep.mubr.f32.mxu0 0.0
    %1797 = vmatmul.mubr.f32.gmra.mxu0 %v735
    %v1798 = vpop.f32.mrf.mxu0
    %v1799 = vadd.f32 0.0, %v1798
    %v1800 = vpop.f32.mrf.mxu0
    %1801 = vmatprep.mubr.f32.mxu0 0.0
    %1802 = vmatmul.mubr.f32.gmra.mxu0 %v738
    %v1803 = vpop.f32.mrf.mxu0
    %v1804 = vadd.f32 0.0, %v1803
    %v1805 = vpop.f32.mrf.mxu0
    %1806 = vmatprep.mubr.f32.mxu0 0.0
    %1807 = vmatmul.mubr.f32.gmra.mxu0 %v741
    %v1808 = vpop.f32.mrf.mxu0
    %v1809 = vadd.f32 0.0, %v1808
    %v1810 = vpop.f32.mrf.mxu0
    %1811 = vmatprep.mubr.f32.mxu0 0.0
    %1812 = vmatmul.mubr.f32.gmra.mxu0 %v744
    %v1813 = vpop.f32.mrf.mxu0
    %v1814 = vadd.f32 0.0, %v1813
    %v1815 = vpop.f32.mrf.mxu0
    %1816 = vmatprep.mubr.f32.mxu0 0.0
    %1817 = vmatmul.mubr.f32.gmra.mxu0 %v747
    %v1818 = vpop.f32.mrf.mxu0
    %v1819 = vadd.f32 0.0, %v1818
    %v1820 = vpop.f32.mrf.mxu0
    %1821 = vmatprep.mubr.f32.mxu0 0.0
    %1822 = vmatmul.mubr.f32.gmra.mxu0 %v750
    %v1823 = vpop.f32.mrf.mxu0
    %v1824 = vadd.f32 0.0, %v1823
    %v1825 = vpop.f32.mrf.mxu0
    %1826 = vmatprep.mubr.f32.mxu0 0.0
    %1827 = vmatmul.mubr.f32.gmra.mxu0 %v753
    %v1828 = vpop.f32.mrf.mxu0
    %v1829 = vadd.f32 0.0, %v1828
    %v1830 = vpop.f32.mrf.mxu0
    %1831 = vmatprep.mubr.f32.mxu0 0.0
    %1832 = vmatmul.mubr.f32.gmra.mxu0 %v1050
    %v1833 = vpop.f32.mrf.mxu0
    %v1834 = vadd.f32 0.0, %v1833
    %v1835 = vpop.f32.mrf.mxu0
    %1836 = vmatprep.mubr.f32.mxu0 0.0
    %1837 = vmatmul.mubr.f32.gmra.mxu0 %v1215
    %v1838 = vpop.f32.mrf.mxu0
    %v1839 = vadd.f32 0.0, %v1838
    %v1840 = vpop.f32.mrf.mxu0
    %1841 = vmatprep.mubr.f32.mxu0 0.0
    %1842 = vmatmul.mubr.f32.gmra.mxu0 %v1380
    %v1843 = vpop.f32.mrf.mxu0
    %v1844 = vadd.f32 0.0, %v1843
    %v1845 = vpop.f32.mrf.mxu0
    %1846 = vmatprep.mubr.f32.mxu0 0.0
    %1847 = vmatmul.mubr.f32.gmra.mxu0 %v1545
    %v1848 = vpop.f32.mrf.mxu0
    %v1849 = vadd.f32 0.0, %v1848
    %v1850 = vpop.f32.mrf.mxu0
    %1851 = vmatprep.mubr.f32.mxu0 0.0
    %1852 = vmatmul.mubr.f32.gmra.mxu0 %v1710
    %v1853 = vpop.f32.mrf.mxu0
    %v1854 = vadd.f32 0.0, %v1853
    %v1855 = vpop.f32.mrf.mxu0
    %1856 = vdwg.mxu0
    %v1857 = vadd.f32 %v1692, %v1779
    %v1858 = vadd.f32 %v1693, %v1784
    %v1859 = vadd.f32 %v1694, %v1789
    %v1860 = vadd.f32 %v1695, %v1794
    %v1861 = vadd.f32 %v1696, %v1799
    %v1862 = vadd.f32 %v1697, %v1804
    %v1863 = vadd.f32 %v1698, %v1809
    %v1864 = vadd.f32 %v1699, %v1814
    %v1865 = vadd.f32 %v1700, %v1819
    %v1866 = vadd.f32 %v1701, %v1824
    %v1867 = vadd.f32 %v1702, %v1829
    %v1868 = vadd.f32 %v1703, %v1834
    %v1869 = vadd.f32 %v1704, %v1839
    %v1870 = vadd.f32 %v1705, %v1844
    %v1871 = vadd.f32 %v1706, %v1849
    %v1872 = vadd.f32 %v1707, %v1854
    %v1873 = vld [vmem:[%s4 + $0x38] sm:$0xff]
    %v1875 = vsel %vm416, %v695, 0
    %1877 = vmatprep.subr.mxu0 0.0
    %1878 = vmatpush1.msra.mxu0 0.0
    %1879 = vmatprep.subr.mxu0 0.0
    %1880 = vmatpush1.msra.mxu0 0.0
    %1881 = vmatprep.subr.mxu0 0.0
    %1882 = vmatpush1.msra.mxu0 0.0
    %1883 = vmatprep.subr.mxu0 0.0
    %1884 = vmatpush1.msra.mxu0 0.0
    %1885 = vmatprep.subr.mxu0 0.0
    %1886 = vmatpush1.msra.mxu0 0.0
    %1887 = vmatprep.subr.mxu0 0.0
    %1888 = vmatpush1.msra.mxu0 0.0
    %1889 = vmatprep.subr.mxu0 0.0
    %1890 = vmatpush1.msra.mxu0 0.0
    %1891 = vmatprep.subr.mxu0 0.0
    %1892 = vmatpush1.msra.mxu0 0.0
    %1893 = vmatprep.subr.mxu0 0.0
    %1894 = vmatpush1.msra.mxu0 0.0
    %1895 = vmatprep.subr.mxu0 0.0
    %1896 = vmatpush1.msra.mxu0 0.0
    %1897 = vmatprep.subr.mxu0 0.0
    %1898 = vmatpush1.msra.mxu0 0.0
    %1899 = vmatprep.subr.mxu0 0.0
    %1900 = vmatpush1.msra.mxu0 0.0
    %1901 = vmatprep.subr.mxu0 0.0
    %1902 = vmatpush1.msra.mxu0 0.0
    %1903 = vmatprep.subr.mxu0 0.0
    %1904 = vmatpush1.msra.mxu0 0.0
    %1905 = vmatprep.subr.mxu0 0.0
    %1906 = vmatpush1.msra.mxu0 0.0
    %1907 = vmatprep.subr.mxu0 0.0
    %1908 = vmatpush1.msra.mxu0 %v1873
    %1909 = vmatprep.subr.mxu0 0.0
    %1910 = vmatpush2.msra.mxu0 0.0
    %1911 = vmatprep.subr.mxu0 0.0
    %1912 = vmatpush2.msra.mxu0 0.0
    %1913 = vmatprep.subr.mxu0 0.0
    %1914 = vmatpush2.msra.mxu0 0.0
    %1915 = vmatprep.subr.mxu0 0.0
    %1916 = vmatpush2.msra.mxu0 0.0
    %1917 = vmatprep.subr.mxu0 0.0
    %1918 = vmatpush2.msra.mxu0 0.0
    %1919 = vmatprep.subr.mxu0 0.0
    %1920 = vmatpush2.msra.mxu0 0.0
    %1921 = vmatprep.subr.mxu0 0.0
    %1922 = vmatpush2.msra.mxu0 0.0
    %1923 = vmatprep.subr.mxu0 0.0
    %1924 = vmatpush2.msra.mxu0 0.0
    %1925 = vmatprep.subr.mxu0 0.0
    %1926 = vmatpush2.msra.mxu0 0.0
    %1927 = vmatprep.subr.mxu0 0.0
    %1928 = vmatpush2.msra.mxu0 0.0
    %1929 = vmatprep.subr.mxu0 0.0
    %1930 = vmatpush2.msra.mxu0 0.0
    %1931 = vmatprep.subr.mxu0 0.0
    %1932 = vmatpush2.msra.mxu0 0.0
    %1933 = vmatprep.subr.mxu0 0.0
    %1934 = vmatpush2.msra.mxu0 0.0
    %1935 = vmatprep.subr.mxu0 0.0
    %1936 = vmatpush2.msra.mxu0 0.0
    %1937 = vmatprep.subr.mxu0 0.0
    %1938 = vmatpush2.msra.mxu0 0.0
    %1939 = vmatprep.subr.mxu0 0.0
    %1940 = vmatpush2.msra.mxu0 0.0
    %1941 = vmatprep.mubr.f32.mxu0 0.0
    %1942 = vmatmul.mubr.f32.gmra.mxu0 %v726
    %v1943 = vpop.f32.mrf.mxu0
    %v1944 = vadd.f32 0.0, %v1943
    %v1945 = vpop.f32.mrf.mxu0
    %1946 = vmatprep.mubr.f32.mxu0 0.0
    %1947 = vmatmul.mubr.f32.gmra.mxu0 %v729
    %v1948 = vpop.f32.mrf.mxu0
    %v1949 = vadd.f32 0.0, %v1948
    %v1950 = vpop.f32.mrf.mxu0
    %1951 = vmatprep.mubr.f32.mxu0 0.0
    %1952 = vmatmul.mubr.f32.gmra.mxu0 %v732
    %v1953 = vpop.f32.mrf.mxu0
    %v1954 = vadd.f32 0.0, %v1953
    %v1955 = vpop.f32.mrf.mxu0
    %1956 = vmatprep.mubr.f32.mxu0 0.0
    %1957 = vmatmul.mubr.f32.gmra.mxu0 %v735
    %v1958 = vpop.f32.mrf.mxu0
    %v1959 = vadd.f32 0.0, %v1958
    %v1960 = vpop.f32.mrf.mxu0
    %1961 = vmatprep.mubr.f32.mxu0 0.0
    %1962 = vmatmul.mubr.f32.gmra.mxu0 %v738
    %v1963 = vpop.f32.mrf.mxu0
    %v1964 = vadd.f32 0.0, %v1963
    %v1965 = vpop.f32.mrf.mxu0
    %1966 = vmatprep.mubr.f32.mxu0 0.0
    %1967 = vmatmul.mubr.f32.gmra.mxu0 %v741
    %v1968 = vpop.f32.mrf.mxu0
    %v1969 = vadd.f32 0.0, %v1968
    %v1970 = vpop.f32.mrf.mxu0
    %1971 = vmatprep.mubr.f32.mxu0 0.0
    %1972 = vmatmul.mubr.f32.gmra.mxu0 %v744
    %v1973 = vpop.f32.mrf.mxu0
    %v1974 = vadd.f32 0.0, %v1973
    %v1975 = vpop.f32.mrf.mxu0
    %1976 = vmatprep.mubr.f32.mxu0 0.0
    %1977 = vmatmul.mubr.f32.gmra.mxu0 %v747
    %v1978 = vpop.f32.mrf.mxu0
    %v1979 = vadd.f32 0.0, %v1978
    %v1980 = vpop.f32.mrf.mxu0
    %1981 = vmatprep.mubr.f32.mxu0 0.0
    %1982 = vmatmul.mubr.f32.gmra.mxu0 %v750
    %v1983 = vpop.f32.mrf.mxu0
    %v1984 = vadd.f32 0.0, %v1983
    %v1985 = vpop.f32.mrf.mxu0
    %1986 = vmatprep.mubr.f32.mxu0 0.0
    %1987 = vmatmul.mubr.f32.gmra.mxu0 %v753
    %v1988 = vpop.f32.mrf.mxu0
    %v1989 = vadd.f32 0.0, %v1988
    %v1990 = vpop.f32.mrf.mxu0
    %1991 = vmatprep.mubr.f32.mxu0 0.0
    %1992 = vmatmul.mubr.f32.gmra.mxu0 %v1050
    %v1993 = vpop.f32.mrf.mxu0
    %v1994 = vadd.f32 0.0, %v1993
    %v1995 = vpop.f32.mrf.mxu0
    %1996 = vmatprep.mubr.f32.mxu0 0.0
    %1997 = vmatmul.mubr.f32.gmra.mxu0 %v1215
    %v1998 = vpop.f32.mrf.mxu0
    %v1999 = vadd.f32 0.0, %v1998
    %v2000 = vpop.f32.mrf.mxu0
    %2001 = vmatprep.mubr.f32.mxu0 0.0
    %2002 = vmatmul.mubr.f32.gmra.mxu0 %v1380
    %v2003 = vpop.f32.mrf.mxu0
    %v2004 = vadd.f32 0.0, %v2003
    %v2005 = vpop.f32.mrf.mxu0
    %2006 = vmatprep.mubr.f32.mxu0 0.0
    %2007 = vmatmul.mubr.f32.gmra.mxu0 %v1545
    %v2008 = vpop.f32.mrf.mxu0
    %v2009 = vadd.f32 0.0, %v2008
    %v2010 = vpop.f32.mrf.mxu0
    %2011 = vmatprep.mubr.f32.mxu0 0.0
    %2012 = vmatmul.mubr.f32.gmra.mxu0 %v1710
    %v2013 = vpop.f32.mrf.mxu0
    %v2014 = vadd.f32 0.0, %v2013
    %v2015 = vpop.f32.mrf.mxu0
    %2016 = vmatprep.mubr.f32.mxu0 0.0
    %2017 = vmatmul.mubr.f32.gmra.mxu0 %v1875
    %v2018 = vpop.f32.mrf.mxu0
    %v2019 = vadd.f32 0.0, %v2018
    %v2020 = vpop.f32.mrf.mxu0
    %2021 = vdwg.mxu0
    %v2022 = vadd.f32 %v1857, %v1944
    %v2023 = vadd.f32 %v1858, %v1949
    %v2024 = vadd.f32 %v1859, %v1954
    %v2025 = vadd.f32 %v1860, %v1959
    %v2026 = vadd.f32 %v1861, %v1964
    %v2027 = vadd.f32 %v1862, %v1969
    %v2028 = vadd.f32 %v1863, %v1974
    %v2029 = vadd.f32 %v1864, %v1979
    %v2030 = vadd.f32 %v1865, %v1984
    %v2031 = vadd.f32 %v1866, %v1989
    %v2032 = vadd.f32 %v1867, %v1994
    %v2033 = vadd.f32 %v1868, %v1999
    %v2034 = vadd.f32 %v1869, %v2004
    %v2035 = vadd.f32 %v1870, %v2009
    %v2036 = vadd.f32 %v1871, %v2014
    %v2037 = vadd.f32 %v1872, %v2019
    %v2038 = vld [vmem:[%s4 + $0x40] sm:$0xff]
    %v2040 = vsel %vm416, %v696, 0
    %2042 = vmatprep.subr.mxu0 0.0
    %2043 = vmatpush1.msra.mxu0 0.0
    %2044 = vmatprep.subr.mxu0 0.0
    %2045 = vmatpush1.msra.mxu0 0.0
    %2046 = vmatprep.subr.mxu0 0.0
    %2047 = vmatpush1.msra.mxu0 0.0
    %2048 = vmatprep.subr.mxu0 0.0
    %2049 = vmatpush1.msra.mxu0 0.0
    %2050 = vmatprep.subr.mxu0 0.0
    %2051 = vmatpush1.msra.mxu0 0.0
    %2052 = vmatprep.subr.mxu0 0.0
    %2053 = vmatpush1.msra.mxu0 0.0
    %2054 = vmatprep.subr.mxu0 0.0
    %2055 = vmatpush1.msra.mxu0 0.0
    %2056 = vmatprep.subr.mxu0 0.0
    %2057 = vmatpush1.msra.mxu0 0.0
    %2058 = vmatprep.subr.mxu0 0.0
    %2059 = vmatpush1.msra.mxu0 0.0
    %2060 = vmatprep.subr.mxu0 0.0
    %2061 = vmatpush1.msra.mxu0 0.0
    %2062 = vmatprep.subr.mxu0 0.0
    %2063 = vmatpush1.msra.mxu0 0.0
    %2064 = vmatprep.subr.mxu0 0.0
    %2065 = vmatpush1.msra.mxu0 0.0
    %2066 = vmatprep.subr.mxu0 0.0
    %2067 = vmatpush1.msra.mxu0 0.0
    %2068 = vmatprep.subr.mxu0 0.0
    %2069 = vmatpush1.msra.mxu0 0.0
    %2070 = vmatprep.subr.mxu0 0.0
    %2071 = vmatpush1.msra.mxu0 0.0
    %2072 = vmatprep.subr.mxu0 0.0
    %2073 = vmatpush1.msra.mxu0 %v2038
    %2074 = vmatprep.subr.mxu0 0.0
    %2075 = vmatpush2.msra.mxu0 0.0
    %2076 = vmatprep.subr.mxu0 0.0
    %2077 = vmatpush2.msra.mxu0 0.0
    %2078 = vmatprep.subr.mxu0 0.0
    %2079 = vmatpush2.msra.mxu0 0.0
    %2080 = vmatprep.subr.mxu0 0.0
    %2081 = vmatpush2.msra.mxu0 0.0
    %2082 = vmatprep.subr.mxu0 0.0
    %2083 = vmatpush2.msra.mxu0 0.0
    %2084 = vmatprep.subr.mxu0 0.0
    %2085 = vmatpush2.msra.mxu0 0.0
    %2086 = vmatprep.subr.mxu0 0.0
    %2087 = vmatpush2.msra.mxu0 0.0
    %2088 = vmatprep.subr.mxu0 0.0
    %2089 = vmatpush2.msra.mxu0 0.0
    %2090 = vmatprep.subr.mxu0 0.0
    %2091 = vmatpush2.msra.mxu0 0.0
    %2092 = vmatprep.subr.mxu0 0.0
    %2093 = vmatpush2.msra.mxu0 0.0
    %2094 = vmatprep.subr.mxu0 0.0
    %2095 = vmatpush2.msra.mxu0 0.0
    %2096 = vmatprep.subr.mxu0 0.0
    %2097 = vmatpush2.msra.mxu0 0.0
    %2098 = vmatprep.subr.mxu0 0.0
    %2099 = vmatpush2.msra.mxu0 0.0
    %2100 = vmatprep.subr.mxu0 0.0
    %2101 = vmatpush2.msra.mxu0 0.0
    %2102 = vmatprep.subr.mxu0 0.0
    %2103 = vmatpush2.msra.mxu0 0.0
    %2104 = vmatprep.subr.mxu0 0.0
    %2105 = vmatpush2.msra.mxu0 0.0
    %2106 = vmatprep.mubr.f32.mxu0 0.0
    %2107 = vmatmul.mubr.f32.gmra.mxu0 %v729
    %v2108 = vpop.f32.mrf.mxu0
    %v2109 = vadd.f32 0.0, %v2108
    %v2110 = vpop.f32.mrf.mxu0
    %2111 = vmatprep.mubr.f32.mxu0 0.0
    %2112 = vmatmul.mubr.f32.gmra.mxu0 %v732
    %v2113 = vpop.f32.mrf.mxu0
    %v2114 = vadd.f32 0.0, %v2113
    %v2115 = vpop.f32.mrf.mxu0
    %2116 = vmatprep.mubr.f32.mxu0 0.0
    %2117 = vmatmul.mubr.f32.gmra.mxu0 %v735
    %v2118 = vpop.f32.mrf.mxu0
    %v2119 = vadd.f32 0.0, %v2118
    %v2120 = vpop.f32.mrf.mxu0
    %2121 = vmatprep.mubr.f32.mxu0 0.0
    %2122 = vmatmul.mubr.f32.gmra.mxu0 %v738
    %v2123 = vpop.f32.mrf.mxu0
    %v2124 = vadd.f32 0.0, %v2123
    %v2125 = vpop.f32.mrf.mxu0
    %2126 = vmatprep.mubr.f32.mxu0 0.0
    %2127 = vmatmul.mubr.f32.gmra.mxu0 %v741
    %v2128 = vpop.f32.mrf.mxu0
    %v2129 = vadd.f32 0.0, %v2128
    %v2130 = vpop.f32.mrf.mxu0
    %2131 = vmatprep.mubr.f32.mxu0 0.0
    %2132 = vmatmul.mubr.f32.gmra.mxu0 %v744
    %v2133 = vpop.f32.mrf.mxu0
    %v2134 = vadd.f32 0.0, %v2133
    %v2135 = vpop.f32.mrf.mxu0
    %2136 = vmatprep.mubr.f32.mxu0 0.0
    %2137 = vmatmul.mubr.f32.gmra.mxu0 %v747
    %v2138 = vpop.f32.mrf.mxu0
    %v2139 = vadd.f32 0.0, %v2138
    %v2140 = vpop.f32.mrf.mxu0
    %2141 = vmatprep.mubr.f32.mxu0 0.0
    %2142 = vmatmul.mubr.f32.gmra.mxu0 %v750
    %v2143 = vpop.f32.mrf.mxu0
    %v2144 = vadd.f32 0.0, %v2143
    %v2145 = vpop.f32.mrf.mxu0
    %2146 = vmatprep.mubr.f32.mxu0 0.0
    %2147 = vmatmul.mubr.f32.gmra.mxu0 %v753
    %v2148 = vpop.f32.mrf.mxu0
    %v2149 = vadd.f32 0.0, %v2148
    %v2150 = vpop.f32.mrf.mxu0
    %2151 = vmatprep.mubr.f32.mxu0 0.0
    %2152 = vmatmul.mubr.f32.gmra.mxu0 %v1050
    %v2153 = vpop.f32.mrf.mxu0
    %v2154 = vadd.f32 0.0, %v2153
    %v2155 = vpop.f32.mrf.mxu0
    %2156 = vmatprep.mubr.f32.mxu0 0.0
    %2157 = vmatmul.mubr.f32.gmra.mxu0 %v1215
    %v2158 = vpop.f32.mrf.mxu0
    %v2159 = vadd.f32 0.0, %v2158
    %v2160 = vpop.f32.mrf.mxu0
    %2161 = vmatprep.mubr.f32.mxu0 0.0
    %2162 = vmatmul.mubr.f32.gmra.mxu0 %v1380
    %v2163 = vpop.f32.mrf.mxu0
    %v2164 = vadd.f32 0.0, %v2163
    %v2165 = vpop.f32.mrf.mxu0
    %2166 = vmatprep.mubr.f32.mxu0 0.0
    %2167 = vmatmul.mubr.f32.gmra.mxu0 %v1545
    %v2168 = vpop.f32.mrf.mxu0
    %v2169 = vadd.f32 0.0, %v2168
    %v2170 = vpop.f32.mrf.mxu0
    %2171 = vmatprep.mubr.f32.mxu0 0.0
    %2172 = vmatmul.mubr.f32.gmra.mxu0 %v1710
    %v2173 = vpop.f32.mrf.mxu0
    %v2174 = vadd.f32 0.0, %v2173
    %v2175 = vpop.f32.mrf.mxu0
    %2176 = vmatprep.mubr.f32.mxu0 0.0
    %2177 = vmatmul.mubr.f32.gmra.mxu0 %v1875
    %v2178 = vpop.f32.mrf.mxu0
    %v2179 = vadd.f32 0.0, %v2178
    %v2180 = vpop.f32.mrf.mxu0
    %2181 = vmatprep.mubr.f32.mxu0 0.0
    %2182 = vmatmul.mubr.f32.gmra.mxu0 %v2040
    %v2183 = vpop.f32.mrf.mxu0
    %v2184 = vadd.f32 0.0, %v2183
    %v2185 = vpop.f32.mrf.mxu0
    %2186 = vdwg.mxu0
    %v2187 = vadd.f32 %v2022, %v2109
    %v2188 = vadd.f32 %v2023, %v2114
    %v2189 = vadd.f32 %v2024, %v2119
    %v2190 = vadd.f32 %v2025, %v2124
    %v2191 = vadd.f32 %v2026, %v2129
    %v2192 = vadd.f32 %v2027, %v2134
    %v2193 = vadd.f32 %v2028, %v2139
    %v2194 = vadd.f32 %v2029, %v2144
    %v2195 = vadd.f32 %v2030, %v2149
    %v2196 = vadd.f32 %v2031, %v2154
    %v2197 = vadd.f32 %v2032, %v2159
    %v2198 = vadd.f32 %v2033, %v2164
    %v2199 = vadd.f32 %v2034, %v2169
    %v2200 = vadd.f32 %v2035, %v2174
    %v2201 = vadd.f32 %v2036, %v2179
    %v2202 = vadd.f32 %v2037, %v2184
    %v2203 = vld [vmem:[%s4 + $0x48] sm:$0xff]
    %v2205 = vsel %vm416, %v697, 0
    %2207 = vmatprep.subr.mxu0 0.0
    %2208 = vmatpush1.msra.mxu0 0.0
    %2209 = vmatprep.subr.mxu0 0.0
    %2210 = vmatpush1.msra.mxu0 0.0
    %2211 = vmatprep.subr.mxu0 0.0
    %2212 = vmatpush1.msra.mxu0 0.0
    %2213 = vmatprep.subr.mxu0 0.0
    %2214 = vmatpush1.msra.mxu0 0.0
    %2215 = vmatprep.subr.mxu0 0.0
    %2216 = vmatpush1.msra.mxu0 0.0
    %2217 = vmatprep.subr.mxu0 0.0
    %2218 = vmatpush1.msra.mxu0 0.0
    %2219 = vmatprep.subr.mxu0 0.0
    %2220 = vmatpush1.msra.mxu0 0.0
    %2221 = vmatprep.subr.mxu0 0.0
    %2222 = vmatpush1.msra.mxu0 0.0
    %2223 = vmatprep.subr.mxu0 0.0
    %2224 = vmatpush1.msra.mxu0 0.0
    %2225 = vmatprep.subr.mxu0 0.0
    %2226 = vmatpush1.msra.mxu0 0.0
    %2227 = vmatprep.subr.mxu0 0.0
    %2228 = vmatpush1.msra.mxu0 0.0
    %2229 = vmatprep.subr.mxu0 0.0
    %2230 = vmatpush1.msra.mxu0 0.0
    %2231 = vmatprep.subr.mxu0 0.0
    %2232 = vmatpush1.msra.mxu0 0.0
    %2233 = vmatprep.subr.mxu0 0.0
    %2234 = vmatpush1.msra.mxu0 0.0
    %2235 = vmatprep.subr.mxu0 0.0
    %2236 = vmatpush1.msra.mxu0 0.0
    %2237 = vmatprep.subr.mxu0 0.0
    %2238 = vmatpush1.msra.mxu0 %v2203
    %2239 = vmatprep.subr.mxu0 0.0
    %2240 = vmatpush2.msra.mxu0 0.0
    %2241 = vmatprep.subr.mxu0 0.0
    %2242 = vmatpush2.msra.mxu0 0.0
    %2243 = vmatprep.subr.mxu0 0.0
    %2244 = vmatpush2.msra.mxu0 0.0
    %2245 = vmatprep.subr.mxu0 0.0
    %2246 = vmatpush2.msra.mxu0 0.0
    %2247 = vmatprep.subr.mxu0 0.0
    %2248 = vmatpush2.msra.mxu0 0.0
    %2249 = vmatprep.subr.mxu0 0.0
    %2250 = vmatpush2.msra.mxu0 0.0
    %2251 = vmatprep.subr.mxu0 0.0
    %2252 = vmatpush2.msra.mxu0 0.0
    %2253 = vmatprep.subr.mxu0 0.0
    %2254 = vmatpush2.msra.mxu0 0.0
    %2255 = vmatprep.subr.mxu0 0.0
    %2256 = vmatpush2.msra.mxu0 0.0
    %2257 = vmatprep.subr.mxu0 0.0
    %2258 = vmatpush2.msra.mxu0 0.0
    %2259 = vmatprep.subr.mxu0 0.0
    %2260 = vmatpush2.msra.mxu0 0.0
    %2261 = vmatprep.subr.mxu0 0.0
    %2262 = vmatpush2.msra.mxu0 0.0
    %2263 = vmatprep.subr.mxu0 0.0
    %2264 = vmatpush2.msra.mxu0 0.0
    %2265 = vmatprep.subr.mxu0 0.0
    %2266 = vmatpush2.msra.mxu0 0.0
    %2267 = vmatprep.subr.mxu0 0.0
    %2268 = vmatpush2.msra.mxu0 0.0
    %2269 = vmatprep.subr.mxu0 0.0
    %2270 = vmatpush2.msra.mxu0 0.0
    %2271 = vmatprep.mubr.f32.mxu0 0.0
    %2272 = vmatmul.mubr.f32.gmra.mxu0 %v732
    %v2273 = vpop.f32.mrf.mxu0
    %v2274 = vadd.f32 0.0, %v2273
    %v2275 = vpop.f32.mrf.mxu0
    %2276 = vmatprep.mubr.f32.mxu0 0.0
    %2277 = vmatmul.mubr.f32.gmra.mxu0 %v735
    %v2278 = vpop.f32.mrf.mxu0
    %v2279 = vadd.f32 0.0, %v2278
    %v2280 = vpop.f32.mrf.mxu0
    %2281 = vmatprep.mubr.f32.mxu0 0.0
    %2282 = vmatmul.mubr.f32.gmra.mxu0 %v738
    %v2283 = vpop.f32.mrf.mxu0
    %v2284 = vadd.f32 0.0, %v2283
    %v2285 = vpop.f32.mrf.mxu0
    %2286 = vmatprep.mubr.f32.mxu0 0.0
    %2287 = vmatmul.mubr.f32.gmra.mxu0 %v741
    %v2288 = vpop.f32.mrf.mxu0
    %v2289 = vadd.f32 0.0, %v2288
    %v2290 = vpop.f32.mrf.mxu0
    %2291 = vmatprep.mubr.f32.mxu0 0.0
    %2292 = vmatmul.mubr.f32.gmra.mxu0 %v744
    %v2293 = vpop.f32.mrf.mxu0
    %v2294 = vadd.f32 0.0, %v2293
    %v2295 = vpop.f32.mrf.mxu0
    %2296 = vmatprep.mubr.f32.mxu0 0.0
    %2297 = vmatmul.mubr.f32.gmra.mxu0 %v747
    %v2298 = vpop.f32.mrf.mxu0
    %v2299 = vadd.f32 0.0, %v2298
    %v2300 = vpop.f32.mrf.mxu0
    %2301 = vmatprep.mubr.f32.mxu0 0.0
    %2302 = vmatmul.mubr.f32.gmra.mxu0 %v750
    %v2303 = vpop.f32.mrf.mxu0
    %v2304 = vadd.f32 0.0, %v2303
    %v2305 = vpop.f32.mrf.mxu0
    %2306 = vmatprep.mubr.f32.mxu0 0.0
    %2307 = vmatmul.mubr.f32.gmra.mxu0 %v753
    %v2308 = vpop.f32.mrf.mxu0
    %v2309 = vadd.f32 0.0, %v2308
    %v2310 = vpop.f32.mrf.mxu0
    %2311 = vmatprep.mubr.f32.mxu0 0.0
    %2312 = vmatmul.mubr.f32.gmra.mxu0 %v1050
    %v2313 = vpop.f32.mrf.mxu0
    %v2314 = vadd.f32 0.0, %v2313
    %v2315 = vpop.f32.mrf.mxu0
    %2316 = vmatprep.mubr.f32.mxu0 0.0
    %2317 = vmatmul.mubr.f32.gmra.mxu0 %v1215
    %v2318 = vpop.f32.mrf.mxu0
    %v2319 = vadd.f32 0.0, %v2318
    %v2320 = vpop.f32.mrf.mxu0
    %2321 = vmatprep.mubr.f32.mxu0 0.0
    %2322 = vmatmul.mubr.f32.gmra.mxu0 %v1380
    %v2323 = vpop.f32.mrf.mxu0
    %v2324 = vadd.f32 0.0, %v2323
    %v2325 = vpop.f32.mrf.mxu0
    %2326 = vmatprep.mubr.f32.mxu0 0.0
    %2327 = vmatmul.mubr.f32.gmra.mxu0 %v1545
    %v2328 = vpop.f32.mrf.mxu0
    %v2329 = vadd.f32 0.0, %v2328
    %v2330 = vpop.f32.mrf.mxu0
    %2331 = vmatprep.mubr.f32.mxu0 0.0
    %2332 = vmatmul.mubr.f32.gmra.mxu0 %v1710
    %v2333 = vpop.f32.mrf.mxu0
    %v2334 = vadd.f32 0.0, %v2333
    %v2335 = vpop.f32.mrf.mxu0
    %2336 = vmatprep.mubr.f32.mxu0 0.0
    %2337 = vmatmul.mubr.f32.gmra.mxu0 %v1875
    %v2338 = vpop.f32.mrf.mxu0
    %v2339 = vadd.f32 0.0, %v2338
    %v2340 = vpop.f32.mrf.mxu0
    %2341 = vmatprep.mubr.f32.mxu0 0.0
    %2342 = vmatmul.mubr.f32.gmra.mxu0 %v2040
    %v2343 = vpop.f32.mrf.mxu0
    %v2344 = vadd.f32 0.0, %v2343
    %v2345 = vpop.f32.mrf.mxu0
    %2346 = vmatprep.mubr.f32.mxu0 0.0
    %2347 = vmatmul.mubr.f32.gmra.mxu0 %v2205
    %v2348 = vpop.f32.mrf.mxu0
    %v2349 = vadd.f32 0.0, %v2348
    %v2350 = vpop.f32.mrf.mxu0
    %2351 = vdwg.mxu0
    %v2352 = vadd.f32 %v2187, %v2274
    %v2353 = vadd.f32 %v2188, %v2279
    %v2354 = vadd.f32 %v2189, %v2284
    %v2355 = vadd.f32 %v2190, %v2289
    %v2356 = vadd.f32 %v2191, %v2294
    %v2357 = vadd.f32 %v2192, %v2299
    %v2358 = vadd.f32 %v2193, %v2304
    %v2359 = vadd.f32 %v2194, %v2309
    %v2360 = vadd.f32 %v2195, %v2314
    %v2361 = vadd.f32 %v2196, %v2319
    %v2362 = vadd.f32 %v2197, %v2324
    %v2363 = vadd.f32 %v2198, %v2329
    %v2364 = vadd.f32 %v2199, %v2334
    %v2365 = vadd.f32 %v2200, %v2339
    %v2366 = vadd.f32 %v2201, %v2344
    %v2367 = vadd.f32 %v2202, %v2349
    %v2368 = vld [vmem:[%s4 + $0x50] sm:$0xff]
    %v2370 = vsel %vm416, %v698, 0
    %2372 = vmatprep.subr.mxu0 0.0
    %2373 = vmatpush1.msra.mxu0 0.0
    %2374 = vmatprep.subr.mxu0 0.0
    %2375 = vmatpush1.msra.mxu0 0.0
    %2376 = vmatprep.subr.mxu0 0.0
    %2377 = vmatpush1.msra.mxu0 0.0
    %2378 = vmatprep.subr.mxu0 0.0
    %2379 = vmatpush1.msra.mxu0 0.0
    %2380 = vmatprep.subr.mxu0 0.0
    %2381 = vmatpush1.msra.mxu0 0.0
    %2382 = vmatprep.subr.mxu0 0.0
    %2383 = vmatpush1.msra.mxu0 0.0
    %2384 = vmatprep.subr.mxu0 0.0
    %2385 = vmatpush1.msra.mxu0 0.0
    %2386 = vmatprep.subr.mxu0 0.0
    %2387 = vmatpush1.msra.mxu0 0.0
    %2388 = vmatprep.subr.mxu0 0.0
    %2389 = vmatpush1.msra.mxu0 0.0
    %2390 = vmatprep.subr.mxu0 0.0
    %2391 = vmatpush1.msra.mxu0 0.0
    %2392 = vmatprep.subr.mxu0 0.0
    %2393 = vmatpush1.msra.mxu0 0.0
    %2394 = vmatprep.subr.mxu0 0.0
    %2395 = vmatpush1.msra.mxu0 0.0
    %2396 = vmatprep.subr.mxu0 0.0
    %2397 = vmatpush1.msra.mxu0 0.0
    %2398 = vmatprep.subr.mxu0 0.0
    %2399 = vmatpush1.msra.mxu0 0.0
    %2400 = vmatprep.subr.mxu0 0.0
    %2401 = vmatpush1.msra.mxu0 0.0
    %2402 = vmatprep.subr.mxu0 0.0
    %2403 = vmatpush1.msra.mxu0 %v2368
    %2404 = vmatprep.subr.mxu0 0.0
    %2405 = vmatpush2.msra.mxu0 0.0
    %2406 = vmatprep.subr.mxu0 0.0
    %2407 = vmatpush2.msra.mxu0 0.0
    %2408 = vmatprep.subr.mxu0 0.0
    %2409 = vmatpush2.msra.mxu0 0.0
    %2410 = vmatprep.subr.mxu0 0.0
    %2411 = vmatpush2.msra.mxu0 0.0
    %2412 = vmatprep.subr.mxu0 0.0
    %2413 = vmatpush2.msra.mxu0 0.0
    %2414 = vmatprep.subr.mxu0 0.0
    %2415 = vmatpush2.msra.mxu0 0.0
    %2416 = vmatprep.subr.mxu0 0.0
    %2417 = vmatpush2.msra.mxu0 0.0
    %2418 = vmatprep.subr.mxu0 0.0
    %2419 = vmatpush2.msra.mxu0 0.0
    %2420 = vmatprep.subr.mxu0 0.0
    %2421 = vmatpush2.msra.mxu0 0.0
    %2422 = vmatprep.subr.mxu0 0.0
    %2423 = vmatpush2.msra.mxu0 0.0
    %2424 = vmatprep.subr.mxu0 0.0
    %2425 = vmatpush2.msra.mxu0 0.0
    %2426 = vmatprep.subr.mxu0 0.0
    %2427 = vmatpush2.msra.mxu0 0.0
    %2428 = vmatprep.subr.mxu0 0.0
    %2429 = vmatpush2.msra.mxu0 0.0
    %2430 = vmatprep.subr.mxu0 0.0
    %2431 = vmatpush2.msra.mxu0 0.0
    %2432 = vmatprep.subr.mxu0 0.0
    %2433 = vmatpush2.msra.mxu0 0.0
    %2434 = vmatprep.subr.mxu0 0.0
    %2435 = vmatpush2.msra.mxu0 0.0
    %2436 = vmatprep.mubr.f32.mxu0 0.0
    %2437 = vmatmul.mubr.f32.gmra.mxu0 %v735
    %v2438 = vpop.f32.mrf.mxu0
    %v2439 = vadd.f32 0.0, %v2438
    %v2440 = vpop.f32.mrf.mxu0
    %2441 = vmatprep.mubr.f32.mxu0 0.0
    %2442 = vmatmul.mubr.f32.gmra.mxu0 %v738
    %v2443 = vpop.f32.mrf.mxu0
    %v2444 = vadd.f32 0.0, %v2443
    %v2445 = vpop.f32.mrf.mxu0
    %2446 = vmatprep.mubr.f32.mxu0 0.0
    %2447 = vmatmul.mubr.f32.gmra.mxu0 %v741
    %v2448 = vpop.f32.mrf.mxu0
    %v2449 = vadd.f32 0.0, %v2448
    %v2450 = vpop.f32.mrf.mxu0
    %2451 = vmatprep.mubr.f32.mxu0 0.0
    %2452 = vmatmul.mubr.f32.gmra.mxu0 %v744
    %v2453 = vpop.f32.mrf.mxu0
    %v2454 = vadd.f32 0.0, %v2453
    %v2455 = vpop.f32.mrf.mxu0
    %2456 = vmatprep.mubr.f32.mxu0 0.0
    %2457 = vmatmul.mubr.f32.gmra.mxu0 %v747
    %v2458 = vpop.f32.mrf.mxu0
    %v2459 = vadd.f32 0.0, %v2458
    %v2460 = vpop.f32.mrf.mxu0
    %2461 = vmatprep.mubr.f32.mxu0 0.0
    %2462 = vmatmul.mubr.f32.gmra.mxu0 %v750
    %v2463 = vpop.f32.mrf.mxu0
    %v2464 = vadd.f32 0.0, %v2463
    %v2465 = vpop.f32.mrf.mxu0
    %2466 = vmatprep.mubr.f32.mxu0 0.0
    %2467 = vmatmul.mubr.f32.gmra.mxu0 %v753
    %v2468 = vpop.f32.mrf.mxu0
    %v2469 = vadd.f32 0.0, %v2468
    %v2470 = vpop.f32.mrf.mxu0
    %2471 = vmatprep.mubr.f32.mxu0 0.0
    %2472 = vmatmul.mubr.f32.gmra.mxu0 %v1050
    %v2473 = vpop.f32.mrf.mxu0
    %v2474 = vadd.f32 0.0, %v2473
    %v2475 = vpop.f32.mrf.mxu0
    %2476 = vmatprep.mubr.f32.mxu0 0.0
    %2477 = vmatmul.mubr.f32.gmra.mxu0 %v1215
    %v2478 = vpop.f32.mrf.mxu0
    %v2479 = vadd.f32 0.0, %v2478
    %v2480 = vpop.f32.mrf.mxu0
    %2481 = vmatprep.mubr.f32.mxu0 0.0
    %2482 = vmatmul.mubr.f32.gmra.mxu0 %v1380
    %v2483 = vpop.f32.mrf.mxu0
    %v2484 = vadd.f32 0.0, %v2483
    %v2485 = vpop.f32.mrf.mxu0
    %2486 = vmatprep.mubr.f32.mxu0 0.0
    %2487 = vmatmul.mubr.f32.gmra.mxu0 %v1545
    %v2488 = vpop.f32.mrf.mxu0
    %v2489 = vadd.f32 0.0, %v2488
    %v2490 = vpop.f32.mrf.mxu0
    %2491 = vmatprep.mubr.f32.mxu0 0.0
    %2492 = vmatmul.mubr.f32.gmra.mxu0 %v1710
    %v2493 = vpop.f32.mrf.mxu0
    %v2494 = vadd.f32 0.0, %v2493
    %v2495 = vpop.f32.mrf.mxu0
    %2496 = vmatprep.mubr.f32.mxu0 0.0
    %2497 = vmatmul.mubr.f32.gmra.mxu0 %v1875
    %v2498 = vpop.f32.mrf.mxu0
    %v2499 = vadd.f32 0.0, %v2498
    %v2500 = vpop.f32.mrf.mxu0
    %2501 = vmatprep.mubr.f32.mxu0 0.0
    %2502 = vmatmul.mubr.f32.gmra.mxu0 %v2040
    %v2503 = vpop.f32.mrf.mxu0
    %v2504 = vadd.f32 0.0, %v2503
    %v2505 = vpop.f32.mrf.mxu0
    %2506 = vmatprep.mubr.f32.mxu0 0.0
    %2507 = vmatmul.mubr.f32.gmra.mxu0 %v2205
    %v2508 = vpop.f32.mrf.mxu0
    %v2509 = vadd.f32 0.0, %v2508
    %v2510 = vpop.f32.mrf.mxu0
    %2511 = vmatprep.mubr.f32.mxu0 0.0
    %2512 = vmatmul.mubr.f32.gmra.mxu0 %v2370
    %v2513 = vpop.f32.mrf.mxu0
    %v2514 = vadd.f32 0.0, %v2513
    %v2515 = vpop.f32.mrf.mxu0
    %2516 = vdwg.mxu0
    %v2517 = vadd.f32 %v2352, %v2439
    %v2518 = vadd.f32 %v2353, %v2444
    %v2519 = vadd.f32 %v2354, %v2449
    %v2520 = vadd.f32 %v2355, %v2454
    %v2521 = vadd.f32 %v2356, %v2459
    %v2522 = vadd.f32 %v2357, %v2464
    %v2523 = vadd.f32 %v2358, %v2469
    %v2524 = vadd.f32 %v2359, %v2474
    %v2525 = vadd.f32 %v2360, %v2479
    %v2526 = vadd.f32 %v2361, %v2484
    %v2527 = vadd.f32 %v2362, %v2489
    %v2528 = vadd.f32 %v2363, %v2494
    %v2529 = vadd.f32 %v2364, %v2499
    %v2530 = vadd.f32 %v2365, %v2504
    %v2531 = vadd.f32 %v2366, %v2509
    %v2532 = vadd.f32 %v2367, %v2514
    %v2533 = vld [vmem:[%s4 + $0x58] sm:$0xff]
    %v2535 = vsel %vm416, %v699, 0
    %2537 = vmatprep.subr.mxu0 0.0
    %2538 = vmatpush1.msra.mxu0 0.0
    %2539 = vmatprep.subr.mxu0 0.0
    %2540 = vmatpush1.msra.mxu0 0.0
    %2541 = vmatprep.subr.mxu0 0.0
    %2542 = vmatpush1.msra.mxu0 0.0
    %2543 = vmatprep.subr.mxu0 0.0
    %2544 = vmatpush1.msra.mxu0 0.0
    %2545 = vmatprep.subr.mxu0 0.0
    %2546 = vmatpush1.msra.mxu0 0.0
    %2547 = vmatprep.subr.mxu0 0.0
    %2548 = vmatpush1.msra.mxu0 0.0
    %2549 = vmatprep.subr.mxu0 0.0
    %2550 = vmatpush1.msra.mxu0 0.0
    %2551 = vmatprep.subr.mxu0 0.0
    %2552 = vmatpush1.msra.mxu0 0.0
    %2553 = vmatprep.subr.mxu0 0.0
    %2554 = vmatpush1.msra.mxu0 0.0
    %2555 = vmatprep.subr.mxu0 0.0
    %2556 = vmatpush1.msra.mxu0 0.0
    %2557 = vmatprep.subr.mxu0 0.0
    %2558 = vmatpush1.msra.mxu0 0.0
    %2559 = vmatprep.subr.mxu0 0.0
    %2560 = vmatpush1.msra.mxu0 0.0
    %2561 = vmatprep.subr.mxu0 0.0
    %2562 = vmatpush1.msra.mxu0 0.0
    %2563 = vmatprep.subr.mxu0 0.0
    %2564 = vmatpush1.msra.mxu0 0.0
    %2565 = vmatprep.subr.mxu0 0.0
    %2566 = vmatpush1.msra.mxu0 0.0
    %2567 = vmatprep.subr.mxu0 0.0
    %2568 = vmatpush1.msra.mxu0 %v2533
    %2569 = vmatprep.subr.mxu0 0.0
    %2570 = vmatpush2.msra.mxu0 0.0
    %2571 = vmatprep.subr.mxu0 0.0
    %2572 = vmatpush2.msra.mxu0 0.0
    %2573 = vmatprep.subr.mxu0 0.0
    %2574 = vmatpush2.msra.mxu0 0.0
    %2575 = vmatprep.subr.mxu0 0.0
    %2576 = vmatpush2.msra.mxu0 0.0
    %2577 = vmatprep.subr.mxu0 0.0
    %2578 = vmatpush2.msra.mxu0 0.0
    %2579 = vmatprep.subr.mxu0 0.0
    %2580 = vmatpush2.msra.mxu0 0.0
    %2581 = vmatprep.subr.mxu0 0.0
    %2582 = vmatpush2.msra.mxu0 0.0
    %2583 = vmatprep.subr.mxu0 0.0
    %2584 = vmatpush2.msra.mxu0 0.0
    %2585 = vmatprep.subr.mxu0 0.0
    %2586 = vmatpush2.msra.mxu0 0.0
    %2587 = vmatprep.subr.mxu0 0.0
    %2588 = vmatpush2.msra.mxu0 0.0
    %2589 = vmatprep.subr.mxu0 0.0
    %2590 = vmatpush2.msra.mxu0 0.0
    %2591 = vmatprep.subr.mxu0 0.0
    %2592 = vmatpush2.msra.mxu0 0.0
    %2593 = vmatprep.subr.mxu0 0.0
    %2594 = vmatpush2.msra.mxu0 0.0
    %2595 = vmatprep.subr.mxu0 0.0
    %2596 = vmatpush2.msra.mxu0 0.0
    %2597 = vmatprep.subr.mxu0 0.0
    %2598 = vmatpush2.msra.mxu0 0.0
    %2599 = vmatprep.subr.mxu0 0.0
    %2600 = vmatpush2.msra.mxu0 0.0
    %2601 = vmatprep.mubr.f32.mxu0 0.0
    %2602 = vmatmul.mubr.f32.gmra.mxu0 %v738
    %v2603 = vpop.f32.mrf.mxu0
    %v2604 = vadd.f32 0.0, %v2603
    %v2605 = vpop.f32.mrf.mxu0
    %2606 = vmatprep.mubr.f32.mxu0 0.0
    %2607 = vmatmul.mubr.f32.gmra.mxu0 %v741
    %v2608 = vpop.f32.mrf.mxu0
    %v2609 = vadd.f32 0.0, %v2608
    %v2610 = vpop.f32.mrf.mxu0
    %2611 = vmatprep.mubr.f32.mxu0 0.0
    %2612 = vmatmul.mubr.f32.gmra.mxu0 %v744
    %v2613 = vpop.f32.mrf.mxu0
    %v2614 = vadd.f32 0.0, %v2613
    %v2615 = vpop.f32.mrf.mxu0
    %2616 = vmatprep.mubr.f32.mxu0 0.0
    %2617 = vmatmul.mubr.f32.gmra.mxu0 %v747
    %v2618 = vpop.f32.mrf.mxu0
    %v2619 = vadd.f32 0.0, %v2618
    %v2620 = vpop.f32.mrf.mxu0
    %2621 = vmatprep.mubr.f32.mxu0 0.0
    %2622 = vmatmul.mubr.f32.gmra.mxu0 %v750
    %v2623 = vpop.f32.mrf.mxu0
    %v2624 = vadd.f32 0.0, %v2623
    %v2625 = vpop.f32.mrf.mxu0
    %2626 = vmatprep.mubr.f32.mxu0 0.0
    %2627 = vmatmul.mubr.f32.gmra.mxu0 %v753
    %v2628 = vpop.f32.mrf.mxu0
    %v2629 = vadd.f32 0.0, %v2628
    %v2630 = vpop.f32.mrf.mxu0
    %2631 = vmatprep.mubr.f32.mxu0 0.0
    %2632 = vmatmul.mubr.f32.gmra.mxu0 %v1050
    %v2633 = vpop.f32.mrf.mxu0
    %v2634 = vadd.f32 0.0, %v2633
    %v2635 = vpop.f32.mrf.mxu0
    %2636 = vmatprep.mubr.f32.mxu0 0.0
    %2637 = vmatmul.mubr.f32.gmra.mxu0 %v1215
    %v2638 = vpop.f32.mrf.mxu0
    %v2639 = vadd.f32 0.0, %v2638
    %v2640 = vpop.f32.mrf.mxu0
    %2641 = vmatprep.mubr.f32.mxu0 0.0
    %2642 = vmatmul.mubr.f32.gmra.mxu0 %v1380
    %v2643 = vpop.f32.mrf.mxu0
    %v2644 = vadd.f32 0.0, %v2643
    %v2645 = vpop.f32.mrf.mxu0
    %2646 = vmatprep.mubr.f32.mxu0 0.0
    %2647 = vmatmul.mubr.f32.gmra.mxu0 %v1545
    %v2648 = vpop.f32.mrf.mxu0
    %v2649 = vadd.f32 0.0, %v2648
    %v2650 = vpop.f32.mrf.mxu0
    %2651 = vmatprep.mubr.f32.mxu0 0.0
    %2652 = vmatmul.mubr.f32.gmra.mxu0 %v1710
    %v2653 = vpop.f32.mrf.mxu0
    %v2654 = vadd.f32 0.0, %v2653
    %v2655 = vpop.f32.mrf.mxu0
    %2656 = vmatprep.mubr.f32.mxu0 0.0
    %2657 = vmatmul.mubr.f32.gmra.mxu0 %v1875
    %v2658 = vpop.f32.mrf.mxu0
    %v2659 = vadd.f32 0.0, %v2658
    %v2660 = vpop.f32.mrf.mxu0
    %2661 = vmatprep.mubr.f32.mxu0 0.0
    %2662 = vmatmul.mubr.f32.gmra.mxu0 %v2040
    %v2663 = vpop.f32.mrf.mxu0
    %v2664 = vadd.f32 0.0, %v2663
    %v2665 = vpop.f32.mrf.mxu0
    %2666 = vmatprep.mubr.f32.mxu0 0.0
    %2667 = vmatmul.mubr.f32.gmra.mxu0 %v2205
    %v2668 = vpop.f32.mrf.mxu0
    %v2669 = vadd.f32 0.0, %v2668
    %v2670 = vpop.f32.mrf.mxu0
    %2671 = vmatprep.mubr.f32.mxu0 0.0
    %2672 = vmatmul.mubr.f32.gmra.mxu0 %v2370
    %v2673 = vpop.f32.mrf.mxu0
    %v2674 = vadd.f32 0.0, %v2673
    %v2675 = vpop.f32.mrf.mxu0
    %2676 = vmatprep.mubr.f32.mxu0 0.0
    %2677 = vmatmul.mubr.f32.gmra.mxu0 %v2535
    %v2678 = vpop.f32.mrf.mxu0
    %v2679 = vadd.f32 0.0, %v2678
    %v2680 = vpop.f32.mrf.mxu0
    %2681 = vdwg.mxu0
    %v2682 = vadd.f32 %v2517, %v2604
    %v2683 = vadd.f32 %v2518, %v2609
    %v2684 = vadd.f32 %v2519, %v2614
    %v2685 = vadd.f32 %v2520, %v2619
    %v2686 = vadd.f32 %v2521, %v2624
    %v2687 = vadd.f32 %v2522, %v2629
    %v2688 = vadd.f32 %v2523, %v2634
    %v2689 = vadd.f32 %v2524, %v2639
    %v2690 = vadd.f32 %v2525, %v2644
    %v2691 = vadd.f32 %v2526, %v2649
    %v2692 = vadd.f32 %v2527, %v2654
    %v2693 = vadd.f32 %v2528, %v2659
    %v2694 = vadd.f32 %v2529, %v2664
    %v2695 = vadd.f32 %v2530, %v2669
    %v2696 = vadd.f32 %v2531, %v2674
    %v2697 = vadd.f32 %v2532, %v2679
    %v2698 = vld [vmem:[%s4 + $0x60] sm:$0xff]
    %v2700 = vsel %vm416, %v700, 0
    %2702 = vmatprep.subr.mxu0 0.0
    %2703 = vmatpush1.msra.mxu0 0.0
    %2704 = vmatprep.subr.mxu0 0.0
    %2705 = vmatpush1.msra.mxu0 0.0
    %2706 = vmatprep.subr.mxu0 0.0
    %2707 = vmatpush1.msra.mxu0 0.0
    %2708 = vmatprep.subr.mxu0 0.0
    %2709 = vmatpush1.msra.mxu0 0.0
    %2710 = vmatprep.subr.mxu0 0.0
    %2711 = vmatpush1.msra.mxu0 0.0
    %2712 = vmatprep.subr.mxu0 0.0
    %2713 = vmatpush1.msra.mxu0 0.0
    %2714 = vmatprep.subr.mxu0 0.0
    %2715 = vmatpush1.msra.mxu0 0.0
    %2716 = vmatprep.subr.mxu0 0.0
    %2717 = vmatpush1.msra.mxu0 0.0
    %2718 = vmatprep.subr.mxu0 0.0
    %2719 = vmatpush1.msra.mxu0 0.0
    %2720 = vmatprep.subr.mxu0 0.0
    %2721 = vmatpush1.msra.mxu0 0.0
    %2722 = vmatprep.subr.mxu0 0.0
    %2723 = vmatpush1.msra.mxu0 0.0
    %2724 = vmatprep.subr.mxu0 0.0
    %2725 = vmatpush1.msra.mxu0 0.0
    %2726 = vmatprep.subr.mxu0 0.0
    %2727 = vmatpush1.msra.mxu0 0.0
    %2728 = vmatprep.subr.mxu0 0.0
    %2729 = vmatpush1.msra.mxu0 0.0
    %2730 = vmatprep.subr.mxu0 0.0
    %2731 = vmatpush1.msra.mxu0 0.0
    %2732 = vmatprep.subr.mxu0 0.0
    %2733 = vmatpush1.msra.mxu0 %v2698
    %2734 = vmatprep.subr.mxu0 0.0
    %2735 = vmatpush2.msra.mxu0 0.0
    %2736 = vmatprep.subr.mxu0 0.0
    %2737 = vmatpush2.msra.mxu0 0.0
    %2738 = vmatprep.subr.mxu0 0.0
    %2739 = vmatpush2.msra.mxu0 0.0
    %2740 = vmatprep.subr.mxu0 0.0
    %2741 = vmatpush2.msra.mxu0 0.0
    %2742 = vmatprep.subr.mxu0 0.0
    %2743 = vmatpush2.msra.mxu0 0.0
    %2744 = vmatprep.subr.mxu0 0.0
    %2745 = vmatpush2.msra.mxu0 0.0
    %2746 = vmatprep.subr.mxu0 0.0
    %2747 = vmatpush2.msra.mxu0 0.0
    %2748 = vmatprep.subr.mxu0 0.0
    %2749 = vmatpush2.msra.mxu0 0.0
    %2750 = vmatprep.subr.mxu0 0.0
    %2751 = vmatpush2.msra.mxu0 0.0
    %2752 = vmatprep.subr.mxu0 0.0
    %2753 = vmatpush2.msra.mxu0 0.0
    %2754 = vmatprep.subr.mxu0 0.0
    %2755 = vmatpush2.msra.mxu0 0.0
    %2756 = vmatprep.subr.mxu0 0.0
    %2757 = vmatpush2.msra.mxu0 0.0
    %2758 = vmatprep.subr.mxu0 0.0
    %2759 = vmatpush2.msra.mxu0 0.0
    %2760 = vmatprep.subr.mxu0 0.0
    %2761 = vmatpush2.msra.mxu0 0.0
    %2762 = vmatprep.subr.mxu0 0.0
    %2763 = vmatpush2.msra.mxu0 0.0
    %2764 = vmatprep.subr.mxu0 0.0
    %2765 = vmatpush2.msra.mxu0 0.0
    %2766 = vmatprep.mubr.f32.mxu0 0.0
    %2767 = vmatmul.mubr.f32.gmra.mxu0 %v741
    %v2768 = vpop.f32.mrf.mxu0
    %v2769 = vadd.f32 0.0, %v2768
    %v2770 = vpop.f32.mrf.mxu0
    %2771 = vmatprep.mubr.f32.mxu0 0.0
    %2772 = vmatmul.mubr.f32.gmra.mxu0 %v744
    %v2773 = vpop.f32.mrf.mxu0
    %v2774 = vadd.f32 0.0, %v2773
    %v2775 = vpop.f32.mrf.mxu0
    %2776 = vmatprep.mubr.f32.mxu0 0.0
    %2777 = vmatmul.mubr.f32.gmra.mxu0 %v747
    %v2778 = vpop.f32.mrf.mxu0
    %v2779 = vadd.f32 0.0, %v2778
    %v2780 = vpop.f32.mrf.mxu0
    %2781 = vmatprep.mubr.f32.mxu0 0.0
    %2782 = vmatmul.mubr.f32.gmra.mxu0 %v750
    %v2783 = vpop.f32.mrf.mxu0
    %v2784 = vadd.f32 0.0, %v2783
    %v2785 = vpop.f32.mrf.mxu0
    %2786 = vmatprep.mubr.f32.mxu0 0.0
    %2787 = vmatmul.mubr.f32.gmra.mxu0 %v753
    %v2788 = vpop.f32.mrf.mxu0
    %v2789 = vadd.f32 0.0, %v2788
    %v2790 = vpop.f32.mrf.mxu0
    %2791 = vmatprep.mubr.f32.mxu0 0.0
    %2792 = vmatmul.mubr.f32.gmra.mxu0 %v1050
    %v2793 = vpop.f32.mrf.mxu0
    %v2794 = vadd.f32 0.0, %v2793
    %v2795 = vpop.f32.mrf.mxu0
    %2796 = vmatprep.mubr.f32.mxu0 0.0
    %2797 = vmatmul.mubr.f32.gmra.mxu0 %v1215
    %v2798 = vpop.f32.mrf.mxu0
    %v2799 = vadd.f32 0.0, %v2798
    %v2800 = vpop.f32.mrf.mxu0
    %2801 = vmatprep.mubr.f32.mxu0 0.0
    %2802 = vmatmul.mubr.f32.gmra.mxu0 %v1380
    %v2803 = vpop.f32.mrf.mxu0
    %v2804 = vadd.f32 0.0, %v2803
    %v2805 = vpop.f32.mrf.mxu0
    %2806 = vmatprep.mubr.f32.mxu0 0.0
    %2807 = vmatmul.mubr.f32.gmra.mxu0 %v1545
    %v2808 = vpop.f32.mrf.mxu0
    %v2809 = vadd.f32 0.0, %v2808
    %v2810 = vpop.f32.mrf.mxu0
    %2811 = vmatprep.mubr.f32.mxu0 0.0
    %2812 = vmatmul.mubr.f32.gmra.mxu0 %v1710
    %v2813 = vpop.f32.mrf.mxu0
    %v2814 = vadd.f32 0.0, %v2813
    %v2815 = vpop.f32.mrf.mxu0
    %2816 = vmatprep.mubr.f32.mxu0 0.0
    %2817 = vmatmul.mubr.f32.gmra.mxu0 %v1875
    %v2818 = vpop.f32.mrf.mxu0
    %v2819 = vadd.f32 0.0, %v2818
    %v2820 = vpop.f32.mrf.mxu0
    %2821 = vmatprep.mubr.f32.mxu0 0.0
    %2822 = vmatmul.mubr.f32.gmra.mxu0 %v2040
    %v2823 = vpop.f32.mrf.mxu0
    %v2824 = vadd.f32 0.0, %v2823
    %v2825 = vpop.f32.mrf.mxu0
    %2826 = vmatprep.mubr.f32.mxu0 0.0
    %2827 = vmatmul.mubr.f32.gmra.mxu0 %v2205
    %v2828 = vpop.f32.mrf.mxu0
    %v2829 = vadd.f32 0.0, %v2828
    %v2830 = vpop.f32.mrf.mxu0
    %2831 = vmatprep.mubr.f32.mxu0 0.0
    %2832 = vmatmul.mubr.f32.gmra.mxu0 %v2370
    %v2833 = vpop.f32.mrf.mxu0
    %v2834 = vadd.f32 0.0, %v2833
    %v2835 = vpop.f32.mrf.mxu0
    %2836 = vmatprep.mubr.f32.mxu0 0.0
    %2837 = vmatmul.mubr.f32.gmra.mxu0 %v2535
    %v2838 = vpop.f32.mrf.mxu0
    %v2839 = vadd.f32 0.0, %v2838
    %v2840 = vpop.f32.mrf.mxu0
    %2841 = vmatprep.mubr.f32.mxu0 0.0
    %2842 = vmatmul.mubr.f32.gmra.mxu0 %v2700
    %v2843 = vpop.f32.mrf.mxu0
    %v2844 = vadd.f32 0.0, %v2843
    %v2845 = vpop.f32.mrf.mxu0
    %2846 = vdwg.mxu0
    %v2847 = vadd.f32 %v2682, %v2769
    %v2848 = vadd.f32 %v2683, %v2774
    %v2849 = vadd.f32 %v2684, %v2779
    %v2850 = vadd.f32 %v2685, %v2784
    %v2851 = vadd.f32 %v2686, %v2789
    %v2852 = vadd.f32 %v2687, %v2794
    %v2853 = vadd.f32 %v2688, %v2799
    %v2854 = vadd.f32 %v2689, %v2804
    %v2855 = vadd.f32 %v2690, %v2809
    %v2856 = vadd.f32 %v2691, %v2814
    %v2857 = vadd.f32 %v2692, %v2819
    %v2858 = vadd.f32 %v2693, %v2824
    %v2859 = vadd.f32 %v2694, %v2829
    %v2860 = vadd.f32 %v2695, %v2834
    %v2861 = vadd.f32 %v2696, %v2839
    %v2862 = vadd.f32 %v2697, %v2844
    %v2863 = vld [vmem:[%s4 + $0x68] sm:$0xff]
    %v2865 = vsel %vm416, %v701, 0
    %2867 = vmatprep.subr.mxu0 0.0
    %2868 = vmatpush1.msra.mxu0 0.0
    %2869 = vmatprep.subr.mxu0 0.0
    %2870 = vmatpush1.msra.mxu0 0.0
    %2871 = vmatprep.subr.mxu0 0.0
    %2872 = vmatpush1.msra.mxu0 0.0
    %2873 = vmatprep.subr.mxu0 0.0
    %2874 = vmatpush1.msra.mxu0 0.0
    %2875 = vmatprep.subr.mxu0 0.0
    %2876 = vmatpush1.msra.mxu0 0.0
    %2877 = vmatprep.subr.mxu0 0.0
    %2878 = vmatpush1.msra.mxu0 0.0
    %2879 = vmatprep.subr.mxu0 0.0
    %2880 = vmatpush1.msra.mxu0 0.0
    %2881 = vmatprep.subr.mxu0 0.0
    %2882 = vmatpush1.msra.mxu0 0.0
    %2883 = vmatprep.subr.mxu0 0.0
    %2884 = vmatpush1.msra.mxu0 0.0
    %2885 = vmatprep.subr.mxu0 0.0
    %2886 = vmatpush1.msra.mxu0 0.0
    %2887 = vmatprep.subr.mxu0 0.0
    %2888 = vmatpush1.msra.mxu0 0.0
    %2889 = vmatprep.subr.mxu0 0.0
    %2890 = vmatpush1.msra.mxu0 0.0
    %2891 = vmatprep.subr.mxu0 0.0
    %2892 = vmatpush1.msra.mxu0 0.0
    %2893 = vmatprep.subr.mxu0 0.0
    %2894 = vmatpush1.msra.mxu0 0.0
    %2895 = vmatprep.subr.mxu0 0.0
    %2896 = vmatpush1.msra.mxu0 0.0
    %2897 = vmatprep.subr.mxu0 0.0
    %2898 = vmatpush1.msra.mxu0 %v2863
    %2899 = vmatprep.subr.mxu0 0.0
    %2900 = vmatpush2.msra.mxu0 0.0
    %2901 = vmatprep.subr.mxu0 0.0
    %2902 = vmatpush2.msra.mxu0 0.0
    %2903 = vmatprep.subr.mxu0 0.0
    %2904 = vmatpush2.msra.mxu0 0.0
    %2905 = vmatprep.subr.mxu0 0.0
    %2906 = vmatpush2.msra.mxu0 0.0
    %2907 = vmatprep.subr.mxu0 0.0
    %2908 = vmatpush2.msra.mxu0 0.0
    %2909 = vmatprep.subr.mxu0 0.0
    %2910 = vmatpush2.msra.mxu0 0.0
    %2911 = vmatprep.subr.mxu0 0.0
    %2912 = vmatpush2.msra.mxu0 0.0
    %2913 = vmatprep.subr.mxu0 0.0
    %2914 = vmatpush2.msra.mxu0 0.0
    %2915 = vmatprep.subr.mxu0 0.0
    %2916 = vmatpush2.msra.mxu0 0.0
    %2917 = vmatprep.subr.mxu0 0.0
    %2918 = vmatpush2.msra.mxu0 0.0
    %2919 = vmatprep.subr.mxu0 0.0
    %2920 = vmatpush2.msra.mxu0 0.0
    %2921 = vmatprep.subr.mxu0 0.0
    %2922 = vmatpush2.msra.mxu0 0.0
    %2923 = vmatprep.subr.mxu0 0.0
    %2924 = vmatpush2.msra.mxu0 0.0
    %2925 = vmatprep.subr.mxu0 0.0
    %2926 = vmatpush2.msra.mxu0 0.0
    %2927 = vmatprep.subr.mxu0 0.0
    %2928 = vmatpush2.msra.mxu0 0.0
    %2929 = vmatprep.subr.mxu0 0.0
    %2930 = vmatpush2.msra.mxu0 0.0
    %2931 = vmatprep.mubr.f32.mxu0 0.0
    %2932 = vmatmul.mubr.f32.gmra.mxu0 %v744
    %v2933 = vpop.f32.mrf.mxu0
    %v2934 = vadd.f32 0.0, %v2933
    %v2935 = vpop.f32.mrf.mxu0
    %2936 = vmatprep.mubr.f32.mxu0 0.0
    %2937 = vmatmul.mubr.f32.gmra.mxu0 %v747
    %v2938 = vpop.f32.mrf.mxu0
    %v2939 = vadd.f32 0.0, %v2938
    %v2940 = vpop.f32.mrf.mxu0
    %2941 = vmatprep.mubr.f32.mxu0 0.0
    %2942 = vmatmul.mubr.f32.gmra.mxu0 %v750
    %v2943 = vpop.f32.mrf.mxu0
    %v2944 = vadd.f32 0.0, %v2943
    %v2945 = vpop.f32.mrf.mxu0
    %2946 = vmatprep.mubr.f32.mxu0 0.0
    %2947 = vmatmul.mubr.f32.gmra.mxu0 %v753
    %v2948 = vpop.f32.mrf.mxu0
    %v2949 = vadd.f32 0.0, %v2948
    %v2950 = vpop.f32.mrf.mxu0
    %2951 = vmatprep.mubr.f32.mxu0 0.0
    %2952 = vmatmul.mubr.f32.gmra.mxu0 %v1050
    %v2953 = vpop.f32.mrf.mxu0
    %v2954 = vadd.f32 0.0, %v2953
    %v2955 = vpop.f32.mrf.mxu0
    %2956 = vmatprep.mubr.f32.mxu0 0.0
    %2957 = vmatmul.mubr.f32.gmra.mxu0 %v1215
    %v2958 = vpop.f32.mrf.mxu0
    %v2959 = vadd.f32 0.0, %v2958
    %v2960 = vpop.f32.mrf.mxu0
    %2961 = vmatprep.mubr.f32.mxu0 0.0
    %2962 = vmatmul.mubr.f32.gmra.mxu0 %v1380
    %v2963 = vpop.f32.mrf.mxu0
    %v2964 = vadd.f32 0.0, %v2963
    %v2965 = vpop.f32.mrf.mxu0
    %2966 = vmatprep.mubr.f32.mxu0 0.0
    %2967 = vmatmul.mubr.f32.gmra.mxu0 %v1545
    %v2968 = vpop.f32.mrf.mxu0
    %v2969 = vadd.f32 0.0, %v2968
    %v2970 = vpop.f32.mrf.mxu0
    %2971 = vmatprep.mubr.f32.mxu0 0.0
    %2972 = vmatmul.mubr.f32.gmra.mxu0 %v1710
    %v2973 = vpop.f32.mrf.mxu0
    %v2974 = vadd.f32 0.0, %v2973
    %v2975 = vpop.f32.mrf.mxu0
    %2976 = vmatprep.mubr.f32.mxu0 0.0
    %2977 = vmatmul.mubr.f32.gmra.mxu0 %v1875
    %v2978 = vpop.f32.mrf.mxu0
    %v2979 = vadd.f32 0.0, %v2978
    %v2980 = vpop.f32.mrf.mxu0
    %2981 = vmatprep.mubr.f32.mxu0 0.0
    %2982 = vmatmul.mubr.f32.gmra.mxu0 %v2040
    %v2983 = vpop.f32.mrf.mxu0
    %v2984 = vadd.f32 0.0, %v2983
    %v2985 = vpop.f32.mrf.mxu0
    %2986 = vmatprep.mubr.f32.mxu0 0.0
    %2987 = vmatmul.mubr.f32.gmra.mxu0 %v2205
    %v2988 = vpop.f32.mrf.mxu0
    %v2989 = vadd.f32 0.0, %v2988
    %v2990 = vpop.f32.mrf.mxu0
    %2991 = vmatprep.mubr.f32.mxu0 0.0
    %2992 = vmatmul.mubr.f32.gmra.mxu0 %v2370
    %v2993 = vpop.f32.mrf.mxu0
    %v2994 = vadd.f32 0.0, %v2993
    %v2995 = vpop.f32.mrf.mxu0
    %2996 = vmatprep.mubr.f32.mxu0 0.0
    %2997 = vmatmul.mubr.f32.gmra.mxu0 %v2535
    %v2998 = vpop.f32.mrf.mxu0
    %v2999 = vadd.f32 0.0, %v2998
    %v3000 = vpop.f32.mrf.mxu0
    %3001 = vmatprep.mubr.f32.mxu0 0.0
    %3002 = vmatmul.mubr.f32.gmra.mxu0 %v2700
    %v3003 = vpop.f32.mrf.mxu0
    %v3004 = vadd.f32 0.0, %v3003
    %v3005 = vpop.f32.mrf.mxu0
    %3006 = vmatprep.mubr.f32.mxu0 0.0
    %3007 = vmatmul.mubr.f32.gmra.mxu0 %v2865
    %v3008 = vpop.f32.mrf.mxu0
    %v3009 = vadd.f32 0.0, %v3008
    %v3010 = vpop.f32.mrf.mxu0
    %3011 = vdwg.mxu0
    %v3012 = vadd.f32 %v2847, %v2934
    %v3013 = vadd.f32 %v2848, %v2939
    %v3014 = vadd.f32 %v2849, %v2944
    %v3015 = vadd.f32 %v2850, %v2949
    %v3016 = vadd.f32 %v2851, %v2954
    %v3017 = vadd.f32 %v2852, %v2959
    %v3018 = vadd.f32 %v2853, %v2964
    %v3019 = vadd.f32 %v2854, %v2969
    %v3020 = vadd.f32 %v2855, %v2974
    %v3021 = vadd.f32 %v2856, %v2979
    %v3022 = vadd.f32 %v2857, %v2984
    %v3023 = vadd.f32 %v2858, %v2989
    %v3024 = vadd.f32 %v2859, %v2994
    %v3025 = vadd.f32 %v2860, %v2999
    %v3026 = vadd.f32 %v2861, %v3004
    %v3027 = vadd.f32 %v2862, %v3009
    %v3028 = vld [vmem:[%s4 + $0x70] sm:$0xff]
    %v3030 = vsel %vm416, %v702, 0
    %3032 = vmatprep.subr.mxu0 0.0
    %3033 = vmatpush1.msra.mxu0 0.0
    %3034 = vmatprep.subr.mxu0 0.0
    %3035 = vmatpush1.msra.mxu0 0.0
    %3036 = vmatprep.subr.mxu0 0.0
    %3037 = vmatpush1.msra.mxu0 0.0
    %3038 = vmatprep.subr.mxu0 0.0
    %3039 = vmatpush1.msra.mxu0 0.0
    %3040 = vmatprep.subr.mxu0 0.0
    %3041 = vmatpush1.msra.mxu0 0.0
    %3042 = vmatprep.subr.mxu0 0.0
    %3043 = vmatpush1.msra.mxu0 0.0
    %3044 = vmatprep.subr.mxu0 0.0
    %3045 = vmatpush1.msra.mxu0 0.0
    %3046 = vmatprep.subr.mxu0 0.0
    %3047 = vmatpush1.msra.mxu0 0.0
    %3048 = vmatprep.subr.mxu0 0.0
    %3049 = vmatpush1.msra.mxu0 0.0
    %3050 = vmatprep.subr.mxu0 0.0
    %3051 = vmatpush1.msra.mxu0 0.0
    %3052 = vmatprep.subr.mxu0 0.0
    %3053 = vmatpush1.msra.mxu0 0.0
    %3054 = vmatprep.subr.mxu0 0.0
    %3055 = vmatpush1.msra.mxu0 0.0
    %3056 = vmatprep.subr.mxu0 0.0
    %3057 = vmatpush1.msra.mxu0 0.0
    %3058 = vmatprep.subr.mxu0 0.0
    %3059 = vmatpush1.msra.mxu0 0.0
    %3060 = vmatprep.subr.mxu0 0.0
    %3061 = vmatpush1.msra.mxu0 0.0
    %3062 = vmatprep.subr.mxu0 0.0
    %3063 = vmatpush1.msra.mxu0 %v3028
    %3064 = vmatprep.subr.mxu0 0.0
    %3065 = vmatpush2.msra.mxu0 0.0
    %3066 = vmatprep.subr.mxu0 0.0
    %3067 = vmatpush2.msra.mxu0 0.0
    %3068 = vmatprep.subr.mxu0 0.0
    %3069 = vmatpush2.msra.mxu0 0.0
    %3070 = vmatprep.subr.mxu0 0.0
    %3071 = vmatpush2.msra.mxu0 0.0
    %3072 = vmatprep.subr.mxu0 0.0
    %3073 = vmatpush2.msra.mxu0 0.0
    %3074 = vmatprep.subr.mxu0 0.0
    %3075 = vmatpush2.msra.mxu0 0.0
    %3076 = vmatprep.subr.mxu0 0.0
    %3077 = vmatpush2.msra.mxu0 0.0
    %3078 = vmatprep.subr.mxu0 0.0
    %3079 = vmatpush2.msra.mxu0 0.0
    %3080 = vmatprep.subr.mxu0 0.0
    %3081 = vmatpush2.msra.mxu0 0.0
    %3082 = vmatprep.subr.mxu0 0.0
    %3083 = vmatpush2.msra.mxu0 0.0
    %3084 = vmatprep.subr.mxu0 0.0
    %3085 = vmatpush2.msra.mxu0 0.0
    %3086 = vmatprep.subr.mxu0 0.0
    %3087 = vmatpush2.msra.mxu0 0.0
    %3088 = vmatprep.subr.mxu0 0.0
    %3089 = vmatpush2.msra.mxu0 0.0
    %3090 = vmatprep.subr.mxu0 0.0
    %3091 = vmatpush2.msra.mxu0 0.0
    %3092 = vmatprep.subr.mxu0 0.0
    %3093 = vmatpush2.msra.mxu0 0.0
    %3094 = vmatprep.subr.mxu0 0.0
    %3095 = vmatpush2.msra.mxu0 0.0
    %3096 = vmatprep.mubr.f32.mxu0 0.0
    %3097 = vmatmul.mubr.f32.gmra.mxu0 %v747
    %v3098 = vpop.f32.mrf.mxu0
    %v3099 = vadd.f32 0.0, %v3098
    %v3100 = vpop.f32.mrf.mxu0
    %3101 = vmatprep.mubr.f32.mxu0 0.0
    %3102 = vmatmul.mubr.f32.gmra.mxu0 %v750
    %v3103 = vpop.f32.mrf.mxu0
    %v3104 = vadd.f32 0.0, %v3103
    %v3105 = vpop.f32.mrf.mxu0
    %3106 = vmatprep.mubr.f32.mxu0 0.0
    %3107 = vmatmul.mubr.f32.gmra.mxu0 %v753
    %v3108 = vpop.f32.mrf.mxu0
    %v3109 = vadd.f32 0.0, %v3108
    %v3110 = vpop.f32.mrf.mxu0
    %3111 = vmatprep.mubr.f32.mxu0 0.0
    %3112 = vmatmul.mubr.f32.gmra.mxu0 %v1050
    %v3113 = vpop.f32.mrf.mxu0
    %v3114 = vadd.f32 0.0, %v3113
    %v3115 = vpop.f32.mrf.mxu0
    %3116 = vmatprep.mubr.f32.mxu0 0.0
    %3117 = vmatmul.mubr.f32.gmra.mxu0 %v1215
    %v3118 = vpop.f32.mrf.mxu0
    %v3119 = vadd.f32 0.0, %v3118
    %v3120 = vpop.f32.mrf.mxu0
    %3121 = vmatprep.mubr.f32.mxu0 0.0
    %3122 = vmatmul.mubr.f32.gmra.mxu0 %v1380
    %v3123 = vpop.f32.mrf.mxu0
    %v3124 = vadd.f32 0.0, %v3123
    %v3125 = vpop.f32.mrf.mxu0
    %3126 = vmatprep.mubr.f32.mxu0 0.0
    %3127 = vmatmul.mubr.f32.gmra.mxu0 %v1545
    %v3128 = vpop.f32.mrf.mxu0
    %v3129 = vadd.f32 0.0, %v3128
    %v3130 = vpop.f32.mrf.mxu0
    %3131 = vmatprep.mubr.f32.mxu0 0.0
    %3132 = vmatmul.mubr.f32.gmra.mxu0 %v1710
    %v3133 = vpop.f32.mrf.mxu0
    %v3134 = vadd.f32 0.0, %v3133
    %v3135 = vpop.f32.mrf.mxu0
    %3136 = vmatprep.mubr.f32.mxu0 0.0
    %3137 = vmatmul.mubr.f32.gmra.mxu0 %v1875
    %v3138 = vpop.f32.mrf.mxu0
    %v3139 = vadd.f32 0.0, %v3138
    %v3140 = vpop.f32.mrf.mxu0
    %3141 = vmatprep.mubr.f32.mxu0 0.0
    %3142 = vmatmul.mubr.f32.gmra.mxu0 %v2040
    %v3143 = vpop.f32.mrf.mxu0
    %v3144 = vadd.f32 0.0, %v3143
    %v3145 = vpop.f32.mrf.mxu0
    %3146 = vmatprep.mubr.f32.mxu0 0.0
    %3147 = vmatmul.mubr.f32.gmra.mxu0 %v2205
    %v3148 = vpop.f32.mrf.mxu0
    %v3149 = vadd.f32 0.0, %v3148
    %v3150 = vpop.f32.mrf.mxu0
    %3151 = vmatprep.mubr.f32.mxu0 0.0
    %3152 = vmatmul.mubr.f32.gmra.mxu0 %v2370
    %v3153 = vpop.f32.mrf.mxu0
    %v3154 = vadd.f32 0.0, %v3153
    %v3155 = vpop.f32.mrf.mxu0
    %3156 = vmatprep.mubr.f32.mxu0 0.0
    %3157 = vmatmul.mubr.f32.gmra.mxu0 %v2535
    %v3158 = vpop.f32.mrf.mxu0
    %v3159 = vadd.f32 0.0, %v3158
    %v3160 = vpop.f32.mrf.mxu0
    %3161 = vmatprep.mubr.f32.mxu0 0.0
    %3162 = vmatmul.mubr.f32.gmra.mxu0 %v2700
    %v3163 = vpop.f32.mrf.mxu0
    %v3164 = vadd.f32 0.0, %v3163
    %v3165 = vpop.f32.mrf.mxu0
    %3166 = vmatprep.mubr.f32.mxu0 0.0
    %3167 = vmatmul.mubr.f32.gmra.mxu0 %v2865
    %v3168 = vpop.f32.mrf.mxu0
    %v3169 = vadd.f32 0.0, %v3168
    %v3170 = vpop.f32.mrf.mxu0
    %3171 = vmatprep.mubr.f32.mxu0 0.0
    %3172 = vmatmul.mubr.f32.gmra.mxu0 %v3030
    %v3173 = vpop.f32.mrf.mxu0
    %v3174 = vadd.f32 0.0, %v3173
    %v3175 = vpop.f32.mrf.mxu0
    %3176 = vdwg.mxu0
    %v3177 = vadd.f32 %v3012, %v3099
    %v3178 = vadd.f32 %v3013, %v3104
    %v3179 = vadd.f32 %v3014, %v3109
    %v3180 = vadd.f32 %v3015, %v3114
    %v3181 = vadd.f32 %v3016, %v3119
    %v3182 = vadd.f32 %v3017, %v3124
    %v3183 = vadd.f32 %v3018, %v3129
    %v3184 = vadd.f32 %v3019, %v3134
    %v3185 = vadd.f32 %v3020, %v3139
    %v3186 = vadd.f32 %v3021, %v3144
    %v3187 = vadd.f32 %v3022, %v3149
    %v3188 = vadd.f32 %v3023, %v3154
    %v3189 = vadd.f32 %v3024, %v3159
    %v3190 = vadd.f32 %v3025, %v3164
    %v3191 = vadd.f32 %v3026, %v3169
    %v3192 = vadd.f32 %v3027, %v3174
    %v3193 = vld [vmem:[%s4 + $0x78] sm:$0xff]
    %v3195 = vsel %vm416, %v703, 0
    %3197 = vmatprep.subr.mxu0 0.0
    %3198 = vmatpush1.msra.mxu0 0.0
    %3199 = vmatprep.subr.mxu0 0.0
    %3200 = vmatpush1.msra.mxu0 0.0
    %3201 = vmatprep.subr.mxu0 0.0
    %3202 = vmatpush1.msra.mxu0 0.0
    %3203 = vmatprep.subr.mxu0 0.0
    %3204 = vmatpush1.msra.mxu0 0.0
    %3205 = vmatprep.subr.mxu0 0.0
    %3206 = vmatpush1.msra.mxu0 0.0
    %3207 = vmatprep.subr.mxu0 0.0
    %3208 = vmatpush1.msra.mxu0 0.0
    %3209 = vmatprep.subr.mxu0 0.0
    %3210 = vmatpush1.msra.mxu0 0.0
    %3211 = vmatprep.subr.mxu0 0.0
    %3212 = vmatpush1.msra.mxu0 0.0
    %3213 = vmatprep.subr.mxu0 0.0
    %3214 = vmatpush1.msra.mxu0 0.0
    %3215 = vmatprep.subr.mxu0 0.0
    %3216 = vmatpush1.msra.mxu0 0.0
    %3217 = vmatprep.subr.mxu0 0.0
    %3218 = vmatpush1.msra.mxu0 0.0
    %3219 = vmatprep.subr.mxu0 0.0
    %3220 = vmatpush1.msra.mxu0 0.0
    %3221 = vmatprep.subr.mxu0 0.0
    %3222 = vmatpush1.msra.mxu0 0.0
    %3223 = vmatprep.subr.mxu0 0.0
    %3224 = vmatpush1.msra.mxu0 0.0
    %3225 = vmatprep.subr.mxu0 0.0
    %3226 = vmatpush1.msra.mxu0 0.0
    %3227 = vmatprep.subr.mxu0 0.0
    %3228 = vmatpush1.msra.mxu0 %v3193
    %3229 = vmatprep.subr.mxu0 0.0
    %3230 = vmatpush2.msra.mxu0 0.0
    %3231 = vmatprep.subr.mxu0 0.0
    %3232 = vmatpush2.msra.mxu0 0.0
    %3233 = vmatprep.subr.mxu0 0.0
    %3234 = vmatpush2.msra.mxu0 0.0
    %3235 = vmatprep.subr.mxu0 0.0
    %3236 = vmatpush2.msra.mxu0 0.0
    %3237 = vmatprep.subr.mxu0 0.0
    %3238 = vmatpush2.msra.mxu0 0.0
    %3239 = vmatprep.subr.mxu0 0.0
    %3240 = vmatpush2.msra.mxu0 0.0
    %3241 = vmatprep.subr.mxu0 0.0
    %3242 = vmatpush2.msra.mxu0 0.0
    %3243 = vmatprep.subr.mxu0 0.0
    %3244 = vmatpush2.msra.mxu0 0.0
    %3245 = vmatprep.subr.mxu0 0.0
    %3246 = vmatpush2.msra.mxu0 0.0
    %3247 = vmatprep.subr.mxu0 0.0
    %3248 = vmatpush2.msra.mxu0 0.0
    %3249 = vmatprep.subr.mxu0 0.0
    %3250 = vmatpush2.msra.mxu0 0.0
    %3251 = vmatprep.subr.mxu0 0.0
    %3252 = vmatpush2.msra.mxu0 0.0
    %3253 = vmatprep.subr.mxu0 0.0
    %3254 = vmatpush2.msra.mxu0 0.0
    %3255 = vmatprep.subr.mxu0 0.0
    %3256 = vmatpush2.msra.mxu0 0.0
    %3257 = vmatprep.subr.mxu0 0.0
    %3258 = vmatpush2.msra.mxu0 0.0
    %3259 = vmatprep.subr.mxu0 0.0
    %3260 = vmatpush2.msra.mxu0 0.0
    %3261 = vmatprep.mubr.f32.mxu0 0.0
    %3262 = vmatmul.mubr.f32.gmra.mxu0 %v750
    %v3263 = vpop.f32.mrf.mxu0
    %v3264 = vadd.f32 0.0, %v3263
    %v3265 = vpop.f32.mrf.mxu0
    %3266 = vmatprep.mubr.f32.mxu0 0.0
    %3267 = vmatmul.mubr.f32.gmra.mxu0 %v753
    %v3268 = vpop.f32.mrf.mxu0
    %v3269 = vadd.f32 0.0, %v3268
    %v3270 = vpop.f32.mrf.mxu0
    %3271 = vmatprep.mubr.f32.mxu0 0.0
    %3272 = vmatmul.mubr.f32.gmra.mxu0 %v1050
    %v3273 = vpop.f32.mrf.mxu0
    %v3274 = vadd.f32 0.0, %v3273
    %v3275 = vpop.f32.mrf.mxu0
    %3276 = vmatprep.mubr.f32.mxu0 0.0
    %3277 = vmatmul.mubr.f32.gmra.mxu0 %v1215
    %v3278 = vpop.f32.mrf.mxu0
    %v3279 = vadd.f32 0.0, %v3278
    %v3280 = vpop.f32.mrf.mxu0
    %3281 = vmatprep.mubr.f32.mxu0 0.0
    %3282 = vmatmul.mubr.f32.gmra.mxu0 %v1380
    %v3283 = vpop.f32.mrf.mxu0
    %v3284 = vadd.f32 0.0, %v3283
    %v3285 = vpop.f32.mrf.mxu0
    %3286 = vmatprep.mubr.f32.mxu0 0.0
    %3287 = vmatmul.mubr.f32.gmra.mxu0 %v1545
    %v3288 = vpop.f32.mrf.mxu0
    %v3289 = vadd.f32 0.0, %v3288
    %v3290 = vpop.f32.mrf.mxu0
    %3291 = vmatprep.mubr.f32.mxu0 0.0
    %3292 = vmatmul.mubr.f32.gmra.mxu0 %v1710
    %v3293 = vpop.f32.mrf.mxu0
    %v3294 = vadd.f32 0.0, %v3293
    %v3295 = vpop.f32.mrf.mxu0
    %3296 = vmatprep.mubr.f32.mxu0 0.0
    %3297 = vmatmul.mubr.f32.gmra.mxu0 %v1875
    %v3298 = vpop.f32.mrf.mxu0
    %v3299 = vadd.f32 0.0, %v3298
    %v3300 = vpop.f32.mrf.mxu0
    %3301 = vmatprep.mubr.f32.mxu0 0.0
    %3302 = vmatmul.mubr.f32.gmra.mxu0 %v2040
    %v3303 = vpop.f32.mrf.mxu0
    %v3304 = vadd.f32 0.0, %v3303
    %v3305 = vpop.f32.mrf.mxu0
    %3306 = vmatprep.mubr.f32.mxu0 0.0
    %3307 = vmatmul.mubr.f32.gmra.mxu0 %v2205
    %v3308 = vpop.f32.mrf.mxu0
    %v3309 = vadd.f32 0.0, %v3308
    %v3310 = vpop.f32.mrf.mxu0
    %3311 = vmatprep.mubr.f32.mxu0 0.0
    %3312 = vmatmul.mubr.f32.gmra.mxu0 %v2370
    %v3313 = vpop.f32.mrf.mxu0
    %v3314 = vadd.f32 0.0, %v3313
    %v3315 = vpop.f32.mrf.mxu0
    %3316 = vmatprep.mubr.f32.mxu0 0.0
    %3317 = vmatmul.mubr.f32.gmra.mxu0 %v2535
    %v3318 = vpop.f32.mrf.mxu0
    %v3319 = vadd.f32 0.0, %v3318
    %v3320 = vpop.f32.mrf.mxu0
    %3321 = vmatprep.mubr.f32.mxu0 0.0
    %3322 = vmatmul.mubr.f32.gmra.mxu0 %v2700
    %v3323 = vpop.f32.mrf.mxu0
    %v3324 = vadd.f32 0.0, %v3323
    %v3325 = vpop.f32.mrf.mxu0
    %3326 = vmatprep.mubr.f32.mxu0 0.0
    %3327 = vmatmul.mubr.f32.gmra.mxu0 %v2865
    %v3328 = vpop.f32.mrf.mxu0
    %v3329 = vadd.f32 0.0, %v3328
    %v3330 = vpop.f32.mrf.mxu0
    %3331 = vmatprep.mubr.f32.mxu0 0.0
    %3332 = vmatmul.mubr.f32.gmra.mxu0 %v3030
    %v3333 = vpop.f32.mrf.mxu0
    %v3334 = vadd.f32 0.0, %v3333
    %v3335 = vpop.f32.mrf.mxu0
    %3336 = vmatprep.mubr.f32.mxu0 0.0
    %3337 = vmatmul.mubr.f32.gmra.mxu0 %v3195
    %v3338 = vpop.f32.mrf.mxu0
    %v3339 = vadd.f32 0.0, %v3338
    %v3340 = vpop.f32.mrf.mxu0
    %3341 = vdwg.mxu0
    %v3342 = vadd.f32 %v3177, %v3264
    %v3343 = vadd.f32 %v3178, %v3269
    %v3344 = vadd.f32 %v3179, %v3274
    %v3345 = vadd.f32 %v3180, %v3279
    %v3346 = vadd.f32 %v3181, %v3284
    %v3347 = vadd.f32 %v3182, %v3289
    %v3348 = vadd.f32 %v3183, %v3294
    %v3349 = vadd.f32 %v3184, %v3299
    %v3350 = vadd.f32 %v3185, %v3304
    %v3351 = vadd.f32 %v3186, %v3309
    %v3352 = vadd.f32 %v3187, %v3314
    %v3353 = vadd.f32 %v3188, %v3319
    %v3354 = vadd.f32 %v3189, %v3324
    %v3355 = vadd.f32 %v3190, %v3329
    %v3356 = vadd.f32 %v3191, %v3334
    %v3357 = vadd.f32 %v3192, %v3339
    %v3358 = vld [vmem:[%s4 + $0x80] sm:$0xff]
    %v3360 = vsel %vm416, %v704, 0
    %3362 = vmatprep.subr.mxu0 0.0
    %3363 = vmatpush1.msra.mxu0 0.0
    %3364 = vmatprep.subr.mxu0 0.0
    %3365 = vmatpush1.msra.mxu0 0.0
    %3366 = vmatprep.subr.mxu0 0.0
    %3367 = vmatpush1.msra.mxu0 0.0
    %3368 = vmatprep.subr.mxu0 0.0
    %3369 = vmatpush1.msra.mxu0 0.0
    %3370 = vmatprep.subr.mxu0 0.0
    %3371 = vmatpush1.msra.mxu0 0.0
    %3372 = vmatprep.subr.mxu0 0.0
    %3373 = vmatpush1.msra.mxu0 0.0
    %3374 = vmatprep.subr.mxu0 0.0
    %3375 = vmatpush1.msra.mxu0 0.0
    %3376 = vmatprep.subr.mxu0 0.0
    %3377 = vmatpush1.msra.mxu0 0.0
    %3378 = vmatprep.subr.mxu0 0.0
    %3379 = vmatpush1.msra.mxu0 0.0
    %3380 = vmatprep.subr.mxu0 0.0
    %3381 = vmatpush1.msra.mxu0 0.0
    %3382 = vmatprep.subr.mxu0 0.0
    %3383 = vmatpush1.msra.mxu0 0.0
    %3384 = vmatprep.subr.mxu0 0.0
    %3385 = vmatpush1.msra.mxu0 0.0
    %3386 = vmatprep.subr.mxu0 0.0
    %3387 = vmatpush1.msra.mxu0 0.0
    %3388 = vmatprep.subr.mxu0 0.0
    %3389 = vmatpush1.msra.mxu0 0.0
    %3390 = vmatprep.subr.mxu0 0.0
    %3391 = vmatpush1.msra.mxu0 0.0
    %3392 = vmatprep.subr.mxu0 0.0
    %3393 = vmatpush1.msra.mxu0 %v3358
    %3394 = vmatprep.subr.mxu0 0.0
    %3395 = vmatpush2.msra.mxu0 0.0
    %3396 = vmatprep.subr.mxu0 0.0
    %3397 = vmatpush2.msra.mxu0 0.0
    %3398 = vmatprep.subr.mxu0 0.0
    %3399 = vmatpush2.msra.mxu0 0.0
    %3400 = vmatprep.subr.mxu0 0.0
    %3401 = vmatpush2.msra.mxu0 0.0
    %3402 = vmatprep.subr.mxu0 0.0
    %3403 = vmatpush2.msra.mxu0 0.0
    %3404 = vmatprep.subr.mxu0 0.0
    %3405 = vmatpush2.msra.mxu0 0.0
    %3406 = vmatprep.subr.mxu0 0.0
    %3407 = vmatpush2.msra.mxu0 0.0
    %3408 = vmatprep.subr.mxu0 0.0
    %3409 = vmatpush2.msra.mxu0 0.0
    %3410 = vmatprep.subr.mxu0 0.0
    %3411 = vmatpush2.msra.mxu0 0.0
    %3412 = vmatprep.subr.mxu0 0.0
    %3413 = vmatpush2.msra.mxu0 0.0
    %3414 = vmatprep.subr.mxu0 0.0
    %3415 = vmatpush2.msra.mxu0 0.0
    %3416 = vmatprep.subr.mxu0 0.0
    %3417 = vmatpush2.msra.mxu0 0.0
    %3418 = vmatprep.subr.mxu0 0.0
    %3419 = vmatpush2.msra.mxu0 0.0
    %3420 = vmatprep.subr.mxu0 0.0
    %3421 = vmatpush2.msra.mxu0 0.0
    %3422 = vmatprep.subr.mxu0 0.0
    %3423 = vmatpush2.msra.mxu0 0.0
    %3424 = vmatprep.subr.mxu0 0.0
    %3425 = vmatpush2.msra.mxu0 0.0
    %3426 = vmatprep.mubr.f32.mxu0 0.0
    %3427 = vmatmul.mubr.f32.gmra.mxu0 %v753
    %v3428 = vpop.f32.mrf.mxu0
    %v3429 = vadd.f32 0.0, %v3428
    %v3430 = vpop.f32.mrf.mxu0
    %3431 = vmatprep.mubr.f32.mxu0 0.0
    %3432 = vmatmul.mubr.f32.gmra.mxu0 %v1050
    %v3433 = vpop.f32.mrf.mxu0
    %v3434 = vadd.f32 0.0, %v3433
    %v3435 = vpop.f32.mrf.mxu0
    %3436 = vmatprep.mubr.f32.mxu0 0.0
    %3437 = vmatmul.mubr.f32.gmra.mxu0 %v1215
    %v3438 = vpop.f32.mrf.mxu0
    %v3439 = vadd.f32 0.0, %v3438
    %v3440 = vpop.f32.mrf.mxu0
    %3441 = vmatprep.mubr.f32.mxu0 0.0
    %3442 = vmatmul.mubr.f32.gmra.mxu0 %v1380
    %v3443 = vpop.f32.mrf.mxu0
    %v3444 = vadd.f32 0.0, %v3443
    %v3445 = vpop.f32.mrf.mxu0
    %3446 = vmatprep.mubr.f32.mxu0 0.0
    %3447 = vmatmul.mubr.f32.gmra.mxu0 %v1545
    %v3448 = vpop.f32.mrf.mxu0
    %v3449 = vadd.f32 0.0, %v3448
    %v3450 = vpop.f32.mrf.mxu0
    %3451 = vmatprep.mubr.f32.mxu0 0.0
    %3452 = vmatmul.mubr.f32.gmra.mxu0 %v1710
    %v3453 = vpop.f32.mrf.mxu0
    %v3454 = vadd.f32 0.0, %v3453
    %v3455 = vpop.f32.mrf.mxu0
    %3456 = vmatprep.mubr.f32.mxu0 0.0
    %3457 = vmatmul.mubr.f32.gmra.mxu0 %v1875
    %v3458 = vpop.f32.mrf.mxu0
    %v3459 = vadd.f32 0.0, %v3458
    %v3460 = vpop.f32.mrf.mxu0
    %3461 = vmatprep.mubr.f32.mxu0 0.0
    %3462 = vmatmul.mubr.f32.gmra.mxu0 %v2040
    %v3463 = vpop.f32.mrf.mxu0
    %v3464 = vadd.f32 0.0, %v3463
    %v3465 = vpop.f32.mrf.mxu0
    %3466 = vmatprep.mubr.f32.mxu0 0.0
    %3467 = vmatmul.mubr.f32.gmra.mxu0 %v2205
    %v3468 = vpop.f32.mrf.mxu0
    %v3469 = vadd.f32 0.0, %v3468
    %v3470 = vpop.f32.mrf.mxu0
    %3471 = vmatprep.mubr.f32.mxu0 0.0
    %3472 = vmatmul.mubr.f32.gmra.mxu0 %v2370
    %v3473 = vpop.f32.mrf.mxu0
    %v3474 = vadd.f32 0.0, %v3473
    %v3475 = vpop.f32.mrf.mxu0
    %3476 = vmatprep.mubr.f32.mxu0 0.0
    %3477 = vmatmul.mubr.f32.gmra.mxu0 %v2535
    %v3478 = vpop.f32.mrf.mxu0
    %v3479 = vadd.f32 0.0, %v3478
    %v3480 = vpop.f32.mrf.mxu0
    %3481 = vmatprep.mubr.f32.mxu0 0.0
    %3482 = vmatmul.mubr.f32.gmra.mxu0 %v2700
    %v3483 = vpop.f32.mrf.mxu0
    %v3484 = vadd.f32 0.0, %v3483
    %v3485 = vpop.f32.mrf.mxu0
    %3486 = vmatprep.mubr.f32.mxu0 0.0
    %3487 = vmatmul.mubr.f32.gmra.mxu0 %v2865
    %v3488 = vpop.f32.mrf.mxu0
    %v3489 = vadd.f32 0.0, %v3488
    %v3490 = vpop.f32.mrf.mxu0
    %3491 = vmatprep.mubr.f32.mxu0 0.0
    %3492 = vmatmul.mubr.f32.gmra.mxu0 %v3030
    %v3493 = vpop.f32.mrf.mxu0
    %v3494 = vadd.f32 0.0, %v3493
    %v3495 = vpop.f32.mrf.mxu0
    %3496 = vmatprep.mubr.f32.mxu0 0.0
    %3497 = vmatmul.mubr.f32.gmra.mxu0 %v3195
    %v3498 = vpop.f32.mrf.mxu0
    %v3499 = vadd.f32 0.0, %v3498
    %v3500 = vpop.f32.mrf.mxu0
    %3501 = vmatprep.mubr.f32.mxu0 0.0
    %3502 = vmatmul.mubr.f32.gmra.mxu0 %v3360
    %v3503 = vpop.f32.mrf.mxu0
    %v3504 = vadd.f32 0.0, %v3503
    %v3505 = vpop.f32.mrf.mxu0
    %3506 = vdwg.mxu0
    %v3507 = vadd.f32 %v3342, %v3429
    %v3508 = vadd.f32 %v3343, %v3434
    %v3509 = vadd.f32 %v3344, %v3439
    %v3510 = vadd.f32 %v3345, %v3444
    %v3511 = vadd.f32 %v3346, %v3449
    %v3512 = vadd.f32 %v3347, %v3454
    %v3513 = vadd.f32 %v3348, %v3459
    %v3514 = vadd.f32 %v3349, %v3464
    %v3515 = vadd.f32 %v3350, %v3469
    %v3516 = vadd.f32 %v3351, %v3474
    %v3517 = vadd.f32 %v3352, %v3479
    %v3518 = vadd.f32 %v3353, %v3484
    %v3519 = vadd.f32 %v3354, %v3489
    %v3520 = vadd.f32 %v3355, %v3494
    %v3521 = vadd.f32 %v3356, %v3499
    %v3522 = vadd.f32 %v3357, %v3504
    %v3523 = vld [vmem:[%s5] sm:$0x1]
    %v3524 = vld [vmem:[%s6] sm:$0x1]
    %vm3525 = vcmask 130048
    %v3526 = vsel %vm3525, %v3507, 0.0
    %v3527 = vsel %vm3525, %v3508, 0.0
    %v3528 = vadd.f32 %v3526, %v3527
    %v3529 = vsel %vm3525, %v3509, 0.0
    %v3530 = vadd.f32 %v3528, %v3529
    %v3531 = vsel %vm3525, %v3510, 0.0
    %v3532 = vadd.f32 %v3530, %v3531
    %v3533 = vsel %vm3525, %v3511, 0.0
    %v3534 = vadd.f32 %v3532, %v3533
    %v3535 = vsel %vm3525, %v3512, 0.0
    %v3536 = vadd.f32 %v3534, %v3535
    %v3537 = vsel %vm3525, %v3513, 0.0
    %v3538 = vadd.f32 %v3536, %v3537
    %v3539 = vsel %vm3525, %v3514, 0.0
    %v3540 = vadd.f32 %v3538, %v3539
    %v3541 = vsel %vm3525, %v3515, 0.0
    %v3542 = vadd.f32 %v3540, %v3541
    %v3543 = vsel %vm3525, %v3516, 0.0
    %v3544 = vadd.f32 %v3542, %v3543
    %v3545 = vsel %vm3525, %v3517, 0.0
    %v3546 = vadd.f32 %v3544, %v3545
    %v3547 = vsel %vm3525, %v3518, 0.0
    %v3548 = vadd.f32 %v3546, %v3547
    %v3549 = vsel %vm3525, %v3519, 0.0
    %v3550 = vadd.f32 %v3548, %v3549
    %v3551 = vsel %vm3525, %v3520, 0.0
    %v3552 = vadd.f32 %v3550, %v3551
    %v3553 = vsel %vm3525, %v3521, 0.0
    %v3554 = vadd.f32 %v3552, %v3553
    %v3555 = vsel %vm3525, %v3522, 0.0
    %v3556 = vadd.f32 %v3554, %v3555
    %v3557 = vrot.slane %v3556, 4
    %v3558 = vadd.f32 %v3556, %v3557
    %v3559 = vrot.slane %v3558, 2
    %v3560 = vadd.f32 %v3558, %v3559
    %v3561 = vrot.slane %v3560, 1
    %v3562 = vadd.f32 %v3560, %v3561
    %v3563 = vmul.f32 %v3562, 0.0078125
    %v3564 = vmul.f32 %v3507, %v3507
    %v3565 = vmul.f32 %v3508, %v3508
    %v3566 = vmul.f32 %v3509, %v3509
    %v3567 = vmul.f32 %v3510, %v3510
    %v3568 = vmul.f32 %v3511, %v3511
    %v3569 = vmul.f32 %v3512, %v3512
    %v3570 = vmul.f32 %v3513, %v3513
    %v3571 = vmul.f32 %v3514, %v3514
    %v3572 = vmul.f32 %v3515, %v3515
    %v3573 = vmul.f32 %v3516, %v3516
    %v3574 = vmul.f32 %v3517, %v3517
    %v3575 = vmul.f32 %v3518, %v3518
    %v3576 = vmul.f32 %v3519, %v3519
    %v3577 = vmul.f32 %v3520, %v3520
    %v3578 = vmul.f32 %v3521, %v3521
    %v3579 = vmul.f32 %v3522, %v3522
    %v3580 = vsel %vm3525, %v3564, 0.0
    %v3581 = vsel %vm3525, %v3565, 0.0
    %v3582 = vadd.f32 %v3580, %v3581
    %v3583 = vsel %vm3525, %v3566, 0.0
    %v3584 = vadd.f32 %v3582, %v3583
    %v3585 = vsel %vm3525, %v3567, 0.0
    %v3586 = vadd.f32 %v3584, %v3585
    %v3587 = vsel %vm3525, %v3568, 0.0
    %v3588 = vadd.f32 %v3586, %v3587
    %v3589 = vsel %vm3525, %v3569, 0.0
    %v3590 = vadd.f32 %v3588, %v3589
    %v3591 = vsel %vm3525, %v3570, 0.0
    %v3592 = vadd.f32 %v3590, %v3591
    %v3593 = vsel %vm3525, %v3571, 0.0
    %v3594 = vadd.f32 %v3592, %v3593
    %v3595 = vsel %vm3525, %v3572, 0.0
    %v3596 = vadd.f32 %v3594, %v3595
    %v3597 = vsel %vm3525, %v3573, 0.0
    %v3598 = vadd.f32 %v3596, %v3597
    %v3599 = vsel %vm3525, %v3574, 0.0
    %v3600 = vadd.f32 %v3598, %v3599
    %v3601 = vsel %vm3525, %v3575, 0.0
    %v3602 = vadd.f32 %v3600, %v3601
    %v3603 = vsel %vm3525, %v3576, 0.0
    %v3604 = vadd.f32 %v3602, %v3603
    %v3605 = vsel %vm3525, %v3577, 0.0
    %v3606 = vadd.f32 %v3604, %v3605
    %v3607 = vsel %vm3525, %v3578, 0.0
    %v3608 = vadd.f32 %v3606, %v3607
    %v3609 = vsel %vm3525, %v3579, 0.0
    %v3610 = vadd.f32 %v3608, %v3609
    %v3611 = vrot.slane %v3610, 4
    %v3612 = vadd.f32 %v3610, %v3611
    %v3613 = vrot.slane %v3612, 2
    %v3614 = vadd.f32 %v3612, %v3613
    %v3615 = vrot.slane %v3614, 1
    %v3616 = vadd.f32 %v3614, %v3615
    %v3617 = vmul.f32 %v3616, 0.0078125
    %v3618 = vmul.f32 %v3563, %v3563
    %v3619 = vsub.f32 %v3617, %v3618
    %v3620 = vmax.f32 %v3619, 0.0
    %v3621 = vadd.f32 %v3620, 1e-05
    %v3622 = vrsqrt.pop %v3621
    %v3623 = vmul.f32 %v3523, %v3622
    %v3624 = vmul.f32 %v3563, %v3623
    %v3625 = vsub.f32 %v3524, %v3624
    %v3627 = vlaneseq
    %v3628 = vshrl.u32 %v3627, 7
    %v3629 = vsub.s32 0, %v3628
    %v3630 = vrot.slane %v3623, %v3629
    %v3632 = vmul.f32 %v3507, %v3630
    %v3633 = vmul.f32 %v3508, %v3630
    %v3634 = vmul.f32 %v3509, %v3630
    %v3635 = vmul.f32 %v3510, %v3630
    %v3636 = vmul.f32 %v3511, %v3630
    %v3637 = vmul.f32 %v3512, %v3630
    %v3638 = vmul.f32 %v3513, %v3630
    %v3639 = vmul.f32 %v3514, %v3630
    %v3640 = vmul.f32 %v3515, %v3630
    %v3641 = vmul.f32 %v3516, %v3630
    %v3642 = vmul.f32 %v3517, %v3630
    %v3643 = vmul.f32 %v3518, %v3630
    %v3644 = vmul.f32 %v3519, %v3630
    %v3645 = vmul.f32 %v3520, %v3630
    %v3646 = vmul.f32 %v3521, %v3630
    %v3647 = vmul.f32 %v3522, %v3630
    %v3649 = vlaneseq
    %v3650 = vshrl.u32 %v3649, 7
    %v3651 = vsub.s32 0, %v3650
    %v3652 = vrot.slane %v3625, %v3651
    %v3654 = vadd.f32 %v3632, %v3652
    %v3655 = vadd.f32 %v3633, %v3652
    %v3656 = vadd.f32 %v3634, %v3652
    %v3657 = vadd.f32 %v3635, %v3652
    %v3658 = vadd.f32 %v3636, %v3652
    %v3659 = vadd.f32 %v3637, %v3652
    %v3660 = vadd.f32 %v3638, %v3652
    %v3661 = vadd.f32 %v3639, %v3652
    %v3662 = vadd.f32 %v3640, %v3652
    %v3663 = vadd.f32 %v3641, %v3652
    %v3664 = vadd.f32 %v3642, %v3652
    %v3665 = vadd.f32 %v3643, %v3652
    %v3666 = vadd.f32 %v3644, %v3652
    %v3667 = vadd.f32 %v3645, %v3652
    %v3668 = vadd.f32 %v3646, %v3652
    %v3669 = vadd.f32 %v3647, %v3652
    %v3670 = vmax.f32 %v3654, 0.0
    %v3671 = vmax.f32 %v3655, 0.0
    %v3672 = vmax.f32 %v3656, 0.0
    %v3673 = vmax.f32 %v3657, 0.0
    %v3674 = vmax.f32 %v3658, 0.0
    %v3675 = vmax.f32 %v3659, 0.0
    %v3676 = vmax.f32 %v3660, 0.0
    %v3677 = vmax.f32 %v3661, 0.0
    %v3678 = vmax.f32 %v3662, 0.0
    %v3679 = vmax.f32 %v3663, 0.0
    %v3680 = vmax.f32 %v3664, 0.0
    %v3681 = vmax.f32 %v3665, 0.0
    %v3682 = vmax.f32 %v3666, 0.0
    %v3683 = vmax.f32 %v3667, 0.0
    %v3684 = vmax.f32 %v3668, 0.0
    %v3685 = vmax.f32 %v3669, 0.0
    %v3686 = vld [vmem:[%s7] sm:$0xff]
    %v3687 = vld [vmem:[%s7 + $0x8] sm:$0xff]
    %v3688 = vld [vmem:[%s7 + $0x10] sm:$0xff]
    %v3689 = vld [vmem:[%s7 + $0x18] sm:$0xff]
    %v3691 = vsel %vm3525, %v3671, 0
    %v3694 = vsel %vm3525, %v3672, 0
    %v3697 = vsel %vm3525, %v3673, 0
    %v3700 = vsel %vm3525, %v3674, 0
    %v3703 = vsel %vm3525, %v3675, 0
    %v3706 = vsel %vm3525, %v3676, 0
    %v3709 = vsel %vm3525, %v3677, 0
    %v3712 = vsel %vm3525, %v3678, 0
    %3714 = vmatprep.subr.mxu0 0.0
    %3715 = vmatpush1.msra.mxu0 0.0
    %3716 = vmatprep.subr.mxu0 0.0
    %3717 = vmatpush1.msra.mxu0 0.0
    %3718 = vmatprep.subr.mxu0 0.0
    %3719 = vmatpush1.msra.mxu0 0.0
    %3720 = vmatprep.subr.mxu0 0.0
    %3721 = vmatpush1.msra.mxu0 0.0
    %3722 = vmatprep.subr.mxu0 0.0
    %3723 = vmatpush1.msra.mxu0 0.0
    %3724 = vmatprep.subr.mxu0 0.0
    %3725 = vmatpush1.msra.mxu0 0.0
    %3726 = vmatprep.subr.mxu0 0.0
    %3727 = vmatpush1.msra.mxu0 0.0
    %3728 = vmatprep.subr.mxu0 0.0
    %3729 = vmatpush1.msra.mxu0 0.0
    %3730 = vmatprep.subr.mxu0 0.0
    %3731 = vmatpush1.msra.mxu0 0.0
    %3732 = vmatprep.subr.mxu0 0.0
    %3733 = vmatpush1.msra.mxu0 0.0
    %3734 = vmatprep.subr.mxu0 0.0
    %3735 = vmatpush1.msra.mxu0 0.0
    %3736 = vmatprep.subr.mxu0 0.0
    %3737 = vmatpush1.msra.mxu0 0.0
    %3738 = vmatprep.subr.mxu0 0.0
    %3739 = vmatpush1.msra.mxu0 0.0
    %3740 = vmatprep.subr.mxu0 0.0
    %3741 = vmatpush1.msra.mxu0 0.0
    %3742 = vmatprep.subr.mxu0 0.0
    %3743 = vmatpush1.msra.mxu0 %v3689
    %3744 = vmatprep.subr.mxu0 0.0
    %3745 = vmatpush1.msra.mxu0 %v3688
    %3746 = vmatprep.subr.mxu0 0.0
    %3747 = vmatpush2.msra.mxu0 0.0
    %3748 = vmatprep.subr.mxu0 0.0
    %3749 = vmatpush2.msra.mxu0 0.0
    %3750 = vmatprep.subr.mxu0 0.0
    %3751 = vmatpush2.msra.mxu0 0.0
    %3752 = vmatprep.subr.mxu0 0.0
    %3753 = vmatpush2.msra.mxu0 0.0
    %3754 = vmatprep.subr.mxu0 0.0
    %3755 = vmatpush2.msra.mxu0 0.0
    %3756 = vmatprep.subr.mxu0 0.0
    %3757 = vmatpush2.msra.mxu0 0.0
    %3758 = vmatprep.subr.mxu0 0.0
    %3759 = vmatpush2.msra.mxu0 0.0
    %3760 = vmatprep.subr.mxu0 0.0
    %3761 = vmatpush2.msra.mxu0 0.0
    %3762 = vmatprep.subr.mxu0 0.0
    %3763 = vmatpush2.msra.mxu0 0.0
    %3764 = vmatprep.subr.mxu0 0.0
    %3765 = vmatpush2.msra.mxu0 0.0
    %3766 = vmatprep.subr.mxu0 0.0
    %3767 = vmatpush2.msra.mxu0 0.0
    %3768 = vmatprep.subr.mxu0 0.0
    %3769 = vmatpush2.msra.mxu0 0.0
    %3770 = vmatprep.subr.mxu0 0.0
    %3771 = vmatpush2.msra.mxu0 0.0
    %3772 = vmatprep.subr.mxu0 0.0
    %3773 = vmatpush2.msra.mxu0 0.0
    %3774 = vmatprep.subr.mxu0 0.0
    %3775 = vmatpush2.msra.mxu0 0.0
    %3776 = vmatprep.subr.mxu0 0.0
    %3777 = vmatpush2.msra.mxu0 0.0
    %3778 = vmatprep.mubr.f32.mxu0 0.0
    %3779 = vmatmul.mubr.f32.gmra.mxu0 %v3691
    %v3780 = vpop.f32.mrf.mxu0
    %v3781 = vadd.f32 0.0, %v3780
    %v3782 = vpop.f32.mrf.mxu0
    %3783 = vmatprep.mubr.f32.mxu0 0.0
    %3784 = vmatmul.mubr.f32.gmra.mxu0 %v3694
    %v3785 = vpop.f32.mrf.mxu0
    %v3786 = vadd.f32 0.0, %v3785
    %v3787 = vpop.f32.mrf.mxu0
    %3788 = vmatprep.mubr.f32.mxu0 0.0
    %3789 = vmatmul.mubr.f32.gmra.mxu0 %v3697
    %v3790 = vpop.f32.mrf.mxu0
    %v3791 = vadd.f32 0.0, %v3790
    %v3792 = vpop.f32.mrf.mxu0
    %3793 = vmatprep.mubr.f32.mxu0 0.0
    %3794 = vmatmul.mubr.f32.gmra.mxu0 %v3700
    %v3795 = vpop.f32.mrf.mxu0
    %v3796 = vadd.f32 0.0, %v3795
    %v3797 = vpop.f32.mrf.mxu0
    %3798 = vmatprep.mubr.f32.mxu0 0.0
    %3799 = vmatmul.mubr.f32.gmra.mxu0 %v3703
    %v3800 = vpop.f32.mrf.mxu0
    %v3801 = vadd.f32 0.0, %v3800
    %v3802 = vpop.f32.mrf.mxu0
    %3803 = vmatprep.mubr.f32.mxu0 0.0
    %3804 = vmatmul.mubr.f32.gmra.mxu0 %v3706
    %v3805 = vpop.f32.mrf.mxu0
    %v3806 = vadd.f32 0.0, %v3805
    %v3807 = vpop.f32.mrf.mxu0
    %3808 = vmatprep.mubr.f32.mxu0 0.0
    %3809 = vmatmul.mubr.f32.gmra.mxu0 %v3709
    %v3810 = vpop.f32.mrf.mxu0
    %v3811 = vadd.f32 0.0, %v3810
    %v3812 = vpop.f32.mrf.mxu0
    %3813 = vmatprep.mubr.f32.mxu0 0.0
    %3814 = vmatmul.mubr.f32.gmra.mxu0 %v3712
    %v3815 = vpop.f32.mrf.mxu0
    %v3816 = vadd.f32 0.0, %v3815
    %v3817 = vpop.f32.mrf.mxu0
    %3818 = vdwg.mxu0
    %v3820 = vsel %vm3525, %v3670, 0
    %3822 = vmatprep.subr.mxu0 0.0
    %3823 = vmatpush1.msra.mxu0 0.0
    %3824 = vmatprep.subr.mxu0 0.0
    %3825 = vmatpush1.msra.mxu0 0.0
    %3826 = vmatprep.subr.mxu0 0.0
    %3827 = vmatpush1.msra.mxu0 0.0
    %3828 = vmatprep.subr.mxu0 0.0
    %3829 = vmatpush1.msra.mxu0 0.0
    %3830 = vmatprep.subr.mxu0 0.0
    %3831 = vmatpush1.msra.mxu0 0.0
    %3832 = vmatprep.subr.mxu0 0.0
    %3833 = vmatpush1.msra.mxu0 0.0
    %3834 = vmatprep.subr.mxu0 0.0
    %3835 = vmatpush1.msra.mxu0 0.0
    %3836 = vmatprep.subr.mxu0 0.0
    %3837 = vmatpush1.msra.mxu0 0.0
    %3838 = vmatprep.subr.mxu0 0.0
    %3839 = vmatpush1.msra.mxu0 0.0
    %3840 = vmatprep.subr.mxu0 0.0
    %3841 = vmatpush1.msra.mxu0 0.0
    %3842 = vmatprep.subr.mxu0 0.0
    %3843 = vmatpush1.msra.mxu0 0.0
    %3844 = vmatprep.subr.mxu0 0.0
    %3845 = vmatpush1.msra.mxu0 0.0
    %3846 = vmatprep.subr.mxu0 0.0
    %3847 = vmatpush1.msra.mxu0 0.0
    %3848 = vmatprep.subr.mxu0 0.0
    %3849 = vmatpush1.msra.mxu0 0.0
    %3850 = vmatprep.subr.mxu0 0.0
    %3851 = vmatpush1.msra.mxu0 %v3687
    %3852 = vmatprep.subr.mxu0 0.0
    %3853 = vmatpush1.msra.mxu0 %v3686
    %3854 = vmatprep.subr.mxu0 0.0
    %3855 = vmatpush2.msra.mxu0 0.0
    %3856 = vmatprep.subr.mxu0 0.0
    %3857 = vmatpush2.msra.mxu0 0.0
    %3858 = vmatprep.subr.mxu0 0.0
    %3859 = vmatpush2.msra.mxu0 0.0
    %3860 = vmatprep.subr.mxu0 0.0
    %3861 = vmatpush2.msra.mxu0 0.0
    %3862 = vmatprep.subr.mxu0 0.0
    %3863 = vmatpush2.msra.mxu0 0.0
    %3864 = vmatprep.subr.mxu0 0.0
    %3865 = vmatpush2.msra.mxu0 0.0
    %3866 = vmatprep.subr.mxu0 0.0
    %3867 = vmatpush2.msra.mxu0 0.0
    %3868 = vmatprep.subr.mxu0 0.0
    %3869 = vmatpush2.msra.mxu0 0.0
    %3870 = vmatprep.subr.mxu0 0.0
    %3871 = vmatpush2.msra.mxu0 0.0
    %3872 = vmatprep.subr.mxu0 0.0
    %3873 = vmatpush2.msra.mxu0 0.0
    %3874 = vmatprep.subr.mxu0 0.0
    %3875 = vmatpush2.msra.mxu0 0.0
    %3876 = vmatprep.subr.mxu0 0.0
    %3877 = vmatpush2.msra.mxu0 0.0
    %3878 = vmatprep.subr.mxu0 0.0
    %3879 = vmatpush2.msra.mxu0 0.0
    %3880 = vmatprep.subr.mxu0 0.0
    %3881 = vmatpush2.msra.mxu0 0.0
    %3882 = vmatprep.subr.mxu0 0.0
    %3883 = vmatpush2.msra.mxu0 0.0
    %3884 = vmatprep.subr.mxu0 0.0
    %3885 = vmatpush2.msra.mxu0 0.0
    %3886 = vmatprep.mubr.f32.mxu0 0.0
    %3887 = vmatmul.mubr.f32.gmra.mxu0 %v3820
    %v3888 = vpop.f32.mrf.mxu0
    %v3889 = vadd.f32 %v3781, %v3888
    %v3890 = vpop.f32.mrf.mxu0
    %3891 = vmatprep.mubr.f32.mxu0 0.0
    %3892 = vmatmul.mubr.f32.gmra.mxu0 %v3691
    %v3893 = vpop.f32.mrf.mxu0
    %v3894 = vadd.f32 %v3786, %v3893
    %v3895 = vpop.f32.mrf.mxu0
    %3896 = vmatprep.mubr.f32.mxu0 0.0
    %3897 = vmatmul.mubr.f32.gmra.mxu0 %v3694
    %v3898 = vpop.f32.mrf.mxu0
    %v3899 = vadd.f32 %v3791, %v3898
    %v3900 = vpop.f32.mrf.mxu0
    %3901 = vmatprep.mubr.f32.mxu0 0.0
    %3902 = vmatmul.mubr.f32.gmra.mxu0 %v3697
    %v3903 = vpop.f32.mrf.mxu0
    %v3904 = vadd.f32 %v3796, %v3903
    %v3905 = vpop.f32.mrf.mxu0
    %3906 = vmatprep.mubr.f32.mxu0 0.0
    %3907 = vmatmul.mubr.f32.gmra.mxu0 %v3700
    %v3908 = vpop.f32.mrf.mxu0
    %v3909 = vadd.f32 %v3801, %v3908
    %v3910 = vpop.f32.mrf.mxu0
    %3911 = vmatprep.mubr.f32.mxu0 0.0
    %3912 = vmatmul.mubr.f32.gmra.mxu0 %v3703
    %v3913 = vpop.f32.mrf.mxu0
    %v3914 = vadd.f32 %v3806, %v3913
    %v3915 = vpop.f32.mrf.mxu0
    %3916 = vmatprep.mubr.f32.mxu0 0.0
    %3917 = vmatmul.mubr.f32.gmra.mxu0 %v3706
    %v3918 = vpop.f32.mrf.mxu0
    %v3919 = vadd.f32 %v3811, %v3918
    %v3920 = vpop.f32.mrf.mxu0
    %3921 = vmatprep.mubr.f32.mxu0 0.0
    %3922 = vmatmul.mubr.f32.gmra.mxu0 %v3709
    %v3923 = vpop.f32.mrf.mxu0
    %v3924 = vadd.f32 %v3816, %v3923
    %v3925 = vpop.f32.mrf.mxu0
    %3926 = vdwg.mxu0
    %v3927 = vld [vmem:[%s7 + $0x20] sm:$0xff]
    %v3928 = vld [vmem:[%s7 + $0x28] sm:$0xff]
    %v3930 = vsel %vm3525, %v3679, 0
    %3932 = vmatprep.subr.mxu0 0.0
    %3933 = vmatpush1.msra.mxu0 0.0
    %3934 = vmatprep.subr.mxu0 0.0
    %3935 = vmatpush1.msra.mxu0 0.0
    %3936 = vmatprep.subr.mxu0 0.0
    %3937 = vmatpush1.msra.mxu0 0.0
    %3938 = vmatprep.subr.mxu0 0.0
    %3939 = vmatpush1.msra.mxu0 0.0
    %3940 = vmatprep.subr.mxu0 0.0
    %3941 = vmatpush1.msra.mxu0 0.0
    %3942 = vmatprep.subr.mxu0 0.0
    %3943 = vmatpush1.msra.mxu0 0.0
    %3944 = vmatprep.subr.mxu0 0.0
    %3945 = vmatpush1.msra.mxu0 0.0
    %3946 = vmatprep.subr.mxu0 0.0
    %3947 = vmatpush1.msra.mxu0 0.0
    %3948 = vmatprep.subr.mxu0 0.0
    %3949 = vmatpush1.msra.mxu0 0.0
    %3950 = vmatprep.subr.mxu0 0.0
    %3951 = vmatpush1.msra.mxu0 0.0
    %3952 = vmatprep.subr.mxu0 0.0
    %3953 = vmatpush1.msra.mxu0 0.0
    %3954 = vmatprep.subr.mxu0 0.0
    %3955 = vmatpush1.msra.mxu0 0.0
    %3956 = vmatprep.subr.mxu0 0.0
    %3957 = vmatpush1.msra.mxu0 0.0
    %3958 = vmatprep.subr.mxu0 0.0
    %3959 = vmatpush1.msra.mxu0 0.0
    %3960 = vmatprep.subr.mxu0 0.0
    %3961 = vmatpush1.msra.mxu0 %v3928
    %3962 = vmatprep.subr.mxu0 0.0
    %3963 = vmatpush1.msra.mxu0 %v3927
    %3964 = vmatprep.subr.mxu0 0.0
    %3965 = vmatpush2.msra.mxu0 0.0
    %3966 = vmatprep.subr.mxu0 0.0
    %3967 = vmatpush2.msra.mxu0 0.0
    %3968 = vmatprep.subr.mxu0 0.0
    %3969 = vmatpush2.msra.mxu0 0.0
    %3970 = vmatprep.subr.mxu0 0.0
    %3971 = vmatpush2.msra.mxu0 0.0
    %3972 = vmatprep.subr.mxu0 0.0
    %3973 = vmatpush2.msra.mxu0 0.0
    %3974 = vmatprep.subr.mxu0 0.0
    %3975 = vmatpush2.msra.mxu0 0.0
    %3976 = vmatprep.subr.mxu0 0.0
    %3977 = vmatpush2.msra.mxu0 0.0
    %3978 = vmatprep.subr.mxu0 0.0
    %3979 = vmatpush2.msra.mxu0 0.0
    %3980 = vmatprep.subr.mxu0 0.0
    %3981 = vmatpush2.msra.mxu0 0.0
    %3982 = vmatprep.subr.mxu0 0.0
    %3983 = vmatpush2.msra.mxu0 0.0
    %3984 = vmatprep.subr.mxu0 0.0
    %3985 = vmatpush2.msra.mxu0 0.0
    %3986 = vmatprep.subr.mxu0 0.0
    %3987 = vmatpush2.msra.mxu0 0.0
    %3988 = vmatprep.subr.mxu0 0.0
    %3989 = vmatpush2.msra.mxu0 0.0
    %3990 = vmatprep.subr.mxu0 0.0
    %3991 = vmatpush2.msra.mxu0 0.0
    %3992 = vmatprep.subr.mxu0 0.0
    %3993 = vmatpush2.msra.mxu0 0.0
    %3994 = vmatprep.subr.mxu0 0.0
    %3995 = vmatpush2.msra.mxu0 0.0
    %3996 = vmatprep.mubr.f32.mxu0 0.0
    %3997 = vmatmul.mubr.f32.gmra.mxu0 %v3694
    %v3998 = vpop.f32.mrf.mxu0
    %v3999 = vadd.f32 0.0, %v3998
    %v4000 = vpop.f32.mrf.mxu0
    %4001 = vmatprep.mubr.f32.mxu0 0.0
    %4002 = vmatmul.mubr.f32.gmra.mxu0 %v3697
    %v4003 = vpop.f32.mrf.mxu0
    %v4004 = vadd.f32 0.0, %v4003
    %v4005 = vpop.f32.mrf.mxu0
    %4006 = vmatprep.mubr.f32.mxu0 0.0
    %4007 = vmatmul.mubr.f32.gmra.mxu0 %v3700
    %v4008 = vpop.f32.mrf.mxu0
    %v4009 = vadd.f32 0.0, %v4008
    %v4010 = vpop.f32.mrf.mxu0
    %4011 = vmatprep.mubr.f32.mxu0 0.0
    %4012 = vmatmul.mubr.f32.gmra.mxu0 %v3703
    %v4013 = vpop.f32.mrf.mxu0
    %v4014 = vadd.f32 0.0, %v4013
    %v4015 = vpop.f32.mrf.mxu0
    %4016 = vmatprep.mubr.f32.mxu0 0.0
    %4017 = vmatmul.mubr.f32.gmra.mxu0 %v3706
    %v4018 = vpop.f32.mrf.mxu0
    %v4019 = vadd.f32 0.0, %v4018
    %v4020 = vpop.f32.mrf.mxu0
    %4021 = vmatprep.mubr.f32.mxu0 0.0
    %4022 = vmatmul.mubr.f32.gmra.mxu0 %v3709
    %v4023 = vpop.f32.mrf.mxu0
    %v4024 = vadd.f32 0.0, %v4023
    %v4025 = vpop.f32.mrf.mxu0
    %4026 = vmatprep.mubr.f32.mxu0 0.0
    %4027 = vmatmul.mubr.f32.gmra.mxu0 %v3712
    %v4028 = vpop.f32.mrf.mxu0
    %v4029 = vadd.f32 0.0, %v4028
    %v4030 = vpop.f32.mrf.mxu0
    %4031 = vmatprep.mubr.f32.mxu0 0.0
    %4032 = vmatmul.mubr.f32.gmra.mxu0 %v3930
    %v4033 = vpop.f32.mrf.mxu0
    %v4034 = vadd.f32 0.0, %v4033
    %v4035 = vpop.f32.mrf.mxu0
    %4036 = vdwg.mxu0
    %v4037 = vadd.f32 %v3889, %v3999
    %v4038 = vadd.f32 %v3894, %v4004
    %v4039 = vadd.f32 %v3899, %v4009
    %v4040 = vadd.f32 %v3904, %v4014
    %v4041 = vadd.f32 %v3909, %v4019
    %v4042 = vadd.f32 %v3914, %v4024
    %v4043 = vadd.f32 %v3919, %v4029
    %v4044 = vadd.f32 %v3924, %v4034
    %v4045 = vld [vmem:[%s7 + $0x30] sm:$0xff]
    %v4046 = vld [vmem:[%s7 + $0x38] sm:$0xff]
    %v4048 = vsel %vm3525, %v3680, 0
    %4050 = vmatprep.subr.mxu0 0.0
    %4051 = vmatpush1.msra.mxu0 0.0
    %4052 = vmatprep.subr.mxu0 0.0
    %4053 = vmatpush1.msra.mxu0 0.0
    %4054 = vmatprep.subr.mxu0 0.0
    %4055 = vmatpush1.msra.mxu0 0.0
    %4056 = vmatprep.subr.mxu0 0.0
    %4057 = vmatpush1.msra.mxu0 0.0
    %4058 = vmatprep.subr.mxu0 0.0
    %4059 = vmatpush1.msra.mxu0 0.0
    %4060 = vmatprep.subr.mxu0 0.0
    %4061 = vmatpush1.msra.mxu0 0.0
    %4062 = vmatprep.subr.mxu0 0.0
    %4063 = vmatpush1.msra.mxu0 0.0
    %4064 = vmatprep.subr.mxu0 0.0
    %4065 = vmatpush1.msra.mxu0 0.0
    %4066 = vmatprep.subr.mxu0 0.0
    %4067 = vmatpush1.msra.mxu0 0.0
    %4068 = vmatprep.subr.mxu0 0.0
    %4069 = vmatpush1.msra.mxu0 0.0
    %4070 = vmatprep.subr.mxu0 0.0
    %4071 = vmatpush1.msra.mxu0 0.0
    %4072 = vmatprep.subr.mxu0 0.0
    %4073 = vmatpush1.msra.mxu0 0.0
    %4074 = vmatprep.subr.mxu0 0.0
    %4075 = vmatpush1.msra.mxu0 0.0
    %4076 = vmatprep.subr.mxu0 0.0
    %4077 = vmatpush1.msra.mxu0 0.0
    %4078 = vmatprep.subr.mxu0 0.0
    %4079 = vmatpush1.msra.mxu0 %v4046
    %4080 = vmatprep.subr.mxu0 0.0
    %4081 = vmatpush1.msra.mxu0 %v4045
    %4082 = vmatprep.subr.mxu0 0.0
    %4083 = vmatpush2.msra.mxu0 0.0
    %4084 = vmatprep.subr.mxu0 0.0
    %4085 = vmatpush2.msra.mxu0 0.0
    %4086 = vmatprep.subr.mxu0 0.0
    %4087 = vmatpush2.msra.mxu0 0.0
    %4088 = vmatprep.subr.mxu0 0.0
    %4089 = vmatpush2.msra.mxu0 0.0
    %4090 = vmatprep.subr.mxu0 0.0
    %4091 = vmatpush2.msra.mxu0 0.0
    %4092 = vmatprep.subr.mxu0 0.0
    %4093 = vmatpush2.msra.mxu0 0.0
    %4094 = vmatprep.subr.mxu0 0.0
    %4095 = vmatpush2.msra.mxu0 0.0
    %4096 = vmatprep.subr.mxu0 0.0
    %4097 = vmatpush2.msra.mxu0 0.0
    %4098 = vmatprep.subr.mxu0 0.0
    %4099 = vmatpush2.msra.mxu0 0.0
    %4100 = vmatprep.subr.mxu0 0.0
    %4101 = vmatpush2.msra.mxu0 0.0
    %4102 = vmatprep.subr.mxu0 0.0
    %4103 = vmatpush2.msra.mxu0 0.0
    %4104 = vmatprep.subr.mxu0 0.0
    %4105 = vmatpush2.msra.mxu0 0.0
    %4106 = vmatprep.subr.mxu0 0.0
    %4107 = vmatpush2.msra.mxu0 0.0
    %4108 = vmatprep.subr.mxu0 0.0
    %4109 = vmatpush2.msra.mxu0 0.0
    %4110 = vmatprep.subr.mxu0 0.0
    %4111 = vmatpush2.msra.mxu0 0.0
    %4112 = vmatprep.subr.mxu0 0.0
    %4113 = vmatpush2.msra.mxu0 0.0
    %4114 = vmatprep.mubr.f32.mxu0 0.0
    %4115 = vmatmul.mubr.f32.gmra.mxu0 %v3697
    %v4116 = vpop.f32.mrf.mxu0
    %v4117 = vadd.f32 0.0, %v4116
    %v4118 = vpop.f32.mrf.mxu0
    %4119 = vmatprep.mubr.f32.mxu0 0.0
    %4120 = vmatmul.mubr.f32.gmra.mxu0 %v3700
    %v4121 = vpop.f32.mrf.mxu0
    %v4122 = vadd.f32 0.0, %v4121
    %v4123 = vpop.f32.mrf.mxu0
    %4124 = vmatprep.mubr.f32.mxu0 0.0
    %4125 = vmatmul.mubr.f32.gmra.mxu0 %v3703
    %v4126 = vpop.f32.mrf.mxu0
    %v4127 = vadd.f32 0.0, %v4126
    %v4128 = vpop.f32.mrf.mxu0
    %4129 = vmatprep.mubr.f32.mxu0 0.0
    %4130 = vmatmul.mubr.f32.gmra.mxu0 %v3706
    %v4131 = vpop.f32.mrf.mxu0
    %v4132 = vadd.f32 0.0, %v4131
    %v4133 = vpop.f32.mrf.mxu0
    %4134 = vmatprep.mubr.f32.mxu0 0.0
    %4135 = vmatmul.mubr.f32.gmra.mxu0 %v3709
    %v4136 = vpop.f32.mrf.mxu0
    %v4137 = vadd.f32 0.0, %v4136
    %v4138 = vpop.f32.mrf.mxu0
    %4139 = vmatprep.mubr.f32.mxu0 0.0
    %4140 = vmatmul.mubr.f32.gmra.mxu0 %v3712
    %v4141 = vpop.f32.mrf.mxu0
    %v4142 = vadd.f32 0.0, %v4141
    %v4143 = vpop.f32.mrf.mxu0
    %4144 = vmatprep.mubr.f32.mxu0 0.0
    %4145 = vmatmul.mubr.f32.gmra.mxu0 %v3930
    %v4146 = vpop.f32.mrf.mxu0
    %v4147 = vadd.f32 0.0, %v4146
    %v4148 = vpop.f32.mrf.mxu0
    %4149 = vmatprep.mubr.f32.mxu0 0.0
    %4150 = vmatmul.mubr.f32.gmra.mxu0 %v4048
    %v4151 = vpop.f32.mrf.mxu0
    %v4152 = vadd.f32 0.0, %v4151
    %v4153 = vpop.f32.mrf.mxu0
    %4154 = vdwg.mxu0
    %v4155 = vadd.f32 %v4037, %v4117
    %v4156 = vadd.f32 %v4038, %v4122
    %v4157 = vadd.f32 %v4039, %v4127
    %v4158 = vadd.f32 %v4040, %v4132
    %v4159 = vadd.f32 %v4041, %v4137
    %v4160 = vadd.f32 %v4042, %v4142
    %v4161 = vadd.f32 %v4043, %v4147
    %v4162 = vadd.f32 %v4044, %v4152
    %v4163 = vld [vmem:[%s7 + $0x40] sm:$0xff]
    %v4164 = vld [vmem:[%s7 + $0x48] sm:$0xff]
    %v4166 = vsel %vm3525, %v3681, 0
    %4168 = vmatprep.subr.mxu0 0.0
    %4169 = vmatpush1.msra.mxu0 0.0
    %4170 = vmatprep.subr.mxu0 0.0
    %4171 = vmatpush1.msra.mxu0 0.0
    %4172 = vmatprep.subr.mxu0 0.0
    %4173 = vmatpush1.msra.mxu0 0.0
    %4174 = vmatprep.subr.mxu0 0.0
    %4175 = vmatpush1.msra.mxu0 0.0
    %4176 = vmatprep.subr.mxu0 0.0
    %4177 = vmatpush1.msra.mxu0 0.0
    %4178 = vmatprep.subr.mxu0 0.0
    %4179 = vmatpush1.msra.mxu0 0.0
    %4180 = vmatprep.subr.mxu0 0.0
    %4181 = vmatpush1.msra.mxu0 0.0
    %4182 = vmatprep.subr.mxu0 0.0
    %4183 = vmatpush1.msra.mxu0 0.0
    %4184 = vmatprep.subr.mxu0 0.0
    %4185 = vmatpush1.msra.mxu0 0.0
    %4186 = vmatprep.subr.mxu0 0.0
    %4187 = vmatpush1.msra.mxu0 0.0
    %4188 = vmatprep.subr.mxu0 0.0
    %4189 = vmatpush1.msra.mxu0 0.0
    %4190 = vmatprep.subr.mxu0 0.0
    %4191 = vmatpush1.msra.mxu0 0.0
    %4192 = vmatprep.subr.mxu0 0.0
    %4193 = vmatpush1.msra.mxu0 0.0
    %4194 = vmatprep.subr.mxu0 0.0
    %4195 = vmatpush1.msra.mxu0 0.0
    %4196 = vmatprep.subr.mxu0 0.0
    %4197 = vmatpush1.msra.mxu0 %v4164
    %4198 = vmatprep.subr.mxu0 0.0
    %4199 = vmatpush1.msra.mxu0 %v4163
    %4200 = vmatprep.subr.mxu0 0.0
    %4201 = vmatpush2.msra.mxu0 0.0
    %4202 = vmatprep.subr.mxu0 0.0
    %4203 = vmatpush2.msra.mxu0 0.0
    %4204 = vmatprep.subr.mxu0 0.0
    %4205 = vmatpush2.msra.mxu0 0.0
    %4206 = vmatprep.subr.mxu0 0.0
    %4207 = vmatpush2.msra.mxu0 0.0
    %4208 = vmatprep.subr.mxu0 0.0
    %4209 = vmatpush2.msra.mxu0 0.0
    %4210 = vmatprep.subr.mxu0 0.0
    %4211 = vmatpush2.msra.mxu0 0.0
    %4212 = vmatprep.subr.mxu0 0.0
    %4213 = vmatpush2.msra.mxu0 0.0
    %4214 = vmatprep.subr.mxu0 0.0
    %4215 = vmatpush2.msra.mxu0 0.0
    %4216 = vmatprep.subr.mxu0 0.0
    %4217 = vmatpush2.msra.mxu0 0.0
    %4218 = vmatprep.subr.mxu0 0.0
    %4219 = vmatpush2.msra.mxu0 0.0
    %4220 = vmatprep.subr.mxu0 0.0
    %4221 = vmatpush2.msra.mxu0 0.0
    %4222 = vmatprep.subr.mxu0 0.0
    %4223 = vmatpush2.msra.mxu0 0.0
    %4224 = vmatprep.subr.mxu0 0.0
    %4225 = vmatpush2.msra.mxu0 0.0
    %4226 = vmatprep.subr.mxu0 0.0
    %4227 = vmatpush2.msra.mxu0 0.0
    %4228 = vmatprep.subr.mxu0 0.0
    %4229 = vmatpush2.msra.mxu0 0.0
    %4230 = vmatprep.subr.mxu0 0.0
    %4231 = vmatpush2.msra.mxu0 0.0
    %4232 = vmatprep.mubr.f32.mxu0 0.0
    %4233 = vmatmul.mubr.f32.gmra.mxu0 %v3700
    %v4234 = vpop.f32.mrf.mxu0
    %v4235 = vadd.f32 0.0, %v4234
    %v4236 = vpop.f32.mrf.mxu0
    %4237 = vmatprep.mubr.f32.mxu0 0.0
    %4238 = vmatmul.mubr.f32.gmra.mxu0 %v3703
    %v4239 = vpop.f32.mrf.mxu0
    %v4240 = vadd.f32 0.0, %v4239
    %v4241 = vpop.f32.mrf.mxu0
    %4242 = vmatprep.mubr.f32.mxu0 0.0
    %4243 = vmatmul.mubr.f32.gmra.mxu0 %v3706
    %v4244 = vpop.f32.mrf.mxu0
    %v4245 = vadd.f32 0.0, %v4244
    %v4246 = vpop.f32.mrf.mxu0
    %4247 = vmatprep.mubr.f32.mxu0 0.0
    %4248 = vmatmul.mubr.f32.gmra.mxu0 %v3709
    %v4249 = vpop.f32.mrf.mxu0
    %v4250 = vadd.f32 0.0, %v4249
    %v4251 = vpop.f32.mrf.mxu0
    %4252 = vmatprep.mubr.f32.mxu0 0.0
    %4253 = vmatmul.mubr.f32.gmra.mxu0 %v3712
    %v4254 = vpop.f32.mrf.mxu0
    %v4255 = vadd.f32 0.0, %v4254
    %v4256 = vpop.f32.mrf.mxu0
    %4257 = vmatprep.mubr.f32.mxu0 0.0
    %4258 = vmatmul.mubr.f32.gmra.mxu0 %v3930
    %v4259 = vpop.f32.mrf.mxu0
    %v4260 = vadd.f32 0.0, %v4259
    %v4261 = vpop.f32.mrf.mxu0
    %4262 = vmatprep.mubr.f32.mxu0 0.0
    %4263 = vmatmul.mubr.f32.gmra.mxu0 %v4048
    %v4264 = vpop.f32.mrf.mxu0
    %v4265 = vadd.f32 0.0, %v4264
    %v4266 = vpop.f32.mrf.mxu0
    %4267 = vmatprep.mubr.f32.mxu0 0.0
    %4268 = vmatmul.mubr.f32.gmra.mxu0 %v4166
    %v4269 = vpop.f32.mrf.mxu0
    %v4270 = vadd.f32 0.0, %v4269
    %v4271 = vpop.f32.mrf.mxu0
    %4272 = vdwg.mxu0
    %v4273 = vadd.f32 %v4155, %v4235
    %v4274 = vadd.f32 %v4156, %v4240
    %v4275 = vadd.f32 %v4157, %v4245
    %v4276 = vadd.f32 %v4158, %v4250
    %v4277 = vadd.f32 %v4159, %v4255
    %v4278 = vadd.f32 %v4160, %v4260
    %v4279 = vadd.f32 %v4161, %v4265
    %v4280 = vadd.f32 %v4162, %v4270
    %v4281 = vld [vmem:[%s7 + $0x50] sm:$0xff]
    %v4282 = vld [vmem:[%s7 + $0x58] sm:$0xff]
    %v4284 = vsel %vm3525, %v3682, 0
    %4286 = vmatprep.subr.mxu0 0.0
    %4287 = vmatpush1.msra.mxu0 0.0
    %4288 = vmatprep.subr.mxu0 0.0
    %4289 = vmatpush1.msra.mxu0 0.0
    %4290 = vmatprep.subr.mxu0 0.0
    %4291 = vmatpush1.msra.mxu0 0.0
    %4292 = vmatprep.subr.mxu0 0.0
    %4293 = vmatpush1.msra.mxu0 0.0
    %4294 = vmatprep.subr.mxu0 0.0
    %4295 = vmatpush1.msra.mxu0 0.0
    %4296 = vmatprep.subr.mxu0 0.0
    %4297 = vmatpush1.msra.mxu0 0.0
    %4298 = vmatprep.subr.mxu0 0.0
    %4299 = vmatpush1.msra.mxu0 0.0
    %4300 = vmatprep.subr.mxu0 0.0
    %4301 = vmatpush1.msra.mxu0 0.0
    %4302 = vmatprep.subr.mxu0 0.0
    %4303 = vmatpush1.msra.mxu0 0.0
    %4304 = vmatprep.subr.mxu0 0.0
    %4305 = vmatpush1.msra.mxu0 0.0
    %4306 = vmatprep.subr.mxu0 0.0
    %4307 = vmatpush1.msra.mxu0 0.0
    %4308 = vmatprep.subr.mxu0 0.0
    %4309 = vmatpush1.msra.mxu0 0.0
    %4310 = vmatprep.subr.mxu0 0.0
    %4311 = vmatpush1.msra.mxu0 0.0
    %4312 = vmatprep.subr.mxu0 0.0
    %4313 = vmatpush1.msra.mxu0 0.0
    %4314 = vmatprep.subr.mxu0 0.0
    %4315 = vmatpush1.msra.mxu0 %v4282
    %4316 = vmatprep.subr.mxu0 0.0
    %4317 = vmatpush1.msra.mxu0 %v4281
    %4318 = vmatprep.subr.mxu0 0.0
    %4319 = vmatpush2.msra.mxu0 0.0
    %4320 = vmatprep.subr.mxu0 0.0
    %4321 = vmatpush2.msra.mxu0 0.0
    %4322 = vmatprep.subr.mxu0 0.0
    %4323 = vmatpush2.msra.mxu0 0.0
    %4324 = vmatprep.subr.mxu0 0.0
    %4325 = vmatpush2.msra.mxu0 0.0
    %4326 = vmatprep.subr.mxu0 0.0
    %4327 = vmatpush2.msra.mxu0 0.0
    %4328 = vmatprep.subr.mxu0 0.0
    %4329 = vmatpush2.msra.mxu0 0.0
    %4330 = vmatprep.subr.mxu0 0.0
    %4331 = vmatpush2.msra.mxu0 0.0
    %4332 = vmatprep.subr.mxu0 0.0
    %4333 = vmatpush2.msra.mxu0 0.0
    %4334 = vmatprep.subr.mxu0 0.0
    %4335 = vmatpush2.msra.mxu0 0.0
    %4336 = vmatprep.subr.mxu0 0.0
    %4337 = vmatpush2.msra.mxu0 0.0
    %4338 = vmatprep.subr.mxu0 0.0
    %4339 = vmatpush2.msra.mxu0 0.0
    %4340 = vmatprep.subr.mxu0 0.0
    %4341 = vmatpush2.msra.mxu0 0.0
    %4342 = vmatprep.subr.mxu0 0.0
    %4343 = vmatpush2.msra.mxu0 0.0
    %4344 = vmatprep.subr.mxu0 0.0
    %4345 = vmatpush2.msra.mxu0 0.0
    %4346 = vmatprep.subr.mxu0 0.0
    %4347 = vmatpush2.msra.mxu0 0.0
    %4348 = vmatprep.subr.mxu0 0.0
    %4349 = vmatpush2.msra.mxu0 0.0
    %4350 = vmatprep.mubr.f32.mxu0 0.0
    %4351 = vmatmul.mubr.f32.gmra.mxu0 %v3703
    %v4352 = vpop.f32.mrf.mxu0
    %v4353 = vadd.f32 0.0, %v4352
    %v4354 = vpop.f32.mrf.mxu0
    %4355 = vmatprep.mubr.f32.mxu0 0.0
    %4356 = vmatmul.mubr.f32.gmra.mxu0 %v3706
    %v4357 = vpop.f32.mrf.mxu0
    %v4358 = vadd.f32 0.0, %v4357
    %v4359 = vpop.f32.mrf.mxu0
    %4360 = vmatprep.mubr.f32.mxu0 0.0
    %4361 = vmatmul.mubr.f32.gmra.mxu0 %v3709
    %v4362 = vpop.f32.mrf.mxu0
    %v4363 = vadd.f32 0.0, %v4362
    %v4364 = vpop.f32.mrf.mxu0
    %4365 = vmatprep.mubr.f32.mxu0 0.0
    %4366 = vmatmul.mubr.f32.gmra.mxu0 %v3712
    %v4367 = vpop.f32.mrf.mxu0
    %v4368 = vadd.f32 0.0, %v4367
    %v4369 = vpop.f32.mrf.mxu0
    %4370 = vmatprep.mubr.f32.mxu0 0.0
    %4371 = vmatmul.mubr.f32.gmra.mxu0 %v3930
    %v4372 = vpop.f32.mrf.mxu0
    %v4373 = vadd.f32 0.0, %v4372
    %v4374 = vpop.f32.mrf.mxu0
    %4375 = vmatprep.mubr.f32.mxu0 0.0
    %4376 = vmatmul.mubr.f32.gmra.mxu0 %v4048
    %v4377 = vpop.f32.mrf.mxu0
    %v4378 = vadd.f32 0.0, %v4377
    %v4379 = vpop.f32.mrf.mxu0
    %4380 = vmatprep.mubr.f32.mxu0 0.0
    %4381 = vmatmul.mubr.f32.gmra.mxu0 %v4166
    %v4382 = vpop.f32.mrf.mxu0
    %v4383 = vadd.f32 0.0, %v4382
    %v4384 = vpop.f32.mrf.mxu0
    %4385 = vmatprep.mubr.f32.mxu0 0.0
    %4386 = vmatmul.mubr.f32.gmra.mxu0 %v4284
    %v4387 = vpop.f32.mrf.mxu0
    %v4388 = vadd.f32 0.0, %v4387
    %v4389 = vpop.f32.mrf.mxu0
    %4390 = vdwg.mxu0
    %v4391 = vadd.f32 %v4273, %v4353
    %v4392 = vadd.f32 %v4274, %v4358
    %v4393 = vadd.f32 %v4275, %v4363
    %v4394 = vadd.f32 %v4276, %v4368
    %v4395 = vadd.f32 %v4277, %v4373
    %v4396 = vadd.f32 %v4278, %v4378
    %v4397 = vadd.f32 %v4279, %v4383
    %v4398 = vadd.f32 %v4280, %v4388
    %v4399 = vld [vmem:[%s7 + $0x60] sm:$0xff]
    %v4400 = vld [vmem:[%s7 + $0x68] sm:$0xff]
    %v4402 = vsel %vm3525, %v3683, 0
    %4404 = vmatprep.subr.mxu0 0.0
    %4405 = vmatpush1.msra.mxu0 0.0
    %4406 = vmatprep.subr.mxu0 0.0
    %4407 = vmatpush1.msra.mxu0 0.0
    %4408 = vmatprep.subr.mxu0 0.0
    %4409 = vmatpush1.msra.mxu0 0.0
    %4410 = vmatprep.subr.mxu0 0.0
    %4411 = vmatpush1.msra.mxu0 0.0
    %4412 = vmatprep.subr.mxu0 0.0
    %4413 = vmatpush1.msra.mxu0 0.0
    %4414 = vmatprep.subr.mxu0 0.0
    %4415 = vmatpush1.msra.mxu0 0.0
    %4416 = vmatprep.subr.mxu0 0.0
    %4417 = vmatpush1.msra.mxu0 0.0
    %4418 = vmatprep.subr.mxu0 0.0
    %4419 = vmatpush1.msra.mxu0 0.0
    %4420 = vmatprep.subr.mxu0 0.0
    %4421 = vmatpush1.msra.mxu0 0.0
    %4422 = vmatprep.subr.mxu0 0.0
    %4423 = vmatpush1.msra.mxu0 0.0
    %4424 = vmatprep.subr.mxu0 0.0
    %4425 = vmatpush1.msra.mxu0 0.0
    %4426 = vmatprep.subr.mxu0 0.0
    %4427 = vmatpush1.msra.mxu0 0.0
    %4428 = vmatprep.subr.mxu0 0.0
    %4429 = vmatpush1.msra.mxu0 0.0
    %4430 = vmatprep.subr.mxu0 0.0
    %4431 = vmatpush1.msra.mxu0 0.0
    %4432 = vmatprep.subr.mxu0 0.0
    %4433 = vmatpush1.msra.mxu0 %v4400
    %4434 = vmatprep.subr.mxu0 0.0
    %4435 = vmatpush1.msra.mxu0 %v4399
    %4436 = vmatprep.subr.mxu0 0.0
    %4437 = vmatpush2.msra.mxu0 0.0
    %4438 = vmatprep.subr.mxu0 0.0
    %4439 = vmatpush2.msra.mxu0 0.0
    %4440 = vmatprep.subr.mxu0 0.0
    %4441 = vmatpush2.msra.mxu0 0.0
    %4442 = vmatprep.subr.mxu0 0.0
    %4443 = vmatpush2.msra.mxu0 0.0
    %4444 = vmatprep.subr.mxu0 0.0
    %4445 = vmatpush2.msra.mxu0 0.0
    %4446 = vmatprep.subr.mxu0 0.0
    %4447 = vmatpush2.msra.mxu0 0.0
    %4448 = vmatprep.subr.mxu0 0.0
    %4449 = vmatpush2.msra.mxu0 0.0
    %4450 = vmatprep.subr.mxu0 0.0
    %4451 = vmatpush2.msra.mxu0 0.0
    %4452 = vmatprep.subr.mxu0 0.0
    %4453 = vmatpush2.msra.mxu0 0.0
    %4454 = vmatprep.subr.mxu0 0.0
    %4455 = vmatpush2.msra.mxu0 0.0
    %4456 = vmatprep.subr.mxu0 0.0
    %4457 = vmatpush2.msra.mxu0 0.0
    %4458 = vmatprep.subr.mxu0 0.0
    %4459 = vmatpush2.msra.mxu0 0.0
    %4460 = vmatprep.subr.mxu0 0.0
    %4461 = vmatpush2.msra.mxu0 0.0
    %4462 = vmatprep.subr.mxu0 0.0
    %4463 = vmatpush2.msra.mxu0 0.0
    %4464 = vmatprep.subr.mxu0 0.0
    %4465 = vmatpush2.msra.mxu0 0.0
    %4466 = vmatprep.subr.mxu0 0.0
    %4467 = vmatpush2.msra.mxu0 0.0
    %4468 = vmatprep.mubr.f32.mxu0 0.0
    %4469 = vmatmul.mubr.f32.gmra.mxu0 %v3706
    %v4470 = vpop.f32.mrf.mxu0
    %v4471 = vadd.f32 0.0, %v4470
    %v4472 = vpop.f32.mrf.mxu0
    %4473 = vmatprep.mubr.f32.mxu0 0.0
    %4474 = vmatmul.mubr.f32.gmra.mxu0 %v3709
    %v4475 = vpop.f32.mrf.mxu0
    %v4476 = vadd.f32 0.0, %v4475
    %v4477 = vpop.f32.mrf.mxu0
    %4478 = vmatprep.mubr.f32.mxu0 0.0
    %4479 = vmatmul.mubr.f32.gmra.mxu0 %v3712
    %v4480 = vpop.f32.mrf.mxu0
    %v4481 = vadd.f32 0.0, %v4480
    %v4482 = vpop.f32.mrf.mxu0
    %4483 = vmatprep.mubr.f32.mxu0 0.0
    %4484 = vmatmul.mubr.f32.gmra.mxu0 %v3930
    %v4485 = vpop.f32.mrf.mxu0
    %v4486 = vadd.f32 0.0, %v4485
    %v4487 = vpop.f32.mrf.mxu0
    %4488 = vmatprep.mubr.f32.mxu0 0.0
    %4489 = vmatmul.mubr.f32.gmra.mxu0 %v4048
    %v4490 = vpop.f32.mrf.mxu0
    %v4491 = vadd.f32 0.0, %v4490
    %v4492 = vpop.f32.mrf.mxu0
    %4493 = vmatprep.mubr.f32.mxu0 0.0
    %4494 = vmatmul.mubr.f32.gmra.mxu0 %v4166
    %v4495 = vpop.f32.mrf.mxu0
    %v4496 = vadd.f32 0.0, %v4495
    %v4497 = vpop.f32.mrf.mxu0
    %4498 = vmatprep.mubr.f32.mxu0 0.0
    %4499 = vmatmul.mubr.f32.gmra.mxu0 %v4284
    %v4500 = vpop.f32.mrf.mxu0
    %v4501 = vadd.f32 0.0, %v4500
    %v4502 = vpop.f32.mrf.mxu0
    %4503 = vmatprep.mubr.f32.mxu0 0.0
    %4504 = vmatmul.mubr.f32.gmra.mxu0 %v4402
    %v4505 = vpop.f32.mrf.mxu0
    %v4506 = vadd.f32 0.0, %v4505
    %v4507 = vpop.f32.mrf.mxu0
    %4508 = vdwg.mxu0
    %v4509 = vadd.f32 %v4391, %v4471
    %v4510 = vadd.f32 %v4392, %v4476
    %v4511 = vadd.f32 %v4393, %v4481
    %v4512 = vadd.f32 %v4394, %v4486
    %v4513 = vadd.f32 %v4395, %v4491
    %v4514 = vadd.f32 %v4396, %v4496
    %v4515 = vadd.f32 %v4397, %v4501
    %v4516 = vadd.f32 %v4398, %v4506
    %v4517 = vld [vmem:[%s7 + $0x70] sm:$0xff]
    %v4518 = vld [vmem:[%s7 + $0x78] sm:$0xff]
    %v4520 = vsel %vm3525, %v3684, 0
    %4522 = vmatprep.subr.mxu0 0.0
    %4523 = vmatpush1.msra.mxu0 0.0
    %4524 = vmatprep.subr.mxu0 0.0
    %4525 = vmatpush1.msra.mxu0 0.0
    %4526 = vmatprep.subr.mxu0 0.0
    %4527 = vmatpush1.msra.mxu0 0.0
    %4528 = vmatprep.subr.mxu0 0.0
    %4529 = vmatpush1.msra.mxu0 0.0
    %4530 = vmatprep.subr.mxu0 0.0
    %4531 = vmatpush1.msra.mxu0 0.0
    %4532 = vmatprep.subr.mxu0 0.0
    %4533 = vmatpush1.msra.mxu0 0.0
    %4534 = vmatprep.subr.mxu0 0.0
    %4535 = vmatpush1.msra.mxu0 0.0
    %4536 = vmatprep.subr.mxu0 0.0
    %4537 = vmatpush1.msra.mxu0 0.0
    %4538 = vmatprep.subr.mxu0 0.0
    %4539 = vmatpush1.msra.mxu0 0.0
    %4540 = vmatprep.subr.mxu0 0.0
    %4541 = vmatpush1.msra.mxu0 0.0
    %4542 = vmatprep.subr.mxu0 0.0
    %4543 = vmatpush1.msra.mxu0 0.0
    %4544 = vmatprep.subr.mxu0 0.0
    %4545 = vmatpush1.msra.mxu0 0.0
    %4546 = vmatprep.subr.mxu0 0.0
    %4547 = vmatpush1.msra.mxu0 0.0
    %4548 = vmatprep.subr.mxu0 0.0
    %4549 = vmatpush1.msra.mxu0 0.0
    %4550 = vmatprep.subr.mxu0 0.0
    %4551 = vmatpush1.msra.mxu0 %v4518
    %4552 = vmatprep.subr.mxu0 0.0
    %4553 = vmatpush1.msra.mxu0 %v4517
    %4554 = vmatprep.subr.mxu0 0.0
    %4555 = vmatpush2.msra.mxu0 0.0
    %4556 = vmatprep.subr.mxu0 0.0
    %4557 = vmatpush2.msra.mxu0 0.0
    %4558 = vmatprep.subr.mxu0 0.0
    %4559 = vmatpush2.msra.mxu0 0.0
    %4560 = vmatprep.subr.mxu0 0.0
    %4561 = vmatpush2.msra.mxu0 0.0
    %4562 = vmatprep.subr.mxu0 0.0
    %4563 = vmatpush2.msra.mxu0 0.0
    %4564 = vmatprep.subr.mxu0 0.0
    %4565 = vmatpush2.msra.mxu0 0.0
    %4566 = vmatprep.subr.mxu0 0.0
    %4567 = vmatpush2.msra.mxu0 0.0
    %4568 = vmatprep.subr.mxu0 0.0
    %4569 = vmatpush2.msra.mxu0 0.0
    %4570 = vmatprep.subr.mxu0 0.0
    %4571 = vmatpush2.msra.mxu0 0.0
    %4572 = vmatprep.subr.mxu0 0.0
    %4573 = vmatpush2.msra.mxu0 0.0
    %4574 = vmatprep.subr.mxu0 0.0
    %4575 = vmatpush2.msra.mxu0 0.0
    %4576 = vmatprep.subr.mxu0 0.0
    %4577 = vmatpush2.msra.mxu0 0.0
    %4578 = vmatprep.subr.mxu0 0.0
    %4579 = vmatpush2.msra.mxu0 0.0
    %4580 = vmatprep.subr.mxu0 0.0
    %4581 = vmatpush2.msra.mxu0 0.0
    %4582 = vmatprep.subr.mxu0 0.0
    %4583 = vmatpush2.msra.mxu0 0.0
    %4584 = vmatprep.subr.mxu0 0.0
    %4585 = vmatpush2.msra.mxu0 0.0
    %4586 = vmatprep.mubr.f32.mxu0 0.0
    %4587 = vmatmul.mubr.f32.gmra.mxu0 %v3709
    %v4588 = vpop.f32.mrf.mxu0
    %v4589 = vadd.f32 0.0, %v4588
    %v4590 = vpop.f32.mrf.mxu0
    %4591 = vmatprep.mubr.f32.mxu0 0.0
    %4592 = vmatmul.mubr.f32.gmra.mxu0 %v3712
    %v4593 = vpop.f32.mrf.mxu0
    %v4594 = vadd.f32 0.0, %v4593
    %v4595 = vpop.f32.mrf.mxu0
    %4596 = vmatprep.mubr.f32.mxu0 0.0
    %4597 = vmatmul.mubr.f32.gmra.mxu0 %v3930
    %v4598 = vpop.f32.mrf.mxu0
    %v4599 = vadd.f32 0.0, %v4598
    %v4600 = vpop.f32.mrf.mxu0
    %4601 = vmatprep.mubr.f32.mxu0 0.0
    %4602 = vmatmul.mubr.f32.gmra.mxu0 %v4048
    %v4603 = vpop.f32.mrf.mxu0
    %v4604 = vadd.f32 0.0, %v4603
    %v4605 = vpop.f32.mrf.mxu0
    %4606 = vmatprep.mubr.f32.mxu0 0.0
    %4607 = vmatmul.mubr.f32.gmra.mxu0 %v4166
    %v4608 = vpop.f32.mrf.mxu0
    %v4609 = vadd.f32 0.0, %v4608
    %v4610 = vpop.f32.mrf.mxu0
    %4611 = vmatprep.mubr.f32.mxu0 0.0
    %4612 = vmatmul.mubr.f32.gmra.mxu0 %v4284
    %v4613 = vpop.f32.mrf.mxu0
    %v4614 = vadd.f32 0.0, %v4613
    %v4615 = vpop.f32.mrf.mxu0
    %4616 = vmatprep.mubr.f32.mxu0 0.0
    %4617 = vmatmul.mubr.f32.gmra.mxu0 %v4402
    %v4618 = vpop.f32.mrf.mxu0
    %v4619 = vadd.f32 0.0, %v4618
    %v4620 = vpop.f32.mrf.mxu0
    %4621 = vmatprep.mubr.f32.mxu0 0.0
    %4622 = vmatmul.mubr.f32.gmra.mxu0 %v4520
    %v4623 = vpop.f32.mrf.mxu0
    %v4624 = vadd.f32 0.0, %v4623
    %v4625 = vpop.f32.mrf.mxu0
    %4626 = vdwg.mxu0
    %v4627 = vadd.f32 %v4509, %v4589
    %v4628 = vadd.f32 %v4510, %v4594
    %v4629 = vadd.f32 %v4511, %v4599
    %v4630 = vadd.f32 %v4512, %v4604
    %v4631 = vadd.f32 %v4513, %v4609
    %v4632 = vadd.f32 %v4514, %v4614
    %v4633 = vadd.f32 %v4515, %v4619
    %v4634 = vadd.f32 %v4516, %v4624
    %v4635 = vld [vmem:[%s7 + $0x80] sm:$0xff]
    %v4636 = vld [vmem:[%s7 + $0x88] sm:$0xff]
    %v4638 = vsel %vm3525, %v3685, 0
    %4640 = vmatprep.subr.mxu0 0.0
    %4641 = vmatpush1.msra.mxu0 0.0
    %4642 = vmatprep.subr.mxu0 0.0
    %4643 = vmatpush1.msra.mxu0 0.0
    %4644 = vmatprep.subr.mxu0 0.0
    %4645 = vmatpush1.msra.mxu0 0.0
    %4646 = vmatprep.subr.mxu0 0.0
    %4647 = vmatpush1.msra.mxu0 0.0
    %4648 = vmatprep.subr.mxu0 0.0
    %4649 = vmatpush1.msra.mxu0 0.0
    %4650 = vmatprep.subr.mxu0 0.0
    %4651 = vmatpush1.msra.mxu0 0.0
    %4652 = vmatprep.subr.mxu0 0.0
    %4653 = vmatpush1.msra.mxu0 0.0
    %4654 = vmatprep.subr.mxu0 0.0
    %4655 = vmatpush1.msra.mxu0 0.0
    %4656 = vmatprep.subr.mxu0 0.0
    %4657 = vmatpush1.msra.mxu0 0.0
    %4658 = vmatprep.subr.mxu0 0.0
    %4659 = vmatpush1.msra.mxu0 0.0
    %4660 = vmatprep.subr.mxu0 0.0
    %4661 = vmatpush1.msra.mxu0 0.0
    %4662 = vmatprep.subr.mxu0 0.0
    %4663 = vmatpush1.msra.mxu0 0.0
    %4664 = vmatprep.subr.mxu0 0.0
    %4665 = vmatpush1.msra.mxu0 0.0
    %4666 = vmatprep.subr.mxu0 0.0
    %4667 = vmatpush1.msra.mxu0 0.0
    %4668 = vmatprep.subr.mxu0 0.0
    %4669 = vmatpush1.msra.mxu0 %v4636
    %4670 = vmatprep.subr.mxu0 0.0
    %4671 = vmatpush1.msra.mxu0 %v4635
    %4672 = vmatprep.subr.mxu0 0.0
    %4673 = vmatpush2.msra.mxu0 0.0
    %4674 = vmatprep.subr.mxu0 0.0
    %4675 = vmatpush2.msra.mxu0 0.0
    %4676 = vmatprep.subr.mxu0 0.0
    %4677 = vmatpush2.msra.mxu0 0.0
    %4678 = vmatprep.subr.mxu0 0.0
    %4679 = vmatpush2.msra.mxu0 0.0
    %4680 = vmatprep.subr.mxu0 0.0
    %4681 = vmatpush2.msra.mxu0 0.0
    %4682 = vmatprep.subr.mxu0 0.0
    %4683 = vmatpush2.msra.mxu0 0.0
    %4684 = vmatprep.subr.mxu0 0.0
    %4685 = vmatpush2.msra.mxu0 0.0
    %4686 = vmatprep.subr.mxu0 0.0
    %4687 = vmatpush2.msra.mxu0 0.0
    %4688 = vmatprep.subr.mxu0 0.0
    %4689 = vmatpush2.msra.mxu0 0.0
    %4690 = vmatprep.subr.mxu0 0.0
    %4691 = vmatpush2.msra.mxu0 0.0
    %4692 = vmatprep.subr.mxu0 0.0
    %4693 = vmatpush2.msra.mxu0 0.0
    %4694 = vmatprep.subr.mxu0 0.0
    %4695 = vmatpush2.msra.mxu0 0.0
    %4696 = vmatprep.subr.mxu0 0.0
    %4697 = vmatpush2.msra.mxu0 0.0
    %4698 = vmatprep.subr.mxu0 0.0
    %4699 = vmatpush2.msra.mxu0 0.0
    %4700 = vmatprep.subr.mxu0 0.0
    %4701 = vmatpush2.msra.mxu0 0.0
    %4702 = vmatprep.subr.mxu0 0.0
    %4703 = vmatpush2.msra.mxu0 0.0
    %4704 = vmatprep.mubr.f32.mxu0 0.0
    %4705 = vmatmul.mubr.f32.gmra.mxu0 %v3712
    %v4706 = vpop.f32.mrf.mxu0
    %v4707 = vadd.f32 0.0, %v4706
    %v4708 = vpop.f32.mrf.mxu0
    %4709 = vmatprep.mubr.f32.mxu0 0.0
    %4710 = vmatmul.mubr.f32.gmra.mxu0 %v3930
    %v4711 = vpop.f32.mrf.mxu0
    %v4712 = vadd.f32 0.0, %v4711
    %v4713 = vpop.f32.mrf.mxu0
    %4714 = vmatprep.mubr.f32.mxu0 0.0
    %4715 = vmatmul.mubr.f32.gmra.mxu0 %v4048
    %v4716 = vpop.f32.mrf.mxu0
    %v4717 = vadd.f32 0.0, %v4716
    %v4718 = vpop.f32.mrf.mxu0
    %4719 = vmatprep.mubr.f32.mxu0 0.0
    %4720 = vmatmul.mubr.f32.gmra.mxu0 %v4166
    %v4721 = vpop.f32.mrf.mxu0
    %v4722 = vadd.f32 0.0, %v4721
    %v4723 = vpop.f32.mrf.mxu0
    %4724 = vmatprep.mubr.f32.mxu0 0.0
    %4725 = vmatmul.mubr.f32.gmra.mxu0 %v4284
    %v4726 = vpop.f32.mrf.mxu0
    %v4727 = vadd.f32 0.0, %v4726
    %v4728 = vpop.f32.mrf.mxu0
    %4729 = vmatprep.mubr.f32.mxu0 0.0
    %4730 = vmatmul.mubr.f32.gmra.mxu0 %v4402
    %v4731 = vpop.f32.mrf.mxu0
    %v4732 = vadd.f32 0.0, %v4731
    %v4733 = vpop.f32.mrf.mxu0
    %4734 = vmatprep.mubr.f32.mxu0 0.0
    %4735 = vmatmul.mubr.f32.gmra.mxu0 %v4520
    %v4736 = vpop.f32.mrf.mxu0
    %v4737 = vadd.f32 0.0, %v4736
    %v4738 = vpop.f32.mrf.mxu0
    %4739 = vmatprep.mubr.f32.mxu0 0.0
    %4740 = vmatmul.mubr.f32.gmra.mxu0 %v4638
    %v4741 = vpop.f32.mrf.mxu0
    %v4742 = vadd.f32 0.0, %v4741
    %v4743 = vpop.f32.mrf.mxu0
    %4744 = vdwg.mxu0
    %v4745 = vadd.f32 %v4627, %v4707
    %v4746 = vadd.f32 %v4628, %v4712
    %v4747 = vadd.f32 %v4629, %v4717
    %v4748 = vadd.f32 %v4630, %v4722
    %v4749 = vadd.f32 %v4631, %v4727
    %v4750 = vadd.f32 %v4632, %v4732
    %v4751 = vadd.f32 %v4633, %v4737
    %v4752 = vadd.f32 %v4634, %v4742
    %v4753 = vld [vmem:[%s8] sm:$0x1]
    %v4754 = vld [vmem:[%s9] sm:$0x1]
    %vm4755 = vcmask 261120
    %v4756 = vsel %vm4755, %v4745, 0.0
    %v4757 = vsel %vm4755, %v4746, 0.0
    %v4758 = vadd.f32 %v4756, %v4757
    %v4759 = vsel %vm4755, %v4747, 0.0
    %v4760 = vadd.f32 %v4758, %v4759
    %v4761 = vsel %vm4755, %v4748, 0.0
    %v4762 = vadd.f32 %v4760, %v4761
    %v4763 = vsel %vm4755, %v4749, 0.0
    %v4764 = vadd.f32 %v4762, %v4763
    %v4765 = vsel %vm4755, %v4750, 0.0
    %v4766 = vadd.f32 %v4764, %v4765
    %v4767 = vsel %vm4755, %v4751, 0.0
    %v4768 = vadd.f32 %v4766, %v4767
    %v4769 = vsel %vm4755, %v4752, 0.0
    %v4770 = vadd.f32 %v4768, %v4769
    %v4771 = vrot.slane %v4770, 4
    %v4772 = vadd.f32 %v4770, %v4771
    %v4773 = vrot.slane %v4772, 2
    %v4774 = vadd.f32 %v4772, %v4773
    %v4775 = vrot.slane %v4774, 1
    %v4776 = vadd.f32 %v4774, %v4775
    %v4777 = vmul.f32 %v4776, 0.015625
    %v4778 = vmul.f32 %v4745, %v4745
    %v4779 = vmul.f32 %v4746, %v4746
    %v4780 = vmul.f32 %v4747, %v4747
    %v4781 = vmul.f32 %v4748, %v4748
    %v4782 = vmul.f32 %v4749, %v4749
    %v4783 = vmul.f32 %v4750, %v4750
    %v4784 = vmul.f32 %v4751, %v4751
    %v4785 = vmul.f32 %v4752, %v4752
    %v4786 = vsel %vm4755, %v4778, 0.0
    %v4787 = vsel %vm4755, %v4779, 0.0
    %v4788 = vadd.f32 %v4786, %v4787
    %v4789 = vsel %vm4755, %v4780, 0.0
    %v4790 = vadd.f32 %v4788, %v4789
    %v4791 = vsel %vm4755, %v4781, 0.0
    %v4792 = vadd.f32 %v4790, %v4791
    %v4793 = vsel %vm4755, %v4782, 0.0
    %v4794 = vadd.f32 %v4792, %v4793
    %v4795 = vsel %vm4755, %v4783, 0.0
    %v4796 = vadd.f32 %v4794, %v4795
    %v4797 = vsel %vm4755, %v4784, 0.0
    %v4798 = vadd.f32 %v4796, %v4797
    %v4799 = vsel %vm4755, %v4785, 0.0
    %v4800 = vadd.f32 %v4798, %v4799
    %v4801 = vrot.slane %v4800, 4
    %v4802 = vadd.f32 %v4800, %v4801
    %v4803 = vrot.slane %v4802, 2
    %v4804 = vadd.f32 %v4802, %v4803
    %v4805 = vrot.slane %v4804, 1
    %v4806 = vadd.f32 %v4804, %v4805
    %v4807 = vmul.f32 %v4806, 0.015625
    %v4808 = vmul.f32 %v4777, %v4777
    %v4809 = vsub.f32 %v4807, %v4808
    %v4810 = vmax.f32 %v4809, 0.0
    %v4811 = vadd.f32 %v4810, 1e-05
    %v4812 = vrsqrt.pop %v4811
    %v4813 = vmul.f32 %v4753, %v4812
    %v4814 = vmul.f32 %v4777, %v4813
    %v4815 = vsub.f32 %v4754, %v4814
    %v4817 = vlaneseq
    %v4818 = vshrl.u32 %v4817, 7
    %v4819 = vsub.s32 0, %v4818
    %v4820 = vrot.slane %v4813, %v4819
    %v4822 = vmul.f32 %v4745, %v4820
    %v4823 = vmul.f32 %v4746, %v4820
    %v4824 = vmul.f32 %v4747, %v4820
    %v4825 = vmul.f32 %v4748, %v4820
    %v4826 = vmul.f32 %v4749, %v4820
    %v4827 = vmul.f32 %v4750, %v4820
    %v4828 = vmul.f32 %v4751, %v4820
    %v4829 = vmul.f32 %v4752, %v4820
    %v4831 = vlaneseq
    %v4832 = vshrl.u32 %v4831, 7
    %v4833 = vsub.s32 0, %v4832
    %v4834 = vrot.slane %v4815, %v4833
    %v4836 = vadd.f32 %v4822, %v4834
    %v4837 = vadd.f32 %v4823, %v4834
    %v4838 = vadd.f32 %v4824, %v4834
    %v4839 = vadd.f32 %v4825, %v4834
    %v4840 = vadd.f32 %v4826, %v4834
    %v4841 = vadd.f32 %v4827, %v4834
    %v4842 = vadd.f32 %v4828, %v4834
    %v4843 = vadd.f32 %v4829, %v4834
    %v4844 = vmax.f32 %v4836, 0.0
    %v4845 = vmax.f32 %v4837, 0.0
    %v4846 = vmax.f32 %v4838, 0.0
    %v4847 = vmax.f32 %v4839, 0.0
    %v4848 = vmax.f32 %v4840, 0.0
    %v4849 = vmax.f32 %v4841, 0.0
    %v4850 = vmax.f32 %v4842, 0.0
    %v4851 = vmax.f32 %v4843, 0.0
    %v4852 = vld [vmem:[%s10] sm:$0xff]
    %v4853 = vld [vmem:[%s10 + $0x8] sm:$0xff]
    %v4854 = vld [vmem:[%s10 + $0x10] sm:$0xff]
    %v4855 = vld [vmem:[%s10 + $0x18] sm:$0xff]
    %v4856 = vld [vmem:[%s10 + $0x20] sm:$0xff]
    %v4857 = vld [vmem:[%s10 + $0x28] sm:$0xff]
    %v4858 = vld [vmem:[%s10 + $0x30] sm:$0xff]
    %v4859 = vld [vmem:[%s10 + $0x38] sm:$0xff]
    %v4860 = vld [vmem:[%s10 + $0x40] sm:$0xff]
    %v4861 = vld [vmem:[%s10 + $0x48] sm:$0xff]
    %v4862 = vld [vmem:[%s10 + $0x50] sm:$0xff]
    %v4863 = vld [vmem:[%s10 + $0x58] sm:$0xff]
    %v4864 = vld [vmem:[%s10 + $0x60] sm:$0xff]
    %v4865 = vld [vmem:[%s10 + $0x68] sm:$0xff]
    %v4866 = vld [vmem:[%s10 + $0x70] sm:$0xff]
    %v4867 = vld [vmem:[%s10 + $0x78] sm:$0xff]
    %v4869 = vrot.slane %v4844, 4
    %v4870 = vsel %vm4755, %v4869, 0
    %4872 = vmatprep.subr.mxu0 0.0
    %4873 = vmatpush1.msra.mxu0 0.0
    %4874 = vmatprep.subr.mxu0 0.0
    %4875 = vmatpush1.msra.mxu0 0.0
    %4876 = vmatprep.subr.mxu0 0.0
    %4877 = vmatpush1.msra.mxu0 0.0
    %4878 = vmatprep.subr.mxu0 0.0
    %4879 = vmatpush1.msra.mxu0 0.0
    %4880 = vmatprep.subr.mxu0 0.0
    %4881 = vmatpush1.msra.mxu0 0.0
    %4882 = vmatprep.subr.mxu0 0.0
    %4883 = vmatpush1.msra.mxu0 0.0
    %4884 = vmatprep.subr.mxu0 0.0
    %4885 = vmatpush1.msra.mxu0 0.0
    %4886 = vmatprep.subr.mxu0 0.0
    %4887 = vmatpush1.msra.mxu0 0.0
    %4888 = vmatprep.subr.mxu0 0.0
    %4889 = vmatpush1.msra.mxu0 0.0
    %4890 = vmatprep.subr.mxu0 0.0
    %4891 = vmatpush1.msra.mxu0 0.0
    %4892 = vmatprep.subr.mxu0 0.0
    %4893 = vmatpush1.msra.mxu0 0.0
    %4894 = vmatprep.subr.mxu0 0.0
    %4895 = vmatpush1.msra.mxu0 0.0
    %4896 = vmatprep.subr.mxu0 %v4867
    %4897 = vmatpush1.msra.mxu0 %v4866
    %4898 = vmatprep.subr.mxu0 %v4865
    %4899 = vmatpush1.msra.mxu0 %v4864
    %4900 = vmatprep.subr.mxu0 %v4863
    %4901 = vmatpush1.msra.mxu0 %v4862
    %4902 = vmatprep.subr.mxu0 %v4861
    %4903 = vmatpush1.msra.mxu0 %v4860
    %4904 = vmatprep.subr.mxu0 0.0
    %4905 = vmatpush2.msra.mxu0 0.0
    %4906 = vmatprep.subr.mxu0 0.0
    %4907 = vmatpush2.msra.mxu0 0.0
    %4908 = vmatprep.subr.mxu0 0.0
    %4909 = vmatpush2.msra.mxu0 0.0
    %4910 = vmatprep.subr.mxu0 0.0
    %4911 = vmatpush2.msra.mxu0 0.0
    %4912 = vmatprep.subr.mxu0 0.0
    %4913 = vmatpush2.msra.mxu0 0.0
    %4914 = vmatprep.subr.mxu0 0.0
    %4915 = vmatpush2.msra.mxu0 0.0
    %4916 = vmatprep.subr.mxu0 0.0
    %4917 = vmatpush2.msra.mxu0 0.0
    %4918 = vmatprep.subr.mxu0 0.0
    %4919 = vmatpush2.msra.mxu0 0.0
    %4920 = vmatprep.subr.mxu0 0.0
    %4921 = vmatpush2.msra.mxu0 0.0
    %4922 = vmatprep.subr.mxu0 0.0
    %4923 = vmatpush2.msra.mxu0 0.0
    %4924 = vmatprep.subr.mxu0 0.0
    %4925 = vmatpush2.msra.mxu0 0.0
    %4926 = vmatprep.subr.mxu0 0.0
    %4927 = vmatpush2.msra.mxu0 0.0
    %4928 = vmatprep.subr.mxu0 0.0
    %4929 = vmatpush2.msra.mxu0 0.0
    %4930 = vmatprep.subr.mxu0 0.0
    %4931 = vmatpush2.msra.mxu0 0.0
    %4932 = vmatprep.subr.mxu0 0.0
    %4933 = vmatpush2.msra.mxu0 0.0
    %4934 = vmatprep.subr.mxu0 0.0
    %4935 = vmatpush2.msra.mxu0 0.0
    %4936 = vmatprep.mubr.f32.mxu0 0.0
    %4937 = vmatmul.mubr.f32.gmra.mxu0 %v4870
    %v4938 = vpop.f32.mrf.mxu0
    %v4939 = vadd.f32 0.0, %v4938
    %v4940 = vpop.f32.mrf.mxu0
    %v4941 = vadd.f32 0.0, %v4940
    %4942 = vdwg.mxu0
    %v4943 = vsel %vm4755, %v4844, 0
    %4945 = vmatprep.subr.mxu0 0.0
    %4946 = vmatpush1.msra.mxu0 0.0
    %4947 = vmatprep.subr.mxu0 0.0
    %4948 = vmatpush1.msra.mxu0 0.0
    %4949 = vmatprep.subr.mxu0 0.0
    %4950 = vmatpush1.msra.mxu0 0.0
    %4951 = vmatprep.subr.mxu0 0.0
    %4952 = vmatpush1.msra.mxu0 0.0
    %4953 = vmatprep.subr.mxu0 0.0
    %4954 = vmatpush1.msra.mxu0 0.0
    %4955 = vmatprep.subr.mxu0 0.0
    %4956 = vmatpush1.msra.mxu0 0.0
    %4957 = vmatprep.subr.mxu0 0.0
    %4958 = vmatpush1.msra.mxu0 0.0
    %4959 = vmatprep.subr.mxu0 0.0
    %4960 = vmatpush1.msra.mxu0 0.0
    %4961 = vmatprep.subr.mxu0 0.0
    %4962 = vmatpush1.msra.mxu0 0.0
    %4963 = vmatprep.subr.mxu0 0.0
    %4964 = vmatpush1.msra.mxu0 0.0
    %4965 = vmatprep.subr.mxu0 0.0
    %4966 = vmatpush1.msra.mxu0 0.0
    %4967 = vmatprep.subr.mxu0 0.0
    %4968 = vmatpush1.msra.mxu0 0.0
    %4969 = vmatprep.subr.mxu0 %v4859
    %4970 = vmatpush1.msra.mxu0 %v4858
    %4971 = vmatprep.subr.mxu0 %v4857
    %4972 = vmatpush1.msra.mxu0 %v4856
    %4973 = vmatprep.subr.mxu0 %v4855
    %4974 = vmatpush1.msra.mxu0 %v4854
    %4975 = vmatprep.subr.mxu0 %v4853
    %4976 = vmatpush1.msra.mxu0 %v4852
    %4977 = vmatprep.subr.mxu0 0.0
    %4978 = vmatpush2.msra.mxu0 0.0
    %4979 = vmatprep.subr.mxu0 0.0
    %4980 = vmatpush2.msra.mxu0 0.0
    %4981 = vmatprep.subr.mxu0 0.0
    %4982 = vmatpush2.msra.mxu0 0.0
    %4983 = vmatprep.subr.mxu0 0.0
    %4984 = vmatpush2.msra.mxu0 0.0
    %4985 = vmatprep.subr.mxu0 0.0
    %4986 = vmatpush2.msra.mxu0 0.0
    %4987 = vmatprep.subr.mxu0 0.0
    %4988 = vmatpush2.msra.mxu0 0.0
    %4989 = vmatprep.subr.mxu0 0.0
    %4990 = vmatpush2.msra.mxu0 0.0
    %4991 = vmatprep.subr.mxu0 0.0
    %4992 = vmatpush2.msra.mxu0 0.0
    %4993 = vmatprep.subr.mxu0 0.0
    %4994 = vmatpush2.msra.mxu0 0.0
    %4995 = vmatprep.subr.mxu0 0.0
    %4996 = vmatpush2.msra.mxu0 0.0
    %4997 = vmatprep.subr.mxu0 0.0
    %4998 = vmatpush2.msra.mxu0 0.0
    %4999 = vmatprep.subr.mxu0 0.0
    %5000 = vmatpush2.msra.mxu0 0.0
    %5001 = vmatprep.subr.mxu0 0.0
    %5002 = vmatpush2.msra.mxu0 0.0
    %5003 = vmatprep.subr.mxu0 0.0
    %5004 = vmatpush2.msra.mxu0 0.0
    %5005 = vmatprep.subr.mxu0 0.0
    %5006 = vmatpush2.msra.mxu0 0.0
    %5007 = vmatprep.subr.mxu0 0.0
    %5008 = vmatpush2.msra.mxu0 0.0
    %5009 = vmatprep.mubr.f32.mxu0 0.0
    %5010 = vmatmul.mubr.f32.gmra.mxu0 %v4943
    %v5011 = vpop.f32.mrf.mxu0
    %v5012 = vadd.f32 %v4939, %v5011
    %v5013 = vpop.f32.mrf.mxu0
    %v5014 = vadd.f32 %v4941, %v5013
    %5015 = vdwg.mxu0
    %v5016 = vld [vmem:[%s10 + $0x80] sm:$0xff]
    %v5017 = vld [vmem:[%s10 + $0x88] sm:$0xff]
    %v5018 = vld [vmem:[%s10 + $0x90] sm:$0xff]
    %v5019 = vld [vmem:[%s10 + $0x98] sm:$0xff]
    %v5020 = vld [vmem:[%s10 + $0xa0] sm:$0xff]
    %v5021 = vld [vmem:[%s10 + $0xa8] sm:$0xff]
    %v5022 = vld [vmem:[%s10 + $0xb0] sm:$0xff]
    %v5023 = vld [vmem:[%s10 + $0xb8] sm:$0xff]
    %v5025 = vsel %vm4755, %v4845, 0
    %5027 = vmatprep.subr.mxu0 0.0
    %5028 = vmatpush1.msra.mxu0 0.0
    %5029 = vmatprep.subr.mxu0 0.0
    %5030 = vmatpush1.msra.mxu0 0.0
    %5031 = vmatprep.subr.mxu0 0.0
    %5032 = vmatpush1.msra.mxu0 0.0
    %5033 = vmatprep.subr.mxu0 0.0
    %5034 = vmatpush1.msra.mxu0 0.0
    %5035 = vmatprep.subr.mxu0 0.0
    %5036 = vmatpush1.msra.mxu0 0.0
    %5037 = vmatprep.subr.mxu0 0.0
    %5038 = vmatpush1.msra.mxu0 0.0
    %5039 = vmatprep.subr.mxu0 0.0
    %5040 = vmatpush1.msra.mxu0 0.0
    %5041 = vmatprep.subr.mxu0 0.0
    %5042 = vmatpush1.msra.mxu0 0.0
    %5043 = vmatprep.subr.mxu0 0.0
    %5044 = vmatpush1.msra.mxu0 0.0
    %5045 = vmatprep.subr.mxu0 0.0
    %5046 = vmatpush1.msra.mxu0 0.0
    %5047 = vmatprep.subr.mxu0 0.0
    %5048 = vmatpush1.msra.mxu0 0.0
    %5049 = vmatprep.subr.mxu0 0.0
    %5050 = vmatpush1.msra.mxu0 0.0
    %5051 = vmatprep.subr.mxu0 %v5023
    %5052 = vmatpush1.msra.mxu0 %v5022
    %5053 = vmatprep.subr.mxu0 %v5021
    %5054 = vmatpush1.msra.mxu0 %v5020
    %5055 = vmatprep.subr.mxu0 %v5019
    %5056 = vmatpush1.msra.mxu0 %v5018
    %5057 = vmatprep.subr.mxu0 %v5017
    %5058 = vmatpush1.msra.mxu0 %v5016
    %5059 = vmatprep.subr.mxu0 0.0
    %5060 = vmatpush2.msra.mxu0 0.0
    %5061 = vmatprep.subr.mxu0 0.0
    %5062 = vmatpush2.msra.mxu0 0.0
    %5063 = vmatprep.subr.mxu0 0.0
    %5064 = vmatpush2.msra.mxu0 0.0
    %5065 = vmatprep.subr.mxu0 0.0
    %5066 = vmatpush2.msra.mxu0 0.0
    %5067 = vmatprep.subr.mxu0 0.0
    %5068 = vmatpush2.msra.mxu0 0.0
    %5069 = vmatprep.subr.mxu0 0.0
    %5070 = vmatpush2.msra.mxu0 0.0
    %5071 = vmatprep.subr.mxu0 0.0
    %5072 = vmatpush2.msra.mxu0 0.0
    %5073 = vmatprep.subr.mxu0 0.0
    %5074 = vmatpush2.msra.mxu0 0.0
    %5075 = vmatprep.subr.mxu0 0.0
    %5076 = vmatpush2.msra.mxu0 0.0
    %5077 = vmatprep.subr.mxu0 0.0
    %5078 = vmatpush2.msra.mxu0 0.0
    %5079 = vmatprep.subr.mxu0 0.0
    %5080 = vmatpush2.msra.mxu0 0.0
    %5081 = vmatprep.subr.mxu0 0.0
    %5082 = vmatpush2.msra.mxu0 0.0
    %5083 = vmatprep.subr.mxu0 0.0
    %5084 = vmatpush2.msra.mxu0 0.0
    %5085 = vmatprep.subr.mxu0 0.0
    %5086 = vmatpush2.msra.mxu0 0.0
    %5087 = vmatprep.subr.mxu0 0.0
    %5088 = vmatpush2.msra.mxu0 0.0
    %5089 = vmatprep.subr.mxu0 0.0
    %5090 = vmatpush2.msra.mxu0 0.0
    %5091 = vmatprep.mubr.f32.mxu0 0.0
    %5092 = vmatmul.mubr.f32.gmra.mxu0 %v5025
    %v5093 = vpop.f32.mrf.mxu0
    %v5094 = vadd.f32 0.0, %v5093
    %v5095 = vpop.f32.mrf.mxu0
    %v5096 = vadd.f32 0.0, %v5095
    %5097 = vdwg.mxu0
    %v5098 = vadd.f32 %v5012, %v5094
    %v5099 = vadd.f32 %v5014, %v5096
    %v5100 = vld [vmem:[%s10 + $0xc0] sm:$0xff]
    %v5101 = vld [vmem:[%s10 + $0xc8] sm:$0xff]
    %v5102 = vld [vmem:[%s10 + $0xd0] sm:$0xff]
    %v5103 = vld [vmem:[%s10 + $0xd8] sm:$0xff]
    %v5104 = vld [vmem:[%s10 + $0xe0] sm:$0xff]
    %v5105 = vld [vmem:[%s10 + $0xe8] sm:$0xff]
    %v5106 = vld [vmem:[%s10 + $0xf0] sm:$0xff]
    %v5107 = vld [vmem:[%s10 + $0xf8] sm:$0xff]
    %v5108 = vrot.slane %v4845, 4
    %v5109 = vsel %vm4755, %v5108, 0
    %5111 = vmatprep.subr.mxu0 0.0
    %5112 = vmatpush1.msra.mxu0 0.0
    %5113 = vmatprep.subr.mxu0 0.0
    %5114 = vmatpush1.msra.mxu0 0.0
    %5115 = vmatprep.subr.mxu0 0.0
    %5116 = vmatpush1.msra.mxu0 0.0
    %5117 = vmatprep.subr.mxu0 0.0
    %5118 = vmatpush1.msra.mxu0 0.0
    %5119 = vmatprep.subr.mxu0 0.0
    %5120 = vmatpush1.msra.mxu0 0.0
    %5121 = vmatprep.subr.mxu0 0.0
    %5122 = vmatpush1.msra.mxu0 0.0
    %5123 = vmatprep.subr.mxu0 0.0
    %5124 = vmatpush1.msra.mxu0 0.0
    %5125 = vmatprep.subr.mxu0 0.0
    %5126 = vmatpush1.msra.mxu0 0.0
    %5127 = vmatprep.subr.mxu0 0.0
    %5128 = vmatpush1.msra.mxu0 0.0
    %5129 = vmatprep.subr.mxu0 0.0
    %5130 = vmatpush1.msra.mxu0 0.0
    %5131 = vmatprep.subr.mxu0 0.0
    %5132 = vmatpush1.msra.mxu0 0.0
    %5133 = vmatprep.subr.mxu0 0.0
    %5134 = vmatpush1.msra.mxu0 0.0
    %5135 = vmatprep.subr.mxu0 %v5107
    %5136 = vmatpush1.msra.mxu0 %v5106
    %5137 = vmatprep.subr.mxu0 %v5105
    %5138 = vmatpush1.msra.mxu0 %v5104
    %5139 = vmatprep.subr.mxu0 %v5103
    %5140 = vmatpush1.msra.mxu0 %v5102
    %5141 = vmatprep.subr.mxu0 %v5101
    %5142 = vmatpush1.msra.mxu0 %v5100
    %5143 = vmatprep.subr.mxu0 0.0
    %5144 = vmatpush2.msra.mxu0 0.0
    %5145 = vmatprep.subr.mxu0 0.0
    %5146 = vmatpush2.msra.mxu0 0.0
    %5147 = vmatprep.subr.mxu0 0.0
    %5148 = vmatpush2.msra.mxu0 0.0
    %5149 = vmatprep.subr.mxu0 0.0
    %5150 = vmatpush2.msra.mxu0 0.0
    %5151 = vmatprep.subr.mxu0 0.0
    %5152 = vmatpush2.msra.mxu0 0.0
    %5153 = vmatprep.subr.mxu0 0.0
    %5154 = vmatpush2.msra.mxu0 0.0
    %5155 = vmatprep.subr.mxu0 0.0
    %5156 = vmatpush2.msra.mxu0 0.0
    %5157 = vmatprep.subr.mxu0 0.0
    %5158 = vmatpush2.msra.mxu0 0.0
    %5159 = vmatprep.subr.mxu0 0.0
    %5160 = vmatpush2.msra.mxu0 0.0
    %5161 = vmatprep.subr.mxu0 0.0
    %5162 = vmatpush2.msra.mxu0 0.0
    %5163 = vmatprep.subr.mxu0 0.0
    %5164 = vmatpush2.msra.mxu0 0.0
    %5165 = vmatprep.subr.mxu0 0.0
    %5166 = vmatpush2.msra.mxu0 0.0
    %5167 = vmatprep.subr.mxu0 0.0
    %5168 = vmatpush2.msra.mxu0 0.0
    %5169 = vmatprep.subr.mxu0 0.0
    %5170 = vmatpush2.msra.mxu0 0.0
    %5171 = vmatprep.subr.mxu0 0.0
    %5172 = vmatpush2.msra.mxu0 0.0
    %5173 = vmatprep.subr.mxu0 0.0
    %5174 = vmatpush2.msra.mxu0 0.0
    %5175 = vmatprep.mubr.f32.mxu0 0.0
    %5176 = vmatmul.mubr.f32.gmra.mxu0 %v5109
    %v5177 = vpop.f32.mrf.mxu0
    %v5178 = vadd.f32 0.0, %v5177
    %v5179 = vpop.f32.mrf.mxu0
    %v5180 = vadd.f32 0.0, %v5179
    %5181 = vdwg.mxu0
    %v5182 = vadd.f32 %v5098, %v5178
    %v5183 = vadd.f32 %v5099, %v5180
    %v5184 = vld [vmem:[%s10 + $0x100] sm:$0xff]
    %v5185 = vld [vmem:[%s10 + $0x108] sm:$0xff]
    %v5186 = vld [vmem:[%s10 + $0x110] sm:$0xff]
    %v5187 = vld [vmem:[%s10 + $0x118] sm:$0xff]
    %v5188 = vld [vmem:[%s10 + $0x120] sm:$0xff]
    %v5189 = vld [vmem:[%s10 + $0x128] sm:$0xff]
    %v5190 = vld [vmem:[%s10 + $0x130] sm:$0xff]
    %v5191 = vld [vmem:[%s10 + $0x138] sm:$0xff]
    %v5193 = vsel %vm4755, %v4846, 0
    %5195 = vmatprep.subr.mxu0 0.0
    %5196 = vmatpush1.msra.mxu0 0.0
    %5197 = vmatprep.subr.mxu0 0.0
    %5198 = vmatpush1.msra.mxu0 0.0
    %5199 = vmatprep.subr.mxu0 0.0
    %5200 = vmatpush1.msra.mxu0 0.0
    %5201 = vmatprep.subr.mxu0 0.0
    %5202 = vmatpush1.msra.mxu0 0.0
    %5203 = vmatprep.subr.mxu0 0.0
    %5204 = vmatpush1.msra.mxu0 0.0
    %5205 = vmatprep.subr.mxu0 0.0
    %5206 = vmatpush1.msra.mxu0 0.0
    %5207 = vmatprep.subr.mxu0 0.0
    %5208 = vmatpush1.msra.mxu0 0.0
    %5209 = vmatprep.subr.mxu0 0.0
    %5210 = vmatpush1.msra.mxu0 0.0
    %5211 = vmatprep.subr.mxu0 0.0
    %5212 = vmatpush1.msra.mxu0 0.0
    %5213 = vmatprep.subr.mxu0 0.0
    %5214 = vmatpush1.msra.mxu0 0.0
    %5215 = vmatprep.subr.mxu0 0.0
    %5216 = vmatpush1.msra.mxu0 0.0
    %5217 = vmatprep.subr.mxu0 0.0
    %5218 = vmatpush1.msra.mxu0 0.0
    %5219 = vmatprep.subr.mxu0 %v5191
    %5220 = vmatpush1.msra.mxu0 %v5190
    %5221 = vmatprep.subr.mxu0 %v5189
    %5222 = vmatpush1.msra.mxu0 %v5188
    %5223 = vmatprep.subr.mxu0 %v5187
    %5224 = vmatpush1.msra.mxu0 %v5186
    %5225 = vmatprep.subr.mxu0 %v5185
    %5226 = vmatpush1.msra.mxu0 %v5184
    %5227 = vmatprep.subr.mxu0 0.0
    %5228 = vmatpush2.msra.mxu0 0.0
    %5229 = vmatprep.subr.mxu0 0.0
    %5230 = vmatpush2.msra.mxu0 0.0
    %5231 = vmatprep.subr.mxu0 0.0
    %5232 = vmatpush2.msra.mxu0 0.0
    %5233 = vmatprep.subr.mxu0 0.0
    %5234 = vmatpush2.msra.mxu0 0.0
    %5235 = vmatprep.subr.mxu0 0.0
    %5236 = vmatpush2.msra.mxu0 0.0
    %5237 = vmatprep.subr.mxu0 0.0
    %5238 = vmatpush2.msra.mxu0 0.0
    %5239 = vmatprep.subr.mxu0 0.0
    %5240 = vmatpush2.msra.mxu0 0.0
    %5241 = vmatprep.subr.mxu0 0.0
    %5242 = vmatpush2.msra.mxu0 0.0
    %5243 = vmatprep.subr.mxu0 0.0
    %5244 = vmatpush2.msra.mxu0 0.0
    %5245 = vmatprep.subr.mxu0 0.0
    %5246 = vmatpush2.msra.mxu0 0.0
    %5247 = vmatprep.subr.mxu0 0.0
    %5248 = vmatpush2.msra.mxu0 0.0
    %5249 = vmatprep.subr.mxu0 0.0
    %5250 = vmatpush2.msra.mxu0 0.0
    %5251 = vmatprep.subr.mxu0 0.0
    %5252 = vmatpush2.msra.mxu0 0.0
    %5253 = vmatprep.subr.mxu0 0.0
    %5254 = vmatpush2.msra.mxu0 0.0
    %5255 = vmatprep.subr.mxu0 0.0
    %5256 = vmatpush2.msra.mxu0 0.0
    %5257 = vmatprep.subr.mxu0 0.0
    %5258 = vmatpush2.msra.mxu0 0.0
    %5259 = vmatprep.mubr.f32.mxu0 0.0
    %5260 = vmatmul.mubr.f32.gmra.mxu0 %v5193
    %v5261 = vpop.f32.mrf.mxu0
    %v5262 = vadd.f32 0.0, %v5261
    %v5263 = vpop.f32.mrf.mxu0
    %v5264 = vadd.f32 0.0, %v5263
    %5265 = vdwg.mxu0
    %v5266 = vadd.f32 %v5182, %v5262
    %v5267 = vadd.f32 %v5183, %v5264
    %v5268 = vld [vmem:[%s10 + $0x140] sm:$0xff]
    %v5269 = vld [vmem:[%s10 + $0x148] sm:$0xff]
    %v5270 = vld [vmem:[%s10 + $0x150] sm:$0xff]
    %v5271 = vld [vmem:[%s10 + $0x158] sm:$0xff]
    %v5272 = vld [vmem:[%s10 + $0x160] sm:$0xff]
    %v5273 = vld [vmem:[%s10 + $0x168] sm:$0xff]
    %v5274 = vld [vmem:[%s10 + $0x170] sm:$0xff]
    %v5275 = vld [vmem:[%s10 + $0x178] sm:$0xff]
    %v5276 = vrot.slane %v4846, 4
    %v5277 = vsel %vm4755, %v5276, 0
    %5279 = vmatprep.subr.mxu0 0.0
    %5280 = vmatpush1.msra.mxu0 0.0
    %5281 = vmatprep.subr.mxu0 0.0
    %5282 = vmatpush1.msra.mxu0 0.0
    %5283 = vmatprep.subr.mxu0 0.0
    %5284 = vmatpush1.msra.mxu0 0.0
    %5285 = vmatprep.subr.mxu0 0.0
    %5286 = vmatpush1.msra.mxu0 0.0
    %5287 = vmatprep.subr.mxu0 0.0
    %5288 = vmatpush1.msra.mxu0 0.0
    %5289 = vmatprep.subr.mxu0 0.0
    %5290 = vmatpush1.msra.mxu0 0.0
    %5291 = vmatprep.subr.mxu0 0.0
    %5292 = vmatpush1.msra.mxu0 0.0
    %5293 = vmatprep.subr.mxu0 0.0
    %5294 = vmatpush1.msra.mxu0 0.0
    %5295 = vmatprep.subr.mxu0 0.0
    %5296 = vmatpush1.msra.mxu0 0.0
    %5297 = vmatprep.subr.mxu0 0.0
    %5298 = vmatpush1.msra.mxu0 0.0
    %5299 = vmatprep.subr.mxu0 0.0
    %5300 = vmatpush1.msra.mxu0 0.0
    %5301 = vmatprep.subr.mxu0 0.0
    %5302 = vmatpush1.msra.mxu0 0.0
    %5303 = vmatprep.subr.mxu0 %v5275
    %5304 = vmatpush1.msra.mxu0 %v5274
    %5305 = vmatprep.subr.mxu0 %v5273
    %5306 = vmatpush1.msra.mxu0 %v5272
    %5307 = vmatprep.subr.mxu0 %v5271
    %5308 = vmatpush1.msra.mxu0 %v5270
    %5309 = vmatprep.subr.mxu0 %v5269
    %5310 = vmatpush1.msra.mxu0 %v5268
    %5311 = vmatprep.subr.mxu0 0.0
    %5312 = vmatpush2.msra.mxu0 0.0
    %5313 = vmatprep.subr.mxu0 0.0
    %5314 = vmatpush2.msra.mxu0 0.0
    %5315 = vmatprep.subr.mxu0 0.0
    %5316 = vmatpush2.msra.mxu0 0.0
    %5317 = vmatprep.subr.mxu0 0.0
    %5318 = vmatpush2.msra.mxu0 0.0
    %5319 = vmatprep.subr.mxu0 0.0
    %5320 = vmatpush2.msra.mxu0 0.0
    %5321 = vmatprep.subr.mxu0 0.0
    %5322 = vmatpush2.msra.mxu0 0.0
    %5323 = vmatprep.subr.mxu0 0.0
    %5324 = vmatpush2.msra.mxu0 0.0
    %5325 = vmatprep.subr.mxu0 0.0
    %5326 = vmatpush2.msra.mxu0 0.0
    %5327 = vmatprep.subr.mxu0 0.0
    %5328 = vmatpush2.msra.mxu0 0.0
    %5329 = vmatprep.subr.mxu0 0.0
    %5330 = vmatpush2.msra.mxu0 0.0
    %5331 = vmatprep.subr.mxu0 0.0
    %5332 = vmatpush2.msra.mxu0 0.0
    %5333 = vmatprep.subr.mxu0 0.0
    %5334 = vmatpush2.msra.mxu0 0.0
    %5335 = vmatprep.subr.mxu0 0.0
    %5336 = vmatpush2.msra.mxu0 0.0
    %5337 = vmatprep.subr.mxu0 0.0
    %5338 = vmatpush2.msra.mxu0 0.0
    %5339 = vmatprep.subr.mxu0 0.0
    %5340 = vmatpush2.msra.mxu0 0.0
    %5341 = vmatprep.subr.mxu0 0.0
    %5342 = vmatpush2.msra.mxu0 0.0
    %5343 = vmatprep.mubr.f32.mxu0 0.0
    %5344 = vmatmul.mubr.f32.gmra.mxu0 %v5277
    %v5345 = vpop.f32.mrf.mxu0
    %v5346 = vadd.f32 0.0, %v5345
    %v5347 = vpop.f32.mrf.mxu0
    %v5348 = vadd.f32 0.0, %v5347
    %5349 = vdwg.mxu0
    %v5350 = vadd.f32 %v5266, %v5346
    %v5351 = vadd.f32 %v5267, %v5348
    %v5352 = vld [vmem:[%s10 + $0x180] sm:$0xff]
    %v5353 = vld [vmem:[%s10 + $0x188] sm:$0xff]
    %v5354 = vld [vmem:[%s10 + $0x190] sm:$0xff]
    %v5355 = vld [vmem:[%s10 + $0x198] sm:$0xff]
    %v5356 = vld [vmem:[%s10 + $0x1a0] sm:$0xff]
    %v5357 = vld [vmem:[%s10 + $0x1a8] sm:$0xff]
    %v5358 = vld [vmem:[%s10 + $0x1b0] sm:$0xff]
    %v5359 = vld [vmem:[%s10 + $0x1b8] sm:$0xff]
    %v5361 = vsel %vm4755, %v4847, 0
    %5363 = vmatprep.subr.mxu0 0.0
    %5364 = vmatpush1.msra.mxu0 0.0
    %5365 = vmatprep.subr.mxu0 0.0
    %5366 = vmatpush1.msra.mxu0 0.0
    %5367 = vmatprep.subr.mxu0 0.0
    %5368 = vmatpush1.msra.mxu0 0.0
    %5369 = vmatprep.subr.mxu0 0.0
    %5370 = vmatpush1.msra.mxu0 0.0
    %5371 = vmatprep.subr.mxu0 0.0
    %5372 = vmatpush1.msra.mxu0 0.0
    %5373 = vmatprep.subr.mxu0 0.0
    %5374 = vmatpush1.msra.mxu0 0.0
    %5375 = vmatprep.subr.mxu0 0.0
    %5376 = vmatpush1.msra.mxu0 0.0
    %5377 = vmatprep.subr.mxu0 0.0
    %5378 = vmatpush1.msra.mxu0 0.0
    %5379 = vmatprep.subr.mxu0 0.0
    %5380 = vmatpush1.msra.mxu0 0.0
    %5381 = vmatprep.subr.mxu0 0.0
    %5382 = vmatpush1.msra.mxu0 0.0
    %5383 = vmatprep.subr.mxu0 0.0
    %5384 = vmatpush1.msra.mxu0 0.0
    %5385 = vmatprep.subr.mxu0 0.0
    %5386 = vmatpush1.msra.mxu0 0.0
    %5387 = vmatprep.subr.mxu0 %v5359
    %5388 = vmatpush1.msra.mxu0 %v5358
    %5389 = vmatprep.subr.mxu0 %v5357
    %5390 = vmatpush1.msra.mxu0 %v5356
    %5391 = vmatprep.subr.mxu0 %v5355
    %5392 = vmatpush1.msra.mxu0 %v5354
    %5393 = vmatprep.subr.mxu0 %v5353
    %5394 = vmatpush1.msra.mxu0 %v5352
    %5395 = vmatprep.subr.mxu0 0.0
    %5396 = vmatpush2.msra.mxu0 0.0
    %5397 = vmatprep.subr.mxu0 0.0
    %5398 = vmatpush2.msra.mxu0 0.0
    %5399 = vmatprep.subr.mxu0 0.0
    %5400 = vmatpush2.msra.mxu0 0.0
    %5401 = vmatprep.subr.mxu0 0.0
    %5402 = vmatpush2.msra.mxu0 0.0
    %5403 = vmatprep.subr.mxu0 0.0
    %5404 = vmatpush2.msra.mxu0 0.0
    %5405 = vmatprep.subr.mxu0 0.0
    %5406 = vmatpush2.msra.mxu0 0.0
    %5407 = vmatprep.subr.mxu0 0.0
    %5408 = vmatpush2.msra.mxu0 0.0
    %5409 = vmatprep.subr.mxu0 0.0
    %5410 = vmatpush2.msra.mxu0 0.0
    %5411 = vmatprep.subr.mxu0 0.0
    %5412 = vmatpush2.msra.mxu0 0.0
    %5413 = vmatprep.subr.mxu0 0.0
    %5414 = vmatpush2.msra.mxu0 0.0
    %5415 = vmatprep.subr.mxu0 0.0
    %5416 = vmatpush2.msra.mxu0 0.0
    %5417 = vmatprep.subr.mxu0 0.0
    %5418 = vmatpush2.msra.mxu0 0.0
    %5419 = vmatprep.subr.mxu0 0.0
    %5420 = vmatpush2.msra.mxu0 0.0
    %5421 = vmatprep.subr.mxu0 0.0
    %5422 = vmatpush2.msra.mxu0 0.0
    %5423 = vmatprep.subr.mxu0 0.0
    %5424 = vmatpush2.msra.mxu0 0.0
    %5425 = vmatprep.subr.mxu0 0.0
    %5426 = vmatpush2.msra.mxu0 0.0
    %5427 = vmatprep.mubr.f32.mxu0 0.0
    %5428 = vmatmul.mubr.f32.gmra.mxu0 %v5361
    %v5429 = vpop.f32.mrf.mxu0
    %v5430 = vadd.f32 0.0, %v5429
    %v5431 = vpop.f32.mrf.mxu0
    %v5432 = vadd.f32 0.0, %v5431
    %5433 = vdwg.mxu0
    %v5434 = vadd.f32 %v5350, %v5430
    %v5435 = vadd.f32 %v5351, %v5432
    %v5436 = vld [vmem:[%s10 + $0x1c0] sm:$0xff]
    %v5437 = vld [vmem:[%s10 + $0x1c8] sm:$0xff]
    %v5438 = vld [vmem:[%s10 + $0x1d0] sm:$0xff]
    %v5439 = vld [vmem:[%s10 + $0x1d8] sm:$0xff]
    %v5440 = vld [vmem:[%s10 + $0x1e0] sm:$0xff]
    %v5441 = vld [vmem:[%s10 + $0x1e8] sm:$0xff]
    %v5442 = vld [vmem:[%s10 + $0x1f0] sm:$0xff]
    %v5443 = vld [vmem:[%s10 + $0x1f8] sm:$0xff]
    %v5444 = vrot.slane %v4847, 4
    %v5445 = vsel %vm4755, %v5444, 0
    %5447 = vmatprep.subr.mxu0 0.0
    %5448 = vmatpush1.msra.mxu0 0.0
    %5449 = vmatprep.subr.mxu0 0.0
    %5450 = vmatpush1.msra.mxu0 0.0
    %5451 = vmatprep.subr.mxu0 0.0
    %5452 = vmatpush1.msra.mxu0 0.0
    %5453 = vmatprep.subr.mxu0 0.0
    %5454 = vmatpush1.msra.mxu0 0.0
    %5455 = vmatprep.subr.mxu0 0.0
    %5456 = vmatpush1.msra.mxu0 0.0
    %5457 = vmatprep.subr.mxu0 0.0
    %5458 = vmatpush1.msra.mxu0 0.0
    %5459 = vmatprep.subr.mxu0 0.0
    %5460 = vmatpush1.msra.mxu0 0.0
    %5461 = vmatprep.subr.mxu0 0.0
    %5462 = vmatpush1.msra.mxu0 0.0
    %5463 = vmatprep.subr.mxu0 0.0
    %5464 = vmatpush1.msra.mxu0 0.0
    %5465 = vmatprep.subr.mxu0 0.0
    %5466 = vmatpush1.msra.mxu0 0.0
    %5467 = vmatprep.subr.mxu0 0.0
    %5468 = vmatpush1.msra.mxu0 0.0
    %5469 = vmatprep.subr.mxu0 0.0
    %5470 = vmatpush1.msra.mxu0 0.0
    %5471 = vmatprep.subr.mxu0 %v5443
    %5472 = vmatpush1.msra.mxu0 %v5442
    %5473 = vmatprep.subr.mxu0 %v5441
    %5474 = vmatpush1.msra.mxu0 %v5440
    %5475 = vmatprep.subr.mxu0 %v5439
    %5476 = vmatpush1.msra.mxu0 %v5438
    %5477 = vmatprep.subr.mxu0 %v5437
    %5478 = vmatpush1.msra.mxu0 %v5436
    %5479 = vmatprep.subr.mxu0 0.0
    %5480 = vmatpush2.msra.mxu0 0.0
    %5481 = vmatprep.subr.mxu0 0.0
    %5482 = vmatpush2.msra.mxu0 0.0
    %5483 = vmatprep.subr.mxu0 0.0
    %5484 = vmatpush2.msra.mxu0 0.0
    %5485 = vmatprep.subr.mxu0 0.0
    %5486 = vmatpush2.msra.mxu0 0.0
    %5487 = vmatprep.subr.mxu0 0.0
    %5488 = vmatpush2.msra.mxu0 0.0
    %5489 = vmatprep.subr.mxu0 0.0
    %5490 = vmatpush2.msra.mxu0 0.0
    %5491 = vmatprep.subr.mxu0 0.0
    %5492 = vmatpush2.msra.mxu0 0.0
    %5493 = vmatprep.subr.mxu0 0.0
    %5494 = vmatpush2.msra.mxu0 0.0
    %5495 = vmatprep.subr.mxu0 0.0
    %5496 = vmatpush2.msra.mxu0 0.0
    %5497 = vmatprep.subr.mxu0 0.0
    %5498 = vmatpush2.msra.mxu0 0.0
    %5499 = vmatprep.subr.mxu0 0.0
    %5500 = vmatpush2.msra.mxu0 0.0
    %5501 = vmatprep.subr.mxu0 0.0
    %5502 = vmatpush2.msra.mxu0 0.0
    %5503 = vmatprep.subr.mxu0 0.0
    %5504 = vmatpush2.msra.mxu0 0.0
    %5505 = vmatprep.subr.mxu0 0.0
    %5506 = vmatpush2.msra.mxu0 0.0
    %5507 = vmatprep.subr.mxu0 0.0
    %5508 = vmatpush2.msra.mxu0 0.0
    %5509 = vmatprep.subr.mxu0 0.0
    %5510 = vmatpush2.msra.mxu0 0.0
    %5511 = vmatprep.mubr.f32.mxu0 0.0
    %5512 = vmatmul.mubr.f32.gmra.mxu0 %v5445
    %v5513 = vpop.f32.mrf.mxu0
    %v5514 = vadd.f32 0.0, %v5513
    %v5515 = vpop.f32.mrf.mxu0
    %v5516 = vadd.f32 0.0, %v5515
    %5517 = vdwg.mxu0
    %v5518 = vadd.f32 %v5434, %v5514
    %v5519 = vadd.f32 %v5435, %v5516
    %v5520 = vld [vmem:[%s10 + $0x200] sm:$0xff]
    %v5521 = vld [vmem:[%s10 + $0x208] sm:$0xff]
    %v5522 = vld [vmem:[%s10 + $0x210] sm:$0xff]
    %v5523 = vld [vmem:[%s10 + $0x218] sm:$0xff]
    %v5524 = vld [vmem:[%s10 + $0x220] sm:$0xff]
    %v5525 = vld [vmem:[%s10 + $0x228] sm:$0xff]
    %v5526 = vld [vmem:[%s10 + $0x230] sm:$0xff]
    %v5527 = vld [vmem:[%s10 + $0x238] sm:$0xff]
    %v5529 = vsel %vm4755, %v4848, 0
    %5531 = vmatprep.subr.mxu0 0.0
    %5532 = vmatpush1.msra.mxu0 0.0
    %5533 = vmatprep.subr.mxu0 0.0
    %5534 = vmatpush1.msra.mxu0 0.0
    %5535 = vmatprep.subr.mxu0 0.0
    %5536 = vmatpush1.msra.mxu0 0.0
    %5537 = vmatprep.subr.mxu0 0.0
    %5538 = vmatpush1.msra.mxu0 0.0
    %5539 = vmatprep.subr.mxu0 0.0
    %5540 = vmatpush1.msra.mxu0 0.0
    %5541 = vmatprep.subr.mxu0 0.0
    %5542 = vmatpush1.msra.mxu0 0.0
    %5543 = vmatprep.subr.mxu0 0.0
    %5544 = vmatpush1.msra.mxu0 0.0
    %5545 = vmatprep.subr.mxu0 0.0
    %5546 = vmatpush1.msra.mxu0 0.0
    %5547 = vmatprep.subr.mxu0 0.0
    %5548 = vmatpush1.msra.mxu0 0.0
    %5549 = vmatprep.subr.mxu0 0.0
    %5550 = vmatpush1.msra.mxu0 0.0
    %5551 = vmatprep.subr.mxu0 0.0
    %5552 = vmatpush1.msra.mxu0 0.0
    %5553 = vmatprep.subr.mxu0 0.0
    %5554 = vmatpush1.msra.mxu0 0.0
    %5555 = vmatprep.subr.mxu0 %v5527
    %5556 = vmatpush1.msra.mxu0 %v5526
    %5557 = vmatprep.subr.mxu0 %v5525
    %5558 = vmatpush1.msra.mxu0 %v5524
    %5559 = vmatprep.subr.mxu0 %v5523
    %5560 = vmatpush1.msra.mxu0 %v5522
    %5561 = vmatprep.subr.mxu0 %v5521
    %5562 = vmatpush1.msra.mxu0 %v5520
    %5563 = vmatprep.subr.mxu0 0.0
    %5564 = vmatpush2.msra.mxu0 0.0
    %5565 = vmatprep.subr.mxu0 0.0
    %5566 = vmatpush2.msra.mxu0 0.0
    %5567 = vmatprep.subr.mxu0 0.0
    %5568 = vmatpush2.msra.mxu0 0.0
    %5569 = vmatprep.subr.mxu0 0.0
    %5570 = vmatpush2.msra.mxu0 0.0
    %5571 = vmatprep.subr.mxu0 0.0
    %5572 = vmatpush2.msra.mxu0 0.0
    %5573 = vmatprep.subr.mxu0 0.0
    %5574 = vmatpush2.msra.mxu0 0.0
    %5575 = vmatprep.subr.mxu0 0.0
    %5576 = vmatpush2.msra.mxu0 0.0
    %5577 = vmatprep.subr.mxu0 0.0
    %5578 = vmatpush2.msra.mxu0 0.0
    %5579 = vmatprep.subr.mxu0 0.0
    %5580 = vmatpush2.msra.mxu0 0.0
    %5581 = vmatprep.subr.mxu0 0.0
    %5582 = vmatpush2.msra.mxu0 0.0
    %5583 = vmatprep.subr.mxu0 0.0
    %5584 = vmatpush2.msra.mxu0 0.0
    %5585 = vmatprep.subr.mxu0 0.0
    %5586 = vmatpush2.msra.mxu0 0.0
    %5587 = vmatprep.subr.mxu0 0.0
    %5588 = vmatpush2.msra.mxu0 0.0
    %5589 = vmatprep.subr.mxu0 0.0
    %5590 = vmatpush2.msra.mxu0 0.0
    %5591 = vmatprep.subr.mxu0 0.0
    %5592 = vmatpush2.msra.mxu0 0.0
    %5593 = vmatprep.subr.mxu0 0.0
    %5594 = vmatpush2.msra.mxu0 0.0
    %5595 = vmatprep.mubr.f32.mxu0 0.0
    %5596 = vmatmul.mubr.f32.gmra.mxu0 %v5529
    %v5597 = vpop.f32.mrf.mxu0
    %v5598 = vadd.f32 0.0, %v5597
    %v5599 = vpop.f32.mrf.mxu0
    %v5600 = vadd.f32 0.0, %v5599
    %5601 = vdwg.mxu0
    %v5602 = vadd.f32 %v5518, %v5598
    %v5603 = vadd.f32 %v5519, %v5600
    %v5604 = vld [vmem:[%s10 + $0x240] sm:$0xff]
    %v5605 = vld [vmem:[%s10 + $0x248] sm:$0xff]
    %v5606 = vld [vmem:[%s10 + $0x250] sm:$0xff]
    %v5607 = vld [vmem:[%s10 + $0x258] sm:$0xff]
    %v5608 = vld [vmem:[%s10 + $0x260] sm:$0xff]
    %v5609 = vld [vmem:[%s10 + $0x268] sm:$0xff]
    %v5610 = vld [vmem:[%s10 + $0x270] sm:$0xff]
    %v5611 = vld [vmem:[%s10 + $0x278] sm:$0xff]
    %v5612 = vrot.slane %v4848, 4
    %v5613 = vsel %vm4755, %v5612, 0
    %5615 = vmatprep.subr.mxu0 0.0
    %5616 = vmatpush1.msra.mxu0 0.0
    %5617 = vmatprep.subr.mxu0 0.0
    %5618 = vmatpush1.msra.mxu0 0.0
    %5619 = vmatprep.subr.mxu0 0.0
    %5620 = vmatpush1.msra.mxu0 0.0
    %5621 = vmatprep.subr.mxu0 0.0
    %5622 = vmatpush1.msra.mxu0 0.0
    %5623 = vmatprep.subr.mxu0 0.0
    %5624 = vmatpush1.msra.mxu0 0.0
    %5625 = vmatprep.subr.mxu0 0.0
    %5626 = vmatpush1.msra.mxu0 0.0
    %5627 = vmatprep.subr.mxu0 0.0
    %5628 = vmatpush1.msra.mxu0 0.0
    %5629 = vmatprep.subr.mxu0 0.0
    %5630 = vmatpush1.msra.mxu0 0.0
    %5631 = vmatprep.subr.mxu0 0.0
    %5632 = vmatpush1.msra.mxu0 0.0
    %5633 = vmatprep.subr.mxu0 0.0
    %5634 = vmatpush1.msra.mxu0 0.0
    %5635 = vmatprep.subr.mxu0 0.0
    %5636 = vmatpush1.msra.mxu0 0.0
    %5637 = vmatprep.subr.mxu0 0.0
    %5638 = vmatpush1.msra.mxu0 0.0
    %5639 = vmatprep.subr.mxu0 %v5611
    %5640 = vmatpush1.msra.mxu0 %v5610
    %5641 = vmatprep.subr.mxu0 %v5609
    %5642 = vmatpush1.msra.mxu0 %v5608
    %5643 = vmatprep.subr.mxu0 %v5607
    %5644 = vmatpush1.msra.mxu0 %v5606
    %5645 = vmatprep.subr.mxu0 %v5605
    %5646 = vmatpush1.msra.mxu0 %v5604
    %5647 = vmatprep.subr.mxu0 0.0
    %5648 = vmatpush2.msra.mxu0 0.0
    %5649 = vmatprep.subr.mxu0 0.0
    %5650 = vmatpush2.msra.mxu0 0.0
    %5651 = vmatprep.subr.mxu0 0.0
    %5652 = vmatpush2.msra.mxu0 0.0
    %5653 = vmatprep.subr.mxu0 0.0
    %5654 = vmatpush2.msra.mxu0 0.0
    %5655 = vmatprep.subr.mxu0 0.0
    %5656 = vmatpush2.msra.mxu0 0.0
    %5657 = vmatprep.subr.mxu0 0.0
    %5658 = vmatpush2.msra.mxu0 0.0
    %5659 = vmatprep.subr.mxu0 0.0
    %5660 = vmatpush2.msra.mxu0 0.0
    %5661 = vmatprep.subr.mxu0 0.0
    %5662 = vmatpush2.msra.mxu0 0.0
    %5663 = vmatprep.subr.mxu0 0.0
    %5664 = vmatpush2.msra.mxu0 0.0
    %5665 = vmatprep.subr.mxu0 0.0
    %5666 = vmatpush2.msra.mxu0 0.0
    %5667 = vmatprep.subr.mxu0 0.0
    %5668 = vmatpush2.msra.mxu0 0.0
    %5669 = vmatprep.subr.mxu0 0.0
    %5670 = vmatpush2.msra.mxu0 0.0
    %5671 = vmatprep.subr.mxu0 0.0
    %5672 = vmatpush2.msra.mxu0 0.0
    %5673 = vmatprep.subr.mxu0 0.0
    %5674 = vmatpush2.msra.mxu0 0.0
    %5675 = vmatprep.subr.mxu0 0.0
    %5676 = vmatpush2.msra.mxu0 0.0
    %5677 = vmatprep.subr.mxu0 0.0
    %5678 = vmatpush2.msra.mxu0 0.0
    %5679 = vmatprep.mubr.f32.mxu0 0.0
    %5680 = vmatmul.mubr.f32.gmra.mxu0 %v5613
    %v5681 = vpop.f32.mrf.mxu0
    %v5682 = vadd.f32 0.0, %v5681
    %v5683 = vpop.f32.mrf.mxu0
    %v5684 = vadd.f32 0.0, %v5683
    %5685 = vdwg.mxu0
    %v5686 = vadd.f32 %v5602, %v5682
    %v5687 = vadd.f32 %v5603, %v5684
    %v5688 = vld [vmem:[%s10 + $0x280] sm:$0xff]
    %v5689 = vld [vmem:[%s10 + $0x288] sm:$0xff]
    %v5690 = vld [vmem:[%s10 + $0x290] sm:$0xff]
    %v5691 = vld [vmem:[%s10 + $0x298] sm:$0xff]
    %v5692 = vld [vmem:[%s10 + $0x2a0] sm:$0xff]
    %v5693 = vld [vmem:[%s10 + $0x2a8] sm:$0xff]
    %v5694 = vld [vmem:[%s10 + $0x2b0] sm:$0xff]
    %v5695 = vld [vmem:[%s10 + $0x2b8] sm:$0xff]
    %v5697 = vsel %vm4755, %v4849, 0
    %5699 = vmatprep.subr.mxu0 0.0
    %5700 = vmatpush1.msra.mxu0 0.0
    %5701 = vmatprep.subr.mxu0 0.0
    %5702 = vmatpush1.msra.mxu0 0.0
    %5703 = vmatprep.subr.mxu0 0.0
    %5704 = vmatpush1.msra.mxu0 0.0
    %5705 = vmatprep.subr.mxu0 0.0
    %5706 = vmatpush1.msra.mxu0 0.0
    %5707 = vmatprep.subr.mxu0 0.0
    %5708 = vmatpush1.msra.mxu0 0.0
    %5709 = vmatprep.subr.mxu0 0.0
    %5710 = vmatpush1.msra.mxu0 0.0
    %5711 = vmatprep.subr.mxu0 0.0
    %5712 = vmatpush1.msra.mxu0 0.0
    %5713 = vmatprep.subr.mxu0 0.0
    %5714 = vmatpush1.msra.mxu0 0.0
    %5715 = vmatprep.subr.mxu0 0.0
    %5716 = vmatpush1.msra.mxu0 0.0
    %5717 = vmatprep.subr.mxu0 0.0
    %5718 = vmatpush1.msra.mxu0 0.0
    %5719 = vmatprep.subr.mxu0 0.0
    %5720 = vmatpush1.msra.mxu0 0.0
    %5721 = vmatprep.subr.mxu0 0.0
    %5722 = vmatpush1.msra.mxu0 0.0
    %5723 = vmatprep.subr.mxu0 %v5695
    %5724 = vmatpush1.msra.mxu0 %v5694
    %5725 = vmatprep.subr.mxu0 %v5693
    %5726 = vmatpush1.msra.mxu0 %v5692
    %5727 = vmatprep.subr.mxu0 %v5691
    %5728 = vmatpush1.msra.mxu0 %v5690
    %5729 = vmatprep.subr.mxu0 %v5689
    %5730 = vmatpush1.msra.mxu0 %v5688
    %5731 = vmatprep.subr.mxu0 0.0
    %5732 = vmatpush2.msra.mxu0 0.0
    %5733 = vmatprep.subr.mxu0 0.0
    %5734 = vmatpush2.msra.mxu0 0.0
    %5735 = vmatprep.subr.mxu0 0.0
    %5736 = vmatpush2.msra.mxu0 0.0
    %5737 = vmatprep.subr.mxu0 0.0
    %5738 = vmatpush2.msra.mxu0 0.0
    %5739 = vmatprep.subr.mxu0 0.0
    %5740 = vmatpush2.msra.mxu0 0.0
    %5741 = vmatprep.subr.mxu0 0.0
    %5742 = vmatpush2.msra.mxu0 0.0
    %5743 = vmatprep.subr.mxu0 0.0
    %5744 = vmatpush2.msra.mxu0 0.0
    %5745 = vmatprep.subr.mxu0 0.0
    %5746 = vmatpush2.msra.mxu0 0.0
    %5747 = vmatprep.subr.mxu0 0.0
    %5748 = vmatpush2.msra.mxu0 0.0
    %5749 = vmatprep.subr.mxu0 0.0
    %5750 = vmatpush2.msra.mxu0 0.0
    %5751 = vmatprep.subr.mxu0 0.0
    %5752 = vmatpush2.msra.mxu0 0.0
    %5753 = vmatprep.subr.mxu0 0.0
    %5754 = vmatpush2.msra.mxu0 0.0
    %5755 = vmatprep.subr.mxu0 0.0
    %5756 = vmatpush2.msra.mxu0 0.0
    %5757 = vmatprep.subr.mxu0 0.0
    %5758 = vmatpush2.msra.mxu0 0.0
    %5759 = vmatprep.subr.mxu0 0.0
    %5760 = vmatpush2.msra.mxu0 0.0
    %5761 = vmatprep.subr.mxu0 0.0
    %5762 = vmatpush2.msra.mxu0 0.0
    %5763 = vmatprep.mubr.f32.mxu0 0.0
    %5764 = vmatmul.mubr.f32.gmra.mxu0 %v5697
    %v5765 = vpop.f32.mrf.mxu0
    %v5766 = vadd.f32 0.0, %v5765
    %v5767 = vpop.f32.mrf.mxu0
    %v5768 = vadd.f32 0.0, %v5767
    %5769 = vdwg.mxu0
    %v5770 = vadd.f32 %v5686, %v5766
    %v5771 = vadd.f32 %v5687, %v5768
    %v5772 = vld [vmem:[%s10 + $0x2c0] sm:$0xff]
    %v5773 = vld [vmem:[%s10 + $0x2c8] sm:$0xff]
    %v5774 = vld [vmem:[%s10 + $0x2d0] sm:$0xff]
    %v5775 = vld [vmem:[%s10 + $0x2d8] sm:$0xff]
    %v5776 = vld [vmem:[%s10 + $0x2e0] sm:$0xff]
    %v5777 = vld [vmem:[%s10 + $0x2e8] sm:$0xff]
    %v5778 = vld [vmem:[%s10 + $0x2f0] sm:$0xff]
    %v5779 = vld [vmem:[%s10 + $0x2f8] sm:$0xff]
    %v5780 = vrot.slane %v4849, 4
    %v5781 = vsel %vm4755, %v5780, 0
    %5783 = vmatprep.subr.mxu0 0.0
    %5784 = vmatpush1.msra.mxu0 0.0
    %5785 = vmatprep.subr.mxu0 0.0
    %5786 = vmatpush1.msra.mxu0 0.0
    %5787 = vmatprep.subr.mxu0 0.0
    %5788 = vmatpush1.msra.mxu0 0.0
    %5789 = vmatprep.subr.mxu0 0.0
    %5790 = vmatpush1.msra.mxu0 0.0
    %5791 = vmatprep.subr.mxu0 0.0
    %5792 = vmatpush1.msra.mxu0 0.0
    %5793 = vmatprep.subr.mxu0 0.0
    %5794 = vmatpush1.msra.mxu0 0.0
    %5795 = vmatprep.subr.mxu0 0.0
    %5796 = vmatpush1.msra.mxu0 0.0
    %5797 = vmatprep.subr.mxu0 0.0
    %5798 = vmatpush1.msra.mxu0 0.0
    %5799 = vmatprep.subr.mxu0 0.0
    %5800 = vmatpush1.msra.mxu0 0.0
    %5801 = vmatprep.subr.mxu0 0.0
    %5802 = vmatpush1.msra.mxu0 0.0
    %5803 = vmatprep.subr.mxu0 0.0
    %5804 = vmatpush1.msra.mxu0 0.0
    %5805 = vmatprep.subr.mxu0 0.0
    %5806 = vmatpush1.msra.mxu0 0.0
    %5807 = vmatprep.subr.mxu0 %v5779
    %5808 = vmatpush1.msra.mxu0 %v5778
    %5809 = vmatprep.subr.mxu0 %v5777
    %5810 = vmatpush1.msra.mxu0 %v5776
    %5811 = vmatprep.subr.mxu0 %v5775
    %5812 = vmatpush1.msra.mxu0 %v5774
    %5813 = vmatprep.subr.mxu0 %v5773
    %5814 = vmatpush1.msra.mxu0 %v5772
    %5815 = vmatprep.subr.mxu0 0.0
    %5816 = vmatpush2.msra.mxu0 0.0
    %5817 = vmatprep.subr.mxu0 0.0
    %5818 = vmatpush2.msra.mxu0 0.0
    %5819 = vmatprep.subr.mxu0 0.0
    %5820 = vmatpush2.msra.mxu0 0.0
    %5821 = vmatprep.subr.mxu0 0.0
    %5822 = vmatpush2.msra.mxu0 0.0
    %5823 = vmatprep.subr.mxu0 0.0
    %5824 = vmatpush2.msra.mxu0 0.0
    %5825 = vmatprep.subr.mxu0 0.0
    %5826 = vmatpush2.msra.mxu0 0.0
    %5827 = vmatprep.subr.mxu0 0.0
    %5828 = vmatpush2.msra.mxu0 0.0
    %5829 = vmatprep.subr.mxu0 0.0
    %5830 = vmatpush2.msra.mxu0 0.0
    %5831 = vmatprep.subr.mxu0 0.0
    %5832 = vmatpush2.msra.mxu0 0.0
    %5833 = vmatprep.subr.mxu0 0.0
    %5834 = vmatpush2.msra.mxu0 0.0
    %5835 = vmatprep.subr.mxu0 0.0
    %5836 = vmatpush2.msra.mxu0 0.0
    %5837 = vmatprep.subr.mxu0 0.0
    %5838 = vmatpush2.msra.mxu0 0.0
    %5839 = vmatprep.subr.mxu0 0.0
    %5840 = vmatpush2.msra.mxu0 0.0
    %5841 = vmatprep.subr.mxu0 0.0
    %5842 = vmatpush2.msra.mxu0 0.0
    %5843 = vmatprep.subr.mxu0 0.0
    %5844 = vmatpush2.msra.mxu0 0.0
    %5845 = vmatprep.subr.mxu0 0.0
    %5846 = vmatpush2.msra.mxu0 0.0
    %5847 = vmatprep.mubr.f32.mxu0 0.0
    %5848 = vmatmul.mubr.f32.gmra.mxu0 %v5781
    %v5849 = vpop.f32.mrf.mxu0
    %v5850 = vadd.f32 0.0, %v5849
    %v5851 = vpop.f32.mrf.mxu0
    %v5852 = vadd.f32 0.0, %v5851
    %5853 = vdwg.mxu0
    %v5854 = vadd.f32 %v5770, %v5850
    %v5855 = vadd.f32 %v5771, %v5852
    %v5856 = vld [vmem:[%s10 + $0x300] sm:$0xff]
    %v5857 = vld [vmem:[%s10 + $0x308] sm:$0xff]
    %v5858 = vld [vmem:[%s10 + $0x310] sm:$0xff]
    %v5859 = vld [vmem:[%s10 + $0x318] sm:$0xff]
    %v5860 = vld [vmem:[%s10 + $0x320] sm:$0xff]
    %v5861 = vld [vmem:[%s10 + $0x328] sm:$0xff]
    %v5862 = vld [vmem:[%s10 + $0x330] sm:$0xff]
    %v5863 = vld [vmem:[%s10 + $0x338] sm:$0xff]
    %v5865 = vsel %vm4755, %v4850, 0
    %5867 = vmatprep.subr.mxu0 0.0
    %5868 = vmatpush1.msra.mxu0 0.0
    %5869 = vmatprep.subr.mxu0 0.0
    %5870 = vmatpush1.msra.mxu0 0.0
    %5871 = vmatprep.subr.mxu0 0.0
    %5872 = vmatpush1.msra.mxu0 0.0
    %5873 = vmatprep.subr.mxu0 0.0
    %5874 = vmatpush1.msra.mxu0 0.0
    %5875 = vmatprep.subr.mxu0 0.0
    %5876 = vmatpush1.msra.mxu0 0.0
    %5877 = vmatprep.subr.mxu0 0.0
    %5878 = vmatpush1.msra.mxu0 0.0
    %5879 = vmatprep.subr.mxu0 0.0
    %5880 = vmatpush1.msra.mxu0 0.0
    %5881 = vmatprep.subr.mxu0 0.0
    %5882 = vmatpush1.msra.mxu0 0.0
    %5883 = vmatprep.subr.mxu0 0.0
    %5884 = vmatpush1.msra.mxu0 0.0
    %5885 = vmatprep.subr.mxu0 0.0
    %5886 = vmatpush1.msra.mxu0 0.0
    %5887 = vmatprep.subr.mxu0 0.0
    %5888 = vmatpush1.msra.mxu0 0.0
    %5889 = vmatprep.subr.mxu0 0.0
    %5890 = vmatpush1.msra.mxu0 0.0
    %5891 = vmatprep.subr.mxu0 %v5863
    %5892 = vmatpush1.msra.mxu0 %v5862
    %5893 = vmatprep.subr.mxu0 %v5861
    %5894 = vmatpush1.msra.mxu0 %v5860
    %5895 = vmatprep.subr.mxu0 %v5859
    %5896 = vmatpush1.msra.mxu0 %v5858
    %5897 = vmatprep.subr.mxu0 %v5857
    %5898 = vmatpush1.msra.mxu0 %v5856
    %5899 = vmatprep.subr.mxu0 0.0
    %5900 = vmatpush2.msra.mxu0 0.0
    %5901 = vmatprep.subr.mxu0 0.0
    %5902 = vmatpush2.msra.mxu0 0.0
    %5903 = vmatprep.subr.mxu0 0.0
    %5904 = vmatpush2.msra.mxu0 0.0
    %5905 = vmatprep.subr.mxu0 0.0
    %5906 = vmatpush2.msra.mxu0 0.0
    %5907 = vmatprep.subr.mxu0 0.0
    %5908 = vmatpush2.msra.mxu0 0.0
    %5909 = vmatprep.subr.mxu0 0.0
    %5910 = vmatpush2.msra.mxu0 0.0
    %5911 = vmatprep.subr.mxu0 0.0
    %5912 = vmatpush2.msra.mxu0 0.0
    %5913 = vmatprep.subr.mxu0 0.0
    %5914 = vmatpush2.msra.mxu0 0.0
    %5915 = vmatprep.subr.mxu0 0.0
    %5916 = vmatpush2.msra.mxu0 0.0
    %5917 = vmatprep.subr.mxu0 0.0
    %5918 = vmatpush2.msra.mxu0 0.0
    %5919 = vmatprep.subr.mxu0 0.0
    %5920 = vmatpush2.msra.mxu0 0.0
    %5921 = vmatprep.subr.mxu0 0.0
    %5922 = vmatpush2.msra.mxu0 0.0
    %5923 = vmatprep.subr.mxu0 0.0
    %5924 = vmatpush2.msra.mxu0 0.0
    %5925 = vmatprep.subr.mxu0 0.0
    %5926 = vmatpush2.msra.mxu0 0.0
    %5927 = vmatprep.subr.mxu0 0.0
    %5928 = vmatpush2.msra.mxu0 0.0
    %5929 = vmatprep.subr.mxu0 0.0
    %5930 = vmatpush2.msra.mxu0 0.0
    %5931 = vmatprep.mubr.f32.mxu0 0.0
    %5932 = vmatmul.mubr.f32.gmra.mxu0 %v5865
    %v5933 = vpop.f32.mrf.mxu0
    %v5934 = vadd.f32 0.0, %v5933
    %v5935 = vpop.f32.mrf.mxu0
    %v5936 = vadd.f32 0.0, %v5935
    %5937 = vdwg.mxu0
    %v5938 = vadd.f32 %v5854, %v5934
    %v5939 = vadd.f32 %v5855, %v5936
    %v5940 = vld [vmem:[%s10 + $0x340] sm:$0xff]
    %v5941 = vld [vmem:[%s10 + $0x348] sm:$0xff]
    %v5942 = vld [vmem:[%s10 + $0x350] sm:$0xff]
    %v5943 = vld [vmem:[%s10 + $0x358] sm:$0xff]
    %v5944 = vld [vmem:[%s10 + $0x360] sm:$0xff]
    %v5945 = vld [vmem:[%s10 + $0x368] sm:$0xff]
    %v5946 = vld [vmem:[%s10 + $0x370] sm:$0xff]
    %v5947 = vld [vmem:[%s10 + $0x378] sm:$0xff]
    %v5948 = vrot.slane %v4850, 4
    %v5949 = vsel %vm4755, %v5948, 0
    %5951 = vmatprep.subr.mxu0 0.0
    %5952 = vmatpush1.msra.mxu0 0.0
    %5953 = vmatprep.subr.mxu0 0.0
    %5954 = vmatpush1.msra.mxu0 0.0
    %5955 = vmatprep.subr.mxu0 0.0
    %5956 = vmatpush1.msra.mxu0 0.0
    %5957 = vmatprep.subr.mxu0 0.0
    %5958 = vmatpush1.msra.mxu0 0.0
    %5959 = vmatprep.subr.mxu0 0.0
    %5960 = vmatpush1.msra.mxu0 0.0
    %5961 = vmatprep.subr.mxu0 0.0
    %5962 = vmatpush1.msra.mxu0 0.0
    %5963 = vmatprep.subr.mxu0 0.0
    %5964 = vmatpush1.msra.mxu0 0.0
    %5965 = vmatprep.subr.mxu0 0.0
    %5966 = vmatpush1.msra.mxu0 0.0
    %5967 = vmatprep.subr.mxu0 0.0
    %5968 = vmatpush1.msra.mxu0 0.0
    %5969 = vmatprep.subr.mxu0 0.0
    %5970 = vmatpush1.msra.mxu0 0.0
    %5971 = vmatprep.subr.mxu0 0.0
    %5972 = vmatpush1.msra.mxu0 0.0
    %5973 = vmatprep.subr.mxu0 0.0
    %5974 = vmatpush1.msra.mxu0 0.0
    %5975 = vmatprep.subr.mxu0 %v5947
    %5976 = vmatpush1.msra.mxu0 %v5946
    %5977 = vmatprep.subr.mxu0 %v5945
    %5978 = vmatpush1.msra.mxu0 %v5944
    %5979 = vmatprep.subr.mxu0 %v5943
    %5980 = vmatpush1.msra.mxu0 %v5942
    %5981 = vmatprep.subr.mxu0 %v5941
    %5982 = vmatpush1.msra.mxu0 %v5940
    %5983 = vmatprep.subr.mxu0 0.0
    %5984 = vmatpush2.msra.mxu0 0.0
    %5985 = vmatprep.subr.mxu0 0.0
    %5986 = vmatpush2.msra.mxu0 0.0
    %5987 = vmatprep.subr.mxu0 0.0
    %5988 = vmatpush2.msra.mxu0 0.0
    %5989 = vmatprep.subr.mxu0 0.0
    %5990 = vmatpush2.msra.mxu0 0.0
    %5991 = vmatprep.subr.mxu0 0.0
    %5992 = vmatpush2.msra.mxu0 0.0
    %5993 = vmatprep.subr.mxu0 0.0
    %5994 = vmatpush2.msra.mxu0 0.0
    %5995 = vmatprep.subr.mxu0 0.0
    %5996 = vmatpush2.msra.mxu0 0.0
    %5997 = vmatprep.subr.mxu0 0.0
    %5998 = vmatpush2.msra.mxu0 0.0
    %5999 = vmatprep.subr.mxu0 0.0
    %6000 = vmatpush2.msra.mxu0 0.0
    %6001 = vmatprep.subr.mxu0 0.0
    %6002 = vmatpush2.msra.mxu0 0.0
    %6003 = vmatprep.subr.mxu0 0.0
    %6004 = vmatpush2.msra.mxu0 0.0
    %6005 = vmatprep.subr.mxu0 0.0
    %6006 = vmatpush2.msra.mxu0 0.0
    %6007 = vmatprep.subr.mxu0 0.0
    %6008 = vmatpush2.msra.mxu0 0.0
    %6009 = vmatprep.subr.mxu0 0.0
    %6010 = vmatpush2.msra.mxu0 0.0
    %6011 = vmatprep.subr.mxu0 0.0
    %6012 = vmatpush2.msra.mxu0 0.0
    %6013 = vmatprep.subr.mxu0 0.0
    %6014 = vmatpush2.msra.mxu0 0.0
    %6015 = vmatprep.mubr.f32.mxu0 0.0
    %6016 = vmatmul.mubr.f32.gmra.mxu0 %v5949
    %v6017 = vpop.f32.mrf.mxu0
    %v6018 = vadd.f32 0.0, %v6017
    %v6019 = vpop.f32.mrf.mxu0
    %v6020 = vadd.f32 0.0, %v6019
    %6021 = vdwg.mxu0
    %v6022 = vadd.f32 %v5938, %v6018
    %v6023 = vadd.f32 %v5939, %v6020
    %v6024 = vld [vmem:[%s10 + $0x380] sm:$0xff]
    %v6025 = vld [vmem:[%s10 + $0x388] sm:$0xff]
    %v6026 = vld [vmem:[%s10 + $0x390] sm:$0xff]
    %v6027 = vld [vmem:[%s10 + $0x398] sm:$0xff]
    %v6028 = vld [vmem:[%s10 + $0x3a0] sm:$0xff]
    %v6029 = vld [vmem:[%s10 + $0x3a8] sm:$0xff]
    %v6030 = vld [vmem:[%s10 + $0x3b0] sm:$0xff]
    %v6031 = vld [vmem:[%s10 + $0x3b8] sm:$0xff]
    %v6033 = vsel %vm4755, %v4851, 0
    %6035 = vmatprep.subr.mxu0 0.0
    %6036 = vmatpush1.msra.mxu0 0.0
    %6037 = vmatprep.subr.mxu0 0.0
    %6038 = vmatpush1.msra.mxu0 0.0
    %6039 = vmatprep.subr.mxu0 0.0
    %6040 = vmatpush1.msra.mxu0 0.0
    %6041 = vmatprep.subr.mxu0 0.0
    %6042 = vmatpush1.msra.mxu0 0.0
    %6043 = vmatprep.subr.mxu0 0.0
    %6044 = vmatpush1.msra.mxu0 0.0
    %6045 = vmatprep.subr.mxu0 0.0
    %6046 = vmatpush1.msra.mxu0 0.0
    %6047 = vmatprep.subr.mxu0 0.0
    %6048 = vmatpush1.msra.mxu0 0.0
    %6049 = vmatprep.subr.mxu0 0.0
    %6050 = vmatpush1.msra.mxu0 0.0
    %6051 = vmatprep.subr.mxu0 0.0
    %6052 = vmatpush1.msra.mxu0 0.0
    %6053 = vmatprep.subr.mxu0 0.0
    %6054 = vmatpush1.msra.mxu0 0.0
    %6055 = vmatprep.subr.mxu0 0.0
    %6056 = vmatpush1.msra.mxu0 0.0
    %6057 = vmatprep.subr.mxu0 0.0
    %6058 = vmatpush1.msra.mxu0 0.0
    %6059 = vmatprep.subr.mxu0 %v6031
    %6060 = vmatpush1.msra.mxu0 %v6030
    %6061 = vmatprep.subr.mxu0 %v6029
    %6062 = vmatpush1.msra.mxu0 %v6028
    %6063 = vmatprep.subr.mxu0 %v6027
    %6064 = vmatpush1.msra.mxu0 %v6026
    %6065 = vmatprep.subr.mxu0 %v6025
    %6066 = vmatpush1.msra.mxu0 %v6024
    %6067 = vmatprep.subr.mxu0 0.0
    %6068 = vmatpush2.msra.mxu0 0.0
    %6069 = vmatprep.subr.mxu0 0.0
    %6070 = vmatpush2.msra.mxu0 0.0
    %6071 = vmatprep.subr.mxu0 0.0
    %6072 = vmatpush2.msra.mxu0 0.0
    %6073 = vmatprep.subr.mxu0 0.0
    %6074 = vmatpush2.msra.mxu0 0.0
    %6075 = vmatprep.subr.mxu0 0.0
    %6076 = vmatpush2.msra.mxu0 0.0
    %6077 = vmatprep.subr.mxu0 0.0
    %6078 = vmatpush2.msra.mxu0 0.0
    %6079 = vmatprep.subr.mxu0 0.0
    %6080 = vmatpush2.msra.mxu0 0.0
    %6081 = vmatprep.subr.mxu0 0.0
    %6082 = vmatpush2.msra.mxu0 0.0
    %6083 = vmatprep.subr.mxu0 0.0
    %6084 = vmatpush2.msra.mxu0 0.0
    %6085 = vmatprep.subr.mxu0 0.0
    %6086 = vmatpush2.msra.mxu0 0.0
    %6087 = vmatprep.subr.mxu0 0.0
    %6088 = vmatpush2.msra.mxu0 0.0
    %6089 = vmatprep.subr.mxu0 0.0
    %6090 = vmatpush2.msra.mxu0 0.0
    %6091 = vmatprep.subr.mxu0 0.0
    %6092 = vmatpush2.msra.mxu0 0.0
    %6093 = vmatprep.subr.mxu0 0.0
    %6094 = vmatpush2.msra.mxu0 0.0
    %6095 = vmatprep.subr.mxu0 0.0
    %6096 = vmatpush2.msra.mxu0 0.0
    %6097 = vmatprep.subr.mxu0 0.0
    %6098 = vmatpush2.msra.mxu0 0.0
    %6099 = vmatprep.mubr.f32.mxu0 0.0
    %6100 = vmatmul.mubr.f32.gmra.mxu0 %v6033
    %v6101 = vpop.f32.mrf.mxu0
    %v6102 = vadd.f32 0.0, %v6101
    %v6103 = vpop.f32.mrf.mxu0
    %v6104 = vadd.f32 0.0, %v6103
    %6105 = vdwg.mxu0
    %v6106 = vadd.f32 %v6022, %v6102
    %v6107 = vadd.f32 %v6023, %v6104
    %v6108 = vld [vmem:[%s10 + $0x3c0] sm:$0xff]
    %v6109 = vld [vmem:[%s10 + $0x3c8] sm:$0xff]
    %v6110 = vld [vmem:[%s10 + $0x3d0] sm:$0xff]
    %v6111 = vld [vmem:[%s10 + $0x3d8] sm:$0xff]
    %v6112 = vld [vmem:[%s10 + $0x3e0] sm:$0xff]
    %v6113 = vld [vmem:[%s10 + $0x3e8] sm:$0xff]
    %v6114 = vld [vmem:[%s10 + $0x3f0] sm:$0xff]
    %v6115 = vld [vmem:[%s10 + $0x3f8] sm:$0xff]
    %v6116 = vrot.slane %v4851, 4
    %v6117 = vsel %vm4755, %v6116, 0
    %6119 = vmatprep.subr.mxu0 0.0
    %6120 = vmatpush1.msra.mxu0 0.0
    %6121 = vmatprep.subr.mxu0 0.0
    %6122 = vmatpush1.msra.mxu0 0.0
    %6123 = vmatprep.subr.mxu0 0.0
    %6124 = vmatpush1.msra.mxu0 0.0
    %6125 = vmatprep.subr.mxu0 0.0
    %6126 = vmatpush1.msra.mxu0 0.0
    %6127 = vmatprep.subr.mxu0 0.0
    %6128 = vmatpush1.msra.mxu0 0.0
    %6129 = vmatprep.subr.mxu0 0.0
    %6130 = vmatpush1.msra.mxu0 0.0
    %6131 = vmatprep.subr.mxu0 0.0
    %6132 = vmatpush1.msra.mxu0 0.0
    %6133 = vmatprep.subr.mxu0 0.0
    %6134 = vmatpush1.msra.mxu0 0.0
    %6135 = vmatprep.subr.mxu0 0.0
    %6136 = vmatpush1.msra.mxu0 0.0
    %6137 = vmatprep.subr.mxu0 0.0
    %6138 = vmatpush1.msra.mxu0 0.0
    %6139 = vmatprep.subr.mxu0 0.0
    %6140 = vmatpush1.msra.mxu0 0.0
    %6141 = vmatprep.subr.mxu0 0.0
    %6142 = vmatpush1.msra.mxu0 0.0
    %6143 = vmatprep.subr.mxu0 %v6115
    %6144 = vmatpush1.msra.mxu0 %v6114
    %6145 = vmatprep.subr.mxu0 %v6113
    %6146 = vmatpush1.msra.mxu0 %v6112
    %6147 = vmatprep.subr.mxu0 %v6111
    %6148 = vmatpush1.msra.mxu0 %v6110
    %6149 = vmatprep.subr.mxu0 %v6109
    %6150 = vmatpush1.msra.mxu0 %v6108
    %6151 = vmatprep.subr.mxu0 0.0
    %6152 = vmatpush2.msra.mxu0 0.0
    %6153 = vmatprep.subr.mxu0 0.0
    %6154 = vmatpush2.msra.mxu0 0.0
    %6155 = vmatprep.subr.mxu0 0.0
    %6156 = vmatpush2.msra.mxu0 0.0
    %6157 = vmatprep.subr.mxu0 0.0
    %6158 = vmatpush2.msra.mxu0 0.0
    %6159 = vmatprep.subr.mxu0 0.0
    %6160 = vmatpush2.msra.mxu0 0.0
    %6161 = vmatprep.subr.mxu0 0.0
    %6162 = vmatpush2.msra.mxu0 0.0
    %6163 = vmatprep.subr.mxu0 0.0
    %6164 = vmatpush2.msra.mxu0 0.0
    %6165 = vmatprep.subr.mxu0 0.0
    %6166 = vmatpush2.msra.mxu0 0.0
    %6167 = vmatprep.subr.mxu0 0.0
    %6168 = vmatpush2.msra.mxu0 0.0
    %6169 = vmatprep.subr.mxu0 0.0
    %6170 = vmatpush2.msra.mxu0 0.0
    %6171 = vmatprep.subr.mxu0 0.0
    %6172 = vmatpush2.msra.mxu0 0.0
    %6173 = vmatprep.subr.mxu0 0.0
    %6174 = vmatpush2.msra.mxu0 0.0
    %6175 = vmatprep.subr.mxu0 0.0
    %6176 = vmatpush2.msra.mxu0 0.0
    %6177 = vmatprep.subr.mxu0 0.0
    %6178 = vmatpush2.msra.mxu0 0.0
    %6179 = vmatprep.subr.mxu0 0.0
    %6180 = vmatpush2.msra.mxu0 0.0
    %6181 = vmatprep.subr.mxu0 0.0
    %6182 = vmatpush2.msra.mxu0 0.0
    %6183 = vmatprep.mubr.f32.mxu0 0.0
    %6184 = vmatmul.mubr.f32.gmra.mxu0 %v6117
    %v6185 = vpop.f32.mrf.mxu0
    %v6186 = vadd.f32 0.0, %v6185
    %v6187 = vpop.f32.mrf.mxu0
    %v6188 = vadd.f32 0.0, %v6187
    %6189 = vdwg.mxu0
    %v6190 = vadd.f32 %v6106, %v6186
    %v6191 = vadd.f32 %v6107, %v6188
    %v6192 = vld [vmem:[%s12] sm:$0x3]
    %v6194 = vlaneseq
    %v6195 = vshrl.u32 %v6194, 7
    %v6196 = vsub.s32 0, %v6195
    %v6197 = vrot.slane %v6192, %v6196
    %v6198 = vlaneseq
    %v6199 = vshrl.u32 %v6198, 7
    %v6200 = vsub.s32 1, %v6199
    %v6201 = vrot.slane %v6192, %v6200
    %v6204 = vadd.f32 %v6190, %v6197
    %v6205 = vadd.f32 %v6191, %v6201
    %v6206 = vld [vmem:[%s11] sm:$0xff]
    %v6207 = vld [vmem:[%s11 + $0x8] sm:$0xff]
    %v6208 = vld [vmem:[%s11 + $0x10] sm:$0xff]
    %v6209 = vld [vmem:[%s11 + $0x18] sm:$0xff]
    %v6210 = vld [vmem:[%s11 + $0x20] sm:$0xff]
    %v6211 = vld [vmem:[%s11 + $0x28] sm:$0xff]
    %v6212 = vld [vmem:[%s11 + $0x30] sm:$0xff]
    %v6213 = vld [vmem:[%s11 + $0x38] sm:$0xff]
    %v6214 = vld [vmem:[%s11 + $0x40] sm:$0xff]
    %v6215 = vld [vmem:[%s11 + $0x48] sm:$0xff]
    %v6216 = vld [vmem:[%s11 + $0x50] sm:$0xff]
    %v6217 = vld [vmem:[%s11 + $0x58] sm:$0xff]
    %v6218 = vld [vmem:[%s11 + $0x60] sm:$0xff]
    %v6219 = vld [vmem:[%s11 + $0x68] sm:$0xff]
    %v6220 = vld [vmem:[%s11 + $0x70] sm:$0xff]
    %v6221 = vld [vmem:[%s11 + $0x78] sm:$0xff]
    %vm6222 = vcmask 523264
    %v6224 = vsel %vm6222, 0.0, 0
    %6226 = vmatprep.subr.mxu0 0.0
    %6227 = vmatpush1.msra.mxu0 0.0
    %6228 = vmatprep.subr.mxu0 0.0
    %6229 = vmatpush1.msra.mxu0 0.0
    %6230 = vmatprep.subr.mxu0 0.0
    %6231 = vmatpush1.msra.mxu0 0.0
    %6232 = vmatprep.subr.mxu0 0.0
    %6233 = vmatpush1.msra.mxu0 0.0
    %6234 = vmatprep.subr.mxu0 0.0
    %6235 = vmatpush1.msra.mxu0 0.0
    %6236 = vmatprep.subr.mxu0 0.0
    %6237 = vmatpush1.msra.mxu0 0.0
    %6238 = vmatprep.subr.mxu0 0.0
    %6239 = vmatpush1.msra.mxu0 0.0
    %6240 = vmatprep.subr.mxu0 0.0
    %6241 = vmatpush1.msra.mxu0 0.0
    %6242 = vmatprep.subr.mxu0 %v6221
    %6243 = vmatpush1.msra.mxu0 %v6220
    %6244 = vmatprep.subr.mxu0 %v6219
    %6245 = vmatpush1.msra.mxu0 %v6218
    %6246 = vmatprep.subr.mxu0 %v6217
    %6247 = vmatpush1.msra.mxu0 %v6216
    %6248 = vmatprep.subr.mxu0 %v6215
    %6249 = vmatpush1.msra.mxu0 %v6214
    %6250 = vmatprep.subr.mxu0 %v6213
    %6251 = vmatpush1.msra.mxu0 %v6212
    %6252 = vmatprep.subr.mxu0 %v6211
    %6253 = vmatpush1.msra.mxu0 %v6210
    %6254 = vmatprep.subr.mxu0 %v6209
    %6255 = vmatpush1.msra.mxu0 %v6208
    %6256 = vmatprep.subr.mxu0 %v6207
    %6257 = vmatpush1.msra.mxu0 %v6206
    %6258 = vmatprep.subr.mxu0 0.0
    %6259 = vmatpush2.msra.mxu0 0.0
    %6260 = vmatprep.subr.mxu0 0.0
    %6261 = vmatpush2.msra.mxu0 0.0
    %6262 = vmatprep.subr.mxu0 0.0
    %6263 = vmatpush2.msra.mxu0 0.0
    %6264 = vmatprep.subr.mxu0 0.0
    %6265 = vmatpush2.msra.mxu0 0.0
    %6266 = vmatprep.subr.mxu0 0.0
    %6267 = vmatpush2.msra.mxu0 0.0
    %6268 = vmatprep.subr.mxu0 0.0
    %6269 = vmatpush2.msra.mxu0 0.0
    %6270 = vmatprep.subr.mxu0 0.0
    %6271 = vmatpush2.msra.mxu0 0.0
    %6272 = vmatprep.subr.mxu0 0.0
    %6273 = vmatpush2.msra.mxu0 0.0
    %6274 = vmatprep.subr.mxu0 0.0
    %6275 = vmatpush2.msra.mxu0 0.0
    %6276 = vmatprep.subr.mxu0 0.0
    %6277 = vmatpush2.msra.mxu0 0.0
    %6278 = vmatprep.subr.mxu0 0.0
    %6279 = vmatpush2.msra.mxu0 0.0
    %6280 = vmatprep.subr.mxu0 0.0
    %6281 = vmatpush2.msra.mxu0 0.0
    %6282 = vmatprep.subr.mxu0 0.0
    %6283 = vmatpush2.msra.mxu0 0.0
    %6284 = vmatprep.subr.mxu0 0.0
    %6285 = vmatpush2.msra.mxu0 0.0
    %6286 = vmatprep.subr.mxu0 0.0
    %6287 = vmatpush2.msra.mxu0 0.0
    %6288 = vmatprep.subr.mxu0 0.0
    %6289 = vmatpush2.msra.mxu0 0.0
    %6290 = vmatprep.mubr.f32.mxu0 0.0
    %6291 = vmatmul.mubr.f32.gmra.mxu0 %v6224
    %v6292 = vpop.f32.mrf.mxu0
    %v6293 = vadd.f32 0.0, %v6292
    %v6294 = vpop.f32.mrf.mxu0
    %v6295 = vadd.f32 0.0, %v6294
    %6296 = vdwg.mxu0
    %v6297 = vadd.f32 %v6204, %v6293
    %v6298 = vadd.f32 %v6205, %v6295
    %v6299 = vxor.u32 %v6297, 2147483648
    %v6300 = vxor.u32 %v6298, 2147483648
    %v6301 = vmul.f32 %v6299, 1.442695
    %v6302 = vpow.pop %v6301
    %v6303 = vmul.f32 %v6300, 1.442695
    %v6304 = vpow.pop %v6303
    %v6305 = vadd.f32 %v6302, 1.0
    %v6306 = vadd.f32 %v6304, 1.0
    %v6307 = vrcp.pop %v6305
    %v6308 = vmul.f32 1.0, %v6307
    %v6309 = vrcp.pop %v6306
    %v6310 = vmul.f32 1.0, %v6309
    %v6311 = vtanh.pop %v6298
    %v6312 = vmul.f32 %v6308, 0.0
    %6314 = vrot.lane.b32.xlu0 %v6311, 64
    %v6315 = vpop.permute.xlu0 %6314
    %v6317 = vmul.f32 %v6308, %v6315
    %6319 = vrot.lane.b32.xlu0 %v6317, 64
    %v6320 = vpop.permute.xlu0 %6319
    %v6322 = vadd.f32 %v6312, %v6320
    %v6323 = vtanh.pop %v6322
    %6325 = vrot.lane.b32.xlu0 %v6323, 64
    %v6326 = vpop.permute.xlu0 %6325
    %v6328 = vmul.f32 %v6310, %v6326
    %v6330 = vsel %vm6222, %v6328, 0
    %6332 = vmatprep.subr.mxu0 0.0
    %6333 = vmatpush1.msra.mxu0 0.0
    %6334 = vmatprep.subr.mxu0 0.0
    %6335 = vmatpush1.msra.mxu0 0.0
    %6336 = vmatprep.subr.mxu0 0.0
    %6337 = vmatpush1.msra.mxu0 0.0
    %6338 = vmatprep.subr.mxu0 0.0
    %6339 = vmatpush1.msra.mxu0 0.0
    %6340 = vmatprep.subr.mxu0 0.0
    %6341 = vmatpush1.msra.mxu0 0.0
    %6342 = vmatprep.subr.mxu0 0.0
    %6343 = vmatpush1.msra.mxu0 0.0
    %6344 = vmatprep.subr.mxu0 0.0
    %6345 = vmatpush1.msra.mxu0 0.0
    %6346 = vmatprep.subr.mxu0 0.0
    %6347 = vmatpush1.msra.mxu0 0.0
    %6348 = vmatprep.subr.mxu0 %v6221
    %6349 = vmatpush1.msra.mxu0 %v6220
    %6350 = vmatprep.subr.mxu0 %v6219
    %6351 = vmatpush1.msra.mxu0 %v6218
    %6352 = vmatprep.subr.mxu0 %v6217
    %6353 = vmatpush1.msra.mxu0 %v6216
    %6354 = vmatprep.subr.mxu0 %v6215
    %6355 = vmatpush1.msra.mxu0 %v6214
    %6356 = vmatprep.subr.mxu0 %v6213
    %6357 = vmatpush1.msra.mxu0 %v6212
    %6358 = vmatprep.subr.mxu0 %v6211
    %6359 = vmatpush1.msra.mxu0 %v6210
    %6360 = vmatprep.subr.mxu0 %v6209
    %6361 = vmatpush1.msra.mxu0 %v6208
    %6362 = vmatprep.subr.mxu0 %v6207
    %6363 = vmatpush1.msra.mxu0 %v6206
    %6364 = vmatprep.subr.mxu0 0.0
    %6365 = vmatpush2.msra.mxu0 0.0
    %6366 = vmatprep.subr.mxu0 0.0
    %6367 = vmatpush2.msra.mxu0 0.0
    %6368 = vmatprep.subr.mxu0 0.0
    %6369 = vmatpush2.msra.mxu0 0.0
    %6370 = vmatprep.subr.mxu0 0.0
    %6371 = vmatpush2.msra.mxu0 0.0
    %6372 = vmatprep.subr.mxu0 0.0
    %6373 = vmatpush2.msra.mxu0 0.0
    %6374 = vmatprep.subr.mxu0 0.0
    %6375 = vmatpush2.msra.mxu0 0.0
    %6376 = vmatprep.subr.mxu0 0.0
    %6377 = vmatpush2.msra.mxu0 0.0
    %6378 = vmatprep.subr.mxu0 0.0
    %6379 = vmatpush2.msra.mxu0 0.0
    %6380 = vmatprep.subr.mxu0 0.0
    %6381 = vmatpush2.msra.mxu0 0.0
    %6382 = vmatprep.subr.mxu0 0.0
    %6383 = vmatpush2.msra.mxu0 0.0
    %6384 = vmatprep.subr.mxu0 0.0
    %6385 = vmatpush2.msra.mxu0 0.0
    %6386 = vmatprep.subr.mxu0 0.0
    %6387 = vmatpush2.msra.mxu0 0.0
    %6388 = vmatprep.subr.mxu0 0.0
    %6389 = vmatpush2.msra.mxu0 0.0
    %6390 = vmatprep.subr.mxu0 0.0
    %6391 = vmatpush2.msra.mxu0 0.0
    %6392 = vmatprep.subr.mxu0 0.0
    %6393 = vmatpush2.msra.mxu0 0.0
    %6394 = vmatprep.subr.mxu0 0.0
    %6395 = vmatpush2.msra.mxu0 0.0
    %6396 = vmatprep.mubr.f32.mxu0 0.0
    %6397 = vmatmul.mubr.f32.gmra.mxu0 %v6330
    %v6398 = vpop.f32.mrf.mxu0
    %v6399 = vadd.f32 0.0, %v6398
    %v6400 = vpop.f32.mrf.mxu0
    %v6401 = vadd.f32 0.0, %v6400
    %6402 = vdwg.mxu0
    %v6405 = vrot.slane %v6399, 7
    %v6406 = vrot.slane %v6401, 7
    %v6409 = vadd.f32 %v6204, %v6405
    %v6410 = vadd.f32 %v6205, %v6406
    %v6411 = vxor.u32 %v6409, 2147483648
    %v6412 = vxor.u32 %v6410, 2147483648
    %v6413 = vmul.f32 %v6411, 1.442695
    %v6414 = vpow.pop %v6413
    %v6415 = vmul.f32 %v6412, 1.442695
    %v6416 = vpow.pop %v6415
    %v6417 = vadd.f32 %v6414, 1.0
    %v6418 = vadd.f32 %v6416, 1.0
    %v6419 = vrcp.pop %v6417
    %v6420 = vmul.f32 1.0, %v6419
    %v6421 = vrcp.pop %v6418
    %v6422 = vmul.f32 1.0, %v6421
    %v6423 = vtanh.pop %v6410
    %v6425 = vrot.slane %v6322, 7
    %v6427 = vmul.f32 %v6420, %v6425
    %6429 = vrot.lane.b32.xlu0 %v6423, 64
    %v6430 = vpop.permute.xlu0 %6429
    %v6432 = vmul.f32 %v6420, %v6430
    %6434 = vrot.lane.b32.xlu0 %v6432, 64
    %v6435 = vpop.permute.xlu0 %6434
    %v6437 = vadd.f32 %v6427, %v6435
    %v6438 = vtanh.pop %v6437
    %6440 = vrot.lane.b32.xlu0 %v6438, 64
    %v6441 = vpop.permute.xlu0 %6440
    %v6443 = vmul.f32 %v6422, %v6441
    %v6445 = vrot.slane %v6443, 1
    %v6446 = vsel %vm6222, %v6445, 0
    %6448 = vmatprep.subr.mxu0 0.0
    %6449 = vmatpush1.msra.mxu0 0.0
    %6450 = vmatprep.subr.mxu0 0.0
    %6451 = vmatpush1.msra.mxu0 0.0
    %6452 = vmatprep.subr.mxu0 0.0
    %6453 = vmatpush1.msra.mxu0 0.0
    %6454 = vmatprep.subr.mxu0 0.0
    %6455 = vmatpush1.msra.mxu0 0.0
    %6456 = vmatprep.subr.mxu0 0.0
    %6457 = vmatpush1.msra.mxu0 0.0
    %6458 = vmatprep.subr.mxu0 0.0
    %6459 = vmatpush1.msra.mxu0 0.0
    %6460 = vmatprep.subr.mxu0 0.0
    %6461 = vmatpush1.msra.mxu0 0.0
    %6462 = vmatprep.subr.mxu0 0.0
    %6463 = vmatpush1.msra.mxu0 0.0
    %6464 = vmatprep.subr.mxu0 %v6221
    %6465 = vmatpush1.msra.mxu0 %v6220
    %6466 = vmatprep.subr.mxu0 %v6219
    %6467 = vmatpush1.msra.mxu0 %v6218
    %6468 = vmatprep.subr.mxu0 %v6217
    %6469 = vmatpush1.msra.mxu0 %v6216
    %6470 = vmatprep.subr.mxu0 %v6215
    %6471 = vmatpush1.msra.mxu0 %v6214
    %6472 = vmatprep.subr.mxu0 %v6213
    %6473 = vmatpush1.msra.mxu0 %v6212
    %6474 = vmatprep.subr.mxu0 %v6211
    %6475 = vmatpush1.msra.mxu0 %v6210
    %6476 = vmatprep.subr.mxu0 %v6209
    %6477 = vmatpush1.msra.mxu0 %v6208
    %6478 = vmatprep.subr.mxu0 %v6207
    %6479 = vmatpush1.msra.mxu0 %v6206
    %6480 = vmatprep.subr.mxu0 0.0
    %6481 = vmatpush2.msra.mxu0 0.0
    %6482 = vmatprep.subr.mxu0 0.0
    %6483 = vmatpush2.msra.mxu0 0.0
    %6484 = vmatprep.subr.mxu0 0.0
    %6485 = vmatpush2.msra.mxu0 0.0
    %6486 = vmatprep.subr.mxu0 0.0
    %6487 = vmatpush2.msra.mxu0 0.0
    %6488 = vmatprep.subr.mxu0 0.0
    %6489 = vmatpush2.msra.mxu0 0.0
    %6490 = vmatprep.subr.mxu0 0.0
    %6491 = vmatpush2.msra.mxu0 0.0
    %6492 = vmatprep.subr.mxu0 0.0
    %6493 = vmatpush2.msra.mxu0 0.0
    %6494 = vmatprep.subr.mxu0 0.0
    %6495 = vmatpush2.msra.mxu0 0.0
    %6496 = vmatprep.subr.mxu0 0.0
    %6497 = vmatpush2.msra.mxu0 0.0
    %6498 = vmatprep.subr.mxu0 0.0
    %6499 = vmatpush2.msra.mxu0 0.0
    %6500 = vmatprep.subr.mxu0 0.0
    %6501 = vmatpush2.msra.mxu0 0.0
    %6502 = vmatprep.subr.mxu0 0.0
    %6503 = vmatpush2.msra.mxu0 0.0
    %6504 = vmatprep.subr.mxu0 0.0
    %6505 = vmatpush2.msra.mxu0 0.0
    %6506 = vmatprep.subr.mxu0 0.0
    %6507 = vmatpush2.msra.mxu0 0.0
    %6508 = vmatprep.subr.mxu0 0.0
    %6509 = vmatpush2.msra.mxu0 0.0
    %6510 = vmatprep.subr.mxu0 0.0
    %6511 = vmatpush2.msra.mxu0 0.0
    %6512 = vmatprep.mubr.f32.mxu0 0.0
    %6513 = vmatmul.mubr.f32.gmra.mxu0 %v6446
    %v6514 = vpop.f32.mrf.mxu0
    %v6515 = vadd.f32 0.0, %v6514
    %v6516 = vpop.f32.mrf.mxu0
    %v6517 = vadd.f32 0.0, %v6516
    %6518 = vdwg.mxu0
    %v6521 = vrot.slane %v6515, 6
    %v6522 = vrot.slane %v6517, 6
    %v6525 = vadd.f32 %v6204, %v6521
    %v6526 = vadd.f32 %v6205, %v6522
    %v6527 = vxor.u32 %v6525, 2147483648
    %v6528 = vxor.u32 %v6526, 2147483648
    %v6529 = vmul.f32 %v6527, 1.442695
    %v6530 = vpow.pop %v6529
    %v6531 = vmul.f32 %v6528, 1.442695
    %v6532 = vpow.pop %v6531
    %v6533 = vadd.f32 %v6530, 1.0
    %v6534 = vadd.f32 %v6532, 1.0
    %v6535 = vrcp.pop %v6533
    %v6536 = vmul.f32 1.0, %v6535
    %v6537 = vrcp.pop %v6534
    %v6538 = vmul.f32 1.0, %v6537
    %v6539 = vtanh.pop %v6526
    %v6541 = vrot.slane %v6437, 7
    %v6543 = vmul.f32 %v6536, %v6541
    %6545 = vrot.lane.b32.xlu0 %v6539, 64
    %v6546 = vpop.permute.xlu0 %6545
    %v6548 = vmul.f32 %v6536, %v6546
    %6550 = vrot.lane.b32.xlu0 %v6548, 64
    %v6551 = vpop.permute.xlu0 %6550
    %v6553 = vadd.f32 %v6543, %v6551
    %v6554 = vtanh.pop %v6553
    %6556 = vrot.lane.b32.xlu0 %v6554, 64
    %v6557 = vpop.permute.xlu0 %6556
    %v6559 = vmul.f32 %v6538, %v6557
    %v6561 = vrot.slane %v6559, 2
    %v6562 = vsel %vm6222, %v6561, 0
    %6564 = vmatprep.subr.mxu0 0.0
    %6565 = vmatpush1.msra.mxu0 0.0
    %6566 = vmatprep.subr.mxu0 0.0
    %6567 = vmatpush1.msra.mxu0 0.0
    %6568 = vmatprep.subr.mxu0 0.0
    %6569 = vmatpush1.msra.mxu0 0.0
    %6570 = vmatprep.subr.mxu0 0.0
    %6571 = vmatpush1.msra.mxu0 0.0
    %6572 = vmatprep.subr.mxu0 0.0
    %6573 = vmatpush1.msra.mxu0 0.0
    %6574 = vmatprep.subr.mxu0 0.0
    %6575 = vmatpush1.msra.mxu0 0.0
    %6576 = vmatprep.subr.mxu0 0.0
    %6577 = vmatpush1.msra.mxu0 0.0
    %6578 = vmatprep.subr.mxu0 0.0
    %6579 = vmatpush1.msra.mxu0 0.0
    %6580 = vmatprep.subr.mxu0 %v6221
    %6581 = vmatpush1.msra.mxu0 %v6220
    %6582 = vmatprep.subr.mxu0 %v6219
    %6583 = vmatpush1.msra.mxu0 %v6218
    %6584 = vmatprep.subr.mxu0 %v6217
    %6585 = vmatpush1.msra.mxu0 %v6216
    %6586 = vmatprep.subr.mxu0 %v6215
    %6587 = vmatpush1.msra.mxu0 %v6214
    %6588 = vmatprep.subr.mxu0 %v6213
    %6589 = vmatpush1.msra.mxu0 %v6212
    %6590 = vmatprep.subr.mxu0 %v6211
    %6591 = vmatpush1.msra.mxu0 %v6210
    %6592 = vmatprep.subr.mxu0 %v6209
    %6593 = vmatpush1.msra.mxu0 %v6208
    %6594 = vmatprep.subr.mxu0 %v6207
    %6595 = vmatpush1.msra.mxu0 %v6206
    %6596 = vmatprep.subr.mxu0 0.0
    %6597 = vmatpush2.msra.mxu0 0.0
    %6598 = vmatprep.subr.mxu0 0.0
    %6599 = vmatpush2.msra.mxu0 0.0
    %6600 = vmatprep.subr.mxu0 0.0
    %6601 = vmatpush2.msra.mxu0 0.0
    %6602 = vmatprep.subr.mxu0 0.0
    %6603 = vmatpush2.msra.mxu0 0.0
    %6604 = vmatprep.subr.mxu0 0.0
    %6605 = vmatpush2.msra.mxu0 0.0
    %6606 = vmatprep.subr.mxu0 0.0
    %6607 = vmatpush2.msra.mxu0 0.0
    %6608 = vmatprep.subr.mxu0 0.0
    %6609 = vmatpush2.msra.mxu0 0.0
    %6610 = vmatprep.subr.mxu0 0.0
    %6611 = vmatpush2.msra.mxu0 0.0
    %6612 = vmatprep.subr.mxu0 0.0
    %6613 = vmatpush2.msra.mxu0 0.0
    %6614 = vmatprep.subr.mxu0 0.0
    %6615 = vmatpush2.msra.mxu0 0.0
    %6616 = vmatprep.subr.mxu0 0.0
    %6617 = vmatpush2.msra.mxu0 0.0
    %6618 = vmatprep.subr.mxu0 0.0
    %6619 = vmatpush2.msra.mxu0 0.0
    %6620 = vmatprep.subr.mxu0 0.0
    %6621 = vmatpush2.msra.mxu0 0.0
    %6622 = vmatprep.subr.mxu0 0.0
    %6623 = vmatpush2.msra.mxu0 0.0
    %6624 = vmatprep.subr.mxu0 0.0
    %6625 = vmatpush2.msra.mxu0 0.0
    %6626 = vmatprep.subr.mxu0 0.0
    %6627 = vmatpush2.msra.mxu0 0.0
    %6628 = vmatprep.mubr.f32.mxu0 0.0
    %6629 = vmatmul.mubr.f32.gmra.mxu0 %v6562
    %v6630 = vpop.f32.mrf.mxu0
    %v6631 = vadd.f32 0.0, %v6630
    %v6632 = vpop.f32.mrf.mxu0
    %v6633 = vadd.f32 0.0, %v6632
    %6634 = vdwg.mxu0
    %v6637 = vrot.slane %v6631, 5
    %v6638 = vrot.slane %v6633, 5
    %v6641 = vadd.f32 %v6204, %v6637
    %v6642 = vadd.f32 %v6205, %v6638
    %v6643 = vxor.u32 %v6641, 2147483648
    %v6644 = vxor.u32 %v6642, 2147483648
    %v6645 = vmul.f32 %v6643, 1.442695
    %v6646 = vpow.pop %v6645
    %v6647 = vmul.f32 %v6644, 1.442695
    %v6648 = vpow.pop %v6647
    %v6649 = vadd.f32 %v6646, 1.0
    %v6650 = vadd.f32 %v6648, 1.0
    %v6651 = vrcp.pop %v6649
    %v6652 = vmul.f32 1.0, %v6651
    %v6653 = vrcp.pop %v6650
    %v6654 = vmul.f32 1.0, %v6653
    %v6655 = vtanh.pop %v6642
    %v6657 = vrot.slane %v6553, 7
    %v6659 = vmul.f32 %v6652, %v6657
    %6661 = vrot.lane.b32.xlu0 %v6655, 64
    %v6662 = vpop.permute.xlu0 %6661
    %v6664 = vmul.f32 %v6652, %v6662
    %6666 = vrot.lane.b32.xlu0 %v6664, 64
    %v6667 = vpop.permute.xlu0 %6666
    %v6669 = vadd.f32 %v6659, %v6667
    %v6670 = vtanh.pop %v6669
    %6672 = vrot.lane.b32.xlu0 %v6670, 64
    %v6673 = vpop.permute.xlu0 %6672
    %v6675 = vmul.f32 %v6654, %v6673
    %vm6676 = vcmask 1040384
    %v6677 = vsel %vm6676, %v6328, %v6443
    %vm6678 = vcmask 1041408
    %v6679 = vsel %vm6678, %v6677, %v6559
    %vm6680 = vcmask 1042432
    %v6681 = vsel %vm6680, %v6679, %v6675
    %v6682 = vld [vmem:[%s13] sm:$0xff]
    %v6683 = vld [vmem:[%s13 + $0x8] sm:$0xff]
    %v6684 = vld [vmem:[%s13 + $0x10] sm:$0xff]
    %v6685 = vld [vmem:[%s13 + $0x18] sm:$0xff]
    %v6686 = vld [vmem:[%s13 + $0x20] sm:$0xff]
    %v6687 = vld [vmem:[%s13 + $0x28] sm:$0xff]
    %v6688 = vld [vmem:[%s13 + $0x30] sm:$0xff]
    %v6689 = vld [vmem:[%s13 + $0x38] sm:$0xff]
    %v6690 = vld [vmem:[%s14] sm:$0x1]
    %v6692 = vlaneseq
    %v6693 = vshrl.u32 %v6692, 7
    %v6694 = vsub.s32 0, %v6693
    %v6695 = vrot.slane %v6690, %v6694
    %v6698 = vsel %vm6222, %v6681, 0
    %6700 = vmatprep.subr.mxu0 0.0
    %6701 = vmatpush1.msra.mxu0 0.0
    %6702 = vmatprep.subr.mxu0 0.0
    %6703 = vmatpush1.msra.mxu0 0.0
    %6704 = vmatprep.subr.mxu0 0.0
    %6705 = vmatpush1.msra.mxu0 0.0
    %6706 = vmatprep.subr.mxu0 0.0
    %6707 = vmatpush1.msra.mxu0 0.0
    %6708 = vmatprep.subr.mxu0 0.0
    %6709 = vmatpush1.msra.mxu0 0.0
    %6710 = vmatprep.subr.mxu0 0.0
    %6711 = vmatpush1.msra.mxu0 0.0
    %6712 = vmatprep.subr.mxu0 0.0
    %6713 = vmatpush1.msra.mxu0 0.0
    %6714 = vmatprep.subr.mxu0 0.0
    %6715 = vmatpush1.msra.mxu0 0.0
    %6716 = vmatprep.subr.mxu0 0.0
    %6717 = vmatpush1.msra.mxu0 %v6689
    %6718 = vmatprep.subr.mxu0 0.0
    %6719 = vmatpush1.msra.mxu0 %v6688
    %6720 = vmatprep.subr.mxu0 0.0
    %6721 = vmatpush1.msra.mxu0 %v6687
    %6722 = vmatprep.subr.mxu0 0.0
    %6723 = vmatpush1.msra.mxu0 %v6686
    %6724 = vmatprep.subr.mxu0 0.0
    %6725 = vmatpush1.msra.mxu0 %v6685
    %6726 = vmatprep.subr.mxu0 0.0
    %6727 = vmatpush1.msra.mxu0 %v6684
    %6728 = vmatprep.subr.mxu0 0.0
    %6729 = vmatpush1.msra.mxu0 %v6683
    %6730 = vmatprep.subr.mxu0 0.0
    %6731 = vmatpush1.msra.mxu0 %v6682
    %6732 = vmatprep.subr.mxu0 0.0
    %6733 = vmatpush2.msra.mxu0 0.0
    %6734 = vmatprep.subr.mxu0 0.0
    %6735 = vmatpush2.msra.mxu0 0.0
    %6736 = vmatprep.subr.mxu0 0.0
    %6737 = vmatpush2.msra.mxu0 0.0
    %6738 = vmatprep.subr.mxu0 0.0
    %6739 = vmatpush2.msra.mxu0 0.0
    %6740 = vmatprep.subr.mxu0 0.0
    %6741 = vmatpush2.msra.mxu0 0.0
    %6742 = vmatprep.subr.mxu0 0.0
    %6743 = vmatpush2.msra.mxu0 0.0
    %6744 = vmatprep.subr.mxu0 0.0
    %6745 = vmatpush2.msra.mxu0 0.0
    %6746 = vmatprep.subr.mxu0 0.0
    %6747 = vmatpush2.msra.mxu0 0.0
    %6748 = vmatprep.subr.mxu0 0.0
    %6749 = vmatpush2.msra.mxu0 0.0
    %6750 = vmatprep.subr.mxu0 0.0
    %6751 = vmatpush2.msra.mxu0 0.0
    %6752 = vmatprep.subr.mxu0 0.0
    %6753 = vmatpush2.msra.mxu0 0.0
    %6754 = vmatprep.subr.mxu0 0.0
    %6755 = vmatpush2.msra.mxu0 0.0
    %6756 = vmatprep.subr.mxu0 0.0
    %6757 = vmatpush2.msra.mxu0 0.0
    %6758 = vmatprep.subr.mxu0 0.0
    %6759 = vmatpush2.msra.mxu0 0.0
    %6760 = vmatprep.subr.mxu0 0.0
    %6761 = vmatpush2.msra.mxu0 0.0
    %6762 = vmatprep.subr.mxu0 0.0
    %6763 = vmatpush2.msra.mxu0 0.0
    %6764 = vmatprep.mubr.f32.mxu0 0.0
    %6765 = vmatmul.mubr.f32.gmra.mxu0 %v6698
    %v6766 = vpop.f32.mrf.mxu0
    %v6767 = vadd.f32 %v6695, %v6766
    %v6768 = vpop.f32.mrf.mxu0
    %6769 = vdwg.mxu0
    %v6770 = vmax.f32 %v6767, 0.0
    %v6771 = vld [vmem:[%s15] sm:$0xff]
    %v6772 = vld [vmem:[%s15 + $0x8] sm:$0xff]
    %v6773 = vld [vmem:[%s15 + $0x10] sm:$0xff]
    %v6774 = vld [vmem:[%s15 + $0x18] sm:$0xff]
    %v6775 = vld [vmem:[%s16] sm:$0x1]
    %v6777 = vlaneseq
    %v6778 = vshrl.u32 %v6777, 7
    %v6779 = vsub.s32 0, %v6778
    %v6780 = vrot.slane %v6775, %v6779
    %v6783 = vsel %vm4755, %v6770, 0
    %6785 = vmatprep.subr.mxu0 0.0
    %6786 = vmatpush1.msra.mxu0 0.0
    %6787 = vmatprep.subr.mxu0 0.0
    %6788 = vmatpush1.msra.mxu0 0.0
    %6789 = vmatprep.subr.mxu0 0.0
    %6790 = vmatpush1.msra.mxu0 0.0
    %6791 = vmatprep.subr.mxu0 0.0
    %6792 = vmatpush1.msra.mxu0 0.0
    %6793 = vmatprep.subr.mxu0 0.0
    %6794 = vmatpush1.msra.mxu0 0.0
    %6795 = vmatprep.subr.mxu0 0.0
    %6796 = vmatpush1.msra.mxu0 0.0
    %6797 = vmatprep.subr.mxu0 0.0
    %6798 = vmatpush1.msra.mxu0 0.0
    %6799 = vmatprep.subr.mxu0 0.0
    %6800 = vmatpush1.msra.mxu0 0.0
    %6801 = vmatprep.subr.mxu0 0.0
    %6802 = vmatpush1.msra.mxu0 0.0
    %6803 = vmatprep.subr.mxu0 0.0
    %6804 = vmatpush1.msra.mxu0 0.0
    %6805 = vmatprep.subr.mxu0 0.0
    %6806 = vmatpush1.msra.mxu0 0.0
    %6807 = vmatprep.subr.mxu0 0.0
    %6808 = vmatpush1.msra.mxu0 0.0
    %6809 = vmatprep.subr.mxu0 0.0
    %6810 = vmatpush1.msra.mxu0 %v6774
    %6811 = vmatprep.subr.mxu0 0.0
    %6812 = vmatpush1.msra.mxu0 %v6773
    %6813 = vmatprep.subr.mxu0 0.0
    %6814 = vmatpush1.msra.mxu0 %v6772
    %6815 = vmatprep.subr.mxu0 0.0
    %6816 = vmatpush1.msra.mxu0 %v6771
    %6817 = vmatprep.subr.mxu0 0.0
    %6818 = vmatpush2.msra.mxu0 0.0
    %6819 = vmatprep.subr.mxu0 0.0
    %6820 = vmatpush2.msra.mxu0 0.0
    %6821 = vmatprep.subr.mxu0 0.0
    %6822 = vmatpush2.msra.mxu0 0.0
    %6823 = vmatprep.subr.mxu0 0.0
    %6824 = vmatpush2.msra.mxu0 0.0
    %6825 = vmatprep.subr.mxu0 0.0
    %6826 = vmatpush2.msra.mxu0 0.0
    %6827 = vmatprep.subr.mxu0 0.0
    %6828 = vmatpush2.msra.mxu0 0.0
    %6829 = vmatprep.subr.mxu0 0.0
    %6830 = vmatpush2.msra.mxu0 0.0
    %6831 = vmatprep.subr.mxu0 0.0
    %6832 = vmatpush2.msra.mxu0 0.0
    %6833 = vmatprep.subr.mxu0 0.0
    %6834 = vmatpush2.msra.mxu0 0.0
    %6835 = vmatprep.subr.mxu0 0.0
    %6836 = vmatpush2.msra.mxu0 0.0
    %6837 = vmatprep.subr.mxu0 0.0
    %6838 = vmatpush2.msra.mxu0 0.0
    %6839 = vmatprep.subr.mxu0 0.0
    %6840 = vmatpush2.msra.mxu0 0.0
    %6841 = vmatprep.subr.mxu0 0.0
    %6842 = vmatpush2.msra.mxu0 0.0
    %6843 = vmatprep.subr.mxu0 0.0
    %6844 = vmatpush2.msra.mxu0 0.0
    %6845 = vmatprep.subr.mxu0 0.0
    %6846 = vmatpush2.msra.mxu0 0.0
    %6847 = vmatprep.subr.mxu0 0.0
    %6848 = vmatpush2.msra.mxu0 0.0
    %6849 = vmatprep.mubr.f32.mxu0 0.0
    %6850 = vmatmul.mubr.f32.gmra.mxu0 %v6783
    %v6851 = vpop.f32.mrf.mxu0
    %v6852 = vadd.f32 %v6780, %v6851
    %v6853 = vpop.f32.mrf.mxu0
    %6854 = vdwg.mxu0
    %vm6855 = vcmask 19456
    %v6856 = vsel %vm6855, %v6852, -inf
    %6857 = vmax.xlane.f32.xlu0 %v6856
    %v6858 = vpop.xlane.xlu0 %6857
    %v6859 = vsub.f32 %v6852, %v6858
    %v6860 = vmul.f32 %v6859, 1.442695
    %v6861 = vpow.pop %v6860
    %v6862 = vsel %vm6855, %v6861, 0.0
    %6863 = vadd.xlane.f32.xlu0 %v6862
    %v6864 = vpop.xlane.xlu0 %6863
    %v6865 = vrcp.pop %v6864
    %v6866 = vmul.f32 %v6861, %v6865
    %6867 = vst.msk [vmem:[#allocation2] sm:$0xf] %vm6855, %v6866
    // Predicated region
    $region70: #{classifier_forward.1} parent=1 // pred_check
      _
    $region71: #{classifier_forward.1} parent=1 // pred_check_branch
      %6869 = sbr.rel (0) target = $region73
    $region72: #{classifier_forward.1} parent=1 // pred_region
      %s6871 = ssub.s32 64, 64
      %6872 = vsyncadd [#allocation3], %s6871
      %s6874 = sshll.u32 [#allocation2], 4
      %s6875 = int_to_ptr.vmem [resolvable:$true] %s6874
      %6877 = dma.vmem_to_hbm [thread:$0]  %s6875, 64, %s17, [#allocation3]
    $region73: #{classifier_forward.1} parent=1 // pred_fallthru
      _
    // Predicated region
    $region74: #{classifier_forward.1} parent=1 // pred_check
      _
    $region75: #{classifier_forward.1} parent=1 // pred_check_branch
      %6879 = sbr.rel (0) target = $region77
    $region76: #{classifier_forward.1} parent=1 // pred_region
      %6880 = dma.done [#allocation3], 64
    $region77: #{classifier_forward.1} parent=1 // pred_fallthru
      _
    %6881 = vsyncpa [#allocation3], 1

</llo_original>
